<compile_context>
chip_gen: v6e
topology: v6e:2x2x1
jax: 0.10.0
libtpu: 0.0.40
codegen_flags: <defaults>
</compile_context>

<pallas_src>
import jax
import jax.numpy as jnp
from jax.experimental import pallas as pl
from jax.experimental.pallas import tpu as pltpu


def _round_up(x, m):
    return (x + m - 1) // m * m


# Conv1-output-row ordering (wrapper side).  Position p in [0,28) holds conv row
# ROW_ORDER1[p] so that:
#   * rows p and p+14 are a maxpool-H pair (2r, 2r+1)          -> pool1 H = one max
#   * pooled row chunks come out parity-grouped (even pool rows 0..6, odd 7..13)
#     -> every conv2 tap LHS is a single contiguous, aligned slice.
_ROW_ORDER1 = tuple(
    [4 * r + 0 for r in range(7)] +      # even conv rows, even pool rows
    [4 * r + 2 for r in range(7)] +      # even conv rows, odd  pool rows
    [4 * r + 1 for r in range(7)] +      # odd  conv rows, even pool rows
    [4 * r + 3 for r in range(7)]        # odd  conv rows, odd  pool rows
)


# ------------------------------- fused kernel ------------------------------- #

def _make_cnn_kernel(bt):
    """bt = images per grid step (multiple of 16)."""
    f32, bf16 = jnp.float32, jnp.bfloat16

    def kernel(xt_ref, b1_ref, t1_ref, b2_ref, t2_ref,
               wf1_ref, bf1_ref, wf2_ref, bf2_ref, o_ref):
        # ---- conv1 (5x5, BN scale folded): ONE matmul, K = 5 taps * 32 = 160 ----
        x = xt_ref[0]                                              # (28*bt, 160) bf16
        y1 = jnp.dot(x, b1_ref[...], preferred_element_type=f32)   # (28*bt, 1024) f32

        # ---- maxpool1 (2x2) fused with bias+relu (max commutes with both) ----
        h = jnp.maximum(y1[:14 * bt], y1[14 * bt:])                # H-pool (14*bt,1024)
        h = jnp.maximum(h[:, :512], h[:, 512:])                    # W-pool (14*bt, 512)
        p1 = jnp.maximum(h + t1_ref[...], 0.0).astype(bf16)        # bn bias + relu

        # ---- conv2 (3x3, BN scale folded): 3 tap matmuls per output-row parity ----
        accs = []
        for g in range(2):                                         # oh2 parity group
            acc = jnp.zeros((6 * bt, 512), f32)
            for i in range(3):                                     # kernel row (tap)
                t = g + i
                s = ((t & 1) * 7 + (t >> 1)) * bt                  # aligned chunk start
                acc = acc + jnp.dot(p1[s:s + 6 * bt, :], b2_ref[i],
                                    preferred_element_type=f32)
            accs.append(acc)

        # ---- maxpool2 (2x2) fused with bias+relu ----
        h2 = jnp.maximum(accs[0], accs[1])                         # H-pool (6*bt, 512)
        h2 = jnp.maximum(h2[:, :256], h2[:, 256:])                 # W-pool (6*bt, 256)
        feat = jnp.maximum(h2 + t2_ref[...], 0.0).astype(bf16)     # rows = (pool2 row, image)

        # ---- fc1 + relu (dropout = identity): 6 batched (bt,256)@(256,256) ----
        acc1 = jnp.zeros((bt, 256), f32)
        for r in range(6):                                         # pool2 row
            acc1 = acc1 + jnp.dot(feat[r * bt:(r + 1) * bt, :],
                                  wf1_ref[r * 256:(r + 1) * 256, :],
                                  preferred_element_type=f32)
        h1 = jnp.maximum(acc1 + bf1_ref[...], 0.0).astype(bf16)    # (bt, 256)

        # ---- fc2 (lane-padded to 128 outputs; real logits in lanes 0:2) ----
        o_ref[...] = jnp.dot(h1, wf2_ref[...],
                             preferred_element_type=f32) + bf2_ref[...]

    return kernel


# ------------------------------ parameter prep ------------------------------ #

def _conv_band_matrix(w_i, in_w, out_w, pos_pad):
    """w_i: (kw, cin, cout) one kernel-row of a conv weight.

    Returns B of shape (in_w*cin, 2*pos_pad*cout) so that a row of the input
    feature map (lanes = (w, cin), cin fastest) matmul'd with B yields the 1-D
    conv along W, with output columns grouped [even ow | odd ow] (each group
    padded to pos_pad positions, cout fastest) for lane-block max-pooling.
    Rows for input positions with no valid tap are all-zero (masking)."""
    kw, cin, cout = w_i.shape
    wi = jnp.arange(in_w)[:, None]
    ow = jnp.arange(out_w)[None, :]
    k = wi - ow                                        # tap index j = wi - ow
    valid = (k >= 0) & (k < kw)
    t = jnp.where(valid[:, :, None, None], w_i[jnp.clip(k, 0, kw - 1)], 0.0)
    t = jnp.transpose(t, (0, 2, 1, 3))                 # (in_w, cin, out_w, cout)

    def blk(sub):                                      # (in_w, cin, out_w//2, cout)
        sub = jnp.pad(sub, ((0, 0), (0, 0), (0, pos_pad - sub.shape[2]), (0, 0)))
        return sub.reshape(in_w * cin, pos_pad * cout)

    return jnp.concatenate([blk(t[:, :, 0::2, :]), blk(t[:, :, 1::2, :])], axis=1)


def init_params(key):
    f32, bf16 = jnp.float32, jnp.bfloat16
    eps = 1e-5
    ks = jax.random.split(key, 8)

    # --- torch-layout parameters (kaiming_normal_ weights, default bias init) ---
    w1 = jax.random.normal(ks[0], (5, 5, 1, 32), f32) * jnp.sqrt(2.0 / 25.0)      # HWIO
    b1 = jax.random.uniform(ks[1], (32,), f32, -0.2, 0.2)
    w2 = jax.random.normal(ks[2], (3, 3, 32, 32), f32) * jnp.sqrt(2.0 / 288.0)    # HWIO
    b2 = jax.random.uniform(ks[3], (32,), f32, -1.0 / 288.0 ** 0.5, 1.0 / 288.0 ** 0.5)
    wfc1 = jax.random.normal(ks[4], (256, 1152), f32) * jnp.sqrt(2.0 / 1152.0)    # (out, in)
    bfc1 = jax.random.uniform(ks[5], (256,), f32, -1.0 / 1152.0 ** 0.5, 1.0 / 1152.0 ** 0.5)
    wfc2 = jax.random.normal(ks[6], (2, 256), f32) * jnp.sqrt(1.0 / 256.0)
    bfc2 = jax.random.uniform(ks[7], (2,), f32, -1.0 / 16.0, 1.0 / 16.0)
    raw = dict(w1=w1, b1=b1, w2=w2, b2=b2, wfc1=wfc1, bfc1=bfc1, wfc2=wfc2, bfc2=bfc2)

    # Eval-mode BN (mean=0, var=1, gamma=1, beta=0) -> per-channel scale bn_s.
    # The scale is folded into the band-matrix columns; only the bias stays in-kernel.
    # (A real checkpoint's running stats would be folded here the same way.)
    bn_s = 1.0 / jnp.sqrt(1.0 + eps)

    p = {}
    # conv1: 5 tap band matrices stacked along K (rows) -> (160, 1024); scale folded.
    b1m = jnp.concatenate([_conv_band_matrix(w1[i], 32, 28, 16) for i in range(5)], axis=0)
    p["B1"] = (b1m * bn_s).astype(bf16)                            # (160, 1024)
    p["t1"] = jnp.tile(b1 * bn_s, 16).reshape(1, 512)              # pooled layout: 16 pos x 32 c
    # conv2: 3 tap band matrices; in_w=16 so pad positions 14,15 get all-zero rows.
    b2m = jnp.stack([_conv_band_matrix(w2[i], 16, 12, 8) for i in range(3)])
    p["B2"] = (b2m * bn_s).astype(bf16)                            # (3, 512, 512)
    p["t2"] = jnp.tile(b2 * bn_s, 8).reshape(1, 256)               # 8 pos x 32 c
    # fc1: bake torch's NCHW flatten + the kernel's (row, padded w-pos, c) layout into rows.
    wf1 = wfc1.reshape(256, 32, 6, 6).transpose(2, 3, 1, 0)        # (h, w, c, o)
    wf1 = jnp.pad(wf1, ((0, 0), (0, 2), (0, 0), (0, 0)))           # pad w positions 6 -> 8 (zero rows)
    p["Wfc1"] = wf1.reshape(6 * 8 * 32, 256).astype(bf16)          # (1536, 256)
    p["bfc1"] = bfc1.reshape(1, 256)
    # fc2: pad the 2 logits to a dense 128-lane output.
    p["Wfc2"] = jnp.pad(wfc2.T, ((0, 0), (0, 126))).astype(bf16)   # (256, 128)
    p["bfc2"] = jnp.pad(bfc2, (0, 126)).reshape(1, 128)
    return p, raw


# --------------------------------- forward ---------------------------------- #

def cnn_forward(x_nchw, params, *, b_tile=None):
    N = x_nchw.shape[0]
    assert x_nchw.shape[1:] == (1, 32, 32)
    if b_tile is None:
        # 16 keeps bf16 sublane tiles aligned; 32 caps per-step VMEM (~12 MiB) so the
        # kernel fits the default scoped limits on v5e/v6e/v7x.  Raise for huge batches.
        b_tile = min(32, _round_up(N, 16))
    assert b_tile % 16 == 0
    n_pad = _round_up(N, b_tile)
    nblk = n_pad // b_tile

    # H-axis im2col (5 taps -> 160 lanes) + conv1 output-row reordering + batch-tile
    # M-stacking, all built once by XLA in the wrapper (layout plumbing, ~9 KB/image).
    x = x_nchw.reshape(N, 32, 32)
    ro = jnp.asarray(_ROW_ORDER1, jnp.int32)                       # (28,)
    rows = ro[:, None] + jnp.arange(5, dtype=jnp.int32)[None, :]   # (28, 5) input rows
    xt = x[:, rows, :].reshape(N, 28, 160)                         # lanes = (tap, col)
    xt = jnp.pad(xt, ((0, n_pad - N), (0, 0), (0, 0)))
    xt = (xt.reshape(nblk, b_tile, 28, 160)
            .transpose(0, 2, 1, 3)                                 # row = p*b_tile + image
            .reshape(nblk, 28 * b_tile, 160)
            .astype(jnp.bfloat16))

    def _const(shape):
        return pl.BlockSpec(shape, lambda n: (0,) * len(shape))

    out = pl.pallas_call(
        _make_cnn_kernel(b_tile),
        out_shape=jax.ShapeDtypeStruct((n_pad, 128), jnp.float32),
        grid=(nblk,),
        in_specs=[
            pl.BlockSpec((1, 28 * b_tile, 160), lambda n: (n, 0, 0)),
            _const(params["B1"].shape),
            _const(params["t1"].shape),
            _const(params["B2"].shape),
            _const(params["t2"].shape),
            _const(params["Wfc1"].shape),
            _const(params["bfc1"].shape),
            _const(params["Wfc2"].shape),
            _const(params["bfc2"].shape),
        ],
        out_specs=pl.BlockSpec((b_tile, 128), lambda n: (n, 0)),
        compiler_params=pltpu.CompilerParams(
            dimension_semantics=("parallel",),
            vmem_limit_bytes=32 * 1024 * 1024),
    )(xt, params["B1"], params["t1"], params["B2"], params["t2"],
      params["Wfc1"], params["bfc1"], params["Wfc2"], params["bfc2"])
    return out[:N, :2]


# ------------------------- plain-JAX reference check ------------------------ #

def reference_forward(x_nchw, raw):
    """Eval-mode reference mirroring the kernel's bf16 matmul inputs."""
    f32, bf16 = jnp.float32, jnp.bfloat16
    bn_s = 1.0 / jnp.sqrt(1.0 + 1e-5)
    dn = ("NHWC", "HWIO", "NHWC")

    x = jnp.transpose(x_nchw, (0, 2, 3, 1)).astype(bf16)
    y = jax.lax.conv_general_dilated(x, raw["w1"].astype(bf16), (1, 1), "VALID",
                                     dimension_numbers=dn, preferred_element_type=f32)
    y = jnp.maximum((y + raw["b1"]) * bn_s, 0.0)
    N, H, W, C = y.shape
    y = y.reshape(N, H // 2, 2, W // 2, 2, C).max(axis=(2, 4)).astype(bf16)

    y = jax.lax.conv_general_dilated(y, raw["w2"].astype(bf16), (1, 1), "VALID",
                                     dimension_numbers=dn, preferred_element_type=f32)
    y = jnp.maximum((y + raw["b2"]) * bn_s, 0.0)
    N, H, W, C = y.shape
    y = y.reshape(N, H // 2, 2, W // 2, 2, C).max(axis=(2, 4))

    feat = jnp.transpose(y, (0, 3, 1, 2)).reshape(N, 32 * 6 * 6).astype(bf16)
    h1 = jnp.dot(feat, raw["wfc1"].T.astype(bf16), preferred_element_type=f32) + raw["bfc1"]
    h1 = jnp.maximum(h1, 0.0).astype(bf16)
    return jnp.dot(h1, raw["wfc2"].T.astype(bf16), preferred_element_type=f32) + raw["bfc2"]


if __name__ == "__main__":
    key = jax.random.PRNGKey(0)
    kx, kp = jax.random.split(key)
    x = jax.random.normal(kx, (2, 1, 32, 32), jnp.float32)   # NCHW; 32x32 required by fc1
    params, raw = init_params(kp)

    fwd = jax.jit(cnn_forward)
    out = jax.block_until_ready(fwd(x, params))
    assert out.shape == (2, 2) and out.dtype == jnp.float32

    ref = reference_forward(x, raw)
    assert jnp.allclose(out, ref, atol=2e-2, rtol=2e-2), (out, ref)
    print("KERNEL_OK")
</pallas_src>

<mosaic_0001>
module attributes {stable_mosaic.version = 11 : i64} {
  func.func @kernel(%arg0: i32, %arg1: memref<1x448x160xbf16, #tpu.memory_space<vmem>>, %arg2: memref<160x1024xbf16, #tpu.memory_space<vmem>>, %arg3: memref<1x512xf32, #tpu.memory_space<vmem>>, %arg4: memref<3x512x512xbf16, #tpu.memory_space<vmem>>, %arg5: memref<1x256xf32, #tpu.memory_space<vmem>>, %arg6: memref<1536x256xbf16, #tpu.memory_space<vmem>>, %arg7: memref<1x256xf32, #tpu.memory_space<vmem>>, %arg8: memref<256x128xbf16, #tpu.memory_space<vmem>>, %arg9: memref<1x128xf32, #tpu.memory_space<vmem>>, %arg10: memref<16x128xf32, #tpu.memory_space<vmem>>) attributes {dimension_semantics = [#tpu.dimension_semantics<parallel>], iteration_bounds = array<i64: 1>, scalar_prefetch = 0 : i64, scratch_operands = 0 : i64, tpu.core_type = #tpu.core_type<tc>, window_params = [{transform_indices = @transform_0, window_bounds = array<i64: 1, 448, 160>}, {pipeline_mode = #tpu.pipeline_mode<synchronous>, transform_indices = @transform_1, window_bounds = array<i64: 160, 1024>}, {pipeline_mode = #tpu.pipeline_mode<synchronous>, transform_indices = @transform_2, window_bounds = array<i64: 1, 512>}, {pipeline_mode = #tpu.pipeline_mode<synchronous>, transform_indices = @transform_3, window_bounds = array<i64: 3, 512, 512>}, {pipeline_mode = #tpu.pipeline_mode<synchronous>, transform_indices = @transform_4, window_bounds = array<i64: 1, 256>}, {pipeline_mode = #tpu.pipeline_mode<synchronous>, transform_indices = @transform_5, window_bounds = array<i64: 1536, 256>}, {pipeline_mode = #tpu.pipeline_mode<synchronous>, transform_indices = @transform_6, window_bounds = array<i64: 1, 256>}, {pipeline_mode = #tpu.pipeline_mode<synchronous>, transform_indices = @transform_7, window_bounds = array<i64: 256, 128>}, {pipeline_mode = #tpu.pipeline_mode<synchronous>, transform_indices = @transform_8, window_bounds = array<i64: 1, 128>}, {transform_indices = @transform_9, window_bounds = array<i64: 16, 128>}]} {
    %c0 = arith.constant 0 : index
    %c0_0 = arith.constant 0 : index
    %c0_1 = arith.constant 0 : index
    %0 = vector.load %arg1[%c0, %c0_0, %c0_1] : memref<1x448x160xbf16, #tpu.memory_space<vmem>>, vector<1x448x160xbf16>
    %1 = vector.shape_cast %0 : vector<1x448x160xbf16> to vector<448x160xbf16>
    %c0_2 = arith.constant 0 : index
    %c0_3 = arith.constant 0 : index
    %2 = vector.load %arg2[%c0_2, %c0_3] : memref<160x1024xbf16, #tpu.memory_space<vmem>>, vector<160x1024xbf16>
    %cst = arith.constant dense<0.000000e+00> : vector<448x1024xf32>
    %3 = tpu.matmul %1, %2, %cst {dimension_numbers = #tpu.dot_dimension_numbers<[1], [0], [0], [1], [0, 0, 1, 1], [], []>} : vector<448x160xbf16>, vector<160x1024xbf16>, vector<448x1024xf32> -> vector<448x1024xf32>
    %4 = vector.extract_strided_slice %3 {offsets = [0, 0], sizes = [224, 1024], strides = [1, 1]} : vector<448x1024xf32> to vector<224x1024xf32>
    %5 = vector.extract_strided_slice %3 {offsets = [224, 0], sizes = [224, 1024], strides = [1, 1]} : vector<448x1024xf32> to vector<224x1024xf32>
    %6 = arith.maximumf %4, %5 : vector<224x1024xf32>
    %7 = vector.extract_strided_slice %6 {offsets = [0, 0], sizes = [224, 512], strides = [1, 1]} : vector<224x1024xf32> to vector<224x512xf32>
    %8 = vector.extract_strided_slice %6 {offsets = [0, 512], sizes = [224, 512], strides = [1, 1]} : vector<224x1024xf32> to vector<224x512xf32>
    %9 = arith.maximumf %7, %8 : vector<224x512xf32>
    %c0_4 = arith.constant 0 : index
    %c0_5 = arith.constant 0 : index
    %10 = vector.load %arg3[%c0_4, %c0_5] : memref<1x512xf32, #tpu.memory_space<vmem>>, vector<1x512xf32>
    %11 = vector.broadcast %10 : vector<1x512xf32> to vector<224x512xf32>
    %12 = arith.addf %9, %11 : vector<224x512xf32>
    %cst_6 = arith.constant 0.000000e+00 : f32
    %13 = vector.broadcast %cst_6 : f32 to vector<224x512xf32>
    %14 = arith.maximumf %12, %13 : vector<224x512xf32>
    %15 = arith.truncf %14 : vector<224x512xf32> to vector<224x512xbf16>
    %cst_7 = arith.constant 0.000000e+00 : f32
    %16 = vector.broadcast %cst_7 : f32 to vector<96x512xf32>
    %17 = vector.extract_strided_slice %15 {offsets = [0, 0], sizes = [96, 512], strides = [1, 1]} : vector<224x512xbf16> to vector<96x512xbf16>
    %c0_8 = arith.constant 0 : index
    %c0_9 = arith.constant 0 : index
    %c0_10 = arith.constant 0 : index
    %18 = vector.load %arg4[%c0_8, %c0_9, %c0_10] : memref<3x512x512xbf16, #tpu.memory_space<vmem>>, vector<1x512x512xbf16>
    %19 = vector.shape_cast %18 : vector<1x512x512xbf16> to vector<512x512xbf16>
    %cst_11 = arith.constant dense<0.000000e+00> : vector<96x512xf32>
    %20 = tpu.matmul %17, %19, %cst_11 {dimension_numbers = #tpu.dot_dimension_numbers<[1], [0], [0], [1], [0, 0, 1, 1], [], []>} : vector<96x512xbf16>, vector<512x512xbf16>, vector<96x512xf32> -> vector<96x512xf32>
    %21 = arith.addf %16, %20 : vector<96x512xf32>
    %22 = vector.extract_strided_slice %15 {offsets = [112, 0], sizes = [96, 512], strides = [1, 1]} : vector<224x512xbf16> to vector<96x512xbf16>
    %c1 = arith.constant 1 : index
    %c0_12 = arith.constant 0 : index
    %c0_13 = arith.constant 0 : index
    %23 = vector.load %arg4[%c1, %c0_12, %c0_13] : memref<3x512x512xbf16, #tpu.memory_space<vmem>>, vector<1x512x512xbf16>
    %24 = vector.shape_cast %23 : vector<1x512x512xbf16> to vector<512x512xbf16>
    %cst_14 = arith.constant dense<0.000000e+00> : vector<96x512xf32>
    %25 = tpu.matmul %22, %24, %cst_14 {dimension_numbers = #tpu.dot_dimension_numbers<[1], [0], [0], [1], [0, 0, 1, 1], [], []>} : vector<96x512xbf16>, vector<512x512xbf16>, vector<96x512xf32> -> vector<96x512xf32>
    %26 = arith.addf %21, %25 : vector<96x512xf32>
    %27 = vector.extract_strided_slice %15 {offsets = [16, 0], sizes = [96, 512], strides = [1, 1]} : vector<224x512xbf16> to vector<96x512xbf16>
    %c2 = arith.constant 2 : index
    %c0_15 = arith.constant 0 : index
    %c0_16 = arith.constant 0 : index
    %28 = vector.load %arg4[%c2, %c0_15, %c0_16] : memref<3x512x512xbf16, #tpu.memory_space<vmem>>, vector<1x512x512xbf16>
    %29 = vector.shape_cast %28 : vector<1x512x512xbf16> to vector<512x512xbf16>
    %cst_17 = arith.constant dense<0.000000e+00> : vector<96x512xf32>
    %30 = tpu.matmul %27, %29, %cst_17 {dimension_numbers = #tpu.dot_dimension_numbers<[1], [0], [0], [1], [0, 0, 1, 1], [], []>} : vector<96x512xbf16>, vector<512x512xbf16>, vector<96x512xf32> -> vector<96x512xf32>
    %31 = arith.addf %26, %30 : vector<96x512xf32>
    %cst_18 = arith.constant 0.000000e+00 : f32
    %32 = vector.broadcast %cst_18 : f32 to vector<96x512xf32>
    %33 = vector.extract_strided_slice %15 {offsets = [112, 0], sizes = [96, 512], strides = [1, 1]} : vector<224x512xbf16> to vector<96x512xbf16>
    %c0_19 = arith.constant 0 : index
    %c0_20 = arith.constant 0 : index
    %c0_21 = arith.constant 0 : index
    %34 = vector.load %arg4[%c0_19, %c0_20, %c0_21] : memref<3x512x512xbf16, #tpu.memory_space<vmem>>, vector<1x512x512xbf16>
    %35 = vector.shape_cast %34 : vector<1x512x512xbf16> to vector<512x512xbf16>
    %cst_22 = arith.constant dense<0.000000e+00> : vector<96x512xf32>
    %36 = tpu.matmul %33, %35, %cst_22 {dimension_numbers = #tpu.dot_dimension_numbers<[1], [0], [0], [1], [0, 0, 1, 1], [], []>} : vector<96x512xbf16>, vector<512x512xbf16>, vector<96x512xf32> -> vector<96x512xf32>
    %37 = arith.addf %32, %36 : vector<96x512xf32>
    %38 = vector.extract_strided_slice %15 {offsets = [16, 0], sizes = [96, 512], strides = [1, 1]} : vector<224x512xbf16> to vector<96x512xbf16>
    %c1_23 = arith.constant 1 : index
    %c0_24 = arith.constant 0 : index
    %c0_25 = arith.constant 0 : index
    %39 = vector.load %arg4[%c1_23, %c0_24, %c0_25] : memref<3x512x512xbf16, #tpu.memory_space<vmem>>, vector<1x512x512xbf16>
    %40 = vector.shape_cast %39 : vector<1x512x512xbf16> to vector<512x512xbf16>
    %cst_26 = arith.constant dense<0.000000e+00> : vector<96x512xf32>
    %41 = tpu.matmul %38, %40, %cst_26 {dimension_numbers = #tpu.dot_dimension_numbers<[1], [0], [0], [1], [0, 0, 1, 1], [], []>} : vector<96x512xbf16>, vector<512x512xbf16>, vector<96x512xf32> -> vector<96x512xf32>
    %42 = arith.addf %37, %41 : vector<96x512xf32>
    %43 = vector.extract_strided_slice %15 {offsets = [128, 0], sizes = [96, 512], strides = [1, 1]} : vector<224x512xbf16> to vector<96x512xbf16>
    %c2_27 = arith.constant 2 : index
    %c0_28 = arith.constant 0 : index
    %c0_29 = arith.constant 0 : index
    %44 = vector.load %arg4[%c2_27, %c0_28, %c0_29] : memref<3x512x512xbf16, #tpu.memory_space<vmem>>, vector<1x512x512xbf16>
    %45 = vector.shape_cast %44 : vector<1x512x512xbf16> to vector<512x512xbf16>
    %cst_30 = arith.constant dense<0.000000e+00> : vector<96x512xf32>
    %46 = tpu.matmul %43, %45, %cst_30 {dimension_numbers = #tpu.dot_dimension_numbers<[1], [0], [0], [1], [0, 0, 1, 1], [], []>} : vector<96x512xbf16>, vector<512x512xbf16>, vector<96x512xf32> -> vector<96x512xf32>
    %47 = arith.addf %42, %46 : vector<96x512xf32>
    %48 = arith.maximumf %31, %47 : vector<96x512xf32>
    %49 = vector.extract_strided_slice %48 {offsets = [0, 0], sizes = [96, 256], strides = [1, 1]} : vector<96x512xf32> to vector<96x256xf32>
    %50 = vector.extract_strided_slice %48 {offsets = [0, 256], sizes = [96, 256], strides = [1, 1]} : vector<96x512xf32> to vector<96x256xf32>
    %51 = arith.maximumf %49, %50 : vector<96x256xf32>
    %c0_31 = arith.constant 0 : index
    %c0_32 = arith.constant 0 : index
    %52 = vector.load %arg5[%c0_31, %c0_32] : memref<1x256xf32, #tpu.memory_space<vmem>>, vector<1x256xf32>
    %53 = vector.broadcast %52 : vector<1x256xf32> to vector<96x256xf32>
    %54 = arith.addf %51, %53 : vector<96x256xf32>
    %cst_33 = arith.constant 0.000000e+00 : f32
    %55 = vector.broadcast %cst_33 : f32 to vector<96x256xf32>
    %56 = arith.maximumf %54, %55 : vector<96x256xf32>
    %57 = arith.truncf %56 : vector<96x256xf32> to vector<96x256xbf16>
    %cst_34 = arith.constant 0.000000e+00 : f32
    %58 = vector.broadcast %cst_34 : f32 to vector<16x256xf32>
    %59 = vector.extract_strided_slice %57 {offsets = [0, 0], sizes = [16, 256], strides = [1, 1]} : vector<96x256xbf16> to vector<16x256xbf16>
    %c0_35 = arith.constant 0 : index
    %c0_36 = arith.constant 0 : index
    %60 = vector.load %arg6[%c0_35, %c0_36] : memref<1536x256xbf16, #tpu.memory_space<vmem>>, vector<256x256xbf16>
    %cst_37 = arith.constant dense<0.000000e+00> : vector<16x256xf32>
    %61 = tpu.matmul %59, %60, %cst_37 {dimension_numbers = #tpu.dot_dimension_numbers<[1], [0], [0], [1], [0, 0, 1, 1], [], []>} : vector<16x256xbf16>, vector<256x256xbf16>, vector<16x256xf32> -> vector<16x256xf32>
    %62 = arith.addf %58, %61 : vector<16x256xf32>
    %63 = vector.extract_strided_slice %57 {offsets = [16, 0], sizes = [16, 256], strides = [1, 1]} : vector<96x256xbf16> to vector<16x256xbf16>
    %c256 = arith.constant 256 : index
    %c0_38 = arith.constant 0 : index
    %64 = vector.load %arg6[%c256, %c0_38] : memref<1536x256xbf16, #tpu.memory_space<vmem>>, vector<256x256xbf16>
    %cst_39 = arith.constant dense<0.000000e+00> : vector<16x256xf32>
    %65 = tpu.matmul %63, %64, %cst_39 {dimension_numbers = #tpu.dot_dimension_numbers<[1], [0], [0], [1], [0, 0, 1, 1], [], []>} : vector<16x256xbf16>, vector<256x256xbf16>, vector<16x256xf32> -> vector<16x256xf32>
    %66 = arith.addf %62, %65 : vector<16x256xf32>
    %67 = vector.extract_strided_slice %57 {offsets = [32, 0], sizes = [16, 256], strides = [1, 1]} : vector<96x256xbf16> to vector<16x256xbf16>
    %c512 = arith.constant 512 : index
    %c0_40 = arith.constant 0 : index
    %68 = vector.load %arg6[%c512, %c0_40] : memref<1536x256xbf16, #tpu.memory_space<vmem>>, vector<256x256xbf16>
    %cst_41 = arith.constant dense<0.000000e+00> : vector<16x256xf32>
    %69 = tpu.matmul %67, %68, %cst_41 {dimension_numbers = #tpu.dot_dimension_numbers<[1], [0], [0], [1], [0, 0, 1, 1], [], []>} : vector<16x256xbf16>, vector<256x256xbf16>, vector<16x256xf32> -> vector<16x256xf32>
    %70 = arith.addf %66, %69 : vector<16x256xf32>
    %71 = vector.extract_strided_slice %57 {offsets = [48, 0], sizes = [16, 256], strides = [1, 1]} : vector<96x256xbf16> to vector<16x256xbf16>
    %c768 = arith.constant 768 : index
    %c0_42 = arith.constant 0 : index
    %72 = vector.load %arg6[%c768, %c0_42] : memref<1536x256xbf16, #tpu.memory_space<vmem>>, vector<256x256xbf16>
    %cst_43 = arith.constant dense<0.000000e+00> : vector<16x256xf32>
    %73 = tpu.matmul %71, %72, %cst_43 {dimension_numbers = #tpu.dot_dimension_numbers<[1], [0], [0], [1], [0, 0, 1, 1], [], []>} : vector<16x256xbf16>, vector<256x256xbf16>, vector<16x256xf32> -> vector<16x256xf32>
    %74 = arith.addf %70, %73 : vector<16x256xf32>
    %75 = vector.extract_strided_slice %57 {offsets = [64, 0], sizes = [16, 256], strides = [1, 1]} : vector<96x256xbf16> to vector<16x256xbf16>
    %c1024 = arith.constant 1024 : index
    %c0_44 = arith.constant 0 : index
    %76 = vector.load %arg6[%c1024, %c0_44] : memref<1536x256xbf16, #tpu.memory_space<vmem>>, vector<256x256xbf16>
    %cst_45 = arith.constant dense<0.000000e+00> : vector<16x256xf32>
    %77 = tpu.matmul %75, %76, %cst_45 {dimension_numbers = #tpu.dot_dimension_numbers<[1], [0], [0], [1], [0, 0, 1, 1], [], []>} : vector<16x256xbf16>, vector<256x256xbf16>, vector<16x256xf32> -> vector<16x256xf32>
    %78 = arith.addf %74, %77 : vector<16x256xf32>
    %79 = vector.extract_strided_slice %57 {offsets = [80, 0], sizes = [16, 256], strides = [1, 1]} : vector<96x256xbf16> to vector<16x256xbf16>
    %c1280 = arith.constant 1280 : index
    %c0_46 = arith.constant 0 : index
    %80 = vector.load %arg6[%c1280, %c0_46] : memref<1536x256xbf16, #tpu.memory_space<vmem>>, vector<256x256xbf16>
    %cst_47 = arith.constant dense<0.000000e+00> : vector<16x256xf32>
    %81 = tpu.matmul %79, %80, %cst_47 {dimension_numbers = #tpu.dot_dimension_numbers<[1], [0], [0], [1], [0, 0, 1, 1], [], []>} : vector<16x256xbf16>, vector<256x256xbf16>, vector<16x256xf32> -> vector<16x256xf32>
    %82 = arith.addf %78, %81 : vector<16x256xf32>
    %c0_48 = arith.constant 0 : index
    %c0_49 = arith.constant 0 : index
    %83 = vector.load %arg7[%c0_48, %c0_49] : memref<1x256xf32, #tpu.memory_space<vmem>>, vector<1x256xf32>
    %84 = vector.broadcast %83 : vector<1x256xf32> to vector<16x256xf32>
    %85 = arith.addf %82, %84 : vector<16x256xf32>
    %cst_50 = arith.constant 0.000000e+00 : f32
    %86 = vector.broadcast %cst_50 : f32 to vector<16x256xf32>
    %87 = arith.maximumf %85, %86 : vector<16x256xf32>
    %88 = arith.truncf %87 : vector<16x256xf32> to vector<16x256xbf16>
    %c0_51 = arith.constant 0 : index
    %c0_52 = arith.constant 0 : index
    %89 = vector.load %arg8[%c0_51, %c0_52] : memref<256x128xbf16, #tpu.memory_space<vmem>>, vector<256x128xbf16>
    %cst_53 = arith.constant dense<0.000000e+00> : vector<16x128xf32>
    %90 = tpu.matmul %88, %89, %cst_53 {dimension_numbers = #tpu.dot_dimension_numbers<[1], [0], [0], [1], [0, 0, 1, 1], [], []>} : vector<16x256xbf16>, vector<256x128xbf16>, vector<16x128xf32> -> vector<16x128xf32>
    %c0_54 = arith.constant 0 : index
    %c0_55 = arith.constant 0 : index
    %91 = vector.load %arg9[%c0_54, %c0_55] : memref<1x128xf32, #tpu.memory_space<vmem>>, vector<1x128xf32>
    %92 = vector.broadcast %91 : vector<1x128xf32> to vector<16x128xf32>
    %93 = arith.addf %90, %92 : vector<16x128xf32>
    %c0_56 = arith.constant 0 : index
    %c0_57 = arith.constant 0 : index
    %94 = vector.load %arg10[%c0_56, %c0_57] : memref<16x128xf32, #tpu.memory_space<vmem>>, vector<16x128xf32>
    tpu.vector_store %arg10[%c0_56, %c0_57], %93 {strides = array<i32>} : memref<16x128xf32, #tpu.memory_space<vmem>>, vector<16x128xf32>,
    return
  }
  func.func @transform_0(%arg0: i32) -> (i32, i32, i32) {
    %c0_i32 = arith.constant 0 : i32
    %c0_i32_0 = arith.constant 0 : i32
    %c0_i32_1 = arith.constant 0 : i32
    return %arg0, %c0_i32, %c0_i32_0 : i32, i32, i32
  }
  func.func @transform_1(%arg0: i32) -> (i32, i32) {
    %c0_i32 = arith.constant 0 : i32
    %c0_i32_0 = arith.constant 0 : i32
    %c0_i32_1 = arith.constant 0 : i32
    return %c0_i32, %c0_i32_0 : i32, i32
  }
  func.func @transform_2(%arg0: i32) -> (i32, i32) {
    %c0_i32 = arith.constant 0 : i32
    %c0_i32_0 = arith.constant 0 : i32
    %c0_i32_1 = arith.constant 0 : i32
    return %c0_i32, %c0_i32_0 : i32, i32
  }
  func.func @transform_3(%arg0: i32) -> (i32, i32, i32) {
    %c0_i32 = arith.constant 0 : i32
    %c0_i32_0 = arith.constant 0 : i32
    %c0_i32_1 = arith.constant 0 : i32
    %c0_i32_2 = arith.constant 0 : i32
    return %c0_i32, %c0_i32_0, %c0_i32_1 : i32, i32, i32
  }
  func.func @transform_4(%arg0: i32) -> (i32, i32) {
    %c0_i32 = arith.constant 0 : i32
    %c0_i32_0 = arith.constant 0 : i32
    %c0_i32_1 = arith.constant 0 : i32
    return %c0_i32, %c0_i32_0 : i32, i32
  }
  func.func @transform_5(%arg0: i32) -> (i32, i32) {
    %c0_i32 = arith.constant 0 : i32
    %c0_i32_0 = arith.constant 0 : i32
    %c0_i32_1 = arith.constant 0 : i32
    return %c0_i32, %c0_i32_0 : i32, i32
  }
  func.func @transform_6(%arg0: i32) -> (i32, i32) {
    %c0_i32 = arith.constant 0 : i32
    %c0_i32_0 = arith.constant 0 : i32
    %c0_i32_1 = arith.constant 0 : i32
    return %c0_i32, %c0_i32_0 : i32, i32
  }
  func.func @transform_7(%arg0: i32) -> (i32, i32) {
    %c0_i32 = arith.constant 0 : i32
    %c0_i32_0 = arith.constant 0 : i32
    %c0_i32_1 = arith.constant 0 : i32
    return %c0_i32, %c0_i32_0 : i32, i32
  }
  func.func @transform_8(%arg0: i32) -> (i32, i32) {
    %c0_i32 = arith.constant 0 : i32
    %c0_i32_0 = arith.constant 0 : i32
    %c0_i32_1 = arith.constant 0 : i32
    return %c0_i32, %c0_i32_0 : i32, i32
  }
  func.func @transform_9(%arg0: i32) -> (i32, i32) {
    %c0_i32 = arith.constant 0 : i32
    %c0_i32_0 = arith.constant 0 : i32
    return %arg0, %c0_i32 : i32, i32
  }
}

</mosaic_0001>

<llo_original>
// kernel: cnn_forward.1
$region0: #{cnn_forward.1}
  #allocation0 [shape = 'u32[]', space=smem, size = 0x4, offset = 0x4, fixed_abs, tag = 'smem constant byte address 0x4 - core index']
  #allocation1 [shape = 'u32[144,128]{1,0:T(1,128)}', space=vmem, size = 0x12000, scoped, tag = 'internal scratch']
  %s0 = inlined_call_operand.vmem [shape: bf16[1,448,160], index: 0, kind: input, shape index: {}]
  %s1 = inlined_call_operand.hbm [shape: bf16[160,1024], index: 1, kind: input, shape index: {}]
  %s2 = inlined_call_operand.hbm [shape: f32[1,512], index: 2, kind: input, shape index: {}]
  %s3 = inlined_call_operand.hbm [shape: bf16[3,512,512], index: 3, kind: input, shape index: {}]
  %s4 = inlined_call_operand.hbm [shape: f32[1,256], index: 4, kind: input, shape index: {}]
  %s5 = inlined_call_operand.vmem [shape: bf16[1536,256], index: 5, kind: input, shape index: {}]
  %s6 = inlined_call_operand.hbm [shape: f32[1,256], index: 6, kind: input, shape index: {}]
  %s7 = inlined_call_operand.hbm [shape: bf16[256,128], index: 7, kind: input, shape index: {}]
  %s8 = inlined_call_operand.hbm [shape: f32[1,128], index: 8, kind: input, shape index: {}]
  %s9 = inlined_call_operand.vmem [shape: f32[16,128], index: 9, kind: output, shape index: {}]
  %s10 = sld [smem:[#allocation0]]
  $region74: #{cnn_forward.1} parent=0
    _
  %s12 = ssub.s32 1, %s10
  %s13 = scalar_select 0, %s12, %s10
  $region1: #{cnn_forward.1} parent=0
    #allocation2 [shape = 'u8[327680]{0}', space=vmem, size = 0x50000, scoped, tag = 'input window, operand 1, single buffered']
    #allocation3 [shape = 's32[1]{0}', space=sflag, size = 0x4, scoped, tag = 'scoped memory for cnn_forward.1']
    #allocation4 [shape = 'u8[2048]{0}', space=vmem, size = 0x800, scoped, tag = 'input window, operand 2, single buffered']
    #allocation5 [shape = 's32[1]{0}', space=sflag, size = 0x4, scoped, tag = 'scoped memory for cnn_forward.1']
    #allocation6 [shape = 'u8[1572864]{0}', space=vmem, size = 0x180000, scoped, tag = 'input window, operand 3, single buffered']
    #allocation7 [shape = 'u8[1024]{0}', space=vmem, size = 0x400, scoped, tag = 'input window, operand 4, single buffered']
    #allocation8 [shape = 's32[1]{0}', space=sflag, size = 0x4, scoped, tag = 'scoped memory for cnn_forward.1']
    #allocation9 [shape = 'u8[1024]{0}', space=vmem, size = 0x400, scoped, tag = 'input window, operand 6, single buffered']
    #allocation10 [shape = 'u8[65536]{0}', space=vmem, size = 0x10000, scoped, tag = 'input window, operand 7, single buffered']
    #allocation11 [shape = 's32[1]{0}', space=sflag, size = 0x4, scoped, tag = 'scoped memory for cnn_forward.1']
    #allocation12 [shape = 'u8[512]{0}', space=vmem, size = 0x400, scoped, tag = 'input window, operand 8, single buffered']
    %14 = vsyncpa [#allocation3], 0
    %15 = vsyncpa [#allocation5], 0
    %16 = vsyncpa [#allocation8], 0
    %17 = vsyncpa [#allocation11], 0
    // Predicated region
    $region2: #{cnn_forward.1} parent=1 // pred_check
      _
    $region3: #{cnn_forward.1} parent=1 // pred_check_branch
      %19 = sbr.rel (0) target = $region5
    $region4: #{cnn_forward.1} parent=1 // pred_region
      _
    $region5: #{cnn_forward.1} parent=1 // pred_fallthru
      _
    // Predicated region
    $region6: #{cnn_forward.1} parent=1 // pred_check
      _
    $region7: #{cnn_forward.1} parent=1 // pred_check_branch
      %21 = sbr.rel (0) target = $region9
    $region8: #{cnn_forward.1} parent=1 // pred_region
      %s23 = ssub.s32 10240, 10240
      %24 = vsyncadd [#allocation3], %s23
      %s25 = sshll.u32 [#allocation2], 4
      %s26 = int_to_ptr.vmem [resolvable:$true] %s25
      %31 = dma.hbm_to_vmem [thread:$0]  %s1, 10240, %s26, [#allocation3], 512, 512, 32
    $region9: #{cnn_forward.1} parent=1 // pred_fallthru
      _
    // Predicated region
    $region10: #{cnn_forward.1} parent=1 // pred_check
      _
    $region11: #{cnn_forward.1} parent=1 // pred_check_branch
      %33 = sbr.rel (0) target = $region13
    $region12: #{cnn_forward.1} parent=1 // pred_region
      %s35 = ssub.s32 64, 64
      %36 = vsyncadd [#allocation5], %s35
      %s38 = sshll.u32 [#allocation4], 4
      %s39 = int_to_ptr.vmem [resolvable:$true] %s38
      %41 = dma.hbm_to_vmem [thread:$0]  %s2, 64, %s39, [#allocation5]
    $region13: #{cnn_forward.1} parent=1 // pred_fallthru
      _
    // Predicated region
    $region14: #{cnn_forward.1} parent=1 // pred_check
      _
    $region15: #{cnn_forward.1} parent=1 // pred_check_branch
      %43 = sbr.rel (0) target = $region17
    $region16: #{cnn_forward.1} parent=1 // pred_region
      %s45 = ssub.s32 49152, 49152
      %46 = vsyncadd [#allocation5], %s45
      %s47 = sshll.u32 [#allocation6], 4
      %s48 = int_to_ptr.vmem [resolvable:$true] %s47
      %53 = dma.hbm_to_vmem [thread:$0]  %s3, 49152, %s48, [#allocation5], 256, 256, 16
    $region17: #{cnn_forward.1} parent=1 // pred_fallthru
      _
    // Predicated region
    $region18: #{cnn_forward.1} parent=1 // pred_check
      _
    $region19: #{cnn_forward.1} parent=1 // pred_check_branch
      %55 = sbr.rel (0) target = $region21
    $region20: #{cnn_forward.1} parent=1 // pred_region
      %s57 = ssub.s32 32, 32
      %58 = vsyncadd [#allocation8], %s57
      %s60 = sshll.u32 [#allocation7], 4
      %s61 = int_to_ptr.vmem [resolvable:$true] %s60
      %63 = dma.hbm_to_vmem [thread:$0]  %s4, 32, %s61, [#allocation8]
    $region21: #{cnn_forward.1} parent=1 // pred_fallthru
      _
    // Predicated region
    $region22: #{cnn_forward.1} parent=1 // pred_check
      _
    $region23: #{cnn_forward.1} parent=1 // pred_check_branch
      %65 = sbr.rel (0) target = $region25
    $region24: #{cnn_forward.1} parent=1 // pred_region
      _
    $region25: #{cnn_forward.1} parent=1 // pred_fallthru
      _
    // Predicated region
    $region26: #{cnn_forward.1} parent=1 // pred_check
      _
    $region27: #{cnn_forward.1} parent=1 // pred_check_branch
      %67 = sbr.rel (0) target = $region29
    $region28: #{cnn_forward.1} parent=1 // pred_region
      %s69 = ssub.s32 32, 32
      %70 = vsyncadd [#allocation8], %s69
      %s72 = sshll.u32 [#allocation9], 4
      %s73 = int_to_ptr.vmem [resolvable:$true] %s72
      %75 = dma.hbm_to_vmem [thread:$0]  %s6, 32, %s73, [#allocation8]
    $region29: #{cnn_forward.1} parent=1 // pred_fallthru
      _
    // Predicated region
    $region30: #{cnn_forward.1} parent=1 // pred_check
      _
    $region31: #{cnn_forward.1} parent=1 // pred_check_branch
      %77 = sbr.rel (0) target = $region33
    $region32: #{cnn_forward.1} parent=1 // pred_region
      %s79 = ssub.s32 2048, 2048
      %80 = vsyncadd [#allocation11], %s79
      %s81 = sshll.u32 [#allocation10], 4
      %s82 = int_to_ptr.vmem [resolvable:$true] %s81
      %87 = dma.hbm_to_vmem [thread:$0]  %s7, 2048, %s82, [#allocation11], 64, 64, 4
    $region33: #{cnn_forward.1} parent=1 // pred_fallthru
      _
    // Predicated region
    $region34: #{cnn_forward.1} parent=1 // pred_check
      _
    $region35: #{cnn_forward.1} parent=1 // pred_check_branch
      %89 = sbr.rel (0) target = $region37
    $region36: #{cnn_forward.1} parent=1 // pred_region
      %s91 = ssub.s32 16, 16
      %92 = vsyncadd [#allocation11], %s91
      %s94 = sshll.u32 [#allocation12], 4
      %s95 = int_to_ptr.vmem [resolvable:$true] %s94
      %97 = dma.hbm_to_vmem [thread:$0]  %s8, 16, %s95, [#allocation11]
    $region37: #{cnn_forward.1} parent=1 // pred_fallthru
      _
    // Predicated region
    $region38: #{cnn_forward.1} parent=1 // pred_check
      _
    $region39: #{cnn_forward.1} parent=1 // pred_check_branch
      %99 = sbr.rel (0) target = $region41
    $region40: #{cnn_forward.1} parent=1 // pred_region
      %100 = dma.done [#allocation3], 10240
    $region41: #{cnn_forward.1} parent=1 // pred_fallthru
      _
    // Predicated region
    $region42: #{cnn_forward.1} parent=1 // pred_check
      _
    $region43: #{cnn_forward.1} parent=1 // pred_check_branch
      %102 = sbr.rel (0) target = $region45
    $region44: #{cnn_forward.1} parent=1 // pred_region
      %103 = dma.done [#allocation5], 64
    $region45: #{cnn_forward.1} parent=1 // pred_fallthru
      _
    // Predicated region
    $region46: #{cnn_forward.1} parent=1 // pred_check
      _
    $region47: #{cnn_forward.1} parent=1 // pred_check_branch
      %105 = sbr.rel (0) target = $region49
    $region48: #{cnn_forward.1} parent=1 // pred_region
      %106 = dma.done [#allocation5], 49152
    $region49: #{cnn_forward.1} parent=1 // pred_fallthru
      _
    // Predicated region
    $region50: #{cnn_forward.1} parent=1 // pred_check
      _
    $region51: #{cnn_forward.1} parent=1 // pred_check_branch
      %108 = sbr.rel (0) target = $region53
    $region52: #{cnn_forward.1} parent=1 // pred_region
      %109 = dma.done [#allocation8], 32
    $region53: #{cnn_forward.1} parent=1 // pred_fallthru
      _
    // Predicated region
    $region54: #{cnn_forward.1} parent=1 // pred_check
      _
    $region55: #{cnn_forward.1} parent=1 // pred_check_branch
      %111 = sbr.rel (0) target = $region57
    $region56: #{cnn_forward.1} parent=1 // pred_region
      %112 = dma.done [#allocation8], 32
    $region57: #{cnn_forward.1} parent=1 // pred_fallthru
      _
    // Predicated region
    $region58: #{cnn_forward.1} parent=1 // pred_check
      _
    $region59: #{cnn_forward.1} parent=1 // pred_check_branch
      %114 = sbr.rel (0) target = $region61
    $region60: #{cnn_forward.1} parent=1 // pred_region
      %115 = dma.done [#allocation11], 2048
    $region61: #{cnn_forward.1} parent=1 // pred_fallthru
      _
    // Predicated region
    $region62: #{cnn_forward.1} parent=1 // pred_check
      _
    $region63: #{cnn_forward.1} parent=1 // pred_check_branch
      %117 = sbr.rel (0) target = $region65
    $region64: #{cnn_forward.1} parent=1 // pred_region
      %118 = dma.done [#allocation11], 16
    $region65: #{cnn_forward.1} parent=1 // pred_fallthru
      _
    %v120 = vld [vmem:[%s0] sm:$0xff]
    %v121 = vld [vmem:[%s0 + $0x8] sm:$0xff]
    %v122 = vld [vmem:[%s0 + $0x10] sm:$0xff]
    %v123 = vld [vmem:[%s0 + $0x18] sm:$0xff]
    %v124 = vld [vmem:[%s0 + $0x20] sm:$0xff]
    %v125 = vld [vmem:[%s0 + $0x28] sm:$0xff]
    %v126 = vld [vmem:[%s0 + $0x30] sm:$0xff]
    %v127 = vld [vmem:[%s0 + $0x38] sm:$0xff]
    %v128 = vld [vmem:[%s0 + $0x40] sm:$0xff]
    %v129 = vld [vmem:[%s0 + $0x48] sm:$0xff]
    %v130 = vld [vmem:[%s0 + $0x50] sm:$0xff]
    %v131 = vld [vmem:[%s0 + $0x58] sm:$0xff]
    %v132 = vld [vmem:[%s0 + $0x60] sm:$0xff]
    %v133 = vld [vmem:[%s0 + $0x68] sm:$0xff]
    %v134 = vld [vmem:[%s0 + $0x70] sm:$0xff]
    %v135 = vld [vmem:[%s0 + $0x78] sm:$0xff]
    %v136 = vld [vmem:[%s0 + $0x80] sm:$0xff]
    %v137 = vld [vmem:[%s0 + $0x88] sm:$0xff]
    %v138 = vld [vmem:[%s0 + $0x90] sm:$0xff]
    %v139 = vld [vmem:[%s0 + $0x98] sm:$0xff]
    %v140 = vld [vmem:[%s0 + $0xa0] sm:$0xff]
    %v141 = vld [vmem:[%s0 + $0xa8] sm:$0xff]
    %v142 = vld [vmem:[%s0 + $0xb0] sm:$0xff]
    %v143 = vld [vmem:[%s0 + $0xb8] sm:$0xff]
    %v144 = vld [vmem:[%s0 + $0xc0] sm:$0xff]
    %v145 = vld [vmem:[%s0 + $0xc8] sm:$0xff]
    %v146 = vld [vmem:[%s0 + $0xd0] sm:$0xff]
    %v147 = vld [vmem:[%s0 + $0xd8] sm:$0xff]
    %v148 = vld [vmem:[%s0 + $0xe0] sm:$0xff]
    %v149 = vld [vmem:[%s0 + $0xe8] sm:$0xff]
    %v150 = vld [vmem:[%s0 + $0xf0] sm:$0xff]
    %v151 = vld [vmem:[%s0 + $0xf8] sm:$0xff]
    %v152 = vld [vmem:[%s0 + $0x100] sm:$0xff]
    %v153 = vld [vmem:[%s0 + $0x108] sm:$0xff]
    %v154 = vld [vmem:[%s0 + $0x110] sm:$0xff]
    %v155 = vld [vmem:[%s0 + $0x118] sm:$0xff]
    %v156 = vld [vmem:[%s0 + $0x120] sm:$0xff]
    %v157 = vld [vmem:[%s0 + $0x128] sm:$0xff]
    %v158 = vld [vmem:[%s0 + $0x130] sm:$0xff]
    %v159 = vld [vmem:[%s0 + $0x138] sm:$0xff]
    %v160 = vld [vmem:[%s0 + $0x140] sm:$0xff]
    %v161 = vld [vmem:[%s0 + $0x148] sm:$0xff]
    %v162 = vld [vmem:[%s0 + $0x150] sm:$0xff]
    %v163 = vld [vmem:[%s0 + $0x158] sm:$0xff]
    %v164 = vld [vmem:[%s0 + $0x160] sm:$0xff]
    %v165 = vld [vmem:[%s0 + $0x168] sm:$0xff]
    %v166 = vld [vmem:[%s0 + $0x170] sm:$0xff]
    %v167 = vld [vmem:[%s0 + $0x178] sm:$0xff]
    %v168 = vld [vmem:[%s0 + $0x180] sm:$0xff]
    %v169 = vld [vmem:[%s0 + $0x188] sm:$0xff]
    %v170 = vld [vmem:[%s0 + $0x190] sm:$0xff]
    %v171 = vld [vmem:[%s0 + $0x198] sm:$0xff]
    %v172 = vld [vmem:[%s0 + $0x1a0] sm:$0xff]
    %v173 = vld [vmem:[%s0 + $0x1a8] sm:$0xff]
    %v174 = vld [vmem:[%s0 + $0x1b0] sm:$0xff]
    %v175 = vld [vmem:[%s0 + $0x1b8] sm:$0xff]
    %v176 = vld [vmem:[#allocation2] sm:$0xff]
    %v177 = vld [vmem:[#allocation2 + $0x8] sm:$0xff]
    %v178 = vld [vmem:[#allocation2 + $0x10] sm:$0xff]
    %v179 = vld [vmem:[#allocation2 + $0x18] sm:$0xff]
    %v180 = vld [vmem:[#allocation2 + $0x20] sm:$0xff]
    %v181 = vld [vmem:[#allocation2 + $0x28] sm:$0xff]
    %v182 = vld [vmem:[#allocation2 + $0x30] sm:$0xff]
    %v183 = vld [vmem:[#allocation2 + $0x38] sm:$0xff]
    %v184 = vld [vmem:[#allocation2 + $0x40] sm:$0xff]
    %v185 = vld [vmem:[#allocation2 + $0x48] sm:$0xff]
    %v186 = vld [vmem:[#allocation2 + $0x50] sm:$0xff]
    %v187 = vld [vmem:[#allocation2 + $0x58] sm:$0xff]
    %v188 = vld [vmem:[#allocation2 + $0x60] sm:$0xff]
    %v189 = vld [vmem:[#allocation2 + $0x68] sm:$0xff]
    %v190 = vld [vmem:[#allocation2 + $0x70] sm:$0xff]
    %v191 = vld [vmem:[#allocation2 + $0x78] sm:$0xff]
    %v192 = vld [vmem:[#allocation2 + $0x80] sm:$0xff]
    %v193 = vld [vmem:[#allocation2 + $0x88] sm:$0xff]
    %v194 = vld [vmem:[#allocation2 + $0x90] sm:$0xff]
    %v195 = vld [vmem:[#allocation2 + $0x98] sm:$0xff]
    %v196 = vld [vmem:[#allocation2 + $0xa0] sm:$0xff]
    %v197 = vld [vmem:[#allocation2 + $0xa8] sm:$0xff]
    %v198 = vld [vmem:[#allocation2 + $0xb0] sm:$0xff]
    %v199 = vld [vmem:[#allocation2 + $0xb8] sm:$0xff]
    %v200 = vld [vmem:[#allocation2 + $0xc0] sm:$0xff]
    %v201 = vld [vmem:[#allocation2 + $0xc8] sm:$0xff]
    %v202 = vld [vmem:[#allocation2 + $0xd0] sm:$0xff]
    %v203 = vld [vmem:[#allocation2 + $0xd8] sm:$0xff]
    %v204 = vld [vmem:[#allocation2 + $0xe0] sm:$0xff]
    %v205 = vld [vmem:[#allocation2 + $0xe8] sm:$0xff]
    %v206 = vld [vmem:[#allocation2 + $0xf0] sm:$0xff]
    %v207 = vld [vmem:[#allocation2 + $0xf8] sm:$0xff]
    %v208 = vld [vmem:[#allocation2 + $0x100] sm:$0xff]
    %v209 = vld [vmem:[#allocation2 + $0x108] sm:$0xff]
    %v210 = vld [vmem:[#allocation2 + $0x110] sm:$0xff]
    %v211 = vld [vmem:[#allocation2 + $0x118] sm:$0xff]
    %v212 = vld [vmem:[#allocation2 + $0x120] sm:$0xff]
    %v213 = vld [vmem:[#allocation2 + $0x128] sm:$0xff]
    %v214 = vld [vmem:[#allocation2 + $0x130] sm:$0xff]
    %v215 = vld [vmem:[#allocation2 + $0x138] sm:$0xff]
    %v216 = vld [vmem:[#allocation2 + $0x140] sm:$0xff]
    %v217 = vld [vmem:[#allocation2 + $0x148] sm:$0xff]
    %v218 = vld [vmem:[#allocation2 + $0x150] sm:$0xff]
    %v219 = vld [vmem:[#allocation2 + $0x158] sm:$0xff]
    %v220 = vld [vmem:[#allocation2 + $0x160] sm:$0xff]
    %v221 = vld [vmem:[#allocation2 + $0x168] sm:$0xff]
    %v222 = vld [vmem:[#allocation2 + $0x170] sm:$0xff]
    %v223 = vld [vmem:[#allocation2 + $0x178] sm:$0xff]
    %v224 = vld [vmem:[#allocation2 + $0x180] sm:$0xff]
    %v225 = vld [vmem:[#allocation2 + $0x188] sm:$0xff]
    %v226 = vld [vmem:[#allocation2 + $0x190] sm:$0xff]
    %v227 = vld [vmem:[#allocation2 + $0x198] sm:$0xff]
    %v228 = vld [vmem:[#allocation2 + $0x1a0] sm:$0xff]
    %v229 = vld [vmem:[#allocation2 + $0x1a8] sm:$0xff]
    %v230 = vld [vmem:[#allocation2 + $0x1b0] sm:$0xff]
    %v231 = vld [vmem:[#allocation2 + $0x1b8] sm:$0xff]
    %v232 = vld [vmem:[#allocation2 + $0x1c0] sm:$0xff]
    %v233 = vld [vmem:[#allocation2 + $0x1c8] sm:$0xff]
    %v234 = vld [vmem:[#allocation2 + $0x1d0] sm:$0xff]
    %v235 = vld [vmem:[#allocation2 + $0x1d8] sm:$0xff]
    %v236 = vld [vmem:[#allocation2 + $0x1e0] sm:$0xff]
    %v237 = vld [vmem:[#allocation2 + $0x1e8] sm:$0xff]
    %v238 = vld [vmem:[#allocation2 + $0x1f0] sm:$0xff]
    %v239 = vld [vmem:[#allocation2 + $0x1f8] sm:$0xff]
    %v240 = vld [vmem:[#allocation2 + $0x200] sm:$0xff]
    %v241 = vld [vmem:[#allocation2 + $0x208] sm:$0xff]
    %v242 = vld [vmem:[#allocation2 + $0x210] sm:$0xff]
    %v243 = vld [vmem:[#allocation2 + $0x218] sm:$0xff]
    %v244 = vld [vmem:[#allocation2 + $0x220] sm:$0xff]
    %v245 = vld [vmem:[#allocation2 + $0x228] sm:$0xff]
    %v246 = vld [vmem:[#allocation2 + $0x230] sm:$0xff]
    %v247 = vld [vmem:[#allocation2 + $0x238] sm:$0xff]
    %v248 = vld [vmem:[#allocation2 + $0x240] sm:$0xff]
    %v249 = vld [vmem:[#allocation2 + $0x248] sm:$0xff]
    %v250 = vld [vmem:[#allocation2 + $0x250] sm:$0xff]
    %v251 = vld [vmem:[#allocation2 + $0x258] sm:$0xff]
    %v252 = vld [vmem:[#allocation2 + $0x260] sm:$0xff]
    %v253 = vld [vmem:[#allocation2 + $0x268] sm:$0xff]
    %v254 = vld [vmem:[#allocation2 + $0x270] sm:$0xff]
    %v255 = vld [vmem:[#allocation2 + $0x278] sm:$0xff]
    %v312 = vunpack.c.l.b16 %v120
    %v313 = vunpack.c.h.b16 %v120
    %v314 = vunpack.c.l.b16 %v121
    %v315 = vunpack.c.h.b16 %v121
    %v316 = vunpack.c.l.b16 %v122
    %v317 = vunpack.c.h.b16 %v122
    %v318 = vunpack.c.l.b16 %v123
    %v319 = vunpack.c.h.b16 %v123
    %v320 = vunpack.c.l.b16 %v124
    %v321 = vunpack.c.h.b16 %v124
    %v322 = vunpack.c.l.b16 %v125
    %v323 = vunpack.c.h.b16 %v125
    %v324 = vunpack.c.l.b16 %v126
    %v325 = vunpack.c.h.b16 %v126
    %v326 = vunpack.c.l.b16 %v127
    %v327 = vunpack.c.h.b16 %v127
    %v328 = vunpack.c.l.b16 %v128
    %v329 = vunpack.c.h.b16 %v128
    %v330 = vunpack.c.l.b16 %v129
    %v331 = vunpack.c.h.b16 %v129
    %v332 = vunpack.c.l.b16 %v130
    %v333 = vunpack.c.h.b16 %v130
    %v334 = vunpack.c.l.b16 %v131
    %v335 = vunpack.c.h.b16 %v131
    %v336 = vunpack.c.l.b16 %v132
    %v337 = vunpack.c.h.b16 %v132
    %v338 = vunpack.c.l.b16 %v133
    %v339 = vunpack.c.h.b16 %v133
    %v340 = vunpack.c.l.b16 %v134
    %v341 = vunpack.c.h.b16 %v134
    %v342 = vunpack.c.l.b16 %v135
    %v343 = vunpack.c.h.b16 %v135
    %v344 = vunpack.c.l.b16 %v136
    %v345 = vunpack.c.h.b16 %v136
    %v346 = vunpack.c.l.b16 %v137
    %v347 = vunpack.c.h.b16 %v137
    %v348 = vunpack.c.l.b16 %v138
    %v349 = vunpack.c.h.b16 %v138
    %v350 = vunpack.c.l.b16 %v139
    %v351 = vunpack.c.h.b16 %v139
    %v352 = vunpack.c.l.b16 %v140
    %v353 = vunpack.c.h.b16 %v140
    %v354 = vunpack.c.l.b16 %v141
    %v355 = vunpack.c.h.b16 %v141
    %v356 = vunpack.c.l.b16 %v142
    %v357 = vunpack.c.h.b16 %v142
    %v358 = vunpack.c.l.b16 %v143
    %v359 = vunpack.c.h.b16 %v143
    %v360 = vunpack.c.l.b16 %v144
    %v361 = vunpack.c.h.b16 %v144
    %v362 = vunpack.c.l.b16 %v145
    %v363 = vunpack.c.h.b16 %v145
    %v364 = vunpack.c.l.b16 %v146
    %v365 = vunpack.c.h.b16 %v146
    %v366 = vunpack.c.l.b16 %v147
    %v367 = vunpack.c.h.b16 %v147
    %v368 = vunpack.c.l.b16 %v148
    %v369 = vunpack.c.h.b16 %v148
    %v370 = vunpack.c.l.b16 %v149
    %v371 = vunpack.c.h.b16 %v149
    %v372 = vunpack.c.l.b16 %v150
    %v373 = vunpack.c.h.b16 %v150
    %v374 = vunpack.c.l.b16 %v151
    %v375 = vunpack.c.h.b16 %v151
    %v376 = vunpack.c.l.b16 %v152
    %v377 = vunpack.c.h.b16 %v152
    %v378 = vunpack.c.l.b16 %v153
    %v379 = vunpack.c.h.b16 %v153
    %v380 = vunpack.c.l.b16 %v154
    %v381 = vunpack.c.h.b16 %v154
    %v382 = vunpack.c.l.b16 %v155
    %v383 = vunpack.c.h.b16 %v155
    %v384 = vunpack.c.l.b16 %v156
    %v385 = vunpack.c.h.b16 %v156
    %v386 = vunpack.c.l.b16 %v157
    %v387 = vunpack.c.h.b16 %v157
    %v388 = vunpack.c.l.b16 %v158
    %v389 = vunpack.c.h.b16 %v158
    %v390 = vunpack.c.l.b16 %v159
    %v391 = vunpack.c.h.b16 %v159
    %v392 = vunpack.c.l.b16 %v160
    %v393 = vunpack.c.h.b16 %v160
    %v394 = vunpack.c.l.b16 %v161
    %v395 = vunpack.c.h.b16 %v161
    %v396 = vunpack.c.l.b16 %v162
    %v397 = vunpack.c.h.b16 %v162
    %v398 = vunpack.c.l.b16 %v163
    %v399 = vunpack.c.h.b16 %v163
    %v400 = vunpack.c.l.b16 %v164
    %v401 = vunpack.c.h.b16 %v164
    %v402 = vunpack.c.l.b16 %v165
    %v403 = vunpack.c.h.b16 %v165
    %v404 = vunpack.c.l.b16 %v166
    %v405 = vunpack.c.h.b16 %v166
    %v406 = vunpack.c.l.b16 %v167
    %v407 = vunpack.c.h.b16 %v167
    %v408 = vunpack.c.l.b16 %v168
    %v409 = vunpack.c.h.b16 %v168
    %v410 = vunpack.c.l.b16 %v169
    %v411 = vunpack.c.h.b16 %v169
    %v412 = vunpack.c.l.b16 %v170
    %v413 = vunpack.c.h.b16 %v170
    %v414 = vunpack.c.l.b16 %v171
    %v415 = vunpack.c.h.b16 %v171
    %v416 = vunpack.c.l.b16 %v172
    %v417 = vunpack.c.h.b16 %v172
    %v418 = vunpack.c.l.b16 %v173
    %v419 = vunpack.c.h.b16 %v173
    %v420 = vunpack.c.l.b16 %v174
    %v421 = vunpack.c.h.b16 %v174
    %v422 = vunpack.c.l.b16 %v175
    %v423 = vunpack.c.h.b16 %v175
    %v424 = vpack.c.b16 %v314, %v312
    %v425 = vpack.c.b16 %v315, %v313
    %v426 = vpack.c.b16 %v318, %v316
    %v427 = vpack.c.b16 %v319, %v317
    %v428 = vpack.c.b16 %v322, %v320
    %v429 = vpack.c.b16 %v323, %v321
    %v430 = vpack.c.b16 %v326, %v324
    %v431 = vpack.c.b16 %v327, %v325
    %v432 = vpack.c.b16 %v330, %v328
    %v433 = vpack.c.b16 %v331, %v329
    %v434 = vpack.c.b16 %v334, %v332
    %v435 = vpack.c.b16 %v335, %v333
    %v436 = vpack.c.b16 %v338, %v336
    %v437 = vpack.c.b16 %v339, %v337
    %v438 = vpack.c.b16 %v342, %v340
    %v439 = vpack.c.b16 %v343, %v341
    %v440 = vpack.c.b16 %v346, %v344
    %v441 = vpack.c.b16 %v347, %v345
    %v442 = vpack.c.b16 %v350, %v348
    %v443 = vpack.c.b16 %v351, %v349
    %v444 = vpack.c.b16 %v354, %v352
    %v445 = vpack.c.b16 %v355, %v353
    %v446 = vpack.c.b16 %v358, %v356
    %v447 = vpack.c.b16 %v359, %v357
    %v448 = vpack.c.b16 %v362, %v360
    %v449 = vpack.c.b16 %v363, %v361
    %v450 = vpack.c.b16 %v366, %v364
    %v451 = vpack.c.b16 %v367, %v365
    %v452 = vpack.c.b16 %v370, %v368
    %v453 = vpack.c.b16 %v371, %v369
    %v454 = vpack.c.b16 %v374, %v372
    %v455 = vpack.c.b16 %v375, %v373
    %v456 = vpack.c.b16 %v378, %v376
    %v457 = vpack.c.b16 %v379, %v377
    %v458 = vpack.c.b16 %v382, %v380
    %v459 = vpack.c.b16 %v383, %v381
    %v460 = vpack.c.b16 %v386, %v384
    %v461 = vpack.c.b16 %v387, %v385
    %v462 = vpack.c.b16 %v390, %v388
    %v463 = vpack.c.b16 %v391, %v389
    %v464 = vpack.c.b16 %v394, %v392
    %v465 = vpack.c.b16 %v395, %v393
    %v466 = vpack.c.b16 %v398, %v396
    %v467 = vpack.c.b16 %v399, %v397
    %v468 = vpack.c.b16 %v402, %v400
    %v469 = vpack.c.b16 %v403, %v401
    %v470 = vpack.c.b16 %v406, %v404
    %v471 = vpack.c.b16 %v407, %v405
    %v472 = vpack.c.b16 %v410, %v408
    %v473 = vpack.c.b16 %v411, %v409
    %v474 = vpack.c.b16 %v414, %v412
    %v475 = vpack.c.b16 %v415, %v413
    %v476 = vpack.c.b16 %v418, %v416
    %v477 = vpack.c.b16 %v419, %v417
    %v478 = vpack.c.b16 %v422, %v420
    %v479 = vpack.c.b16 %v423, %v421
    %v588 = vunpack.c.l.b16 %v176
    %v589 = vunpack.c.h.b16 %v176
    %v590 = vunpack.c.l.b16 %v177
    %v591 = vunpack.c.h.b16 %v177
    %v592 = vunpack.c.l.b16 %v178
    %v593 = vunpack.c.h.b16 %v178
    %v594 = vunpack.c.l.b16 %v179
    %v595 = vunpack.c.h.b16 %v179
    %v596 = vunpack.c.l.b16 %v180
    %v597 = vunpack.c.h.b16 %v180
    %v598 = vunpack.c.l.b16 %v181
    %v599 = vunpack.c.h.b16 %v181
    %v600 = vunpack.c.l.b16 %v182
    %v601 = vunpack.c.h.b16 %v182
    %v602 = vunpack.c.l.b16 %v183
    %v603 = vunpack.c.h.b16 %v183
    %v604 = vunpack.c.l.b16 %v184
    %v605 = vunpack.c.h.b16 %v184
    %v606 = vunpack.c.l.b16 %v185
    %v607 = vunpack.c.h.b16 %v185
    %v608 = vunpack.c.l.b16 %v186
    %v609 = vunpack.c.h.b16 %v186
    %v610 = vunpack.c.l.b16 %v187
    %v611 = vunpack.c.h.b16 %v187
    %v612 = vunpack.c.l.b16 %v188
    %v613 = vunpack.c.h.b16 %v188
    %v614 = vunpack.c.l.b16 %v189
    %v615 = vunpack.c.h.b16 %v189
    %v616 = vunpack.c.l.b16 %v190
    %v617 = vunpack.c.h.b16 %v190
    %v618 = vunpack.c.l.b16 %v191
    %v619 = vunpack.c.h.b16 %v191
    %v620 = vunpack.c.l.b16 %v192
    %v621 = vunpack.c.h.b16 %v192
    %v622 = vunpack.c.l.b16 %v193
    %v623 = vunpack.c.h.b16 %v193
    %v624 = vunpack.c.l.b16 %v194
    %v625 = vunpack.c.h.b16 %v194
    %v626 = vunpack.c.l.b16 %v195
    %v627 = vunpack.c.h.b16 %v195
    %v628 = vunpack.c.l.b16 %v196
    %v629 = vunpack.c.h.b16 %v196
    %v630 = vunpack.c.l.b16 %v197
    %v631 = vunpack.c.h.b16 %v197
    %v632 = vunpack.c.l.b16 %v198
    %v633 = vunpack.c.h.b16 %v198
    %v634 = vunpack.c.l.b16 %v199
    %v635 = vunpack.c.h.b16 %v199
    %v636 = vunpack.c.l.b16 %v200
    %v637 = vunpack.c.h.b16 %v200
    %v638 = vunpack.c.l.b16 %v201
    %v639 = vunpack.c.h.b16 %v201
    %v640 = vunpack.c.l.b16 %v202
    %v641 = vunpack.c.h.b16 %v202
    %v642 = vunpack.c.l.b16 %v203
    %v643 = vunpack.c.h.b16 %v203
    %v644 = vunpack.c.l.b16 %v204
    %v645 = vunpack.c.h.b16 %v204
    %v646 = vunpack.c.l.b16 %v205
    %v647 = vunpack.c.h.b16 %v205
    %v648 = vunpack.c.l.b16 %v206
    %v649 = vunpack.c.h.b16 %v206
    %v650 = vunpack.c.l.b16 %v207
    %v651 = vunpack.c.h.b16 %v207
    %v652 = vunpack.c.l.b16 %v208
    %v653 = vunpack.c.h.b16 %v208
    %v654 = vunpack.c.l.b16 %v209
    %v655 = vunpack.c.h.b16 %v209
    %v656 = vunpack.c.l.b16 %v210
    %v657 = vunpack.c.h.b16 %v210
    %v658 = vunpack.c.l.b16 %v211
    %v659 = vunpack.c.h.b16 %v211
    %v660 = vunpack.c.l.b16 %v212
    %v661 = vunpack.c.h.b16 %v212
    %v662 = vunpack.c.l.b16 %v213
    %v663 = vunpack.c.h.b16 %v213
    %v664 = vunpack.c.l.b16 %v214
    %v665 = vunpack.c.h.b16 %v214
    %v666 = vunpack.c.l.b16 %v215
    %v667 = vunpack.c.h.b16 %v215
    %v668 = vunpack.c.l.b16 %v216
    %v669 = vunpack.c.h.b16 %v216
    %v670 = vunpack.c.l.b16 %v217
    %v671 = vunpack.c.h.b16 %v217
    %v672 = vunpack.c.l.b16 %v218
    %v673 = vunpack.c.h.b16 %v218
    %v674 = vunpack.c.l.b16 %v219
    %v675 = vunpack.c.h.b16 %v219
    %v676 = vunpack.c.l.b16 %v220
    %v677 = vunpack.c.h.b16 %v220
    %v678 = vunpack.c.l.b16 %v221
    %v679 = vunpack.c.h.b16 %v221
    %v680 = vunpack.c.l.b16 %v222
    %v681 = vunpack.c.h.b16 %v222
    %v682 = vunpack.c.l.b16 %v223
    %v683 = vunpack.c.h.b16 %v223
    %v684 = vunpack.c.l.b16 %v224
    %v685 = vunpack.c.h.b16 %v224
    %v686 = vunpack.c.l.b16 %v225
    %v687 = vunpack.c.h.b16 %v225
    %v688 = vunpack.c.l.b16 %v226
    %v689 = vunpack.c.h.b16 %v226
    %v690 = vunpack.c.l.b16 %v227
    %v691 = vunpack.c.h.b16 %v227
    %v692 = vunpack.c.l.b16 %v228
    %v693 = vunpack.c.h.b16 %v228
    %v694 = vunpack.c.l.b16 %v229
    %v695 = vunpack.c.h.b16 %v229
    %v696 = vunpack.c.l.b16 %v230
    %v697 = vunpack.c.h.b16 %v230
    %v698 = vunpack.c.l.b16 %v231
    %v699 = vunpack.c.h.b16 %v231
    %v700 = vunpack.c.l.b16 %v232
    %v701 = vunpack.c.h.b16 %v232
    %v702 = vunpack.c.l.b16 %v233
    %v703 = vunpack.c.h.b16 %v233
    %v704 = vunpack.c.l.b16 %v234
    %v705 = vunpack.c.h.b16 %v234
    %v706 = vunpack.c.l.b16 %v235
    %v707 = vunpack.c.h.b16 %v235
    %v708 = vunpack.c.l.b16 %v236
    %v709 = vunpack.c.h.b16 %v236
    %v710 = vunpack.c.l.b16 %v237
    %v711 = vunpack.c.h.b16 %v237
    %v712 = vunpack.c.l.b16 %v238
    %v713 = vunpack.c.h.b16 %v238
    %v714 = vunpack.c.l.b16 %v239
    %v715 = vunpack.c.h.b16 %v239
    %v716 = vunpack.c.l.b16 %v240
    %v717 = vunpack.c.h.b16 %v240
    %v718 = vunpack.c.l.b16 %v241
    %v719 = vunpack.c.h.b16 %v241
    %v720 = vunpack.c.l.b16 %v242
    %v721 = vunpack.c.h.b16 %v242
    %v722 = vunpack.c.l.b16 %v243
    %v723 = vunpack.c.h.b16 %v243
    %v724 = vunpack.c.l.b16 %v244
    %v725 = vunpack.c.h.b16 %v244
    %v726 = vunpack.c.l.b16 %v245
    %v727 = vunpack.c.h.b16 %v245
    %v728 = vunpack.c.l.b16 %v246
    %v729 = vunpack.c.h.b16 %v246
    %v730 = vunpack.c.l.b16 %v247
    %v731 = vunpack.c.h.b16 %v247
    %v732 = vunpack.c.l.b16 %v248
    %v733 = vunpack.c.h.b16 %v248
    %v734 = vunpack.c.l.b16 %v249
    %v735 = vunpack.c.h.b16 %v249
    %v736 = vunpack.c.l.b16 %v250
    %v737 = vunpack.c.h.b16 %v250
    %v738 = vunpack.c.l.b16 %v251
    %v739 = vunpack.c.h.b16 %v251
    %v740 = vunpack.c.l.b16 %v252
    %v741 = vunpack.c.h.b16 %v252
    %v742 = vunpack.c.l.b16 %v253
    %v743 = vunpack.c.h.b16 %v253
    %v744 = vunpack.c.l.b16 %v254
    %v745 = vunpack.c.h.b16 %v254
    %v746 = vunpack.c.l.b16 %v255
    %v747 = vunpack.c.h.b16 %v255
    %v748 = vpack.c.b16 %v596, %v588
    %v749 = vpack.c.b16 %v597, %v589
    %v750 = vpack.c.b16 %v598, %v590
    %v751 = vpack.c.b16 %v599, %v591
    %v752 = vpack.c.b16 %v600, %v592
    %v753 = vpack.c.b16 %v601, %v593
    %v754 = vpack.c.b16 %v602, %v594
    %v755 = vpack.c.b16 %v603, %v595
    %v756 = vpack.c.b16 %v612, %v604
    %v757 = vpack.c.b16 %v613, %v605
    %v758 = vpack.c.b16 %v614, %v606
    %v759 = vpack.c.b16 %v615, %v607
    %v760 = vpack.c.b16 %v616, %v608
    %v761 = vpack.c.b16 %v617, %v609
    %v762 = vpack.c.b16 %v618, %v610
    %v763 = vpack.c.b16 %v619, %v611
    %v764 = vpack.c.b16 %v628, %v620
    %v765 = vpack.c.b16 %v629, %v621
    %v766 = vpack.c.b16 %v630, %v622
    %v767 = vpack.c.b16 %v631, %v623
    %v768 = vpack.c.b16 %v632, %v624
    %v769 = vpack.c.b16 %v633, %v625
    %v770 = vpack.c.b16 %v634, %v626
    %v771 = vpack.c.b16 %v635, %v627
    %v772 = vpack.c.b16 %v644, %v636
    %v773 = vpack.c.b16 %v645, %v637
    %v774 = vpack.c.b16 %v646, %v638
    %v775 = vpack.c.b16 %v647, %v639
    %v776 = vpack.c.b16 %v648, %v640
    %v777 = vpack.c.b16 %v649, %v641
    %v778 = vpack.c.b16 %v650, %v642
    %v779 = vpack.c.b16 %v651, %v643
    %v780 = vpack.c.b16 %v660, %v652
    %v781 = vpack.c.b16 %v661, %v653
    %v782 = vpack.c.b16 %v662, %v654
    %v783 = vpack.c.b16 %v663, %v655
    %v784 = vpack.c.b16 %v664, %v656
    %v785 = vpack.c.b16 %v665, %v657
    %v786 = vpack.c.b16 %v666, %v658
    %v787 = vpack.c.b16 %v667, %v659
    %v788 = vpack.c.b16 %v676, %v668
    %v789 = vpack.c.b16 %v677, %v669
    %v790 = vpack.c.b16 %v678, %v670
    %v791 = vpack.c.b16 %v679, %v671
    %v792 = vpack.c.b16 %v680, %v672
    %v793 = vpack.c.b16 %v681, %v673
    %v794 = vpack.c.b16 %v682, %v674
    %v795 = vpack.c.b16 %v683, %v675
    %v796 = vpack.c.b16 %v692, %v684
    %v797 = vpack.c.b16 %v693, %v685
    %v798 = vpack.c.b16 %v694, %v686
    %v799 = vpack.c.b16 %v695, %v687
    %v800 = vpack.c.b16 %v696, %v688
    %v801 = vpack.c.b16 %v697, %v689
    %v802 = vpack.c.b16 %v698, %v690
    %v803 = vpack.c.b16 %v699, %v691
    %v804 = vpack.c.b16 %v708, %v700
    %v805 = vpack.c.b16 %v709, %v701
    %v806 = vpack.c.b16 %v710, %v702
    %v807 = vpack.c.b16 %v711, %v703
    %v808 = vpack.c.b16 %v712, %v704
    %v809 = vpack.c.b16 %v713, %v705
    %v810 = vpack.c.b16 %v714, %v706
    %v811 = vpack.c.b16 %v715, %v707
    %v812 = vpack.c.b16 %v724, %v716
    %v813 = vpack.c.b16 %v725, %v717
    %v814 = vpack.c.b16 %v726, %v718
    %v815 = vpack.c.b16 %v727, %v719
    %v816 = vpack.c.b16 %v728, %v720
    %v817 = vpack.c.b16 %v729, %v721
    %v818 = vpack.c.b16 %v730, %v722
    %v819 = vpack.c.b16 %v731, %v723
    %v820 = vpack.c.b16 %v740, %v732
    %v821 = vpack.c.b16 %v741, %v733
    %v822 = vpack.c.b16 %v742, %v734
    %v823 = vpack.c.b16 %v743, %v735
    %v824 = vpack.c.b16 %v744, %v736
    %v825 = vpack.c.b16 %v745, %v737
    %v826 = vpack.c.b16 %v746, %v738
    %v827 = vpack.c.b16 %v747, %v739
    %vm908 = vcmask 261120
    %v910 = vsel %vm908, %v425, 0
    %v913 = vsel %vm908, %v427, 0
    %v916 = vsel %vm908, %v429, 0
    %v919 = vsel %vm908, %v431, 0
    %v922 = vsel %vm908, %v433, 0
    %v925 = vsel %vm908, %v435, 0
    %v928 = vsel %vm908, %v437, 0
    %v931 = vsel %vm908, %v439, 0
    %v934 = vsel %vm908, %v441, 0
    %v937 = vsel %vm908, %v443, 0
    %v940 = vsel %vm908, %v445, 0
    %v943 = vsel %vm908, %v447, 0
    %v946 = vsel %vm908, %v449, 0
    %v949 = vsel %vm908, %v451, 0
    %v952 = vsel %vm908, %v453, 0
    %v955 = vsel %vm908, %v455, 0
    %v958 = vsel %vm908, %v457, 0
    %v961 = vsel %vm908, %v459, 0
    %v964 = vsel %vm908, %v461, 0
    %v967 = vsel %vm908, %v463, 0
    %v970 = vsel %vm908, %v465, 0
    %v973 = vsel %vm908, %v467, 0
    %v976 = vsel %vm908, %v469, 0
    %v979 = vsel %vm908, %v471, 0
    %v982 = vsel %vm908, %v473, 0
    %v985 = vsel %vm908, %v475, 0
    %v988 = vsel %vm908, %v477, 0
    %v991 = vsel %vm908, %v479, 0
    %993 = vmatprep.subr.bf16.mxu0 %v805
    %994 = vmatpush1.bf16.msra.mxu0 %v804
    %995 = vmatprep.subr.bf16.mxu0 %v797
    %996 = vmatpush1.bf16.msra.mxu0 %v796
    %997 = vmatprep.subr.bf16.mxu0 %v789
    %998 = vmatpush1.bf16.msra.mxu0 %v788
    %999 = vmatprep.subr.bf16.mxu0 %v781
    %1000 = vmatpush1.bf16.msra.mxu0 %v780
    %1001 = vmatprep.subr.bf16.mxu0 %v773
    %1002 = vmatpush1.bf16.msra.mxu0 %v772
    %1003 = vmatprep.subr.bf16.mxu0 %v765
    %1004 = vmatpush1.bf16.msra.mxu0 %v764
    %1005 = vmatprep.subr.bf16.mxu0 %v757
    %1006 = vmatpush1.bf16.msra.mxu0 %v756
    %1007 = vmatprep.subr.bf16.mxu0 %v749
    %1008 = vmatpush1.bf16.msra.mxu0 %v748
    %1009 = vmatprep.subr.bf16.mxu0 0
    %1010 = vmatpush2.bf16.msra.mxu0 0
    %1011 = vmatprep.subr.bf16.mxu0 0
    %1012 = vmatpush2.bf16.msra.mxu0 0
    %1013 = vmatprep.subr.bf16.mxu0 0
    %1014 = vmatpush2.bf16.msra.mxu0 0
    %1015 = vmatprep.subr.bf16.mxu0 0
    %1016 = vmatpush2.bf16.msra.mxu0 0
    %1017 = vmatprep.subr.bf16.mxu0 0
    %1018 = vmatpush2.bf16.msra.mxu0 0
    %1019 = vmatprep.subr.bf16.mxu0 0
    %1020 = vmatpush2.bf16.msra.mxu0 0
    %1021 = vmatprep.subr.bf16.mxu0 %v821
    %1022 = vmatpush2.bf16.msra.mxu0 %v820
    %1023 = vmatprep.subr.bf16.mxu0 %v813
    %1024 = vmatpush2.bf16.msra.mxu0 %v812
    %1025 = vmatprep.mubr.bf16.mxu0 %v910
    %1026 = vmatmul.mubr.bf16.gmra.mxu0 %v424
    %v1027 = vpop.f32.mrf.mxu0
    %v1028 = vadd.f32 0.0, %v1027
    %v1029 = vpop.f32.mrf.mxu0
    %v1030 = vadd.f32 0.0, %v1029
    %v1031 = vpop.f32.mrf.mxu0
    %v1032 = vadd.f32 0.0, %v1031
    %v1033 = vpop.f32.mrf.mxu0
    %v1034 = vadd.f32 0.0, %v1033
    %1035 = vmatprep.mubr.bf16.mxu0 %v913
    %1036 = vmatmul.mubr.bf16.gmra.mxu0 %v426
    %v1037 = vpop.f32.mrf.mxu0
    %v1038 = vadd.f32 0.0, %v1037
    %v1039 = vpop.f32.mrf.mxu0
    %v1040 = vadd.f32 0.0, %v1039
    %v1041 = vpop.f32.mrf.mxu0
    %v1042 = vadd.f32 0.0, %v1041
    %v1043 = vpop.f32.mrf.mxu0
    %v1044 = vadd.f32 0.0, %v1043
    %1045 = vmatprep.mubr.bf16.mxu0 %v916
    %1046 = vmatmul.mubr.bf16.gmra.mxu0 %v428
    %v1047 = vpop.f32.mrf.mxu0
    %v1048 = vadd.f32 0.0, %v1047
    %v1049 = vpop.f32.mrf.mxu0
    %v1050 = vadd.f32 0.0, %v1049
    %v1051 = vpop.f32.mrf.mxu0
    %v1052 = vadd.f32 0.0, %v1051
    %v1053 = vpop.f32.mrf.mxu0
    %v1054 = vadd.f32 0.0, %v1053
    %1055 = vmatprep.mubr.bf16.mxu0 %v919
    %1056 = vmatmul.mubr.bf16.gmra.mxu0 %v430
    %v1057 = vpop.f32.mrf.mxu0
    %v1058 = vadd.f32 0.0, %v1057
    %v1059 = vpop.f32.mrf.mxu0
    %v1060 = vadd.f32 0.0, %v1059
    %v1061 = vpop.f32.mrf.mxu0
    %v1062 = vadd.f32 0.0, %v1061
    %v1063 = vpop.f32.mrf.mxu0
    %v1064 = vadd.f32 0.0, %v1063
    %1065 = vmatprep.mubr.bf16.mxu0 %v922
    %1066 = vmatmul.mubr.bf16.gmra.mxu0 %v432
    %v1067 = vpop.f32.mrf.mxu0
    %v1068 = vadd.f32 0.0, %v1067
    %v1069 = vpop.f32.mrf.mxu0
    %v1070 = vadd.f32 0.0, %v1069
    %v1071 = vpop.f32.mrf.mxu0
    %v1072 = vadd.f32 0.0, %v1071
    %v1073 = vpop.f32.mrf.mxu0
    %v1074 = vadd.f32 0.0, %v1073
    %1075 = vmatprep.mubr.bf16.mxu0 %v925
    %1076 = vmatmul.mubr.bf16.gmra.mxu0 %v434
    %v1077 = vpop.f32.mrf.mxu0
    %v1078 = vadd.f32 0.0, %v1077
    %v1079 = vpop.f32.mrf.mxu0
    %v1080 = vadd.f32 0.0, %v1079
    %v1081 = vpop.f32.mrf.mxu0
    %v1082 = vadd.f32 0.0, %v1081
    %v1083 = vpop.f32.mrf.mxu0
    %v1084 = vadd.f32 0.0, %v1083
    %1085 = vmatprep.mubr.bf16.mxu0 %v928
    %1086 = vmatmul.mubr.bf16.gmra.mxu0 %v436
    %v1087 = vpop.f32.mrf.mxu0
    %v1088 = vadd.f32 0.0, %v1087
    %v1089 = vpop.f32.mrf.mxu0
    %v1090 = vadd.f32 0.0, %v1089
    %v1091 = vpop.f32.mrf.mxu0
    %v1092 = vadd.f32 0.0, %v1091
    %v1093 = vpop.f32.mrf.mxu0
    %v1094 = vadd.f32 0.0, %v1093
    %1095 = vmatprep.mubr.bf16.mxu0 %v931
    %1096 = vmatmul.mubr.bf16.gmra.mxu0 %v438
    %v1097 = vpop.f32.mrf.mxu0
    %v1098 = vadd.f32 0.0, %v1097
    %v1099 = vpop.f32.mrf.mxu0
    %v1100 = vadd.f32 0.0, %v1099
    %v1101 = vpop.f32.mrf.mxu0
    %v1102 = vadd.f32 0.0, %v1101
    %v1103 = vpop.f32.mrf.mxu0
    %v1104 = vadd.f32 0.0, %v1103
    %1105 = vmatprep.mubr.bf16.mxu0 %v934
    %1106 = vmatmul.mubr.bf16.gmra.mxu0 %v440
    %v1107 = vpop.f32.mrf.mxu0
    %v1108 = vadd.f32 0.0, %v1107
    %v1109 = vpop.f32.mrf.mxu0
    %v1110 = vadd.f32 0.0, %v1109
    %v1111 = vpop.f32.mrf.mxu0
    %v1112 = vadd.f32 0.0, %v1111
    %v1113 = vpop.f32.mrf.mxu0
    %v1114 = vadd.f32 0.0, %v1113
    %1115 = vmatprep.mubr.bf16.mxu0 %v937
    %1116 = vmatmul.mubr.bf16.gmra.mxu0 %v442
    %v1117 = vpop.f32.mrf.mxu0
    %v1118 = vadd.f32 0.0, %v1117
    %v1119 = vpop.f32.mrf.mxu0
    %v1120 = vadd.f32 0.0, %v1119
    %v1121 = vpop.f32.mrf.mxu0
    %v1122 = vadd.f32 0.0, %v1121
    %v1123 = vpop.f32.mrf.mxu0
    %v1124 = vadd.f32 0.0, %v1123
    %1125 = vmatprep.mubr.bf16.mxu0 %v940
    %1126 = vmatmul.mubr.bf16.gmra.mxu0 %v444
    %v1127 = vpop.f32.mrf.mxu0
    %v1128 = vadd.f32 0.0, %v1127
    %v1129 = vpop.f32.mrf.mxu0
    %v1130 = vadd.f32 0.0, %v1129
    %v1131 = vpop.f32.mrf.mxu0
    %v1132 = vadd.f32 0.0, %v1131
    %v1133 = vpop.f32.mrf.mxu0
    %v1134 = vadd.f32 0.0, %v1133
    %1135 = vmatprep.mubr.bf16.mxu0 %v943
    %1136 = vmatmul.mubr.bf16.gmra.mxu0 %v446
    %v1137 = vpop.f32.mrf.mxu0
    %v1138 = vadd.f32 0.0, %v1137
    %v1139 = vpop.f32.mrf.mxu0
    %v1140 = vadd.f32 0.0, %v1139
    %v1141 = vpop.f32.mrf.mxu0
    %v1142 = vadd.f32 0.0, %v1141
    %v1143 = vpop.f32.mrf.mxu0
    %v1144 = vadd.f32 0.0, %v1143
    %1145 = vmatprep.mubr.bf16.mxu0 %v946
    %1146 = vmatmul.mubr.bf16.gmra.mxu0 %v448
    %v1147 = vpop.f32.mrf.mxu0
    %v1148 = vadd.f32 0.0, %v1147
    %v1149 = vpop.f32.mrf.mxu0
    %v1150 = vadd.f32 0.0, %v1149
    %v1151 = vpop.f32.mrf.mxu0
    %v1152 = vadd.f32 0.0, %v1151
    %v1153 = vpop.f32.mrf.mxu0
    %v1154 = vadd.f32 0.0, %v1153
    %1155 = vmatprep.mubr.bf16.mxu0 %v949
    %1156 = vmatmul.mubr.bf16.gmra.mxu0 %v450
    %v1157 = vpop.f32.mrf.mxu0
    %v1158 = vadd.f32 0.0, %v1157
    %v1159 = vpop.f32.mrf.mxu0
    %v1160 = vadd.f32 0.0, %v1159
    %v1161 = vpop.f32.mrf.mxu0
    %v1162 = vadd.f32 0.0, %v1161
    %v1163 = vpop.f32.mrf.mxu0
    %v1164 = vadd.f32 0.0, %v1163
    %1165 = vmatprep.mubr.bf16.mxu0 %v952
    %1166 = vmatmul.mubr.bf16.gmra.mxu0 %v452
    %v1167 = vpop.f32.mrf.mxu0
    %v1168 = vadd.f32 0.0, %v1167
    %v1169 = vpop.f32.mrf.mxu0
    %v1170 = vadd.f32 0.0, %v1169
    %v1171 = vpop.f32.mrf.mxu0
    %v1172 = vadd.f32 0.0, %v1171
    %v1173 = vpop.f32.mrf.mxu0
    %v1174 = vadd.f32 0.0, %v1173
    %1175 = vmatprep.mubr.bf16.mxu0 %v955
    %1176 = vmatmul.mubr.bf16.gmra.mxu0 %v454
    %v1177 = vpop.f32.mrf.mxu0
    %v1178 = vadd.f32 0.0, %v1177
    %v1179 = vpop.f32.mrf.mxu0
    %v1180 = vadd.f32 0.0, %v1179
    %v1181 = vpop.f32.mrf.mxu0
    %v1182 = vadd.f32 0.0, %v1181
    %v1183 = vpop.f32.mrf.mxu0
    %v1184 = vadd.f32 0.0, %v1183
    %1185 = vmatprep.mubr.bf16.mxu0 %v958
    %1186 = vmatmul.mubr.bf16.gmra.mxu0 %v456
    %v1187 = vpop.f32.mrf.mxu0
    %v1188 = vadd.f32 0.0, %v1187
    %v1189 = vpop.f32.mrf.mxu0
    %v1190 = vadd.f32 0.0, %v1189
    %v1191 = vpop.f32.mrf.mxu0
    %v1192 = vadd.f32 0.0, %v1191
    %v1193 = vpop.f32.mrf.mxu0
    %v1194 = vadd.f32 0.0, %v1193
    %1195 = vmatprep.mubr.bf16.mxu0 %v961
    %1196 = vmatmul.mubr.bf16.gmra.mxu0 %v458
    %v1197 = vpop.f32.mrf.mxu0
    %v1198 = vadd.f32 0.0, %v1197
    %v1199 = vpop.f32.mrf.mxu0
    %v1200 = vadd.f32 0.0, %v1199
    %v1201 = vpop.f32.mrf.mxu0
    %v1202 = vadd.f32 0.0, %v1201
    %v1203 = vpop.f32.mrf.mxu0
    %v1204 = vadd.f32 0.0, %v1203
    %1205 = vmatprep.mubr.bf16.mxu0 %v964
    %1206 = vmatmul.mubr.bf16.gmra.mxu0 %v460
    %v1207 = vpop.f32.mrf.mxu0
    %v1208 = vadd.f32 0.0, %v1207
    %v1209 = vpop.f32.mrf.mxu0
    %v1210 = vadd.f32 0.0, %v1209
    %v1211 = vpop.f32.mrf.mxu0
    %v1212 = vadd.f32 0.0, %v1211
    %v1213 = vpop.f32.mrf.mxu0
    %v1214 = vadd.f32 0.0, %v1213
    %1215 = vmatprep.mubr.bf16.mxu0 %v967
    %1216 = vmatmul.mubr.bf16.gmra.mxu0 %v462
    %v1217 = vpop.f32.mrf.mxu0
    %v1218 = vadd.f32 0.0, %v1217
    %v1219 = vpop.f32.mrf.mxu0
    %v1220 = vadd.f32 0.0, %v1219
    %v1221 = vpop.f32.mrf.mxu0
    %v1222 = vadd.f32 0.0, %v1221
    %v1223 = vpop.f32.mrf.mxu0
    %v1224 = vadd.f32 0.0, %v1223
    %1225 = vmatprep.mubr.bf16.mxu0 %v970
    %1226 = vmatmul.mubr.bf16.gmra.mxu0 %v464
    %v1227 = vpop.f32.mrf.mxu0
    %v1228 = vadd.f32 0.0, %v1227
    %v1229 = vpop.f32.mrf.mxu0
    %v1230 = vadd.f32 0.0, %v1229
    %v1231 = vpop.f32.mrf.mxu0
    %v1232 = vadd.f32 0.0, %v1231
    %v1233 = vpop.f32.mrf.mxu0
    %v1234 = vadd.f32 0.0, %v1233
    %1235 = vmatprep.mubr.bf16.mxu0 %v973
    %1236 = vmatmul.mubr.bf16.gmra.mxu0 %v466
    %v1237 = vpop.f32.mrf.mxu0
    %v1238 = vadd.f32 0.0, %v1237
    %v1239 = vpop.f32.mrf.mxu0
    %v1240 = vadd.f32 0.0, %v1239
    %v1241 = vpop.f32.mrf.mxu0
    %v1242 = vadd.f32 0.0, %v1241
    %v1243 = vpop.f32.mrf.mxu0
    %v1244 = vadd.f32 0.0, %v1243
    %1245 = vmatprep.mubr.bf16.mxu0 %v976
    %1246 = vmatmul.mubr.bf16.gmra.mxu0 %v468
    %v1247 = vpop.f32.mrf.mxu0
    %v1248 = vadd.f32 0.0, %v1247
    %v1249 = vpop.f32.mrf.mxu0
    %v1250 = vadd.f32 0.0, %v1249
    %v1251 = vpop.f32.mrf.mxu0
    %v1252 = vadd.f32 0.0, %v1251
    %v1253 = vpop.f32.mrf.mxu0
    %v1254 = vadd.f32 0.0, %v1253
    %1255 = vmatprep.mubr.bf16.mxu0 %v979
    %1256 = vmatmul.mubr.bf16.gmra.mxu0 %v470
    %v1257 = vpop.f32.mrf.mxu0
    %v1258 = vadd.f32 0.0, %v1257
    %v1259 = vpop.f32.mrf.mxu0
    %v1260 = vadd.f32 0.0, %v1259
    %v1261 = vpop.f32.mrf.mxu0
    %v1262 = vadd.f32 0.0, %v1261
    %v1263 = vpop.f32.mrf.mxu0
    %v1264 = vadd.f32 0.0, %v1263
    %1265 = vmatprep.mubr.bf16.mxu0 %v982
    %1266 = vmatmul.mubr.bf16.gmra.mxu0 %v472
    %v1267 = vpop.f32.mrf.mxu0
    %v1268 = vadd.f32 0.0, %v1267
    %v1269 = vpop.f32.mrf.mxu0
    %v1270 = vadd.f32 0.0, %v1269
    %v1271 = vpop.f32.mrf.mxu0
    %v1272 = vadd.f32 0.0, %v1271
    %v1273 = vpop.f32.mrf.mxu0
    %v1274 = vadd.f32 0.0, %v1273
    %1275 = vmatprep.mubr.bf16.mxu0 %v985
    %1276 = vmatmul.mubr.bf16.gmra.mxu0 %v474
    %v1277 = vpop.f32.mrf.mxu0
    %v1278 = vadd.f32 0.0, %v1277
    %v1279 = vpop.f32.mrf.mxu0
    %v1280 = vadd.f32 0.0, %v1279
    %v1281 = vpop.f32.mrf.mxu0
    %v1282 = vadd.f32 0.0, %v1281
    %v1283 = vpop.f32.mrf.mxu0
    %v1284 = vadd.f32 0.0, %v1283
    %1285 = vmatprep.mubr.bf16.mxu0 %v988
    %1286 = vmatmul.mubr.bf16.gmra.mxu0 %v476
    %v1287 = vpop.f32.mrf.mxu0
    %v1288 = vadd.f32 0.0, %v1287
    %v1289 = vpop.f32.mrf.mxu0
    %v1290 = vadd.f32 0.0, %v1289
    %v1291 = vpop.f32.mrf.mxu0
    %v1292 = vadd.f32 0.0, %v1291
    %v1293 = vpop.f32.mrf.mxu0
    %v1294 = vadd.f32 0.0, %v1293
    %1295 = vmatprep.mubr.bf16.mxu0 %v991
    %1296 = vmatmul.mubr.bf16.gmra.mxu0 %v478
    %v1297 = vpop.f32.mrf.mxu0
    %v1298 = vadd.f32 0.0, %v1297
    %v1299 = vpop.f32.mrf.mxu0
    %v1300 = vadd.f32 0.0, %v1299
    %v1301 = vpop.f32.mrf.mxu0
    %v1302 = vadd.f32 0.0, %v1301
    %v1303 = vpop.f32.mrf.mxu0
    %v1304 = vadd.f32 0.0, %v1303
    %1305 = vdwg.mxu0
    %1306 = vmatprep.subr.bf16.mxu0 %v807
    %1307 = vmatpush1.bf16.msra.mxu0 %v806
    %1308 = vmatprep.subr.bf16.mxu0 %v799
    %1309 = vmatpush1.bf16.msra.mxu0 %v798
    %1310 = vmatprep.subr.bf16.mxu0 %v791
    %1311 = vmatpush1.bf16.msra.mxu0 %v790
    %1312 = vmatprep.subr.bf16.mxu0 %v783
    %1313 = vmatpush1.bf16.msra.mxu0 %v782
    %1314 = vmatprep.subr.bf16.mxu0 %v775
    %1315 = vmatpush1.bf16.msra.mxu0 %v774
    %1316 = vmatprep.subr.bf16.mxu0 %v767
    %1317 = vmatpush1.bf16.msra.mxu0 %v766
    %1318 = vmatprep.subr.bf16.mxu0 %v759
    %1319 = vmatpush1.bf16.msra.mxu0 %v758
    %1320 = vmatprep.subr.bf16.mxu0 %v751
    %1321 = vmatpush1.bf16.msra.mxu0 %v750
    %1322 = vmatprep.subr.bf16.mxu0 0
    %1323 = vmatpush2.bf16.msra.mxu0 0
    %1324 = vmatprep.subr.bf16.mxu0 0
    %1325 = vmatpush2.bf16.msra.mxu0 0
    %1326 = vmatprep.subr.bf16.mxu0 0
    %1327 = vmatpush2.bf16.msra.mxu0 0
    %1328 = vmatprep.subr.bf16.mxu0 0
    %1329 = vmatpush2.bf16.msra.mxu0 0
    %1330 = vmatprep.subr.bf16.mxu0 0
    %1331 = vmatpush2.bf16.msra.mxu0 0
    %1332 = vmatprep.subr.bf16.mxu0 0
    %1333 = vmatpush2.bf16.msra.mxu0 0
    %1334 = vmatprep.subr.bf16.mxu0 %v823
    %1335 = vmatpush2.bf16.msra.mxu0 %v822
    %1336 = vmatprep.subr.bf16.mxu0 %v815
    %1337 = vmatpush2.bf16.msra.mxu0 %v814
    %1338 = vmatprep.mubr.bf16.mxu0 %v910
    %1339 = vmatmul.mubr.bf16.gmra.mxu0 %v424
    %v1340 = vpop.f32.mrf.mxu0
    %v1341 = vadd.f32 0.0, %v1340
    %v1342 = vpop.f32.mrf.mxu0
    %v1343 = vadd.f32 0.0, %v1342
    %v1344 = vpop.f32.mrf.mxu0
    %v1345 = vadd.f32 0.0, %v1344
    %v1346 = vpop.f32.mrf.mxu0
    %v1347 = vadd.f32 0.0, %v1346
    %1348 = vmatprep.mubr.bf16.mxu0 %v913
    %1349 = vmatmul.mubr.bf16.gmra.mxu0 %v426
    %v1350 = vpop.f32.mrf.mxu0
    %v1351 = vadd.f32 0.0, %v1350
    %v1352 = vpop.f32.mrf.mxu0
    %v1353 = vadd.f32 0.0, %v1352
    %v1354 = vpop.f32.mrf.mxu0
    %v1355 = vadd.f32 0.0, %v1354
    %v1356 = vpop.f32.mrf.mxu0
    %v1357 = vadd.f32 0.0, %v1356
    %1358 = vmatprep.mubr.bf16.mxu0 %v916
    %1359 = vmatmul.mubr.bf16.gmra.mxu0 %v428
    %v1360 = vpop.f32.mrf.mxu0
    %v1361 = vadd.f32 0.0, %v1360
    %v1362 = vpop.f32.mrf.mxu0
    %v1363 = vadd.f32 0.0, %v1362
    %v1364 = vpop.f32.mrf.mxu0
    %v1365 = vadd.f32 0.0, %v1364
    %v1366 = vpop.f32.mrf.mxu0
    %v1367 = vadd.f32 0.0, %v1366
    %1368 = vmatprep.mubr.bf16.mxu0 %v919
    %1369 = vmatmul.mubr.bf16.gmra.mxu0 %v430
    %v1370 = vpop.f32.mrf.mxu0
    %v1371 = vadd.f32 0.0, %v1370
    %v1372 = vpop.f32.mrf.mxu0
    %v1373 = vadd.f32 0.0, %v1372
    %v1374 = vpop.f32.mrf.mxu0
    %v1375 = vadd.f32 0.0, %v1374
    %v1376 = vpop.f32.mrf.mxu0
    %v1377 = vadd.f32 0.0, %v1376
    %1378 = vmatprep.mubr.bf16.mxu0 %v922
    %1379 = vmatmul.mubr.bf16.gmra.mxu0 %v432
    %v1380 = vpop.f32.mrf.mxu0
    %v1381 = vadd.f32 0.0, %v1380
    %v1382 = vpop.f32.mrf.mxu0
    %v1383 = vadd.f32 0.0, %v1382
    %v1384 = vpop.f32.mrf.mxu0
    %v1385 = vadd.f32 0.0, %v1384
    %v1386 = vpop.f32.mrf.mxu0
    %v1387 = vadd.f32 0.0, %v1386
    %1388 = vmatprep.mubr.bf16.mxu0 %v925
    %1389 = vmatmul.mubr.bf16.gmra.mxu0 %v434
    %v1390 = vpop.f32.mrf.mxu0
    %v1391 = vadd.f32 0.0, %v1390
    %v1392 = vpop.f32.mrf.mxu0
    %v1393 = vadd.f32 0.0, %v1392
    %v1394 = vpop.f32.mrf.mxu0
    %v1395 = vadd.f32 0.0, %v1394
    %v1396 = vpop.f32.mrf.mxu0
    %v1397 = vadd.f32 0.0, %v1396
    %1398 = vmatprep.mubr.bf16.mxu0 %v928
    %1399 = vmatmul.mubr.bf16.gmra.mxu0 %v436
    %v1400 = vpop.f32.mrf.mxu0
    %v1401 = vadd.f32 0.0, %v1400
    %v1402 = vpop.f32.mrf.mxu0
    %v1403 = vadd.f32 0.0, %v1402
    %v1404 = vpop.f32.mrf.mxu0
    %v1405 = vadd.f32 0.0, %v1404
    %v1406 = vpop.f32.mrf.mxu0
    %v1407 = vadd.f32 0.0, %v1406
    %1408 = vmatprep.mubr.bf16.mxu0 %v931
    %1409 = vmatmul.mubr.bf16.gmra.mxu0 %v438
    %v1410 = vpop.f32.mrf.mxu0
    %v1411 = vadd.f32 0.0, %v1410
    %v1412 = vpop.f32.mrf.mxu0
    %v1413 = vadd.f32 0.0, %v1412
    %v1414 = vpop.f32.mrf.mxu0
    %v1415 = vadd.f32 0.0, %v1414
    %v1416 = vpop.f32.mrf.mxu0
    %v1417 = vadd.f32 0.0, %v1416
    %1418 = vmatprep.mubr.bf16.mxu0 %v934
    %1419 = vmatmul.mubr.bf16.gmra.mxu0 %v440
    %v1420 = vpop.f32.mrf.mxu0
    %v1421 = vadd.f32 0.0, %v1420
    %v1422 = vpop.f32.mrf.mxu0
    %v1423 = vadd.f32 0.0, %v1422
    %v1424 = vpop.f32.mrf.mxu0
    %v1425 = vadd.f32 0.0, %v1424
    %v1426 = vpop.f32.mrf.mxu0
    %v1427 = vadd.f32 0.0, %v1426
    %1428 = vmatprep.mubr.bf16.mxu0 %v937
    %1429 = vmatmul.mubr.bf16.gmra.mxu0 %v442
    %v1430 = vpop.f32.mrf.mxu0
    %v1431 = vadd.f32 0.0, %v1430
    %v1432 = vpop.f32.mrf.mxu0
    %v1433 = vadd.f32 0.0, %v1432
    %v1434 = vpop.f32.mrf.mxu0
    %v1435 = vadd.f32 0.0, %v1434
    %v1436 = vpop.f32.mrf.mxu0
    %v1437 = vadd.f32 0.0, %v1436
    %1438 = vmatprep.mubr.bf16.mxu0 %v940
    %1439 = vmatmul.mubr.bf16.gmra.mxu0 %v444
    %v1440 = vpop.f32.mrf.mxu0
    %v1441 = vadd.f32 0.0, %v1440
    %v1442 = vpop.f32.mrf.mxu0
    %v1443 = vadd.f32 0.0, %v1442
    %v1444 = vpop.f32.mrf.mxu0
    %v1445 = vadd.f32 0.0, %v1444
    %v1446 = vpop.f32.mrf.mxu0
    %v1447 = vadd.f32 0.0, %v1446
    %1448 = vmatprep.mubr.bf16.mxu0 %v943
    %1449 = vmatmul.mubr.bf16.gmra.mxu0 %v446
    %v1450 = vpop.f32.mrf.mxu0
    %v1451 = vadd.f32 0.0, %v1450
    %v1452 = vpop.f32.mrf.mxu0
    %v1453 = vadd.f32 0.0, %v1452
    %v1454 = vpop.f32.mrf.mxu0
    %v1455 = vadd.f32 0.0, %v1454
    %v1456 = vpop.f32.mrf.mxu0
    %v1457 = vadd.f32 0.0, %v1456
    %1458 = vmatprep.mubr.bf16.mxu0 %v946
    %1459 = vmatmul.mubr.bf16.gmra.mxu0 %v448
    %v1460 = vpop.f32.mrf.mxu0
    %v1461 = vadd.f32 0.0, %v1460
    %v1462 = vpop.f32.mrf.mxu0
    %v1463 = vadd.f32 0.0, %v1462
    %v1464 = vpop.f32.mrf.mxu0
    %v1465 = vadd.f32 0.0, %v1464
    %v1466 = vpop.f32.mrf.mxu0
    %v1467 = vadd.f32 0.0, %v1466
    %1468 = vmatprep.mubr.bf16.mxu0 %v949
    %1469 = vmatmul.mubr.bf16.gmra.mxu0 %v450
    %v1470 = vpop.f32.mrf.mxu0
    %v1471 = vadd.f32 0.0, %v1470
    %v1472 = vpop.f32.mrf.mxu0
    %v1473 = vadd.f32 0.0, %v1472
    %v1474 = vpop.f32.mrf.mxu0
    %v1475 = vadd.f32 0.0, %v1474
    %v1476 = vpop.f32.mrf.mxu0
    %v1477 = vadd.f32 0.0, %v1476
    %1478 = vmatprep.mubr.bf16.mxu0 %v952
    %1479 = vmatmul.mubr.bf16.gmra.mxu0 %v452
    %v1480 = vpop.f32.mrf.mxu0
    %v1481 = vadd.f32 0.0, %v1480
    %v1482 = vpop.f32.mrf.mxu0
    %v1483 = vadd.f32 0.0, %v1482
    %v1484 = vpop.f32.mrf.mxu0
    %v1485 = vadd.f32 0.0, %v1484
    %v1486 = vpop.f32.mrf.mxu0
    %v1487 = vadd.f32 0.0, %v1486
    %1488 = vmatprep.mubr.bf16.mxu0 %v955
    %1489 = vmatmul.mubr.bf16.gmra.mxu0 %v454
    %v1490 = vpop.f32.mrf.mxu0
    %v1491 = vadd.f32 0.0, %v1490
    %v1492 = vpop.f32.mrf.mxu0
    %v1493 = vadd.f32 0.0, %v1492
    %v1494 = vpop.f32.mrf.mxu0
    %v1495 = vadd.f32 0.0, %v1494
    %v1496 = vpop.f32.mrf.mxu0
    %v1497 = vadd.f32 0.0, %v1496
    %1498 = vmatprep.mubr.bf16.mxu0 %v958
    %1499 = vmatmul.mubr.bf16.gmra.mxu0 %v456
    %v1500 = vpop.f32.mrf.mxu0
    %v1501 = vadd.f32 0.0, %v1500
    %v1502 = vpop.f32.mrf.mxu0
    %v1503 = vadd.f32 0.0, %v1502
    %v1504 = vpop.f32.mrf.mxu0
    %v1505 = vadd.f32 0.0, %v1504
    %v1506 = vpop.f32.mrf.mxu0
    %v1507 = vadd.f32 0.0, %v1506
    %1508 = vmatprep.mubr.bf16.mxu0 %v961
    %1509 = vmatmul.mubr.bf16.gmra.mxu0 %v458
    %v1510 = vpop.f32.mrf.mxu0
    %v1511 = vadd.f32 0.0, %v1510
    %v1512 = vpop.f32.mrf.mxu0
    %v1513 = vadd.f32 0.0, %v1512
    %v1514 = vpop.f32.mrf.mxu0
    %v1515 = vadd.f32 0.0, %v1514
    %v1516 = vpop.f32.mrf.mxu0
    %v1517 = vadd.f32 0.0, %v1516
    %1518 = vmatprep.mubr.bf16.mxu0 %v964
    %1519 = vmatmul.mubr.bf16.gmra.mxu0 %v460
    %v1520 = vpop.f32.mrf.mxu0
    %v1521 = vadd.f32 0.0, %v1520
    %v1522 = vpop.f32.mrf.mxu0
    %v1523 = vadd.f32 0.0, %v1522
    %v1524 = vpop.f32.mrf.mxu0
    %v1525 = vadd.f32 0.0, %v1524
    %v1526 = vpop.f32.mrf.mxu0
    %v1527 = vadd.f32 0.0, %v1526
    %1528 = vmatprep.mubr.bf16.mxu0 %v967
    %1529 = vmatmul.mubr.bf16.gmra.mxu0 %v462
    %v1530 = vpop.f32.mrf.mxu0
    %v1531 = vadd.f32 0.0, %v1530
    %v1532 = vpop.f32.mrf.mxu0
    %v1533 = vadd.f32 0.0, %v1532
    %v1534 = vpop.f32.mrf.mxu0
    %v1535 = vadd.f32 0.0, %v1534
    %v1536 = vpop.f32.mrf.mxu0
    %v1537 = vadd.f32 0.0, %v1536
    %1538 = vmatprep.mubr.bf16.mxu0 %v970
    %1539 = vmatmul.mubr.bf16.gmra.mxu0 %v464
    %v1540 = vpop.f32.mrf.mxu0
    %v1541 = vadd.f32 0.0, %v1540
    %v1542 = vpop.f32.mrf.mxu0
    %v1543 = vadd.f32 0.0, %v1542
    %v1544 = vpop.f32.mrf.mxu0
    %v1545 = vadd.f32 0.0, %v1544
    %v1546 = vpop.f32.mrf.mxu0
    %v1547 = vadd.f32 0.0, %v1546
    %1548 = vmatprep.mubr.bf16.mxu0 %v973
    %1549 = vmatmul.mubr.bf16.gmra.mxu0 %v466
    %v1550 = vpop.f32.mrf.mxu0
    %v1551 = vadd.f32 0.0, %v1550
    %v1552 = vpop.f32.mrf.mxu0
    %v1553 = vadd.f32 0.0, %v1552
    %v1554 = vpop.f32.mrf.mxu0
    %v1555 = vadd.f32 0.0, %v1554
    %v1556 = vpop.f32.mrf.mxu0
    %v1557 = vadd.f32 0.0, %v1556
    %1558 = vmatprep.mubr.bf16.mxu0 %v976
    %1559 = vmatmul.mubr.bf16.gmra.mxu0 %v468
    %v1560 = vpop.f32.mrf.mxu0
    %v1561 = vadd.f32 0.0, %v1560
    %v1562 = vpop.f32.mrf.mxu0
    %v1563 = vadd.f32 0.0, %v1562
    %v1564 = vpop.f32.mrf.mxu0
    %v1565 = vadd.f32 0.0, %v1564
    %v1566 = vpop.f32.mrf.mxu0
    %v1567 = vadd.f32 0.0, %v1566
    %1568 = vmatprep.mubr.bf16.mxu0 %v979
    %1569 = vmatmul.mubr.bf16.gmra.mxu0 %v470
    %v1570 = vpop.f32.mrf.mxu0
    %v1571 = vadd.f32 0.0, %v1570
    %v1572 = vpop.f32.mrf.mxu0
    %v1573 = vadd.f32 0.0, %v1572
    %v1574 = vpop.f32.mrf.mxu0
    %v1575 = vadd.f32 0.0, %v1574
    %v1576 = vpop.f32.mrf.mxu0
    %v1577 = vadd.f32 0.0, %v1576
    %1578 = vmatprep.mubr.bf16.mxu0 %v982
    %1579 = vmatmul.mubr.bf16.gmra.mxu0 %v472
    %v1580 = vpop.f32.mrf.mxu0
    %v1581 = vadd.f32 0.0, %v1580
    %v1582 = vpop.f32.mrf.mxu0
    %v1583 = vadd.f32 0.0, %v1582
    %v1584 = vpop.f32.mrf.mxu0
    %v1585 = vadd.f32 0.0, %v1584
    %v1586 = vpop.f32.mrf.mxu0
    %v1587 = vadd.f32 0.0, %v1586
    %1588 = vmatprep.mubr.bf16.mxu0 %v985
    %1589 = vmatmul.mubr.bf16.gmra.mxu0 %v474
    %v1590 = vpop.f32.mrf.mxu0
    %v1591 = vadd.f32 0.0, %v1590
    %v1592 = vpop.f32.mrf.mxu0
    %v1593 = vadd.f32 0.0, %v1592
    %v1594 = vpop.f32.mrf.mxu0
    %v1595 = vadd.f32 0.0, %v1594
    %v1596 = vpop.f32.mrf.mxu0
    %v1597 = vadd.f32 0.0, %v1596
    %1598 = vmatprep.mubr.bf16.mxu0 %v988
    %1599 = vmatmul.mubr.bf16.gmra.mxu0 %v476
    %v1600 = vpop.f32.mrf.mxu0
    %v1601 = vadd.f32 0.0, %v1600
    %v1602 = vpop.f32.mrf.mxu0
    %v1603 = vadd.f32 0.0, %v1602
    %v1604 = vpop.f32.mrf.mxu0
    %v1605 = vadd.f32 0.0, %v1604
    %v1606 = vpop.f32.mrf.mxu0
    %v1607 = vadd.f32 0.0, %v1606
    %1608 = vmatprep.mubr.bf16.mxu0 %v991
    %1609 = vmatmul.mubr.bf16.gmra.mxu0 %v478
    %v1610 = vpop.f32.mrf.mxu0
    %v1611 = vadd.f32 0.0, %v1610
    %v1612 = vpop.f32.mrf.mxu0
    %v1613 = vadd.f32 0.0, %v1612
    %v1614 = vpop.f32.mrf.mxu0
    %v1615 = vadd.f32 0.0, %v1614
    %v1616 = vpop.f32.mrf.mxu0
    %v1617 = vadd.f32 0.0, %v1616
    %1618 = vdwg.mxu0
    %1619 = vmatprep.subr.bf16.mxu0 %v809
    %1620 = vmatpush1.bf16.msra.mxu0 %v808
    %1621 = vmatprep.subr.bf16.mxu0 %v801
    %1622 = vmatpush1.bf16.msra.mxu0 %v800
    %1623 = vmatprep.subr.bf16.mxu0 %v793
    %1624 = vmatpush1.bf16.msra.mxu0 %v792
    %1625 = vmatprep.subr.bf16.mxu0 %v785
    %1626 = vmatpush1.bf16.msra.mxu0 %v784
    %1627 = vmatprep.subr.bf16.mxu0 %v777
    %1628 = vmatpush1.bf16.msra.mxu0 %v776
    %1629 = vmatprep.subr.bf16.mxu0 %v769
    %1630 = vmatpush1.bf16.msra.mxu0 %v768
    %1631 = vmatprep.subr.bf16.mxu0 %v761
    %1632 = vmatpush1.bf16.msra.mxu0 %v760
    %1633 = vmatprep.subr.bf16.mxu0 %v753
    %1634 = vmatpush1.bf16.msra.mxu0 %v752
    %1635 = vmatprep.subr.bf16.mxu0 0
    %1636 = vmatpush2.bf16.msra.mxu0 0
    %1637 = vmatprep.subr.bf16.mxu0 0
    %1638 = vmatpush2.bf16.msra.mxu0 0
    %1639 = vmatprep.subr.bf16.mxu0 0
    %1640 = vmatpush2.bf16.msra.mxu0 0
    %1641 = vmatprep.subr.bf16.mxu0 0
    %1642 = vmatpush2.bf16.msra.mxu0 0
    %1643 = vmatprep.subr.bf16.mxu0 0
    %1644 = vmatpush2.bf16.msra.mxu0 0
    %1645 = vmatprep.subr.bf16.mxu0 0
    %1646 = vmatpush2.bf16.msra.mxu0 0
    %1647 = vmatprep.subr.bf16.mxu0 %v825
    %1648 = vmatpush2.bf16.msra.mxu0 %v824
    %1649 = vmatprep.subr.bf16.mxu0 %v817
    %1650 = vmatpush2.bf16.msra.mxu0 %v816
    %1651 = vmatprep.mubr.bf16.mxu0 %v910
    %1652 = vmatmul.mubr.bf16.gmra.mxu0 %v424
    %v1653 = vpop.f32.mrf.mxu0
    %v1654 = vadd.f32 0.0, %v1653
    %v1655 = vpop.f32.mrf.mxu0
    %v1656 = vadd.f32 0.0, %v1655
    %v1657 = vpop.f32.mrf.mxu0
    %v1658 = vadd.f32 0.0, %v1657
    %v1659 = vpop.f32.mrf.mxu0
    %v1660 = vadd.f32 0.0, %v1659
    %1661 = vmatprep.mubr.bf16.mxu0 %v913
    %1662 = vmatmul.mubr.bf16.gmra.mxu0 %v426
    %v1663 = vpop.f32.mrf.mxu0
    %v1664 = vadd.f32 0.0, %v1663
    %v1665 = vpop.f32.mrf.mxu0
    %v1666 = vadd.f32 0.0, %v1665
    %v1667 = vpop.f32.mrf.mxu0
    %v1668 = vadd.f32 0.0, %v1667
    %v1669 = vpop.f32.mrf.mxu0
    %v1670 = vadd.f32 0.0, %v1669
    %1671 = vmatprep.mubr.bf16.mxu0 %v916
    %1672 = vmatmul.mubr.bf16.gmra.mxu0 %v428
    %v1673 = vpop.f32.mrf.mxu0
    %v1674 = vadd.f32 0.0, %v1673
    %v1675 = vpop.f32.mrf.mxu0
    %v1676 = vadd.f32 0.0, %v1675
    %v1677 = vpop.f32.mrf.mxu0
    %v1678 = vadd.f32 0.0, %v1677
    %v1679 = vpop.f32.mrf.mxu0
    %v1680 = vadd.f32 0.0, %v1679
    %1681 = vmatprep.mubr.bf16.mxu0 %v919
    %1682 = vmatmul.mubr.bf16.gmra.mxu0 %v430
    %v1683 = vpop.f32.mrf.mxu0
    %v1684 = vadd.f32 0.0, %v1683
    %v1685 = vpop.f32.mrf.mxu0
    %v1686 = vadd.f32 0.0, %v1685
    %v1687 = vpop.f32.mrf.mxu0
    %v1688 = vadd.f32 0.0, %v1687
    %v1689 = vpop.f32.mrf.mxu0
    %v1690 = vadd.f32 0.0, %v1689
    %1691 = vmatprep.mubr.bf16.mxu0 %v922
    %1692 = vmatmul.mubr.bf16.gmra.mxu0 %v432
    %v1693 = vpop.f32.mrf.mxu0
    %v1694 = vadd.f32 0.0, %v1693
    %v1695 = vpop.f32.mrf.mxu0
    %v1696 = vadd.f32 0.0, %v1695
    %v1697 = vpop.f32.mrf.mxu0
    %v1698 = vadd.f32 0.0, %v1697
    %v1699 = vpop.f32.mrf.mxu0
    %v1700 = vadd.f32 0.0, %v1699
    %1701 = vmatprep.mubr.bf16.mxu0 %v925
    %1702 = vmatmul.mubr.bf16.gmra.mxu0 %v434
    %v1703 = vpop.f32.mrf.mxu0
    %v1704 = vadd.f32 0.0, %v1703
    %v1705 = vpop.f32.mrf.mxu0
    %v1706 = vadd.f32 0.0, %v1705
    %v1707 = vpop.f32.mrf.mxu0
    %v1708 = vadd.f32 0.0, %v1707
    %v1709 = vpop.f32.mrf.mxu0
    %v1710 = vadd.f32 0.0, %v1709
    %1711 = vmatprep.mubr.bf16.mxu0 %v928
    %1712 = vmatmul.mubr.bf16.gmra.mxu0 %v436
    %v1713 = vpop.f32.mrf.mxu0
    %v1714 = vadd.f32 0.0, %v1713
    %v1715 = vpop.f32.mrf.mxu0
    %v1716 = vadd.f32 0.0, %v1715
    %v1717 = vpop.f32.mrf.mxu0
    %v1718 = vadd.f32 0.0, %v1717
    %v1719 = vpop.f32.mrf.mxu0
    %v1720 = vadd.f32 0.0, %v1719
    %1721 = vmatprep.mubr.bf16.mxu0 %v931
    %1722 = vmatmul.mubr.bf16.gmra.mxu0 %v438
    %v1723 = vpop.f32.mrf.mxu0
    %v1724 = vadd.f32 0.0, %v1723
    %v1725 = vpop.f32.mrf.mxu0
    %v1726 = vadd.f32 0.0, %v1725
    %v1727 = vpop.f32.mrf.mxu0
    %v1728 = vadd.f32 0.0, %v1727
    %v1729 = vpop.f32.mrf.mxu0
    %v1730 = vadd.f32 0.0, %v1729
    %1731 = vmatprep.mubr.bf16.mxu0 %v934
    %1732 = vmatmul.mubr.bf16.gmra.mxu0 %v440
    %v1733 = vpop.f32.mrf.mxu0
    %v1734 = vadd.f32 0.0, %v1733
    %v1735 = vpop.f32.mrf.mxu0
    %v1736 = vadd.f32 0.0, %v1735
    %v1737 = vpop.f32.mrf.mxu0
    %v1738 = vadd.f32 0.0, %v1737
    %v1739 = vpop.f32.mrf.mxu0
    %v1740 = vadd.f32 0.0, %v1739
    %1741 = vmatprep.mubr.bf16.mxu0 %v937
    %1742 = vmatmul.mubr.bf16.gmra.mxu0 %v442
    %v1743 = vpop.f32.mrf.mxu0
    %v1744 = vadd.f32 0.0, %v1743
    %v1745 = vpop.f32.mrf.mxu0
    %v1746 = vadd.f32 0.0, %v1745
    %v1747 = vpop.f32.mrf.mxu0
    %v1748 = vadd.f32 0.0, %v1747
    %v1749 = vpop.f32.mrf.mxu0
    %v1750 = vadd.f32 0.0, %v1749
    %1751 = vmatprep.mubr.bf16.mxu0 %v940
    %1752 = vmatmul.mubr.bf16.gmra.mxu0 %v444
    %v1753 = vpop.f32.mrf.mxu0
    %v1754 = vadd.f32 0.0, %v1753
    %v1755 = vpop.f32.mrf.mxu0
    %v1756 = vadd.f32 0.0, %v1755
    %v1757 = vpop.f32.mrf.mxu0
    %v1758 = vadd.f32 0.0, %v1757
    %v1759 = vpop.f32.mrf.mxu0
    %v1760 = vadd.f32 0.0, %v1759
    %1761 = vmatprep.mubr.bf16.mxu0 %v943
    %1762 = vmatmul.mubr.bf16.gmra.mxu0 %v446
    %v1763 = vpop.f32.mrf.mxu0
    %v1764 = vadd.f32 0.0, %v1763
    %v1765 = vpop.f32.mrf.mxu0
    %v1766 = vadd.f32 0.0, %v1765
    %v1767 = vpop.f32.mrf.mxu0
    %v1768 = vadd.f32 0.0, %v1767
    %v1769 = vpop.f32.mrf.mxu0
    %v1770 = vadd.f32 0.0, %v1769
    %1771 = vmatprep.mubr.bf16.mxu0 %v946
    %1772 = vmatmul.mubr.bf16.gmra.mxu0 %v448
    %v1773 = vpop.f32.mrf.mxu0
    %v1774 = vadd.f32 0.0, %v1773
    %v1775 = vpop.f32.mrf.mxu0
    %v1776 = vadd.f32 0.0, %v1775
    %v1777 = vpop.f32.mrf.mxu0
    %v1778 = vadd.f32 0.0, %v1777
    %v1779 = vpop.f32.mrf.mxu0
    %v1780 = vadd.f32 0.0, %v1779
    %1781 = vmatprep.mubr.bf16.mxu0 %v949
    %1782 = vmatmul.mubr.bf16.gmra.mxu0 %v450
    %v1783 = vpop.f32.mrf.mxu0
    %v1784 = vadd.f32 0.0, %v1783
    %v1785 = vpop.f32.mrf.mxu0
    %v1786 = vadd.f32 0.0, %v1785
    %v1787 = vpop.f32.mrf.mxu0
    %v1788 = vadd.f32 0.0, %v1787
    %v1789 = vpop.f32.mrf.mxu0
    %v1790 = vadd.f32 0.0, %v1789
    %1791 = vmatprep.mubr.bf16.mxu0 %v952
    %1792 = vmatmul.mubr.bf16.gmra.mxu0 %v452
    %v1793 = vpop.f32.mrf.mxu0
    %v1794 = vadd.f32 0.0, %v1793
    %v1795 = vpop.f32.mrf.mxu0
    %v1796 = vadd.f32 0.0, %v1795
    %v1797 = vpop.f32.mrf.mxu0
    %v1798 = vadd.f32 0.0, %v1797
    %v1799 = vpop.f32.mrf.mxu0
    %v1800 = vadd.f32 0.0, %v1799
    %1801 = vmatprep.mubr.bf16.mxu0 %v955
    %1802 = vmatmul.mubr.bf16.gmra.mxu0 %v454
    %v1803 = vpop.f32.mrf.mxu0
    %v1804 = vadd.f32 0.0, %v1803
    %v1805 = vpop.f32.mrf.mxu0
    %v1806 = vadd.f32 0.0, %v1805
    %v1807 = vpop.f32.mrf.mxu0
    %v1808 = vadd.f32 0.0, %v1807
    %v1809 = vpop.f32.mrf.mxu0
    %v1810 = vadd.f32 0.0, %v1809
    %1811 = vmatprep.mubr.bf16.mxu0 %v958
    %1812 = vmatmul.mubr.bf16.gmra.mxu0 %v456
    %v1813 = vpop.f32.mrf.mxu0
    %v1814 = vadd.f32 0.0, %v1813
    %v1815 = vpop.f32.mrf.mxu0
    %v1816 = vadd.f32 0.0, %v1815
    %v1817 = vpop.f32.mrf.mxu0
    %v1818 = vadd.f32 0.0, %v1817
    %v1819 = vpop.f32.mrf.mxu0
    %v1820 = vadd.f32 0.0, %v1819
    %1821 = vmatprep.mubr.bf16.mxu0 %v961
    %1822 = vmatmul.mubr.bf16.gmra.mxu0 %v458
    %v1823 = vpop.f32.mrf.mxu0
    %v1824 = vadd.f32 0.0, %v1823
    %v1825 = vpop.f32.mrf.mxu0
    %v1826 = vadd.f32 0.0, %v1825
    %v1827 = vpop.f32.mrf.mxu0
    %v1828 = vadd.f32 0.0, %v1827
    %v1829 = vpop.f32.mrf.mxu0
    %v1830 = vadd.f32 0.0, %v1829
    %1831 = vmatprep.mubr.bf16.mxu0 %v964
    %1832 = vmatmul.mubr.bf16.gmra.mxu0 %v460
    %v1833 = vpop.f32.mrf.mxu0
    %v1834 = vadd.f32 0.0, %v1833
    %v1835 = vpop.f32.mrf.mxu0
    %v1836 = vadd.f32 0.0, %v1835
    %v1837 = vpop.f32.mrf.mxu0
    %v1838 = vadd.f32 0.0, %v1837
    %v1839 = vpop.f32.mrf.mxu0
    %v1840 = vadd.f32 0.0, %v1839
    %1841 = vmatprep.mubr.bf16.mxu0 %v967
    %1842 = vmatmul.mubr.bf16.gmra.mxu0 %v462
    %v1843 = vpop.f32.mrf.mxu0
    %v1844 = vadd.f32 0.0, %v1843
    %v1845 = vpop.f32.mrf.mxu0
    %v1846 = vadd.f32 0.0, %v1845
    %v1847 = vpop.f32.mrf.mxu0
    %v1848 = vadd.f32 0.0, %v1847
    %v1849 = vpop.f32.mrf.mxu0
    %v1850 = vadd.f32 0.0, %v1849
    %1851 = vmatprep.mubr.bf16.mxu0 %v970
    %1852 = vmatmul.mubr.bf16.gmra.mxu0 %v464
    %v1853 = vpop.f32.mrf.mxu0
    %v1854 = vadd.f32 0.0, %v1853
    %v1855 = vpop.f32.mrf.mxu0
    %v1856 = vadd.f32 0.0, %v1855
    %v1857 = vpop.f32.mrf.mxu0
    %v1858 = vadd.f32 0.0, %v1857
    %v1859 = vpop.f32.mrf.mxu0
    %v1860 = vadd.f32 0.0, %v1859
    %1861 = vmatprep.mubr.bf16.mxu0 %v973
    %1862 = vmatmul.mubr.bf16.gmra.mxu0 %v466
    %v1863 = vpop.f32.mrf.mxu0
    %v1864 = vadd.f32 0.0, %v1863
    %v1865 = vpop.f32.mrf.mxu0
    %v1866 = vadd.f32 0.0, %v1865
    %v1867 = vpop.f32.mrf.mxu0
    %v1868 = vadd.f32 0.0, %v1867
    %v1869 = vpop.f32.mrf.mxu0
    %v1870 = vadd.f32 0.0, %v1869
    %1871 = vmatprep.mubr.bf16.mxu0 %v976
    %1872 = vmatmul.mubr.bf16.gmra.mxu0 %v468
    %v1873 = vpop.f32.mrf.mxu0
    %v1874 = vadd.f32 0.0, %v1873
    %v1875 = vpop.f32.mrf.mxu0
    %v1876 = vadd.f32 0.0, %v1875
    %v1877 = vpop.f32.mrf.mxu0
    %v1878 = vadd.f32 0.0, %v1877
    %v1879 = vpop.f32.mrf.mxu0
    %v1880 = vadd.f32 0.0, %v1879
    %1881 = vmatprep.mubr.bf16.mxu0 %v979
    %1882 = vmatmul.mubr.bf16.gmra.mxu0 %v470
    %v1883 = vpop.f32.mrf.mxu0
    %v1884 = vadd.f32 0.0, %v1883
    %v1885 = vpop.f32.mrf.mxu0
    %v1886 = vadd.f32 0.0, %v1885
    %v1887 = vpop.f32.mrf.mxu0
    %v1888 = vadd.f32 0.0, %v1887
    %v1889 = vpop.f32.mrf.mxu0
    %v1890 = vadd.f32 0.0, %v1889
    %1891 = vmatprep.mubr.bf16.mxu0 %v982
    %1892 = vmatmul.mubr.bf16.gmra.mxu0 %v472
    %v1893 = vpop.f32.mrf.mxu0
    %v1894 = vadd.f32 0.0, %v1893
    %v1895 = vpop.f32.mrf.mxu0
    %v1896 = vadd.f32 0.0, %v1895
    %v1897 = vpop.f32.mrf.mxu0
    %v1898 = vadd.f32 0.0, %v1897
    %v1899 = vpop.f32.mrf.mxu0
    %v1900 = vadd.f32 0.0, %v1899
    %1901 = vmatprep.mubr.bf16.mxu0 %v985
    %1902 = vmatmul.mubr.bf16.gmra.mxu0 %v474
    %v1903 = vpop.f32.mrf.mxu0
    %v1904 = vadd.f32 0.0, %v1903
    %v1905 = vpop.f32.mrf.mxu0
    %v1906 = vadd.f32 0.0, %v1905
    %v1907 = vpop.f32.mrf.mxu0
    %v1908 = vadd.f32 0.0, %v1907
    %v1909 = vpop.f32.mrf.mxu0
    %v1910 = vadd.f32 0.0, %v1909
    %1911 = vmatprep.mubr.bf16.mxu0 %v988
    %1912 = vmatmul.mubr.bf16.gmra.mxu0 %v476
    %v1913 = vpop.f32.mrf.mxu0
    %v1914 = vadd.f32 0.0, %v1913
    %v1915 = vpop.f32.mrf.mxu0
    %v1916 = vadd.f32 0.0, %v1915
    %v1917 = vpop.f32.mrf.mxu0
    %v1918 = vadd.f32 0.0, %v1917
    %v1919 = vpop.f32.mrf.mxu0
    %v1920 = vadd.f32 0.0, %v1919
    %1921 = vmatprep.mubr.bf16.mxu0 %v991
    %1922 = vmatmul.mubr.bf16.gmra.mxu0 %v478
    %v1923 = vpop.f32.mrf.mxu0
    %v1924 = vadd.f32 0.0, %v1923
    %v1925 = vpop.f32.mrf.mxu0
    %v1926 = vadd.f32 0.0, %v1925
    %v1927 = vpop.f32.mrf.mxu0
    %v1928 = vadd.f32 0.0, %v1927
    %v1929 = vpop.f32.mrf.mxu0
    %v1930 = vadd.f32 0.0, %v1929
    %1931 = vdwg.mxu0
    %1932 = vmatprep.subr.bf16.mxu0 %v811
    %1933 = vmatpush1.bf16.msra.mxu0 %v810
    %1934 = vmatprep.subr.bf16.mxu0 %v803
    %1935 = vmatpush1.bf16.msra.mxu0 %v802
    %1936 = vmatprep.subr.bf16.mxu0 %v795
    %1937 = vmatpush1.bf16.msra.mxu0 %v794
    %1938 = vmatprep.subr.bf16.mxu0 %v787
    %1939 = vmatpush1.bf16.msra.mxu0 %v786
    %1940 = vmatprep.subr.bf16.mxu0 %v779
    %1941 = vmatpush1.bf16.msra.mxu0 %v778
    %1942 = vmatprep.subr.bf16.mxu0 %v771
    %1943 = vmatpush1.bf16.msra.mxu0 %v770
    %1944 = vmatprep.subr.bf16.mxu0 %v763
    %1945 = vmatpush1.bf16.msra.mxu0 %v762
    %1946 = vmatprep.subr.bf16.mxu0 %v755
    %1947 = vmatpush1.bf16.msra.mxu0 %v754
    %1948 = vmatprep.subr.bf16.mxu0 0
    %1949 = vmatpush2.bf16.msra.mxu0 0
    %1950 = vmatprep.subr.bf16.mxu0 0
    %1951 = vmatpush2.bf16.msra.mxu0 0
    %1952 = vmatprep.subr.bf16.mxu0 0
    %1953 = vmatpush2.bf16.msra.mxu0 0
    %1954 = vmatprep.subr.bf16.mxu0 0
    %1955 = vmatpush2.bf16.msra.mxu0 0
    %1956 = vmatprep.subr.bf16.mxu0 0
    %1957 = vmatpush2.bf16.msra.mxu0 0
    %1958 = vmatprep.subr.bf16.mxu0 0
    %1959 = vmatpush2.bf16.msra.mxu0 0
    %1960 = vmatprep.subr.bf16.mxu0 %v827
    %1961 = vmatpush2.bf16.msra.mxu0 %v826
    %1962 = vmatprep.subr.bf16.mxu0 %v819
    %1963 = vmatpush2.bf16.msra.mxu0 %v818
    %1964 = vmatprep.mubr.bf16.mxu0 %v910
    %1965 = vmatmul.mubr.bf16.gmra.mxu0 %v424
    %v1966 = vpop.f32.mrf.mxu0
    %v1967 = vadd.f32 0.0, %v1966
    %v1968 = vpop.f32.mrf.mxu0
    %v1969 = vadd.f32 0.0, %v1968
    %v1970 = vpop.f32.mrf.mxu0
    %v1971 = vadd.f32 0.0, %v1970
    %v1972 = vpop.f32.mrf.mxu0
    %v1973 = vadd.f32 0.0, %v1972
    %1974 = vmatprep.mubr.bf16.mxu0 %v913
    %1975 = vmatmul.mubr.bf16.gmra.mxu0 %v426
    %v1976 = vpop.f32.mrf.mxu0
    %v1977 = vadd.f32 0.0, %v1976
    %v1978 = vpop.f32.mrf.mxu0
    %v1979 = vadd.f32 0.0, %v1978
    %v1980 = vpop.f32.mrf.mxu0
    %v1981 = vadd.f32 0.0, %v1980
    %v1982 = vpop.f32.mrf.mxu0
    %v1983 = vadd.f32 0.0, %v1982
    %1984 = vmatprep.mubr.bf16.mxu0 %v916
    %1985 = vmatmul.mubr.bf16.gmra.mxu0 %v428
    %v1986 = vpop.f32.mrf.mxu0
    %v1987 = vadd.f32 0.0, %v1986
    %v1988 = vpop.f32.mrf.mxu0
    %v1989 = vadd.f32 0.0, %v1988
    %v1990 = vpop.f32.mrf.mxu0
    %v1991 = vadd.f32 0.0, %v1990
    %v1992 = vpop.f32.mrf.mxu0
    %v1993 = vadd.f32 0.0, %v1992
    %1994 = vmatprep.mubr.bf16.mxu0 %v919
    %1995 = vmatmul.mubr.bf16.gmra.mxu0 %v430
    %v1996 = vpop.f32.mrf.mxu0
    %v1997 = vadd.f32 0.0, %v1996
    %v1998 = vpop.f32.mrf.mxu0
    %v1999 = vadd.f32 0.0, %v1998
    %v2000 = vpop.f32.mrf.mxu0
    %v2001 = vadd.f32 0.0, %v2000
    %v2002 = vpop.f32.mrf.mxu0
    %v2003 = vadd.f32 0.0, %v2002
    %2004 = vmatprep.mubr.bf16.mxu0 %v922
    %2005 = vmatmul.mubr.bf16.gmra.mxu0 %v432
    %v2006 = vpop.f32.mrf.mxu0
    %v2007 = vadd.f32 0.0, %v2006
    %v2008 = vpop.f32.mrf.mxu0
    %v2009 = vadd.f32 0.0, %v2008
    %v2010 = vpop.f32.mrf.mxu0
    %v2011 = vadd.f32 0.0, %v2010
    %v2012 = vpop.f32.mrf.mxu0
    %v2013 = vadd.f32 0.0, %v2012
    %2014 = vmatprep.mubr.bf16.mxu0 %v925
    %2015 = vmatmul.mubr.bf16.gmra.mxu0 %v434
    %v2016 = vpop.f32.mrf.mxu0
    %v2017 = vadd.f32 0.0, %v2016
    %v2018 = vpop.f32.mrf.mxu0
    %v2019 = vadd.f32 0.0, %v2018
    %v2020 = vpop.f32.mrf.mxu0
    %v2021 = vadd.f32 0.0, %v2020
    %v2022 = vpop.f32.mrf.mxu0
    %v2023 = vadd.f32 0.0, %v2022
    %2024 = vmatprep.mubr.bf16.mxu0 %v928
    %2025 = vmatmul.mubr.bf16.gmra.mxu0 %v436
    %v2026 = vpop.f32.mrf.mxu0
    %v2027 = vadd.f32 0.0, %v2026
    %v2028 = vpop.f32.mrf.mxu0
    %v2029 = vadd.f32 0.0, %v2028
    %v2030 = vpop.f32.mrf.mxu0
    %v2031 = vadd.f32 0.0, %v2030
    %v2032 = vpop.f32.mrf.mxu0
    %v2033 = vadd.f32 0.0, %v2032
    %2034 = vmatprep.mubr.bf16.mxu0 %v931
    %2035 = vmatmul.mubr.bf16.gmra.mxu0 %v438
    %v2036 = vpop.f32.mrf.mxu0
    %v2037 = vadd.f32 0.0, %v2036
    %v2038 = vpop.f32.mrf.mxu0
    %v2039 = vadd.f32 0.0, %v2038
    %v2040 = vpop.f32.mrf.mxu0
    %v2041 = vadd.f32 0.0, %v2040
    %v2042 = vpop.f32.mrf.mxu0
    %v2043 = vadd.f32 0.0, %v2042
    %2044 = vmatprep.mubr.bf16.mxu0 %v934
    %2045 = vmatmul.mubr.bf16.gmra.mxu0 %v440
    %v2046 = vpop.f32.mrf.mxu0
    %v2047 = vadd.f32 0.0, %v2046
    %v2048 = vpop.f32.mrf.mxu0
    %v2049 = vadd.f32 0.0, %v2048
    %v2050 = vpop.f32.mrf.mxu0
    %v2051 = vadd.f32 0.0, %v2050
    %v2052 = vpop.f32.mrf.mxu0
    %v2053 = vadd.f32 0.0, %v2052
    %2054 = vmatprep.mubr.bf16.mxu0 %v937
    %2055 = vmatmul.mubr.bf16.gmra.mxu0 %v442
    %v2056 = vpop.f32.mrf.mxu0
    %v2057 = vadd.f32 0.0, %v2056
    %v2058 = vpop.f32.mrf.mxu0
    %v2059 = vadd.f32 0.0, %v2058
    %v2060 = vpop.f32.mrf.mxu0
    %v2061 = vadd.f32 0.0, %v2060
    %v2062 = vpop.f32.mrf.mxu0
    %v2063 = vadd.f32 0.0, %v2062
    %2064 = vmatprep.mubr.bf16.mxu0 %v940
    %2065 = vmatmul.mubr.bf16.gmra.mxu0 %v444
    %v2066 = vpop.f32.mrf.mxu0
    %v2067 = vadd.f32 0.0, %v2066
    %v2068 = vpop.f32.mrf.mxu0
    %v2069 = vadd.f32 0.0, %v2068
    %v2070 = vpop.f32.mrf.mxu0
    %v2071 = vadd.f32 0.0, %v2070
    %v2072 = vpop.f32.mrf.mxu0
    %v2073 = vadd.f32 0.0, %v2072
    %2074 = vmatprep.mubr.bf16.mxu0 %v943
    %2075 = vmatmul.mubr.bf16.gmra.mxu0 %v446
    %v2076 = vpop.f32.mrf.mxu0
    %v2077 = vadd.f32 0.0, %v2076
    %v2078 = vpop.f32.mrf.mxu0
    %v2079 = vadd.f32 0.0, %v2078
    %v2080 = vpop.f32.mrf.mxu0
    %v2081 = vadd.f32 0.0, %v2080
    %v2082 = vpop.f32.mrf.mxu0
    %v2083 = vadd.f32 0.0, %v2082
    %2084 = vmatprep.mubr.bf16.mxu0 %v946
    %2085 = vmatmul.mubr.bf16.gmra.mxu0 %v448
    %v2086 = vpop.f32.mrf.mxu0
    %v2087 = vadd.f32 0.0, %v2086
    %v2088 = vpop.f32.mrf.mxu0
    %v2089 = vadd.f32 0.0, %v2088
    %v2090 = vpop.f32.mrf.mxu0
    %v2091 = vadd.f32 0.0, %v2090
    %v2092 = vpop.f32.mrf.mxu0
    %v2093 = vadd.f32 0.0, %v2092
    %2094 = vmatprep.mubr.bf16.mxu0 %v949
    %2095 = vmatmul.mubr.bf16.gmra.mxu0 %v450
    %v2096 = vpop.f32.mrf.mxu0
    %v2097 = vadd.f32 0.0, %v2096
    %v2098 = vpop.f32.mrf.mxu0
    %v2099 = vadd.f32 0.0, %v2098
    %v2100 = vpop.f32.mrf.mxu0
    %v2101 = vadd.f32 0.0, %v2100
    %v2102 = vpop.f32.mrf.mxu0
    %v2103 = vadd.f32 0.0, %v2102
    %2104 = vmatprep.mubr.bf16.mxu0 %v952
    %2105 = vmatmul.mubr.bf16.gmra.mxu0 %v452
    %v2106 = vpop.f32.mrf.mxu0
    %v2107 = vadd.f32 0.0, %v2106
    %v2108 = vpop.f32.mrf.mxu0
    %v2109 = vadd.f32 0.0, %v2108
    %v2110 = vpop.f32.mrf.mxu0
    %v2111 = vadd.f32 0.0, %v2110
    %v2112 = vpop.f32.mrf.mxu0
    %v2113 = vadd.f32 0.0, %v2112
    %2114 = vmatprep.mubr.bf16.mxu0 %v955
    %2115 = vmatmul.mubr.bf16.gmra.mxu0 %v454
    %v2116 = vpop.f32.mrf.mxu0
    %v2117 = vadd.f32 0.0, %v2116
    %v2118 = vpop.f32.mrf.mxu0
    %v2119 = vadd.f32 0.0, %v2118
    %v2120 = vpop.f32.mrf.mxu0
    %v2121 = vadd.f32 0.0, %v2120
    %v2122 = vpop.f32.mrf.mxu0
    %v2123 = vadd.f32 0.0, %v2122
    %2124 = vmatprep.mubr.bf16.mxu0 %v958
    %2125 = vmatmul.mubr.bf16.gmra.mxu0 %v456
    %v2126 = vpop.f32.mrf.mxu0
    %v2127 = vadd.f32 0.0, %v2126
    %v2128 = vpop.f32.mrf.mxu0
    %v2129 = vadd.f32 0.0, %v2128
    %v2130 = vpop.f32.mrf.mxu0
    %v2131 = vadd.f32 0.0, %v2130
    %v2132 = vpop.f32.mrf.mxu0
    %v2133 = vadd.f32 0.0, %v2132
    %2134 = vmatprep.mubr.bf16.mxu0 %v961
    %2135 = vmatmul.mubr.bf16.gmra.mxu0 %v458
    %v2136 = vpop.f32.mrf.mxu0
    %v2137 = vadd.f32 0.0, %v2136
    %v2138 = vpop.f32.mrf.mxu0
    %v2139 = vadd.f32 0.0, %v2138
    %v2140 = vpop.f32.mrf.mxu0
    %v2141 = vadd.f32 0.0, %v2140
    %v2142 = vpop.f32.mrf.mxu0
    %v2143 = vadd.f32 0.0, %v2142
    %2144 = vmatprep.mubr.bf16.mxu0 %v964
    %2145 = vmatmul.mubr.bf16.gmra.mxu0 %v460
    %v2146 = vpop.f32.mrf.mxu0
    %v2147 = vadd.f32 0.0, %v2146
    %v2148 = vpop.f32.mrf.mxu0
    %v2149 = vadd.f32 0.0, %v2148
    %v2150 = vpop.f32.mrf.mxu0
    %v2151 = vadd.f32 0.0, %v2150
    %v2152 = vpop.f32.mrf.mxu0
    %v2153 = vadd.f32 0.0, %v2152
    %2154 = vmatprep.mubr.bf16.mxu0 %v967
    %2155 = vmatmul.mubr.bf16.gmra.mxu0 %v462
    %v2156 = vpop.f32.mrf.mxu0
    %v2157 = vadd.f32 0.0, %v2156
    %v2158 = vpop.f32.mrf.mxu0
    %v2159 = vadd.f32 0.0, %v2158
    %v2160 = vpop.f32.mrf.mxu0
    %v2161 = vadd.f32 0.0, %v2160
    %v2162 = vpop.f32.mrf.mxu0
    %v2163 = vadd.f32 0.0, %v2162
    %2164 = vmatprep.mubr.bf16.mxu0 %v970
    %2165 = vmatmul.mubr.bf16.gmra.mxu0 %v464
    %v2166 = vpop.f32.mrf.mxu0
    %v2167 = vadd.f32 0.0, %v2166
    %v2168 = vpop.f32.mrf.mxu0
    %v2169 = vadd.f32 0.0, %v2168
    %v2170 = vpop.f32.mrf.mxu0
    %v2171 = vadd.f32 0.0, %v2170
    %v2172 = vpop.f32.mrf.mxu0
    %v2173 = vadd.f32 0.0, %v2172
    %2174 = vmatprep.mubr.bf16.mxu0 %v973
    %2175 = vmatmul.mubr.bf16.gmra.mxu0 %v466
    %v2176 = vpop.f32.mrf.mxu0
    %v2177 = vadd.f32 0.0, %v2176
    %v2178 = vpop.f32.mrf.mxu0
    %v2179 = vadd.f32 0.0, %v2178
    %v2180 = vpop.f32.mrf.mxu0
    %v2181 = vadd.f32 0.0, %v2180
    %v2182 = vpop.f32.mrf.mxu0
    %v2183 = vadd.f32 0.0, %v2182
    %2184 = vmatprep.mubr.bf16.mxu0 %v976
    %2185 = vmatmul.mubr.bf16.gmra.mxu0 %v468
    %v2186 = vpop.f32.mrf.mxu0
    %v2187 = vadd.f32 0.0, %v2186
    %v2188 = vpop.f32.mrf.mxu0
    %v2189 = vadd.f32 0.0, %v2188
    %v2190 = vpop.f32.mrf.mxu0
    %v2191 = vadd.f32 0.0, %v2190
    %v2192 = vpop.f32.mrf.mxu0
    %v2193 = vadd.f32 0.0, %v2192
    %2194 = vmatprep.mubr.bf16.mxu0 %v979
    %2195 = vmatmul.mubr.bf16.gmra.mxu0 %v470
    %v2196 = vpop.f32.mrf.mxu0
    %v2197 = vadd.f32 0.0, %v2196
    %v2198 = vpop.f32.mrf.mxu0
    %v2199 = vadd.f32 0.0, %v2198
    %v2200 = vpop.f32.mrf.mxu0
    %v2201 = vadd.f32 0.0, %v2200
    %v2202 = vpop.f32.mrf.mxu0
    %v2203 = vadd.f32 0.0, %v2202
    %2204 = vmatprep.mubr.bf16.mxu0 %v982
    %2205 = vmatmul.mubr.bf16.gmra.mxu0 %v472
    %v2206 = vpop.f32.mrf.mxu0
    %v2207 = vadd.f32 0.0, %v2206
    %v2208 = vpop.f32.mrf.mxu0
    %v2209 = vadd.f32 0.0, %v2208
    %v2210 = vpop.f32.mrf.mxu0
    %v2211 = vadd.f32 0.0, %v2210
    %v2212 = vpop.f32.mrf.mxu0
    %v2213 = vadd.f32 0.0, %v2212
    %2214 = vmatprep.mubr.bf16.mxu0 %v985
    %2215 = vmatmul.mubr.bf16.gmra.mxu0 %v474
    %v2216 = vpop.f32.mrf.mxu0
    %v2217 = vadd.f32 0.0, %v2216
    %v2218 = vpop.f32.mrf.mxu0
    %v2219 = vadd.f32 0.0, %v2218
    %v2220 = vpop.f32.mrf.mxu0
    %v2221 = vadd.f32 0.0, %v2220
    %v2222 = vpop.f32.mrf.mxu0
    %v2223 = vadd.f32 0.0, %v2222
    %2224 = vmatprep.mubr.bf16.mxu0 %v988
    %2225 = vmatmul.mubr.bf16.gmra.mxu0 %v476
    %v2226 = vpop.f32.mrf.mxu0
    %v2227 = vadd.f32 0.0, %v2226
    %v2228 = vpop.f32.mrf.mxu0
    %v2229 = vadd.f32 0.0, %v2228
    %v2230 = vpop.f32.mrf.mxu0
    %v2231 = vadd.f32 0.0, %v2230
    %v2232 = vpop.f32.mrf.mxu0
    %v2233 = vadd.f32 0.0, %v2232
    %2234 = vmatprep.mubr.bf16.mxu0 %v991
    %2235 = vmatmul.mubr.bf16.gmra.mxu0 %v478
    %v2236 = vpop.f32.mrf.mxu0
    %v2237 = vadd.f32 0.0, %v2236
    %v2238 = vpop.f32.mrf.mxu0
    %v2239 = vadd.f32 0.0, %v2238
    %v2240 = vpop.f32.mrf.mxu0
    %v2241 = vadd.f32 0.0, %v2240
    %v2242 = vpop.f32.mrf.mxu0
    %v2243 = vadd.f32 0.0, %v2242
    %2244 = vdwg.mxu0
    %v2245 = vmax.f32 %v1028, %v1168
    %v2246 = vmax.f32 %v1030, %v1170
    %v2247 = vmax.f32 %v1341, %v1481
    %v2248 = vmax.f32 %v1343, %v1483
    %v2249 = vmax.f32 %v1654, %v1794
    %v2250 = vmax.f32 %v1656, %v1796
    %v2251 = vmax.f32 %v1967, %v2107
    %v2252 = vmax.f32 %v1969, %v2109
    %v2253 = vmax.f32 %v1032, %v1172
    %v2254 = vmax.f32 %v1034, %v1174
    %v2255 = vmax.f32 %v1345, %v1485
    %v2256 = vmax.f32 %v1347, %v1487
    %v2257 = vmax.f32 %v1658, %v1798
    %v2258 = vmax.f32 %v1660, %v1800
    %v2259 = vmax.f32 %v1971, %v2111
    %v2260 = vmax.f32 %v1973, %v2113
    %v2261 = vmax.f32 %v1038, %v1178
    %v2262 = vmax.f32 %v1040, %v1180
    %v2263 = vmax.f32 %v1351, %v1491
    %v2264 = vmax.f32 %v1353, %v1493
    %v2265 = vmax.f32 %v1664, %v1804
    %v2266 = vmax.f32 %v1666, %v1806
    %v2267 = vmax.f32 %v1977, %v2117
    %v2268 = vmax.f32 %v1979, %v2119
    %v2269 = vmax.f32 %v1042, %v1182
    %v2270 = vmax.f32 %v1044, %v1184
    %v2271 = vmax.f32 %v1355, %v1495
    %v2272 = vmax.f32 %v1357, %v1497
    %v2273 = vmax.f32 %v1668, %v1808
    %v2274 = vmax.f32 %v1670, %v1810
    %v2275 = vmax.f32 %v1981, %v2121
    %v2276 = vmax.f32 %v1983, %v2123
    %v2277 = vmax.f32 %v1048, %v1188
    %v2278 = vmax.f32 %v1050, %v1190
    %v2279 = vmax.f32 %v1361, %v1501
    %v2280 = vmax.f32 %v1363, %v1503
    %v2281 = vmax.f32 %v1674, %v1814
    %v2282 = vmax.f32 %v1676, %v1816
    %v2283 = vmax.f32 %v1987, %v2127
    %v2284 = vmax.f32 %v1989, %v2129
    %v2285 = vmax.f32 %v1052, %v1192
    %v2286 = vmax.f32 %v1054, %v1194
    %v2287 = vmax.f32 %v1365, %v1505
    %v2288 = vmax.f32 %v1367, %v1507
    %v2289 = vmax.f32 %v1678, %v1818
    %v2290 = vmax.f32 %v1680, %v1820
    %v2291 = vmax.f32 %v1991, %v2131
    %v2292 = vmax.f32 %v1993, %v2133
    %v2293 = vmax.f32 %v1058, %v1198
    %v2294 = vmax.f32 %v1060, %v1200
    %v2295 = vmax.f32 %v1371, %v1511
    %v2296 = vmax.f32 %v1373, %v1513
    %v2297 = vmax.f32 %v1684, %v1824
    %v2298 = vmax.f32 %v1686, %v1826
    %v2299 = vmax.f32 %v1997, %v2137
    %v2300 = vmax.f32 %v1999, %v2139
    %v2301 = vmax.f32 %v1062, %v1202
    %v2302 = vmax.f32 %v1064, %v1204
    %v2303 = vmax.f32 %v1375, %v1515
    %v2304 = vmax.f32 %v1377, %v1517
    %v2305 = vmax.f32 %v1688, %v1828
    %v2306 = vmax.f32 %v1690, %v1830
    %v2307 = vmax.f32 %v2001, %v2141
    %v2308 = vmax.f32 %v2003, %v2143
    %v2309 = vmax.f32 %v1068, %v1208
    %v2310 = vmax.f32 %v1070, %v1210
    %v2311 = vmax.f32 %v1381, %v1521
    %v2312 = vmax.f32 %v1383, %v1523
    %v2313 = vmax.f32 %v1694, %v1834
    %v2314 = vmax.f32 %v1696, %v1836
    %v2315 = vmax.f32 %v2007, %v2147
    %v2316 = vmax.f32 %v2009, %v2149
    %v2317 = vmax.f32 %v1072, %v1212
    %v2318 = vmax.f32 %v1074, %v1214
    %v2319 = vmax.f32 %v1385, %v1525
    %v2320 = vmax.f32 %v1387, %v1527
    %v2321 = vmax.f32 %v1698, %v1838
    %v2322 = vmax.f32 %v1700, %v1840
    %v2323 = vmax.f32 %v2011, %v2151
    %v2324 = vmax.f32 %v2013, %v2153
    %v2325 = vmax.f32 %v1078, %v1218
    %v2326 = vmax.f32 %v1080, %v1220
    %v2327 = vmax.f32 %v1391, %v1531
    %v2328 = vmax.f32 %v1393, %v1533
    %v2329 = vmax.f32 %v1704, %v1844
    %v2330 = vmax.f32 %v1706, %v1846
    %v2331 = vmax.f32 %v2017, %v2157
    %v2332 = vmax.f32 %v2019, %v2159
    %v2333 = vmax.f32 %v1082, %v1222
    %v2334 = vmax.f32 %v1084, %v1224
    %v2335 = vmax.f32 %v1395, %v1535
    %v2336 = vmax.f32 %v1397, %v1537
    %v2337 = vmax.f32 %v1708, %v1848
    %v2338 = vmax.f32 %v1710, %v1850
    %v2339 = vmax.f32 %v2021, %v2161
    %v2340 = vmax.f32 %v2023, %v2163
    %v2341 = vmax.f32 %v1088, %v1228
    %v2342 = vmax.f32 %v1090, %v1230
    %v2343 = vmax.f32 %v1401, %v1541
    %v2344 = vmax.f32 %v1403, %v1543
    %v2345 = vmax.f32 %v1714, %v1854
    %v2346 = vmax.f32 %v1716, %v1856
    %v2347 = vmax.f32 %v2027, %v2167
    %v2348 = vmax.f32 %v2029, %v2169
    %v2349 = vmax.f32 %v1092, %v1232
    %v2350 = vmax.f32 %v1094, %v1234
    %v2351 = vmax.f32 %v1405, %v1545
    %v2352 = vmax.f32 %v1407, %v1547
    %v2353 = vmax.f32 %v1718, %v1858
    %v2354 = vmax.f32 %v1720, %v1860
    %v2355 = vmax.f32 %v2031, %v2171
    %v2356 = vmax.f32 %v2033, %v2173
    %v2357 = vmax.f32 %v1098, %v1238
    %v2358 = vmax.f32 %v1100, %v1240
    %v2359 = vmax.f32 %v1411, %v1551
    %v2360 = vmax.f32 %v1413, %v1553
    %v2361 = vmax.f32 %v1724, %v1864
    %v2362 = vmax.f32 %v1726, %v1866
    %v2363 = vmax.f32 %v2037, %v2177
    %v2364 = vmax.f32 %v2039, %v2179
    %v2365 = vmax.f32 %v1102, %v1242
    %v2366 = vmax.f32 %v1104, %v1244
    %v2367 = vmax.f32 %v1415, %v1555
    %v2368 = vmax.f32 %v1417, %v1557
    %v2369 = vmax.f32 %v1728, %v1868
    %v2370 = vmax.f32 %v1730, %v1870
    %v2371 = vmax.f32 %v2041, %v2181
    %v2372 = vmax.f32 %v2043, %v2183
    %v2373 = vmax.f32 %v1108, %v1248
    %v2374 = vmax.f32 %v1110, %v1250
    %v2375 = vmax.f32 %v1421, %v1561
    %v2376 = vmax.f32 %v1423, %v1563
    %v2377 = vmax.f32 %v1734, %v1874
    %v2378 = vmax.f32 %v1736, %v1876
    %v2379 = vmax.f32 %v2047, %v2187
    %v2380 = vmax.f32 %v2049, %v2189
    %v2381 = vmax.f32 %v1112, %v1252
    %v2382 = vmax.f32 %v1114, %v1254
    %v2383 = vmax.f32 %v1425, %v1565
    %v2384 = vmax.f32 %v1427, %v1567
    %v2385 = vmax.f32 %v1738, %v1878
    %v2386 = vmax.f32 %v1740, %v1880
    %v2387 = vmax.f32 %v2051, %v2191
    %v2388 = vmax.f32 %v2053, %v2193
    %v2389 = vmax.f32 %v1118, %v1258
    %v2390 = vmax.f32 %v1120, %v1260
    %v2391 = vmax.f32 %v1431, %v1571
    %v2392 = vmax.f32 %v1433, %v1573
    %v2393 = vmax.f32 %v1744, %v1884
    %v2394 = vmax.f32 %v1746, %v1886
    %v2395 = vmax.f32 %v2057, %v2197
    %v2396 = vmax.f32 %v2059, %v2199
    %v2397 = vmax.f32 %v1122, %v1262
    %v2398 = vmax.f32 %v1124, %v1264
    %v2399 = vmax.f32 %v1435, %v1575
    %v2400 = vmax.f32 %v1437, %v1577
    %v2401 = vmax.f32 %v1748, %v1888
    %v2402 = vmax.f32 %v1750, %v1890
    %v2403 = vmax.f32 %v2061, %v2201
    %v2404 = vmax.f32 %v2063, %v2203
    %v2405 = vmax.f32 %v1128, %v1268
    %v2406 = vmax.f32 %v1130, %v1270
    %v2407 = vmax.f32 %v1441, %v1581
    %v2408 = vmax.f32 %v1443, %v1583
    %v2409 = vmax.f32 %v1754, %v1894
    %v2410 = vmax.f32 %v1756, %v1896
    %v2411 = vmax.f32 %v2067, %v2207
    %v2412 = vmax.f32 %v2069, %v2209
    %v2413 = vmax.f32 %v1132, %v1272
    %v2414 = vmax.f32 %v1134, %v1274
    %v2415 = vmax.f32 %v1445, %v1585
    %v2416 = vmax.f32 %v1447, %v1587
    %v2417 = vmax.f32 %v1758, %v1898
    %v2418 = vmax.f32 %v1760, %v1900
    %v2419 = vmax.f32 %v2071, %v2211
    %v2420 = vmax.f32 %v2073, %v2213
    %v2421 = vmax.f32 %v1138, %v1278
    %v2422 = vmax.f32 %v1140, %v1280
    %v2423 = vmax.f32 %v1451, %v1591
    %v2424 = vmax.f32 %v1453, %v1593
    %v2425 = vmax.f32 %v1764, %v1904
    %v2426 = vmax.f32 %v1766, %v1906
    %v2427 = vmax.f32 %v2077, %v2217
    %v2428 = vmax.f32 %v2079, %v2219
    %v2429 = vmax.f32 %v1142, %v1282
    %v2430 = vmax.f32 %v1144, %v1284
    %v2431 = vmax.f32 %v1455, %v1595
    %v2432 = vmax.f32 %v1457, %v1597
    %v2433 = vmax.f32 %v1768, %v1908
    %v2434 = vmax.f32 %v1770, %v1910
    %v2435 = vmax.f32 %v2081, %v2221
    %v2436 = vmax.f32 %v2083, %v2223
    %v2437 = vmax.f32 %v1148, %v1288
    %v2438 = vmax.f32 %v1150, %v1290
    %v2439 = vmax.f32 %v1461, %v1601
    %v2440 = vmax.f32 %v1463, %v1603
    %v2441 = vmax.f32 %v1774, %v1914
    %v2442 = vmax.f32 %v1776, %v1916
    %v2443 = vmax.f32 %v2087, %v2227
    %v2444 = vmax.f32 %v2089, %v2229
    %v2445 = vmax.f32 %v1152, %v1292
    %v2446 = vmax.f32 %v1154, %v1294
    %v2447 = vmax.f32 %v1465, %v1605
    %v2448 = vmax.f32 %v1467, %v1607
    %v2449 = vmax.f32 %v1778, %v1918
    %v2450 = vmax.f32 %v1780, %v1920
    %v2451 = vmax.f32 %v2091, %v2231
    %v2452 = vmax.f32 %v2093, %v2233
    %v2453 = vmax.f32 %v1158, %v1298
    %v2454 = vmax.f32 %v1160, %v1300
    %v2455 = vmax.f32 %v1471, %v1611
    %v2456 = vmax.f32 %v1473, %v1613
    %v2457 = vmax.f32 %v1784, %v1924
    %v2458 = vmax.f32 %v1786, %v1926
    %v2459 = vmax.f32 %v2097, %v2237
    %v2460 = vmax.f32 %v2099, %v2239
    %v2461 = vmax.f32 %v1162, %v1302
    %v2462 = vmax.f32 %v1164, %v1304
    %v2463 = vmax.f32 %v1475, %v1615
    %v2464 = vmax.f32 %v1477, %v1617
    %v2465 = vmax.f32 %v1788, %v1928
    %v2466 = vmax.f32 %v1790, %v1930
    %v2467 = vmax.f32 %v2101, %v2241
    %v2468 = vmax.f32 %v2103, %v2243
    %v2469 = vmax.f32 %v2245, %v2249
    %v2470 = vmax.f32 %v2246, %v2250
    %v2471 = vmax.f32 %v2247, %v2251
    %v2472 = vmax.f32 %v2248, %v2252
    %v2473 = vmax.f32 %v2253, %v2257
    %v2474 = vmax.f32 %v2254, %v2258
    %v2475 = vmax.f32 %v2255, %v2259
    %v2476 = vmax.f32 %v2256, %v2260
    %v2477 = vmax.f32 %v2261, %v2265
    %v2478 = vmax.f32 %v2262, %v2266
    %v2479 = vmax.f32 %v2263, %v2267
    %v2480 = vmax.f32 %v2264, %v2268
    %v2481 = vmax.f32 %v2269, %v2273
    %v2482 = vmax.f32 %v2270, %v2274
    %v2483 = vmax.f32 %v2271, %v2275
    %v2484 = vmax.f32 %v2272, %v2276
    %v2485 = vmax.f32 %v2277, %v2281
    %v2486 = vmax.f32 %v2278, %v2282
    %v2487 = vmax.f32 %v2279, %v2283
    %v2488 = vmax.f32 %v2280, %v2284
    %v2489 = vmax.f32 %v2285, %v2289
    %v2490 = vmax.f32 %v2286, %v2290
    %v2491 = vmax.f32 %v2287, %v2291
    %v2492 = vmax.f32 %v2288, %v2292
    %v2493 = vmax.f32 %v2293, %v2297
    %v2494 = vmax.f32 %v2294, %v2298
    %v2495 = vmax.f32 %v2295, %v2299
    %v2496 = vmax.f32 %v2296, %v2300
    %v2497 = vmax.f32 %v2301, %v2305
    %v2498 = vmax.f32 %v2302, %v2306
    %v2499 = vmax.f32 %v2303, %v2307
    %v2500 = vmax.f32 %v2304, %v2308
    %v2501 = vmax.f32 %v2309, %v2313
    %v2502 = vmax.f32 %v2310, %v2314
    %v2503 = vmax.f32 %v2311, %v2315
    %v2504 = vmax.f32 %v2312, %v2316
    %v2505 = vmax.f32 %v2317, %v2321
    %v2506 = vmax.f32 %v2318, %v2322
    %v2507 = vmax.f32 %v2319, %v2323
    %v2508 = vmax.f32 %v2320, %v2324
    %v2509 = vmax.f32 %v2325, %v2329
    %v2510 = vmax.f32 %v2326, %v2330
    %v2511 = vmax.f32 %v2327, %v2331
    %v2512 = vmax.f32 %v2328, %v2332
    %v2513 = vmax.f32 %v2333, %v2337
    %v2514 = vmax.f32 %v2334, %v2338
    %v2515 = vmax.f32 %v2335, %v2339
    %v2516 = vmax.f32 %v2336, %v2340
    %v2517 = vmax.f32 %v2341, %v2345
    %v2518 = vmax.f32 %v2342, %v2346
    %v2519 = vmax.f32 %v2343, %v2347
    %v2520 = vmax.f32 %v2344, %v2348
    %v2521 = vmax.f32 %v2349, %v2353
    %v2522 = vmax.f32 %v2350, %v2354
    %v2523 = vmax.f32 %v2351, %v2355
    %v2524 = vmax.f32 %v2352, %v2356
    %v2525 = vmax.f32 %v2357, %v2361
    %v2526 = vmax.f32 %v2358, %v2362
    %v2527 = vmax.f32 %v2359, %v2363
    %v2528 = vmax.f32 %v2360, %v2364
    %v2529 = vmax.f32 %v2365, %v2369
    %v2530 = vmax.f32 %v2366, %v2370
    %v2531 = vmax.f32 %v2367, %v2371
    %v2532 = vmax.f32 %v2368, %v2372
    %v2533 = vmax.f32 %v2373, %v2377
    %v2534 = vmax.f32 %v2374, %v2378
    %v2535 = vmax.f32 %v2375, %v2379
    %v2536 = vmax.f32 %v2376, %v2380
    %v2537 = vmax.f32 %v2381, %v2385
    %v2538 = vmax.f32 %v2382, %v2386
    %v2539 = vmax.f32 %v2383, %v2387
    %v2540 = vmax.f32 %v2384, %v2388
    %v2541 = vmax.f32 %v2389, %v2393
    %v2542 = vmax.f32 %v2390, %v2394
    %v2543 = vmax.f32 %v2391, %v2395
    %v2544 = vmax.f32 %v2392, %v2396
    %v2545 = vmax.f32 %v2397, %v2401
    %v2546 = vmax.f32 %v2398, %v2402
    %v2547 = vmax.f32 %v2399, %v2403
    %v2548 = vmax.f32 %v2400, %v2404
    %v2549 = vmax.f32 %v2405, %v2409
    %v2550 = vmax.f32 %v2406, %v2410
    %v2551 = vmax.f32 %v2407, %v2411
    %v2552 = vmax.f32 %v2408, %v2412
    %v2553 = vmax.f32 %v2413, %v2417
    %v2554 = vmax.f32 %v2414, %v2418
    %v2555 = vmax.f32 %v2415, %v2419
    %v2556 = vmax.f32 %v2416, %v2420
    %v2557 = vmax.f32 %v2421, %v2425
    %v2558 = vmax.f32 %v2422, %v2426
    %v2559 = vmax.f32 %v2423, %v2427
    %v2560 = vmax.f32 %v2424, %v2428
    %v2561 = vmax.f32 %v2429, %v2433
    %v2562 = vmax.f32 %v2430, %v2434
    %v2563 = vmax.f32 %v2431, %v2435
    %v2564 = vmax.f32 %v2432, %v2436
    %v2565 = vmax.f32 %v2437, %v2441
    %v2566 = vmax.f32 %v2438, %v2442
    %v2567 = vmax.f32 %v2439, %v2443
    %v2568 = vmax.f32 %v2440, %v2444
    %v2569 = vmax.f32 %v2445, %v2449
    %v2570 = vmax.f32 %v2446, %v2450
    %v2571 = vmax.f32 %v2447, %v2451
    %v2572 = vmax.f32 %v2448, %v2452
    %v2573 = vmax.f32 %v2453, %v2457
    %v2574 = vmax.f32 %v2454, %v2458
    %v2575 = vmax.f32 %v2455, %v2459
    %v2576 = vmax.f32 %v2456, %v2460
    %v2577 = vmax.f32 %v2461, %v2465
    %v2578 = vmax.f32 %v2462, %v2466
    %v2579 = vmax.f32 %v2463, %v2467
    %v2580 = vmax.f32 %v2464, %v2468
    %v2581 = vld [vmem:[#allocation4] sm:$0xf]
    %v2583 = vlaneseq
    %v2584 = vshrl.u32 %v2583, 7
    %v2585 = vsub.s32 0, %v2584
    %v2586 = vrot.slane %v2581, %v2585
    %v2587 = vlaneseq
    %v2588 = vshrl.u32 %v2587, 7
    %v2589 = vsub.s32 1, %v2588
    %v2590 = vrot.slane %v2581, %v2589
    %v2591 = vlaneseq
    %v2592 = vshrl.u32 %v2591, 7
    %v2593 = vsub.s32 2, %v2592
    %v2594 = vrot.slane %v2581, %v2593
    %v2595 = vlaneseq
    %v2596 = vshrl.u32 %v2595, 7
    %v2597 = vsub.s32 3, %v2596
    %v2598 = vrot.slane %v2581, %v2597
    %v2603 = vadd.f32 %v2469, %v2586
    %v2604 = vadd.f32 %v2470, %v2590
    %v2605 = vadd.f32 %v2471, %v2594
    %v2606 = vadd.f32 %v2472, %v2598
    %v2607 = vadd.f32 %v2473, %v2586
    %v2608 = vadd.f32 %v2474, %v2590
    %v2609 = vadd.f32 %v2475, %v2594
    %v2610 = vadd.f32 %v2476, %v2598
    %v2611 = vadd.f32 %v2477, %v2586
    %v2612 = vadd.f32 %v2478, %v2590
    %v2613 = vadd.f32 %v2479, %v2594
    %v2614 = vadd.f32 %v2480, %v2598
    %v2615 = vadd.f32 %v2481, %v2586
    %v2616 = vadd.f32 %v2482, %v2590
    %v2617 = vadd.f32 %v2483, %v2594
    %v2618 = vadd.f32 %v2484, %v2598
    %v2619 = vadd.f32 %v2485, %v2586
    %v2620 = vadd.f32 %v2486, %v2590
    %v2621 = vadd.f32 %v2487, %v2594
    %v2622 = vadd.f32 %v2488, %v2598
    %v2623 = vadd.f32 %v2489, %v2586
    %v2624 = vadd.f32 %v2490, %v2590
    %v2625 = vadd.f32 %v2491, %v2594
    %v2626 = vadd.f32 %v2492, %v2598
    %v2627 = vadd.f32 %v2493, %v2586
    %v2628 = vadd.f32 %v2494, %v2590
    %v2629 = vadd.f32 %v2495, %v2594
    %v2630 = vadd.f32 %v2496, %v2598
    %v2631 = vadd.f32 %v2497, %v2586
    %v2632 = vadd.f32 %v2498, %v2590
    %v2633 = vadd.f32 %v2499, %v2594
    %v2634 = vadd.f32 %v2500, %v2598
    %v2635 = vadd.f32 %v2501, %v2586
    %v2636 = vadd.f32 %v2502, %v2590
    %v2637 = vadd.f32 %v2503, %v2594
    %v2638 = vadd.f32 %v2504, %v2598
    %v2639 = vadd.f32 %v2505, %v2586
    %v2640 = vadd.f32 %v2506, %v2590
    %v2641 = vadd.f32 %v2507, %v2594
    %v2642 = vadd.f32 %v2508, %v2598
    %v2643 = vadd.f32 %v2509, %v2586
    %v2644 = vadd.f32 %v2510, %v2590
    %v2645 = vadd.f32 %v2511, %v2594
    %v2646 = vadd.f32 %v2512, %v2598
    %v2647 = vadd.f32 %v2513, %v2586
    %v2648 = vadd.f32 %v2514, %v2590
    %v2649 = vadd.f32 %v2515, %v2594
    %v2650 = vadd.f32 %v2516, %v2598
    %v2651 = vadd.f32 %v2517, %v2586
    %v2652 = vadd.f32 %v2518, %v2590
    %v2653 = vadd.f32 %v2519, %v2594
    %v2654 = vadd.f32 %v2520, %v2598
    %v2655 = vadd.f32 %v2521, %v2586
    %v2656 = vadd.f32 %v2522, %v2590
    %v2657 = vadd.f32 %v2523, %v2594
    %v2658 = vadd.f32 %v2524, %v2598
    %v2659 = vadd.f32 %v2525, %v2586
    %v2660 = vadd.f32 %v2526, %v2590
    %v2661 = vadd.f32 %v2527, %v2594
    %v2662 = vadd.f32 %v2528, %v2598
    %v2663 = vadd.f32 %v2529, %v2586
    %v2664 = vadd.f32 %v2530, %v2590
    %v2665 = vadd.f32 %v2531, %v2594
    %v2666 = vadd.f32 %v2532, %v2598
    %v2667 = vadd.f32 %v2533, %v2586
    %v2668 = vadd.f32 %v2534, %v2590
    %v2669 = vadd.f32 %v2535, %v2594
    %v2670 = vadd.f32 %v2536, %v2598
    %v2671 = vadd.f32 %v2537, %v2586
    %v2672 = vadd.f32 %v2538, %v2590
    %v2673 = vadd.f32 %v2539, %v2594
    %v2674 = vadd.f32 %v2540, %v2598
    %v2675 = vadd.f32 %v2541, %v2586
    %v2676 = vadd.f32 %v2542, %v2590
    %v2677 = vadd.f32 %v2543, %v2594
    %v2678 = vadd.f32 %v2544, %v2598
    %v2679 = vadd.f32 %v2545, %v2586
    %v2680 = vadd.f32 %v2546, %v2590
    %v2681 = vadd.f32 %v2547, %v2594
    %v2682 = vadd.f32 %v2548, %v2598
    %v2683 = vadd.f32 %v2549, %v2586
    %v2684 = vadd.f32 %v2550, %v2590
    %v2685 = vadd.f32 %v2551, %v2594
    %v2686 = vadd.f32 %v2552, %v2598
    %v2687 = vadd.f32 %v2553, %v2586
    %v2688 = vadd.f32 %v2554, %v2590
    %v2689 = vadd.f32 %v2555, %v2594
    %v2690 = vadd.f32 %v2556, %v2598
    %v2691 = vadd.f32 %v2557, %v2586
    %v2692 = vadd.f32 %v2558, %v2590
    %v2693 = vadd.f32 %v2559, %v2594
    %v2694 = vadd.f32 %v2560, %v2598
    %v2695 = vadd.f32 %v2561, %v2586
    %v2696 = vadd.f32 %v2562, %v2590
    %v2697 = vadd.f32 %v2563, %v2594
    %v2698 = vadd.f32 %v2564, %v2598
    %v2699 = vadd.f32 %v2565, %v2586
    %v2700 = vadd.f32 %v2566, %v2590
    %v2701 = vadd.f32 %v2567, %v2594
    %v2702 = vadd.f32 %v2568, %v2598
    %v2703 = vadd.f32 %v2569, %v2586
    %v2704 = vadd.f32 %v2570, %v2590
    %v2705 = vadd.f32 %v2571, %v2594
    %v2706 = vadd.f32 %v2572, %v2598
    %v2707 = vadd.f32 %v2573, %v2586
    %v2708 = vadd.f32 %v2574, %v2590
    %v2709 = vadd.f32 %v2575, %v2594
    %v2710 = vadd.f32 %v2576, %v2598
    %v2711 = vadd.f32 %v2577, %v2586
    %v2712 = vadd.f32 %v2578, %v2590
    %v2713 = vadd.f32 %v2579, %v2594
    %v2714 = vadd.f32 %v2580, %v2598
    %v2715 = vmax.f32 %v2603, 0.0
    %v2716 = vmax.f32 %v2604, 0.0
    %v2717 = vmax.f32 %v2605, 0.0
    %v2718 = vmax.f32 %v2606, 0.0
    %v2719 = vmax.f32 %v2607, 0.0
    %v2720 = vmax.f32 %v2608, 0.0
    %v2721 = vmax.f32 %v2609, 0.0
    %v2722 = vmax.f32 %v2610, 0.0
    %v2723 = vmax.f32 %v2611, 0.0
    %v2724 = vmax.f32 %v2612, 0.0
    %v2725 = vmax.f32 %v2613, 0.0
    %v2726 = vmax.f32 %v2614, 0.0
    %v2727 = vmax.f32 %v2615, 0.0
    %v2728 = vmax.f32 %v2616, 0.0
    %v2729 = vmax.f32 %v2617, 0.0
    %v2730 = vmax.f32 %v2618, 0.0
    %v2731 = vmax.f32 %v2619, 0.0
    %v2732 = vmax.f32 %v2620, 0.0
    %v2733 = vmax.f32 %v2621, 0.0
    %v2734 = vmax.f32 %v2622, 0.0
    %v2735 = vmax.f32 %v2623, 0.0
    %v2736 = vmax.f32 %v2624, 0.0
    %v2737 = vmax.f32 %v2625, 0.0
    %v2738 = vmax.f32 %v2626, 0.0
    %v2739 = vmax.f32 %v2627, 0.0
    %v2740 = vmax.f32 %v2628, 0.0
    %v2741 = vmax.f32 %v2629, 0.0
    %v2742 = vmax.f32 %v2630, 0.0
    %v2743 = vmax.f32 %v2631, 0.0
    %v2744 = vmax.f32 %v2632, 0.0
    %v2745 = vmax.f32 %v2633, 0.0
    %v2746 = vmax.f32 %v2634, 0.0
    %v2747 = vmax.f32 %v2635, 0.0
    %v2748 = vmax.f32 %v2636, 0.0
    %v2749 = vmax.f32 %v2637, 0.0
    %v2750 = vmax.f32 %v2638, 0.0
    %v2751 = vmax.f32 %v2639, 0.0
    %v2752 = vmax.f32 %v2640, 0.0
    %v2753 = vmax.f32 %v2641, 0.0
    %v2754 = vmax.f32 %v2642, 0.0
    %v2755 = vmax.f32 %v2643, 0.0
    %v2756 = vmax.f32 %v2644, 0.0
    %v2757 = vmax.f32 %v2645, 0.0
    %v2758 = vmax.f32 %v2646, 0.0
    %v2759 = vmax.f32 %v2647, 0.0
    %v2760 = vmax.f32 %v2648, 0.0
    %v2761 = vmax.f32 %v2649, 0.0
    %v2762 = vmax.f32 %v2650, 0.0
    %v2763 = vmax.f32 %v2651, 0.0
    %v2764 = vmax.f32 %v2652, 0.0
    %v2765 = vmax.f32 %v2653, 0.0
    %v2766 = vmax.f32 %v2654, 0.0
    %v2767 = vmax.f32 %v2655, 0.0
    %v2768 = vmax.f32 %v2656, 0.0
    %v2769 = vmax.f32 %v2657, 0.0
    %v2770 = vmax.f32 %v2658, 0.0
    %v2771 = vmax.f32 %v2659, 0.0
    %v2772 = vmax.f32 %v2660, 0.0
    %v2773 = vmax.f32 %v2661, 0.0
    %v2774 = vmax.f32 %v2662, 0.0
    %v2775 = vmax.f32 %v2663, 0.0
    %v2776 = vmax.f32 %v2664, 0.0
    %v2777 = vmax.f32 %v2665, 0.0
    %v2778 = vmax.f32 %v2666, 0.0
    %v2779 = vmax.f32 %v2667, 0.0
    %v2780 = vmax.f32 %v2668, 0.0
    %v2781 = vmax.f32 %v2669, 0.0
    %v2782 = vmax.f32 %v2670, 0.0
    %v2783 = vmax.f32 %v2671, 0.0
    %v2784 = vmax.f32 %v2672, 0.0
    %v2785 = vmax.f32 %v2673, 0.0
    %v2786 = vmax.f32 %v2674, 0.0
    %v2787 = vmax.f32 %v2675, 0.0
    %v2788 = vmax.f32 %v2676, 0.0
    %v2789 = vmax.f32 %v2677, 0.0
    %v2790 = vmax.f32 %v2678, 0.0
    %v2791 = vmax.f32 %v2679, 0.0
    %v2792 = vmax.f32 %v2680, 0.0
    %v2793 = vmax.f32 %v2681, 0.0
    %v2794 = vmax.f32 %v2682, 0.0
    %v2795 = vmax.f32 %v2683, 0.0
    %v2796 = vmax.f32 %v2684, 0.0
    %v2797 = vmax.f32 %v2685, 0.0
    %v2798 = vmax.f32 %v2686, 0.0
    %v2799 = vmax.f32 %v2687, 0.0
    %v2800 = vmax.f32 %v2688, 0.0
    %v2801 = vmax.f32 %v2689, 0.0
    %v2802 = vmax.f32 %v2690, 0.0
    %v2803 = vmax.f32 %v2691, 0.0
    %v2804 = vmax.f32 %v2692, 0.0
    %v2805 = vmax.f32 %v2693, 0.0
    %v2806 = vmax.f32 %v2694, 0.0
    %v2807 = vmax.f32 %v2695, 0.0
    %v2808 = vmax.f32 %v2696, 0.0
    %v2809 = vmax.f32 %v2697, 0.0
    %v2810 = vmax.f32 %v2698, 0.0
    %v2811 = vmax.f32 %v2699, 0.0
    %v2812 = vmax.f32 %v2700, 0.0
    %v2813 = vmax.f32 %v2701, 0.0
    %v2814 = vmax.f32 %v2702, 0.0
    %v2815 = vmax.f32 %v2703, 0.0
    %v2816 = vmax.f32 %v2704, 0.0
    %v2817 = vmax.f32 %v2705, 0.0
    %v2818 = vmax.f32 %v2706, 0.0
    %v2819 = vmax.f32 %v2707, 0.0
    %v2820 = vmax.f32 %v2708, 0.0
    %v2821 = vmax.f32 %v2709, 0.0
    %v2822 = vmax.f32 %v2710, 0.0
    %v2823 = vmax.f32 %v2711, 0.0
    %v2824 = vmax.f32 %v2712, 0.0
    %v2825 = vmax.f32 %v2713, 0.0
    %v2826 = vmax.f32 %v2714, 0.0
    %v2827 = vpack.c.bf16 %v2719, %v2715
    %v2828 = vpack.c.bf16 %v2720, %v2716
    %v2829 = vpack.c.bf16 %v2721, %v2717
    %v2830 = vpack.c.bf16 %v2722, %v2718
    %v2831 = vpack.c.bf16 %v2727, %v2723
    %v2832 = vpack.c.bf16 %v2728, %v2724
    %v2833 = vpack.c.bf16 %v2729, %v2725
    %v2834 = vpack.c.bf16 %v2730, %v2726
    %v2835 = vpack.c.bf16 %v2735, %v2731
    %v2836 = vpack.c.bf16 %v2736, %v2732
    %v2837 = vpack.c.bf16 %v2737, %v2733
    %v2838 = vpack.c.bf16 %v2738, %v2734
    %v2839 = vpack.c.bf16 %v2743, %v2739
    %v2840 = vpack.c.bf16 %v2744, %v2740
    %v2841 = vpack.c.bf16 %v2745, %v2741
    %v2842 = vpack.c.bf16 %v2746, %v2742
    %v2843 = vpack.c.bf16 %v2751, %v2747
    %v2844 = vpack.c.bf16 %v2752, %v2748
    %v2845 = vpack.c.bf16 %v2753, %v2749
    %v2846 = vpack.c.bf16 %v2754, %v2750
    %v2847 = vpack.c.bf16 %v2759, %v2755
    %v2848 = vpack.c.bf16 %v2760, %v2756
    %v2849 = vpack.c.bf16 %v2761, %v2757
    %v2850 = vpack.c.bf16 %v2762, %v2758
    %v2851 = vpack.c.bf16 %v2767, %v2763
    %v2852 = vpack.c.bf16 %v2768, %v2764
    %v2853 = vpack.c.bf16 %v2769, %v2765
    %v2854 = vpack.c.bf16 %v2770, %v2766
    %v2855 = vpack.c.bf16 %v2775, %v2771
    %v2856 = vpack.c.bf16 %v2776, %v2772
    %v2857 = vpack.c.bf16 %v2777, %v2773
    %v2858 = vpack.c.bf16 %v2778, %v2774
    %v2859 = vpack.c.bf16 %v2783, %v2779
    %v2860 = vpack.c.bf16 %v2784, %v2780
    %v2861 = vpack.c.bf16 %v2785, %v2781
    %v2862 = vpack.c.bf16 %v2786, %v2782
    %v2863 = vpack.c.bf16 %v2791, %v2787
    %v2864 = vpack.c.bf16 %v2792, %v2788
    %v2865 = vpack.c.bf16 %v2793, %v2789
    %v2866 = vpack.c.bf16 %v2794, %v2790
    %v2867 = vpack.c.bf16 %v2799, %v2795
    %v2868 = vpack.c.bf16 %v2800, %v2796
    %v2869 = vpack.c.bf16 %v2801, %v2797
    %v2870 = vpack.c.bf16 %v2802, %v2798
    %v2871 = vpack.c.bf16 %v2807, %v2803
    %v2872 = vpack.c.bf16 %v2808, %v2804
    %v2873 = vpack.c.bf16 %v2809, %v2805
    %v2874 = vpack.c.bf16 %v2810, %v2806
    %v2875 = vpack.c.bf16 %v2815, %v2811
    %v2876 = vpack.c.bf16 %v2816, %v2812
    %v2877 = vpack.c.bf16 %v2817, %v2813
    %v2878 = vpack.c.bf16 %v2818, %v2814
    %v2879 = vpack.c.bf16 %v2823, %v2819
    %v2880 = vpack.c.bf16 %v2824, %v2820
    %v2881 = vpack.c.bf16 %v2825, %v2821
    %v2882 = vpack.c.bf16 %v2826, %v2822
    %v2883 = vld [vmem:[#allocation6] sm:$0xff]
    %v2884 = vld [vmem:[#allocation6 + $0x8] sm:$0xff]
    %v2885 = vld [vmem:[#allocation6 + $0x10] sm:$0xff]
    %v2886 = vld [vmem:[#allocation6 + $0x18] sm:$0xff]
    %v2887 = vld [vmem:[#allocation6 + $0x20] sm:$0xff]
    %v2888 = vld [vmem:[#allocation6 + $0x28] sm:$0xff]
    %v2889 = vld [vmem:[#allocation6 + $0x30] sm:$0xff]
    %v2890 = vld [vmem:[#allocation6 + $0x38] sm:$0xff]
    %v2891 = vld [vmem:[#allocation6 + $0x40] sm:$0xff]
    %v2892 = vld [vmem:[#allocation6 + $0x48] sm:$0xff]
    %v2893 = vld [vmem:[#allocation6 + $0x50] sm:$0xff]
    %v2894 = vld [vmem:[#allocation6 + $0x58] sm:$0xff]
    %v2895 = vld [vmem:[#allocation6 + $0x60] sm:$0xff]
    %v2896 = vld [vmem:[#allocation6 + $0x68] sm:$0xff]
    %v2897 = vld [vmem:[#allocation6 + $0x70] sm:$0xff]
    %v2898 = vld [vmem:[#allocation6 + $0x78] sm:$0xff]
    %v2899 = vld [vmem:[#allocation6 + $0x80] sm:$0xff]
    %v2900 = vld [vmem:[#allocation6 + $0x88] sm:$0xff]
    %v2901 = vld [vmem:[#allocation6 + $0x90] sm:$0xff]
    %v2902 = vld [vmem:[#allocation6 + $0x98] sm:$0xff]
    %v2903 = vld [vmem:[#allocation6 + $0xa0] sm:$0xff]
    %v2904 = vld [vmem:[#allocation6 + $0xa8] sm:$0xff]
    %v2905 = vld [vmem:[#allocation6 + $0xb0] sm:$0xff]
    %v2906 = vld [vmem:[#allocation6 + $0xb8] sm:$0xff]
    %v2907 = vld [vmem:[#allocation6 + $0xc0] sm:$0xff]
    %v2908 = vld [vmem:[#allocation6 + $0xc8] sm:$0xff]
    %v2909 = vld [vmem:[#allocation6 + $0xd0] sm:$0xff]
    %v2910 = vld [vmem:[#allocation6 + $0xd8] sm:$0xff]
    %v2911 = vld [vmem:[#allocation6 + $0xe0] sm:$0xff]
    %v2912 = vld [vmem:[#allocation6 + $0xe8] sm:$0xff]
    %v2913 = vld [vmem:[#allocation6 + $0xf0] sm:$0xff]
    %v2914 = vld [vmem:[#allocation6 + $0xf8] sm:$0xff]
    %v2915 = vld [vmem:[#allocation6 + $0x100] sm:$0xff]
    %v2916 = vld [vmem:[#allocation6 + $0x108] sm:$0xff]
    %v2917 = vld [vmem:[#allocation6 + $0x110] sm:$0xff]
    %v2918 = vld [vmem:[#allocation6 + $0x118] sm:$0xff]
    %v2919 = vld [vmem:[#allocation6 + $0x120] sm:$0xff]
    %v2920 = vld [vmem:[#allocation6 + $0x128] sm:$0xff]
    %v2921 = vld [vmem:[#allocation6 + $0x130] sm:$0xff]
    %v2922 = vld [vmem:[#allocation6 + $0x138] sm:$0xff]
    %v2923 = vld [vmem:[#allocation6 + $0x140] sm:$0xff]
    %v2924 = vld [vmem:[#allocation6 + $0x148] sm:$0xff]
    %v2925 = vld [vmem:[#allocation6 + $0x150] sm:$0xff]
    %v2926 = vld [vmem:[#allocation6 + $0x158] sm:$0xff]
    %v2927 = vld [vmem:[#allocation6 + $0x160] sm:$0xff]
    %v2928 = vld [vmem:[#allocation6 + $0x168] sm:$0xff]
    %v2929 = vld [vmem:[#allocation6 + $0x170] sm:$0xff]
    %v2930 = vld [vmem:[#allocation6 + $0x178] sm:$0xff]
    %v2931 = vld [vmem:[#allocation6 + $0x180] sm:$0xff]
    %v2932 = vld [vmem:[#allocation6 + $0x188] sm:$0xff]
    %v2933 = vld [vmem:[#allocation6 + $0x190] sm:$0xff]
    %v2934 = vld [vmem:[#allocation6 + $0x198] sm:$0xff]
    %v2935 = vld [vmem:[#allocation6 + $0x1a0] sm:$0xff]
    %v2936 = vld [vmem:[#allocation6 + $0x1a8] sm:$0xff]
    %v2937 = vld [vmem:[#allocation6 + $0x1b0] sm:$0xff]
    %v2938 = vld [vmem:[#allocation6 + $0x1b8] sm:$0xff]
    %v2939 = vld [vmem:[#allocation6 + $0x1c0] sm:$0xff]
    %v2940 = vld [vmem:[#allocation6 + $0x1c8] sm:$0xff]
    %v2941 = vld [vmem:[#allocation6 + $0x1d0] sm:$0xff]
    %v2942 = vld [vmem:[#allocation6 + $0x1d8] sm:$0xff]
    %v2943 = vld [vmem:[#allocation6 + $0x1e0] sm:$0xff]
    %v2944 = vld [vmem:[#allocation6 + $0x1e8] sm:$0xff]
    %v2945 = vld [vmem:[#allocation6 + $0x1f0] sm:$0xff]
    %v2946 = vld [vmem:[#allocation6 + $0x1f8] sm:$0xff]
    %v2947 = vld [vmem:[#allocation6 + $0x200] sm:$0xff]
    %v2948 = vld [vmem:[#allocation6 + $0x208] sm:$0xff]
    %v2949 = vld [vmem:[#allocation6 + $0x210] sm:$0xff]
    %v2950 = vld [vmem:[#allocation6 + $0x218] sm:$0xff]
    %v2951 = vld [vmem:[#allocation6 + $0x220] sm:$0xff]
    %v2952 = vld [vmem:[#allocation6 + $0x228] sm:$0xff]
    %v2953 = vld [vmem:[#allocation6 + $0x230] sm:$0xff]
    %v2954 = vld [vmem:[#allocation6 + $0x238] sm:$0xff]
    %v2955 = vld [vmem:[#allocation6 + $0x240] sm:$0xff]
    %v2956 = vld [vmem:[#allocation6 + $0x248] sm:$0xff]
    %v2957 = vld [vmem:[#allocation6 + $0x250] sm:$0xff]
    %v2958 = vld [vmem:[#allocation6 + $0x258] sm:$0xff]
    %v2959 = vld [vmem:[#allocation6 + $0x260] sm:$0xff]
    %v2960 = vld [vmem:[#allocation6 + $0x268] sm:$0xff]
    %v2961 = vld [vmem:[#allocation6 + $0x270] sm:$0xff]
    %v2962 = vld [vmem:[#allocation6 + $0x278] sm:$0xff]
    %v2963 = vld [vmem:[#allocation6 + $0x280] sm:$0xff]
    %v2964 = vld [vmem:[#allocation6 + $0x288] sm:$0xff]
    %v2965 = vld [vmem:[#allocation6 + $0x290] sm:$0xff]
    %v2966 = vld [vmem:[#allocation6 + $0x298] sm:$0xff]
    %v2967 = vld [vmem:[#allocation6 + $0x2a0] sm:$0xff]
    %v2968 = vld [vmem:[#allocation6 + $0x2a8] sm:$0xff]
    %v2969 = vld [vmem:[#allocation6 + $0x2b0] sm:$0xff]
    %v2970 = vld [vmem:[#allocation6 + $0x2b8] sm:$0xff]
    %v2971 = vld [vmem:[#allocation6 + $0x2c0] sm:$0xff]
    %v2972 = vld [vmem:[#allocation6 + $0x2c8] sm:$0xff]
    %v2973 = vld [vmem:[#allocation6 + $0x2d0] sm:$0xff]
    %v2974 = vld [vmem:[#allocation6 + $0x2d8] sm:$0xff]
    %v2975 = vld [vmem:[#allocation6 + $0x2e0] sm:$0xff]
    %v2976 = vld [vmem:[#allocation6 + $0x2e8] sm:$0xff]
    %v2977 = vld [vmem:[#allocation6 + $0x2f0] sm:$0xff]
    %v2978 = vld [vmem:[#allocation6 + $0x2f8] sm:$0xff]
    %v2979 = vld [vmem:[#allocation6 + $0x300] sm:$0xff]
    %v2980 = vld [vmem:[#allocation6 + $0x308] sm:$0xff]
    %v2981 = vld [vmem:[#allocation6 + $0x310] sm:$0xff]
    %v2982 = vld [vmem:[#allocation6 + $0x318] sm:$0xff]
    %v2983 = vld [vmem:[#allocation6 + $0x320] sm:$0xff]
    %v2984 = vld [vmem:[#allocation6 + $0x328] sm:$0xff]
    %v2985 = vld [vmem:[#allocation6 + $0x330] sm:$0xff]
    %v2986 = vld [vmem:[#allocation6 + $0x338] sm:$0xff]
    %v2987 = vld [vmem:[#allocation6 + $0x340] sm:$0xff]
    %v2988 = vld [vmem:[#allocation6 + $0x348] sm:$0xff]
    %v2989 = vld [vmem:[#allocation6 + $0x350] sm:$0xff]
    %v2990 = vld [vmem:[#allocation6 + $0x358] sm:$0xff]
    %v2991 = vld [vmem:[#allocation6 + $0x360] sm:$0xff]
    %v2992 = vld [vmem:[#allocation6 + $0x368] sm:$0xff]
    %v2993 = vld [vmem:[#allocation6 + $0x370] sm:$0xff]
    %v2994 = vld [vmem:[#allocation6 + $0x378] sm:$0xff]
    %v2995 = vld [vmem:[#allocation6 + $0x380] sm:$0xff]
    %v2996 = vld [vmem:[#allocation6 + $0x388] sm:$0xff]
    %v2997 = vld [vmem:[#allocation6 + $0x390] sm:$0xff]
    %v2998 = vld [vmem:[#allocation6 + $0x398] sm:$0xff]
    %v2999 = vld [vmem:[#allocation6 + $0x3a0] sm:$0xff]
    %v3000 = vld [vmem:[#allocation6 + $0x3a8] sm:$0xff]
    %v3001 = vld [vmem:[#allocation6 + $0x3b0] sm:$0xff]
    %v3002 = vld [vmem:[#allocation6 + $0x3b8] sm:$0xff]
    %v3003 = vld [vmem:[#allocation6 + $0x3c0] sm:$0xff]
    %v3004 = vld [vmem:[#allocation6 + $0x3c8] sm:$0xff]
    %v3005 = vld [vmem:[#allocation6 + $0x3d0] sm:$0xff]
    %v3006 = vld [vmem:[#allocation6 + $0x3d8] sm:$0xff]
    %v3007 = vld [vmem:[#allocation6 + $0x3e0] sm:$0xff]
    %v3008 = vld [vmem:[#allocation6 + $0x3e8] sm:$0xff]
    %v3009 = vld [vmem:[#allocation6 + $0x3f0] sm:$0xff]
    %v3010 = vld [vmem:[#allocation6 + $0x3f8] sm:$0xff]
    %s3011 = scalar_lea.vmem [#allocation6], 1024
    %v3012 = vld [vmem:[%s3011] sm:$0xff]
    %v3013 = vld [vmem:[%s3011 + $0x8] sm:$0xff]
    %v3014 = vld [vmem:[%s3011 + $0x10] sm:$0xff]
    %v3015 = vld [vmem:[%s3011 + $0x18] sm:$0xff]
    %v3016 = vld [vmem:[%s3011 + $0x20] sm:$0xff]
    %v3017 = vld [vmem:[%s3011 + $0x28] sm:$0xff]
    %v3018 = vld [vmem:[%s3011 + $0x30] sm:$0xff]
    %v3019 = vld [vmem:[%s3011 + $0x38] sm:$0xff]
    %v3020 = vld [vmem:[%s3011 + $0x40] sm:$0xff]
    %v3021 = vld [vmem:[%s3011 + $0x48] sm:$0xff]
    %v3022 = vld [vmem:[%s3011 + $0x50] sm:$0xff]
    %v3023 = vld [vmem:[%s3011 + $0x58] sm:$0xff]
    %v3024 = vld [vmem:[%s3011 + $0x60] sm:$0xff]
    %v3025 = vld [vmem:[%s3011 + $0x68] sm:$0xff]
    %v3026 = vld [vmem:[%s3011 + $0x70] sm:$0xff]
    %v3027 = vld [vmem:[%s3011 + $0x78] sm:$0xff]
    %v3028 = vld [vmem:[%s3011 + $0x80] sm:$0xff]
    %v3029 = vld [vmem:[%s3011 + $0x88] sm:$0xff]
    %v3030 = vld [vmem:[%s3011 + $0x90] sm:$0xff]
    %v3031 = vld [vmem:[%s3011 + $0x98] sm:$0xff]
    %v3032 = vld [vmem:[%s3011 + $0xa0] sm:$0xff]
    %v3033 = vld [vmem:[%s3011 + $0xa8] sm:$0xff]
    %v3034 = vld [vmem:[%s3011 + $0xb0] sm:$0xff]
    %v3035 = vld [vmem:[%s3011 + $0xb8] sm:$0xff]
    %v3036 = vld [vmem:[%s3011 + $0xc0] sm:$0xff]
    %v3037 = vld [vmem:[%s3011 + $0xc8] sm:$0xff]
    %v3038 = vld [vmem:[%s3011 + $0xd0] sm:$0xff]
    %v3039 = vld [vmem:[%s3011 + $0xd8] sm:$0xff]
    %v3040 = vld [vmem:[%s3011 + $0xe0] sm:$0xff]
    %v3041 = vld [vmem:[%s3011 + $0xe8] sm:$0xff]
    %v3042 = vld [vmem:[%s3011 + $0xf0] sm:$0xff]
    %v3043 = vld [vmem:[%s3011 + $0xf8] sm:$0xff]
    %v3044 = vld [vmem:[%s3011 + $0x100] sm:$0xff]
    %v3045 = vld [vmem:[%s3011 + $0x108] sm:$0xff]
    %v3046 = vld [vmem:[%s3011 + $0x110] sm:$0xff]
    %v3047 = vld [vmem:[%s3011 + $0x118] sm:$0xff]
    %v3048 = vld [vmem:[%s3011 + $0x120] sm:$0xff]
    %v3049 = vld [vmem:[%s3011 + $0x128] sm:$0xff]
    %v3050 = vld [vmem:[%s3011 + $0x130] sm:$0xff]
    %v3051 = vld [vmem:[%s3011 + $0x138] sm:$0xff]
    %v3052 = vld [vmem:[%s3011 + $0x140] sm:$0xff]
    %v3053 = vld [vmem:[%s3011 + $0x148] sm:$0xff]
    %v3054 = vld [vmem:[%s3011 + $0x150] sm:$0xff]
    %v3055 = vld [vmem:[%s3011 + $0x158] sm:$0xff]
    %v3056 = vld [vmem:[%s3011 + $0x160] sm:$0xff]
    %v3057 = vld [vmem:[%s3011 + $0x168] sm:$0xff]
    %v3058 = vld [vmem:[%s3011 + $0x170] sm:$0xff]
    %v3059 = vld [vmem:[%s3011 + $0x178] sm:$0xff]
    %v3060 = vld [vmem:[%s3011 + $0x180] sm:$0xff]
    %v3061 = vld [vmem:[%s3011 + $0x188] sm:$0xff]
    %v3062 = vld [vmem:[%s3011 + $0x190] sm:$0xff]
    %v3063 = vld [vmem:[%s3011 + $0x198] sm:$0xff]
    %v3064 = vld [vmem:[%s3011 + $0x1a0] sm:$0xff]
    %v3065 = vld [vmem:[%s3011 + $0x1a8] sm:$0xff]
    %v3066 = vld [vmem:[%s3011 + $0x1b0] sm:$0xff]
    %v3067 = vld [vmem:[%s3011 + $0x1b8] sm:$0xff]
    %v3068 = vld [vmem:[%s3011 + $0x1c0] sm:$0xff]
    %v3069 = vld [vmem:[%s3011 + $0x1c8] sm:$0xff]
    %v3070 = vld [vmem:[%s3011 + $0x1d0] sm:$0xff]
    %v3071 = vld [vmem:[%s3011 + $0x1d8] sm:$0xff]
    %v3072 = vld [vmem:[%s3011 + $0x1e0] sm:$0xff]
    %v3073 = vld [vmem:[%s3011 + $0x1e8] sm:$0xff]
    %v3074 = vld [vmem:[%s3011 + $0x1f0] sm:$0xff]
    %v3075 = vld [vmem:[%s3011 + $0x1f8] sm:$0xff]
    %v3076 = vld [vmem:[%s3011 + $0x200] sm:$0xff]
    %v3077 = vld [vmem:[%s3011 + $0x208] sm:$0xff]
    %v3078 = vld [vmem:[%s3011 + $0x210] sm:$0xff]
    %v3079 = vld [vmem:[%s3011 + $0x218] sm:$0xff]
    %v3080 = vld [vmem:[%s3011 + $0x220] sm:$0xff]
    %v3081 = vld [vmem:[%s3011 + $0x228] sm:$0xff]
    %v3082 = vld [vmem:[%s3011 + $0x230] sm:$0xff]
    %v3083 = vld [vmem:[%s3011 + $0x238] sm:$0xff]
    %v3084 = vld [vmem:[%s3011 + $0x240] sm:$0xff]
    %v3085 = vld [vmem:[%s3011 + $0x248] sm:$0xff]
    %v3086 = vld [vmem:[%s3011 + $0x250] sm:$0xff]
    %v3087 = vld [vmem:[%s3011 + $0x258] sm:$0xff]
    %v3088 = vld [vmem:[%s3011 + $0x260] sm:$0xff]
    %v3089 = vld [vmem:[%s3011 + $0x268] sm:$0xff]
    %v3090 = vld [vmem:[%s3011 + $0x270] sm:$0xff]
    %v3091 = vld [vmem:[%s3011 + $0x278] sm:$0xff]
    %v3092 = vld [vmem:[%s3011 + $0x280] sm:$0xff]
    %v3093 = vld [vmem:[%s3011 + $0x288] sm:$0xff]
    %v3094 = vld [vmem:[%s3011 + $0x290] sm:$0xff]
    %v3095 = vld [vmem:[%s3011 + $0x298] sm:$0xff]
    %v3096 = vld [vmem:[%s3011 + $0x2a0] sm:$0xff]
    %v3097 = vld [vmem:[%s3011 + $0x2a8] sm:$0xff]
    %v3098 = vld [vmem:[%s3011 + $0x2b0] sm:$0xff]
    %v3099 = vld [vmem:[%s3011 + $0x2b8] sm:$0xff]
    %v3100 = vld [vmem:[%s3011 + $0x2c0] sm:$0xff]
    %v3101 = vld [vmem:[%s3011 + $0x2c8] sm:$0xff]
    %v3102 = vld [vmem:[%s3011 + $0x2d0] sm:$0xff]
    %v3103 = vld [vmem:[%s3011 + $0x2d8] sm:$0xff]
    %v3104 = vld [vmem:[%s3011 + $0x2e0] sm:$0xff]
    %v3105 = vld [vmem:[%s3011 + $0x2e8] sm:$0xff]
    %v3106 = vld [vmem:[%s3011 + $0x2f0] sm:$0xff]
    %v3107 = vld [vmem:[%s3011 + $0x2f8] sm:$0xff]
    %v3108 = vld [vmem:[%s3011 + $0x300] sm:$0xff]
    %v3109 = vld [vmem:[%s3011 + $0x308] sm:$0xff]
    %v3110 = vld [vmem:[%s3011 + $0x310] sm:$0xff]
    %v3111 = vld [vmem:[%s3011 + $0x318] sm:$0xff]
    %v3112 = vld [vmem:[%s3011 + $0x320] sm:$0xff]
    %v3113 = vld [vmem:[%s3011 + $0x328] sm:$0xff]
    %v3114 = vld [vmem:[%s3011 + $0x330] sm:$0xff]
    %v3115 = vld [vmem:[%s3011 + $0x338] sm:$0xff]
    %v3116 = vld [vmem:[%s3011 + $0x340] sm:$0xff]
    %v3117 = vld [vmem:[%s3011 + $0x348] sm:$0xff]
    %v3118 = vld [vmem:[%s3011 + $0x350] sm:$0xff]
    %v3119 = vld [vmem:[%s3011 + $0x358] sm:$0xff]
    %v3120 = vld [vmem:[%s3011 + $0x360] sm:$0xff]
    %v3121 = vld [vmem:[%s3011 + $0x368] sm:$0xff]
    %v3122 = vld [vmem:[%s3011 + $0x370] sm:$0xff]
    %v3123 = vld [vmem:[%s3011 + $0x378] sm:$0xff]
    %v3124 = vld [vmem:[%s3011 + $0x380] sm:$0xff]
    %v3125 = vld [vmem:[%s3011 + $0x388] sm:$0xff]
    %v3126 = vld [vmem:[%s3011 + $0x390] sm:$0xff]
    %v3127 = vld [vmem:[%s3011 + $0x398] sm:$0xff]
    %v3128 = vld [vmem:[%s3011 + $0x3a0] sm:$0xff]
    %v3129 = vld [vmem:[%s3011 + $0x3a8] sm:$0xff]
    %v3130 = vld [vmem:[%s3011 + $0x3b0] sm:$0xff]
    %v3131 = vld [vmem:[%s3011 + $0x3b8] sm:$0xff]
    %v3132 = vld [vmem:[%s3011 + $0x3c0] sm:$0xff]
    %v3133 = vld [vmem:[%s3011 + $0x3c8] sm:$0xff]
    %v3134 = vld [vmem:[%s3011 + $0x3d0] sm:$0xff]
    %v3135 = vld [vmem:[%s3011 + $0x3d8] sm:$0xff]
    %v3136 = vld [vmem:[%s3011 + $0x3e0] sm:$0xff]
    %v3137 = vld [vmem:[%s3011 + $0x3e8] sm:$0xff]
    %v3138 = vld [vmem:[%s3011 + $0x3f0] sm:$0xff]
    %v3139 = vld [vmem:[%s3011 + $0x3f8] sm:$0xff]
    %v3268 = vunpack.c.l.b16 %v3012
    %v3269 = vunpack.c.h.b16 %v3012
    %v3270 = vunpack.c.l.b16 %v3013
    %v3271 = vunpack.c.h.b16 %v3013
    %v3272 = vunpack.c.l.b16 %v3014
    %v3273 = vunpack.c.h.b16 %v3014
    %v3274 = vunpack.c.l.b16 %v3015
    %v3275 = vunpack.c.h.b16 %v3015
    %v3276 = vunpack.c.l.b16 %v3016
    %v3277 = vunpack.c.h.b16 %v3016
    %v3278 = vunpack.c.l.b16 %v3017
    %v3279 = vunpack.c.h.b16 %v3017
    %v3280 = vunpack.c.l.b16 %v3018
    %v3281 = vunpack.c.h.b16 %v3018
    %v3282 = vunpack.c.l.b16 %v3019
    %v3283 = vunpack.c.h.b16 %v3019
    %v3284 = vunpack.c.l.b16 %v3020
    %v3285 = vunpack.c.h.b16 %v3020
    %v3286 = vunpack.c.l.b16 %v3021
    %v3287 = vunpack.c.h.b16 %v3021
    %v3288 = vunpack.c.l.b16 %v3022
    %v3289 = vunpack.c.h.b16 %v3022
    %v3290 = vunpack.c.l.b16 %v3023
    %v3291 = vunpack.c.h.b16 %v3023
    %v3292 = vunpack.c.l.b16 %v3024
    %v3293 = vunpack.c.h.b16 %v3024
    %v3294 = vunpack.c.l.b16 %v3025
    %v3295 = vunpack.c.h.b16 %v3025
    %v3296 = vunpack.c.l.b16 %v3026
    %v3297 = vunpack.c.h.b16 %v3026
    %v3298 = vunpack.c.l.b16 %v3027
    %v3299 = vunpack.c.h.b16 %v3027
    %v3300 = vunpack.c.l.b16 %v3028
    %v3301 = vunpack.c.h.b16 %v3028
    %v3302 = vunpack.c.l.b16 %v3029
    %v3303 = vunpack.c.h.b16 %v3029
    %v3304 = vunpack.c.l.b16 %v3030
    %v3305 = vunpack.c.h.b16 %v3030
    %v3306 = vunpack.c.l.b16 %v3031
    %v3307 = vunpack.c.h.b16 %v3031
    %v3308 = vunpack.c.l.b16 %v3032
    %v3309 = vunpack.c.h.b16 %v3032
    %v3310 = vunpack.c.l.b16 %v3033
    %v3311 = vunpack.c.h.b16 %v3033
    %v3312 = vunpack.c.l.b16 %v3034
    %v3313 = vunpack.c.h.b16 %v3034
    %v3314 = vunpack.c.l.b16 %v3035
    %v3315 = vunpack.c.h.b16 %v3035
    %v3316 = vunpack.c.l.b16 %v3036
    %v3317 = vunpack.c.h.b16 %v3036
    %v3318 = vunpack.c.l.b16 %v3037
    %v3319 = vunpack.c.h.b16 %v3037
    %v3320 = vunpack.c.l.b16 %v3038
    %v3321 = vunpack.c.h.b16 %v3038
    %v3322 = vunpack.c.l.b16 %v3039
    %v3323 = vunpack.c.h.b16 %v3039
    %v3324 = vunpack.c.l.b16 %v3040
    %v3325 = vunpack.c.h.b16 %v3040
    %v3326 = vunpack.c.l.b16 %v3041
    %v3327 = vunpack.c.h.b16 %v3041
    %v3328 = vunpack.c.l.b16 %v3042
    %v3329 = vunpack.c.h.b16 %v3042
    %v3330 = vunpack.c.l.b16 %v3043
    %v3331 = vunpack.c.h.b16 %v3043
    %v3332 = vunpack.c.l.b16 %v3044
    %v3333 = vunpack.c.h.b16 %v3044
    %v3334 = vunpack.c.l.b16 %v3045
    %v3335 = vunpack.c.h.b16 %v3045
    %v3336 = vunpack.c.l.b16 %v3046
    %v3337 = vunpack.c.h.b16 %v3046
    %v3338 = vunpack.c.l.b16 %v3047
    %v3339 = vunpack.c.h.b16 %v3047
    %v3340 = vunpack.c.l.b16 %v3048
    %v3341 = vunpack.c.h.b16 %v3048
    %v3342 = vunpack.c.l.b16 %v3049
    %v3343 = vunpack.c.h.b16 %v3049
    %v3344 = vunpack.c.l.b16 %v3050
    %v3345 = vunpack.c.h.b16 %v3050
    %v3346 = vunpack.c.l.b16 %v3051
    %v3347 = vunpack.c.h.b16 %v3051
    %v3348 = vunpack.c.l.b16 %v3052
    %v3349 = vunpack.c.h.b16 %v3052
    %v3350 = vunpack.c.l.b16 %v3053
    %v3351 = vunpack.c.h.b16 %v3053
    %v3352 = vunpack.c.l.b16 %v3054
    %v3353 = vunpack.c.h.b16 %v3054
    %v3354 = vunpack.c.l.b16 %v3055
    %v3355 = vunpack.c.h.b16 %v3055
    %v3356 = vunpack.c.l.b16 %v3056
    %v3357 = vunpack.c.h.b16 %v3056
    %v3358 = vunpack.c.l.b16 %v3057
    %v3359 = vunpack.c.h.b16 %v3057
    %v3360 = vunpack.c.l.b16 %v3058
    %v3361 = vunpack.c.h.b16 %v3058
    %v3362 = vunpack.c.l.b16 %v3059
    %v3363 = vunpack.c.h.b16 %v3059
    %v3364 = vunpack.c.l.b16 %v3060
    %v3365 = vunpack.c.h.b16 %v3060
    %v3366 = vunpack.c.l.b16 %v3061
    %v3367 = vunpack.c.h.b16 %v3061
    %v3368 = vunpack.c.l.b16 %v3062
    %v3369 = vunpack.c.h.b16 %v3062
    %v3370 = vunpack.c.l.b16 %v3063
    %v3371 = vunpack.c.h.b16 %v3063
    %v3372 = vunpack.c.l.b16 %v3064
    %v3373 = vunpack.c.h.b16 %v3064
    %v3374 = vunpack.c.l.b16 %v3065
    %v3375 = vunpack.c.h.b16 %v3065
    %v3376 = vunpack.c.l.b16 %v3066
    %v3377 = vunpack.c.h.b16 %v3066
    %v3378 = vunpack.c.l.b16 %v3067
    %v3379 = vunpack.c.h.b16 %v3067
    %v3380 = vunpack.c.l.b16 %v3068
    %v3381 = vunpack.c.h.b16 %v3068
    %v3382 = vunpack.c.l.b16 %v3069
    %v3383 = vunpack.c.h.b16 %v3069
    %v3384 = vunpack.c.l.b16 %v3070
    %v3385 = vunpack.c.h.b16 %v3070
    %v3386 = vunpack.c.l.b16 %v3071
    %v3387 = vunpack.c.h.b16 %v3071
    %v3388 = vunpack.c.l.b16 %v3072
    %v3389 = vunpack.c.h.b16 %v3072
    %v3390 = vunpack.c.l.b16 %v3073
    %v3391 = vunpack.c.h.b16 %v3073
    %v3392 = vunpack.c.l.b16 %v3074
    %v3393 = vunpack.c.h.b16 %v3074
    %v3394 = vunpack.c.l.b16 %v3075
    %v3395 = vunpack.c.h.b16 %v3075
    %v3396 = vunpack.c.l.b16 %v3076
    %v3397 = vunpack.c.h.b16 %v3076
    %v3398 = vunpack.c.l.b16 %v3077
    %v3399 = vunpack.c.h.b16 %v3077
    %v3400 = vunpack.c.l.b16 %v3078
    %v3401 = vunpack.c.h.b16 %v3078
    %v3402 = vunpack.c.l.b16 %v3079
    %v3403 = vunpack.c.h.b16 %v3079
    %v3404 = vunpack.c.l.b16 %v3080
    %v3405 = vunpack.c.h.b16 %v3080
    %v3406 = vunpack.c.l.b16 %v3081
    %v3407 = vunpack.c.h.b16 %v3081
    %v3408 = vunpack.c.l.b16 %v3082
    %v3409 = vunpack.c.h.b16 %v3082
    %v3410 = vunpack.c.l.b16 %v3083
    %v3411 = vunpack.c.h.b16 %v3083
    %v3412 = vunpack.c.l.b16 %v3084
    %v3413 = vunpack.c.h.b16 %v3084
    %v3414 = vunpack.c.l.b16 %v3085
    %v3415 = vunpack.c.h.b16 %v3085
    %v3416 = vunpack.c.l.b16 %v3086
    %v3417 = vunpack.c.h.b16 %v3086
    %v3418 = vunpack.c.l.b16 %v3087
    %v3419 = vunpack.c.h.b16 %v3087
    %v3420 = vunpack.c.l.b16 %v3088
    %v3421 = vunpack.c.h.b16 %v3088
    %v3422 = vunpack.c.l.b16 %v3089
    %v3423 = vunpack.c.h.b16 %v3089
    %v3424 = vunpack.c.l.b16 %v3090
    %v3425 = vunpack.c.h.b16 %v3090
    %v3426 = vunpack.c.l.b16 %v3091
    %v3427 = vunpack.c.h.b16 %v3091
    %v3428 = vunpack.c.l.b16 %v3092
    %v3429 = vunpack.c.h.b16 %v3092
    %v3430 = vunpack.c.l.b16 %v3093
    %v3431 = vunpack.c.h.b16 %v3093
    %v3432 = vunpack.c.l.b16 %v3094
    %v3433 = vunpack.c.h.b16 %v3094
    %v3434 = vunpack.c.l.b16 %v3095
    %v3435 = vunpack.c.h.b16 %v3095
    %v3436 = vunpack.c.l.b16 %v3096
    %v3437 = vunpack.c.h.b16 %v3096
    %v3438 = vunpack.c.l.b16 %v3097
    %v3439 = vunpack.c.h.b16 %v3097
    %v3440 = vunpack.c.l.b16 %v3098
    %v3441 = vunpack.c.h.b16 %v3098
    %v3442 = vunpack.c.l.b16 %v3099
    %v3443 = vunpack.c.h.b16 %v3099
    %v3444 = vunpack.c.l.b16 %v3100
    %v3445 = vunpack.c.h.b16 %v3100
    %v3446 = vunpack.c.l.b16 %v3101
    %v3447 = vunpack.c.h.b16 %v3101
    %v3448 = vunpack.c.l.b16 %v3102
    %v3449 = vunpack.c.h.b16 %v3102
    %v3450 = vunpack.c.l.b16 %v3103
    %v3451 = vunpack.c.h.b16 %v3103
    %v3452 = vunpack.c.l.b16 %v3104
    %v3453 = vunpack.c.h.b16 %v3104
    %v3454 = vunpack.c.l.b16 %v3105
    %v3455 = vunpack.c.h.b16 %v3105
    %v3456 = vunpack.c.l.b16 %v3106
    %v3457 = vunpack.c.h.b16 %v3106
    %v3458 = vunpack.c.l.b16 %v3107
    %v3459 = vunpack.c.h.b16 %v3107
    %v3460 = vunpack.c.l.b16 %v3108
    %v3461 = vunpack.c.h.b16 %v3108
    %v3462 = vunpack.c.l.b16 %v3109
    %v3463 = vunpack.c.h.b16 %v3109
    %v3464 = vunpack.c.l.b16 %v3110
    %v3465 = vunpack.c.h.b16 %v3110
    %v3466 = vunpack.c.l.b16 %v3111
    %v3467 = vunpack.c.h.b16 %v3111
    %v3468 = vunpack.c.l.b16 %v3112
    %v3469 = vunpack.c.h.b16 %v3112
    %v3470 = vunpack.c.l.b16 %v3113
    %v3471 = vunpack.c.h.b16 %v3113
    %v3472 = vunpack.c.l.b16 %v3114
    %v3473 = vunpack.c.h.b16 %v3114
    %v3474 = vunpack.c.l.b16 %v3115
    %v3475 = vunpack.c.h.b16 %v3115
    %v3476 = vunpack.c.l.b16 %v3116
    %v3477 = vunpack.c.h.b16 %v3116
    %v3478 = vunpack.c.l.b16 %v3117
    %v3479 = vunpack.c.h.b16 %v3117
    %v3480 = vunpack.c.l.b16 %v3118
    %v3481 = vunpack.c.h.b16 %v3118
    %v3482 = vunpack.c.l.b16 %v3119
    %v3483 = vunpack.c.h.b16 %v3119
    %v3484 = vunpack.c.l.b16 %v3120
    %v3485 = vunpack.c.h.b16 %v3120
    %v3486 = vunpack.c.l.b16 %v3121
    %v3487 = vunpack.c.h.b16 %v3121
    %v3488 = vunpack.c.l.b16 %v3122
    %v3489 = vunpack.c.h.b16 %v3122
    %v3490 = vunpack.c.l.b16 %v3123
    %v3491 = vunpack.c.h.b16 %v3123
    %v3492 = vunpack.c.l.b16 %v3124
    %v3493 = vunpack.c.h.b16 %v3124
    %v3494 = vunpack.c.l.b16 %v3125
    %v3495 = vunpack.c.h.b16 %v3125
    %v3496 = vunpack.c.l.b16 %v3126
    %v3497 = vunpack.c.h.b16 %v3126
    %v3498 = vunpack.c.l.b16 %v3127
    %v3499 = vunpack.c.h.b16 %v3127
    %v3500 = vunpack.c.l.b16 %v3128
    %v3501 = vunpack.c.h.b16 %v3128
    %v3502 = vunpack.c.l.b16 %v3129
    %v3503 = vunpack.c.h.b16 %v3129
    %v3504 = vunpack.c.l.b16 %v3130
    %v3505 = vunpack.c.h.b16 %v3130
    %v3506 = vunpack.c.l.b16 %v3131
    %v3507 = vunpack.c.h.b16 %v3131
    %v3508 = vunpack.c.l.b16 %v3132
    %v3509 = vunpack.c.h.b16 %v3132
    %v3510 = vunpack.c.l.b16 %v3133
    %v3511 = vunpack.c.h.b16 %v3133
    %v3512 = vunpack.c.l.b16 %v3134
    %v3513 = vunpack.c.h.b16 %v3134
    %v3514 = vunpack.c.l.b16 %v3135
    %v3515 = vunpack.c.h.b16 %v3135
    %v3516 = vunpack.c.l.b16 %v3136
    %v3517 = vunpack.c.h.b16 %v3136
    %v3518 = vunpack.c.l.b16 %v3137
    %v3519 = vunpack.c.h.b16 %v3137
    %v3520 = vunpack.c.l.b16 %v3138
    %v3521 = vunpack.c.h.b16 %v3138
    %v3522 = vunpack.c.l.b16 %v3139
    %v3523 = vunpack.c.h.b16 %v3139
    %v3524 = vpack.c.b16 %v3272, %v3268
    %v3525 = vpack.c.b16 %v3273, %v3269
    %v3526 = vpack.c.b16 %v3274, %v3270
    %v3527 = vpack.c.b16 %v3275, %v3271
    %v3528 = vpack.c.b16 %v3280, %v3276
    %v3529 = vpack.c.b16 %v3281, %v3277
    %v3530 = vpack.c.b16 %v3282, %v3278
    %v3531 = vpack.c.b16 %v3283, %v3279
    %v3532 = vpack.c.b16 %v3288, %v3284
    %v3533 = vpack.c.b16 %v3289, %v3285
    %v3534 = vpack.c.b16 %v3290, %v3286
    %v3535 = vpack.c.b16 %v3291, %v3287
    %v3536 = vpack.c.b16 %v3296, %v3292
    %v3537 = vpack.c.b16 %v3297, %v3293
    %v3538 = vpack.c.b16 %v3298, %v3294
    %v3539 = vpack.c.b16 %v3299, %v3295
    %v3540 = vpack.c.b16 %v3304, %v3300
    %v3541 = vpack.c.b16 %v3305, %v3301
    %v3542 = vpack.c.b16 %v3306, %v3302
    %v3543 = vpack.c.b16 %v3307, %v3303
    %v3544 = vpack.c.b16 %v3312, %v3308
    %v3545 = vpack.c.b16 %v3313, %v3309
    %v3546 = vpack.c.b16 %v3314, %v3310
    %v3547 = vpack.c.b16 %v3315, %v3311
    %v3548 = vpack.c.b16 %v3320, %v3316
    %v3549 = vpack.c.b16 %v3321, %v3317
    %v3550 = vpack.c.b16 %v3322, %v3318
    %v3551 = vpack.c.b16 %v3323, %v3319
    %v3552 = vpack.c.b16 %v3328, %v3324
    %v3553 = vpack.c.b16 %v3329, %v3325
    %v3554 = vpack.c.b16 %v3330, %v3326
    %v3555 = vpack.c.b16 %v3331, %v3327
    %v3556 = vpack.c.b16 %v3336, %v3332
    %v3557 = vpack.c.b16 %v3337, %v3333
    %v3558 = vpack.c.b16 %v3338, %v3334
    %v3559 = vpack.c.b16 %v3339, %v3335
    %v3560 = vpack.c.b16 %v3344, %v3340
    %v3561 = vpack.c.b16 %v3345, %v3341
    %v3562 = vpack.c.b16 %v3346, %v3342
    %v3563 = vpack.c.b16 %v3347, %v3343
    %v3564 = vpack.c.b16 %v3352, %v3348
    %v3565 = vpack.c.b16 %v3353, %v3349
    %v3566 = vpack.c.b16 %v3354, %v3350
    %v3567 = vpack.c.b16 %v3355, %v3351
    %v3568 = vpack.c.b16 %v3360, %v3356
    %v3569 = vpack.c.b16 %v3361, %v3357
    %v3570 = vpack.c.b16 %v3362, %v3358
    %v3571 = vpack.c.b16 %v3363, %v3359
    %v3572 = vpack.c.b16 %v3368, %v3364
    %v3573 = vpack.c.b16 %v3369, %v3365
    %v3574 = vpack.c.b16 %v3370, %v3366
    %v3575 = vpack.c.b16 %v3371, %v3367
    %v3576 = vpack.c.b16 %v3376, %v3372
    %v3577 = vpack.c.b16 %v3377, %v3373
    %v3578 = vpack.c.b16 %v3378, %v3374
    %v3579 = vpack.c.b16 %v3379, %v3375
    %v3580 = vpack.c.b16 %v3384, %v3380
    %v3581 = vpack.c.b16 %v3385, %v3381
    %v3582 = vpack.c.b16 %v3386, %v3382
    %v3583 = vpack.c.b16 %v3387, %v3383
    %v3584 = vpack.c.b16 %v3392, %v3388
    %v3585 = vpack.c.b16 %v3393, %v3389
    %v3586 = vpack.c.b16 %v3394, %v3390
    %v3587 = vpack.c.b16 %v3395, %v3391
    %v3588 = vpack.c.b16 %v3400, %v3396
    %v3589 = vpack.c.b16 %v3401, %v3397
    %v3590 = vpack.c.b16 %v3402, %v3398
    %v3591 = vpack.c.b16 %v3403, %v3399
    %v3592 = vpack.c.b16 %v3408, %v3404
    %v3593 = vpack.c.b16 %v3409, %v3405
    %v3594 = vpack.c.b16 %v3410, %v3406
    %v3595 = vpack.c.b16 %v3411, %v3407
    %v3596 = vpack.c.b16 %v3416, %v3412
    %v3597 = vpack.c.b16 %v3417, %v3413
    %v3598 = vpack.c.b16 %v3418, %v3414
    %v3599 = vpack.c.b16 %v3419, %v3415
    %v3600 = vpack.c.b16 %v3424, %v3420
    %v3601 = vpack.c.b16 %v3425, %v3421
    %v3602 = vpack.c.b16 %v3426, %v3422
    %v3603 = vpack.c.b16 %v3427, %v3423
    %v3604 = vpack.c.b16 %v3432, %v3428
    %v3605 = vpack.c.b16 %v3433, %v3429
    %v3606 = vpack.c.b16 %v3434, %v3430
    %v3607 = vpack.c.b16 %v3435, %v3431
    %v3608 = vpack.c.b16 %v3440, %v3436
    %v3609 = vpack.c.b16 %v3441, %v3437
    %v3610 = vpack.c.b16 %v3442, %v3438
    %v3611 = vpack.c.b16 %v3443, %v3439
    %v3612 = vpack.c.b16 %v3448, %v3444
    %v3613 = vpack.c.b16 %v3449, %v3445
    %v3614 = vpack.c.b16 %v3450, %v3446
    %v3615 = vpack.c.b16 %v3451, %v3447
    %v3616 = vpack.c.b16 %v3456, %v3452
    %v3617 = vpack.c.b16 %v3457, %v3453
    %v3618 = vpack.c.b16 %v3458, %v3454
    %v3619 = vpack.c.b16 %v3459, %v3455
    %v3620 = vpack.c.b16 %v3464, %v3460
    %v3621 = vpack.c.b16 %v3465, %v3461
    %v3622 = vpack.c.b16 %v3466, %v3462
    %v3623 = vpack.c.b16 %v3467, %v3463
    %v3624 = vpack.c.b16 %v3472, %v3468
    %v3625 = vpack.c.b16 %v3473, %v3469
    %v3626 = vpack.c.b16 %v3474, %v3470
    %v3627 = vpack.c.b16 %v3475, %v3471
    %v3628 = vpack.c.b16 %v3480, %v3476
    %v3629 = vpack.c.b16 %v3481, %v3477
    %v3630 = vpack.c.b16 %v3482, %v3478
    %v3631 = vpack.c.b16 %v3483, %v3479
    %v3632 = vpack.c.b16 %v3488, %v3484
    %v3633 = vpack.c.b16 %v3489, %v3485
    %v3634 = vpack.c.b16 %v3490, %v3486
    %v3635 = vpack.c.b16 %v3491, %v3487
    %v3636 = vpack.c.b16 %v3496, %v3492
    %v3637 = vpack.c.b16 %v3497, %v3493
    %v3638 = vpack.c.b16 %v3498, %v3494
    %v3639 = vpack.c.b16 %v3499, %v3495
    %v3640 = vpack.c.b16 %v3504, %v3500
    %v3641 = vpack.c.b16 %v3505, %v3501
    %v3642 = vpack.c.b16 %v3506, %v3502
    %v3643 = vpack.c.b16 %v3507, %v3503
    %v3644 = vpack.c.b16 %v3512, %v3508
    %v3645 = vpack.c.b16 %v3513, %v3509
    %v3646 = vpack.c.b16 %v3514, %v3510
    %v3647 = vpack.c.b16 %v3515, %v3511
    %v3648 = vpack.c.b16 %v3520, %v3516
    %v3649 = vpack.c.b16 %v3521, %v3517
    %v3650 = vpack.c.b16 %v3522, %v3518
    %v3651 = vpack.c.b16 %v3523, %v3519
    %3780 = vmatprep.subr.bf16.mxu0 %v3553
    %3781 = vmatpush1.bf16.msra.mxu0 %v3552
    %3782 = vmatprep.subr.bf16.mxu0 %v3549
    %3783 = vmatpush1.bf16.msra.mxu0 %v3548
    %3784 = vmatprep.subr.bf16.mxu0 %v3545
    %3785 = vmatpush1.bf16.msra.mxu0 %v3544
    %3786 = vmatprep.subr.bf16.mxu0 %v3541
    %3787 = vmatpush1.bf16.msra.mxu0 %v3540
    %3788 = vmatprep.subr.bf16.mxu0 %v3537
    %3789 = vmatpush1.bf16.msra.mxu0 %v3536
    %3790 = vmatprep.subr.bf16.mxu0 %v3533
    %3791 = vmatpush1.bf16.msra.mxu0 %v3532
    %3792 = vmatprep.subr.bf16.mxu0 %v3529
    %3793 = vmatpush1.bf16.msra.mxu0 %v3528
    %3794 = vmatprep.subr.bf16.mxu0 %v3525
    %3795 = vmatpush1.bf16.msra.mxu0 %v3524
    %3796 = vmatprep.subr.bf16.mxu0 %v3585
    %3797 = vmatpush2.bf16.msra.mxu0 %v3584
    %3798 = vmatprep.subr.bf16.mxu0 %v3581
    %3799 = vmatpush2.bf16.msra.mxu0 %v3580
    %3800 = vmatprep.subr.bf16.mxu0 %v3577
    %3801 = vmatpush2.bf16.msra.mxu0 %v3576
    %3802 = vmatprep.subr.bf16.mxu0 %v3573
    %3803 = vmatpush2.bf16.msra.mxu0 %v3572
    %3804 = vmatprep.subr.bf16.mxu0 %v3569
    %3805 = vmatpush2.bf16.msra.mxu0 %v3568
    %3806 = vmatprep.subr.bf16.mxu0 %v3565
    %3807 = vmatpush2.bf16.msra.mxu0 %v3564
    %3808 = vmatprep.subr.bf16.mxu0 %v3561
    %3809 = vmatpush2.bf16.msra.mxu0 %v3560
    %3810 = vmatprep.subr.bf16.mxu0 %v3557
    %3811 = vmatpush2.bf16.msra.mxu0 %v3556
    %3812 = vmatprep.mubr.bf16.mxu0 %v2856
    %3813 = vmatmul.mubr.bf16.gmra.mxu0 %v2855
    %v3814 = vpop.f32.mrf.mxu0
    %v3815 = vadd.f32 0.0, %v3814
    %v3816 = vpop.f32.mrf.mxu0
    %v3817 = vadd.f32 0.0, %v3816
    %v3818 = vpop.f32.mrf.mxu0
    %v3819 = vadd.f32 0.0, %v3818
    %v3820 = vpop.f32.mrf.mxu0
    %v3821 = vadd.f32 0.0, %v3820
    %3822 = vmatprep.mubr.bf16.mxu0 %v2860
    %3823 = vmatmul.mubr.bf16.gmra.mxu0 %v2859
    %v3824 = vpop.f32.mrf.mxu0
    %v3825 = vadd.f32 0.0, %v3824
    %v3826 = vpop.f32.mrf.mxu0
    %v3827 = vadd.f32 0.0, %v3826
    %v3828 = vpop.f32.mrf.mxu0
    %v3829 = vadd.f32 0.0, %v3828
    %v3830 = vpop.f32.mrf.mxu0
    %v3831 = vadd.f32 0.0, %v3830
    %3832 = vmatprep.mubr.bf16.mxu0 %v2864
    %3833 = vmatmul.mubr.bf16.gmra.mxu0 %v2863
    %v3834 = vpop.f32.mrf.mxu0
    %v3835 = vadd.f32 0.0, %v3834
    %v3836 = vpop.f32.mrf.mxu0
    %v3837 = vadd.f32 0.0, %v3836
    %v3838 = vpop.f32.mrf.mxu0
    %v3839 = vadd.f32 0.0, %v3838
    %v3840 = vpop.f32.mrf.mxu0
    %v3841 = vadd.f32 0.0, %v3840
    %3842 = vmatprep.mubr.bf16.mxu0 %v2868
    %3843 = vmatmul.mubr.bf16.gmra.mxu0 %v2867
    %v3844 = vpop.f32.mrf.mxu0
    %v3845 = vadd.f32 0.0, %v3844
    %v3846 = vpop.f32.mrf.mxu0
    %v3847 = vadd.f32 0.0, %v3846
    %v3848 = vpop.f32.mrf.mxu0
    %v3849 = vadd.f32 0.0, %v3848
    %v3850 = vpop.f32.mrf.mxu0
    %v3851 = vadd.f32 0.0, %v3850
    %3852 = vmatprep.mubr.bf16.mxu0 %v2872
    %3853 = vmatmul.mubr.bf16.gmra.mxu0 %v2871
    %v3854 = vpop.f32.mrf.mxu0
    %v3855 = vadd.f32 0.0, %v3854
    %v3856 = vpop.f32.mrf.mxu0
    %v3857 = vadd.f32 0.0, %v3856
    %v3858 = vpop.f32.mrf.mxu0
    %v3859 = vadd.f32 0.0, %v3858
    %v3860 = vpop.f32.mrf.mxu0
    %v3861 = vadd.f32 0.0, %v3860
    %3862 = vmatprep.mubr.bf16.mxu0 %v2876
    %3863 = vmatmul.mubr.bf16.gmra.mxu0 %v2875
    %v3864 = vpop.f32.mrf.mxu0
    %v3865 = vadd.f32 0.0, %v3864
    %v3866 = vpop.f32.mrf.mxu0
    %v3867 = vadd.f32 0.0, %v3866
    %v3868 = vpop.f32.mrf.mxu0
    %v3869 = vadd.f32 0.0, %v3868
    %v3870 = vpop.f32.mrf.mxu0
    %v3871 = vadd.f32 0.0, %v3870
    %3872 = vdwg.mxu0
    %3873 = vmatprep.subr.bf16.mxu0 %v3617
    %3874 = vmatpush1.bf16.msra.mxu0 %v3616
    %3875 = vmatprep.subr.bf16.mxu0 %v3613
    %3876 = vmatpush1.bf16.msra.mxu0 %v3612
    %3877 = vmatprep.subr.bf16.mxu0 %v3609
    %3878 = vmatpush1.bf16.msra.mxu0 %v3608
    %3879 = vmatprep.subr.bf16.mxu0 %v3605
    %3880 = vmatpush1.bf16.msra.mxu0 %v3604
    %3881 = vmatprep.subr.bf16.mxu0 %v3601
    %3882 = vmatpush1.bf16.msra.mxu0 %v3600
    %3883 = vmatprep.subr.bf16.mxu0 %v3597
    %3884 = vmatpush1.bf16.msra.mxu0 %v3596
    %3885 = vmatprep.subr.bf16.mxu0 %v3593
    %3886 = vmatpush1.bf16.msra.mxu0 %v3592
    %3887 = vmatprep.subr.bf16.mxu0 %v3589
    %3888 = vmatpush1.bf16.msra.mxu0 %v3588
    %3889 = vmatprep.subr.bf16.mxu0 %v3649
    %3890 = vmatpush2.bf16.msra.mxu0 %v3648
    %3891 = vmatprep.subr.bf16.mxu0 %v3645
    %3892 = vmatpush2.bf16.msra.mxu0 %v3644
    %3893 = vmatprep.subr.bf16.mxu0 %v3641
    %3894 = vmatpush2.bf16.msra.mxu0 %v3640
    %3895 = vmatprep.subr.bf16.mxu0 %v3637
    %3896 = vmatpush2.bf16.msra.mxu0 %v3636
    %3897 = vmatprep.subr.bf16.mxu0 %v3633
    %3898 = vmatpush2.bf16.msra.mxu0 %v3632
    %3899 = vmatprep.subr.bf16.mxu0 %v3629
    %3900 = vmatpush2.bf16.msra.mxu0 %v3628
    %3901 = vmatprep.subr.bf16.mxu0 %v3625
    %3902 = vmatpush2.bf16.msra.mxu0 %v3624
    %3903 = vmatprep.subr.bf16.mxu0 %v3621
    %3904 = vmatpush2.bf16.msra.mxu0 %v3620
    %3905 = vmatprep.mubr.bf16.mxu0 %v2858
    %3906 = vmatmul.mubr.bf16.gmra.mxu0 %v2857
    %v3907 = vpop.f32.mrf.mxu0
    %v3908 = vadd.f32 %v3815, %v3907
    %v3909 = vpop.f32.mrf.mxu0
    %v3910 = vadd.f32 %v3817, %v3909
    %v3911 = vpop.f32.mrf.mxu0
    %v3912 = vadd.f32 %v3819, %v3911
    %v3913 = vpop.f32.mrf.mxu0
    %v3914 = vadd.f32 %v3821, %v3913
    %3915 = vmatprep.mubr.bf16.mxu0 %v2862
    %3916 = vmatmul.mubr.bf16.gmra.mxu0 %v2861
    %v3917 = vpop.f32.mrf.mxu0
    %v3918 = vadd.f32 %v3825, %v3917
    %v3919 = vpop.f32.mrf.mxu0
    %v3920 = vadd.f32 %v3827, %v3919
    %v3921 = vpop.f32.mrf.mxu0
    %v3922 = vadd.f32 %v3829, %v3921
    %v3923 = vpop.f32.mrf.mxu0
    %v3924 = vadd.f32 %v3831, %v3923
    %3925 = vmatprep.mubr.bf16.mxu0 %v2866
    %3926 = vmatmul.mubr.bf16.gmra.mxu0 %v2865
    %v3927 = vpop.f32.mrf.mxu0
    %v3928 = vadd.f32 %v3835, %v3927
    %v3929 = vpop.f32.mrf.mxu0
    %v3930 = vadd.f32 %v3837, %v3929
    %v3931 = vpop.f32.mrf.mxu0
    %v3932 = vadd.f32 %v3839, %v3931
    %v3933 = vpop.f32.mrf.mxu0
    %v3934 = vadd.f32 %v3841, %v3933
    %3935 = vmatprep.mubr.bf16.mxu0 %v2870
    %3936 = vmatmul.mubr.bf16.gmra.mxu0 %v2869
    %v3937 = vpop.f32.mrf.mxu0
    %v3938 = vadd.f32 %v3845, %v3937
    %v3939 = vpop.f32.mrf.mxu0
    %v3940 = vadd.f32 %v3847, %v3939
    %v3941 = vpop.f32.mrf.mxu0
    %v3942 = vadd.f32 %v3849, %v3941
    %v3943 = vpop.f32.mrf.mxu0
    %v3944 = vadd.f32 %v3851, %v3943
    %3945 = vmatprep.mubr.bf16.mxu0 %v2874
    %3946 = vmatmul.mubr.bf16.gmra.mxu0 %v2873
    %v3947 = vpop.f32.mrf.mxu0
    %v3948 = vadd.f32 %v3855, %v3947
    %v3949 = vpop.f32.mrf.mxu0
    %v3950 = vadd.f32 %v3857, %v3949
    %v3951 = vpop.f32.mrf.mxu0
    %v3952 = vadd.f32 %v3859, %v3951
    %v3953 = vpop.f32.mrf.mxu0
    %v3954 = vadd.f32 %v3861, %v3953
    %3955 = vmatprep.mubr.bf16.mxu0 %v2878
    %3956 = vmatmul.mubr.bf16.gmra.mxu0 %v2877
    %v3957 = vpop.f32.mrf.mxu0
    %v3958 = vadd.f32 %v3865, %v3957
    %v3959 = vpop.f32.mrf.mxu0
    %v3960 = vadd.f32 %v3867, %v3959
    %v3961 = vpop.f32.mrf.mxu0
    %v3962 = vadd.f32 %v3869, %v3961
    %v3963 = vpop.f32.mrf.mxu0
    %v3964 = vadd.f32 %v3871, %v3963
    %3965 = vdwg.mxu0
    %3966 = vmatprep.subr.bf16.mxu0 %v3555
    %3967 = vmatpush1.bf16.msra.mxu0 %v3554
    %3968 = vmatprep.subr.bf16.mxu0 %v3551
    %3969 = vmatpush1.bf16.msra.mxu0 %v3550
    %3970 = vmatprep.subr.bf16.mxu0 %v3547
    %3971 = vmatpush1.bf16.msra.mxu0 %v3546
    %3972 = vmatprep.subr.bf16.mxu0 %v3543
    %3973 = vmatpush1.bf16.msra.mxu0 %v3542
    %3974 = vmatprep.subr.bf16.mxu0 %v3539
    %3975 = vmatpush1.bf16.msra.mxu0 %v3538
    %3976 = vmatprep.subr.bf16.mxu0 %v3535
    %3977 = vmatpush1.bf16.msra.mxu0 %v3534
    %3978 = vmatprep.subr.bf16.mxu0 %v3531
    %3979 = vmatpush1.bf16.msra.mxu0 %v3530
    %3980 = vmatprep.subr.bf16.mxu0 %v3527
    %3981 = vmatpush1.bf16.msra.mxu0 %v3526
    %3982 = vmatprep.subr.bf16.mxu0 %v3587
    %3983 = vmatpush2.bf16.msra.mxu0 %v3586
    %3984 = vmatprep.subr.bf16.mxu0 %v3583
    %3985 = vmatpush2.bf16.msra.mxu0 %v3582
    %3986 = vmatprep.subr.bf16.mxu0 %v3579
    %3987 = vmatpush2.bf16.msra.mxu0 %v3578
    %3988 = vmatprep.subr.bf16.mxu0 %v3575
    %3989 = vmatpush2.bf16.msra.mxu0 %v3574
    %3990 = vmatprep.subr.bf16.mxu0 %v3571
    %3991 = vmatpush2.bf16.msra.mxu0 %v3570
    %3992 = vmatprep.subr.bf16.mxu0 %v3567
    %3993 = vmatpush2.bf16.msra.mxu0 %v3566
    %3994 = vmatprep.subr.bf16.mxu0 %v3563
    %3995 = vmatpush2.bf16.msra.mxu0 %v3562
    %3996 = vmatprep.subr.bf16.mxu0 %v3559
    %3997 = vmatpush2.bf16.msra.mxu0 %v3558
    %3998 = vmatprep.mubr.bf16.mxu0 %v2856
    %3999 = vmatmul.mubr.bf16.gmra.mxu0 %v2855
    %v4000 = vpop.f32.mrf.mxu0
    %v4001 = vadd.f32 0.0, %v4000
    %v4002 = vpop.f32.mrf.mxu0
    %v4003 = vadd.f32 0.0, %v4002
    %v4004 = vpop.f32.mrf.mxu0
    %v4005 = vadd.f32 0.0, %v4004
    %v4006 = vpop.f32.mrf.mxu0
    %v4007 = vadd.f32 0.0, %v4006
    %4008 = vmatprep.mubr.bf16.mxu0 %v2860
    %4009 = vmatmul.mubr.bf16.gmra.mxu0 %v2859
    %v4010 = vpop.f32.mrf.mxu0
    %v4011 = vadd.f32 0.0, %v4010
    %v4012 = vpop.f32.mrf.mxu0
    %v4013 = vadd.f32 0.0, %v4012
    %v4014 = vpop.f32.mrf.mxu0
    %v4015 = vadd.f32 0.0, %v4014
    %v4016 = vpop.f32.mrf.mxu0
    %v4017 = vadd.f32 0.0, %v4016
    %4018 = vmatprep.mubr.bf16.mxu0 %v2864
    %4019 = vmatmul.mubr.bf16.gmra.mxu0 %v2863
    %v4020 = vpop.f32.mrf.mxu0
    %v4021 = vadd.f32 0.0, %v4020
    %v4022 = vpop.f32.mrf.mxu0
    %v4023 = vadd.f32 0.0, %v4022
    %v4024 = vpop.f32.mrf.mxu0
    %v4025 = vadd.f32 0.0, %v4024
    %v4026 = vpop.f32.mrf.mxu0
    %v4027 = vadd.f32 0.0, %v4026
    %4028 = vmatprep.mubr.bf16.mxu0 %v2868
    %4029 = vmatmul.mubr.bf16.gmra.mxu0 %v2867
    %v4030 = vpop.f32.mrf.mxu0
    %v4031 = vadd.f32 0.0, %v4030
    %v4032 = vpop.f32.mrf.mxu0
    %v4033 = vadd.f32 0.0, %v4032
    %v4034 = vpop.f32.mrf.mxu0
    %v4035 = vadd.f32 0.0, %v4034
    %v4036 = vpop.f32.mrf.mxu0
    %v4037 = vadd.f32 0.0, %v4036
    %4038 = vmatprep.mubr.bf16.mxu0 %v2872
    %4039 = vmatmul.mubr.bf16.gmra.mxu0 %v2871
    %v4040 = vpop.f32.mrf.mxu0
    %v4041 = vadd.f32 0.0, %v4040
    %v4042 = vpop.f32.mrf.mxu0
    %v4043 = vadd.f32 0.0, %v4042
    %v4044 = vpop.f32.mrf.mxu0
    %v4045 = vadd.f32 0.0, %v4044
    %v4046 = vpop.f32.mrf.mxu0
    %v4047 = vadd.f32 0.0, %v4046
    %4048 = vmatprep.mubr.bf16.mxu0 %v2876
    %4049 = vmatmul.mubr.bf16.gmra.mxu0 %v2875
    %v4050 = vpop.f32.mrf.mxu0
    %v4051 = vadd.f32 0.0, %v4050
    %v4052 = vpop.f32.mrf.mxu0
    %v4053 = vadd.f32 0.0, %v4052
    %v4054 = vpop.f32.mrf.mxu0
    %v4055 = vadd.f32 0.0, %v4054
    %v4056 = vpop.f32.mrf.mxu0
    %v4057 = vadd.f32 0.0, %v4056
    %4058 = vdwg.mxu0
    %4059 = vmatprep.subr.bf16.mxu0 %v3619
    %4060 = vmatpush1.bf16.msra.mxu0 %v3618
    %4061 = vmatprep.subr.bf16.mxu0 %v3615
    %4062 = vmatpush1.bf16.msra.mxu0 %v3614
    %4063 = vmatprep.subr.bf16.mxu0 %v3611
    %4064 = vmatpush1.bf16.msra.mxu0 %v3610
    %4065 = vmatprep.subr.bf16.mxu0 %v3607
    %4066 = vmatpush1.bf16.msra.mxu0 %v3606
    %4067 = vmatprep.subr.bf16.mxu0 %v3603
    %4068 = vmatpush1.bf16.msra.mxu0 %v3602
    %4069 = vmatprep.subr.bf16.mxu0 %v3599
    %4070 = vmatpush1.bf16.msra.mxu0 %v3598
    %4071 = vmatprep.subr.bf16.mxu0 %v3595
    %4072 = vmatpush1.bf16.msra.mxu0 %v3594
    %4073 = vmatprep.subr.bf16.mxu0 %v3591
    %4074 = vmatpush1.bf16.msra.mxu0 %v3590
    %4075 = vmatprep.subr.bf16.mxu0 %v3651
    %4076 = vmatpush2.bf16.msra.mxu0 %v3650
    %4077 = vmatprep.subr.bf16.mxu0 %v3647
    %4078 = vmatpush2.bf16.msra.mxu0 %v3646
    %4079 = vmatprep.subr.bf16.mxu0 %v3643
    %4080 = vmatpush2.bf16.msra.mxu0 %v3642
    %4081 = vmatprep.subr.bf16.mxu0 %v3639
    %4082 = vmatpush2.bf16.msra.mxu0 %v3638
    %4083 = vmatprep.subr.bf16.mxu0 %v3635
    %4084 = vmatpush2.bf16.msra.mxu0 %v3634
    %4085 = vmatprep.subr.bf16.mxu0 %v3631
    %4086 = vmatpush2.bf16.msra.mxu0 %v3630
    %4087 = vmatprep.subr.bf16.mxu0 %v3627
    %4088 = vmatpush2.bf16.msra.mxu0 %v3626
    %4089 = vmatprep.subr.bf16.mxu0 %v3623
    %4090 = vmatpush2.bf16.msra.mxu0 %v3622
    %4091 = vmatprep.mubr.bf16.mxu0 %v2858
    %4092 = vmatmul.mubr.bf16.gmra.mxu0 %v2857
    %v4093 = vpop.f32.mrf.mxu0
    %v4094 = vadd.f32 %v4001, %v4093
    %v4095 = vpop.f32.mrf.mxu0
    %v4096 = vadd.f32 %v4003, %v4095
    %v4097 = vpop.f32.mrf.mxu0
    %v4098 = vadd.f32 %v4005, %v4097
    %v4099 = vpop.f32.mrf.mxu0
    %v4100 = vadd.f32 %v4007, %v4099
    %4101 = vmatprep.mubr.bf16.mxu0 %v2862
    %4102 = vmatmul.mubr.bf16.gmra.mxu0 %v2861
    %v4103 = vpop.f32.mrf.mxu0
    %v4104 = vadd.f32 %v4011, %v4103
    %v4105 = vpop.f32.mrf.mxu0
    %v4106 = vadd.f32 %v4013, %v4105
    %v4107 = vpop.f32.mrf.mxu0
    %v4108 = vadd.f32 %v4015, %v4107
    %v4109 = vpop.f32.mrf.mxu0
    %v4110 = vadd.f32 %v4017, %v4109
    %4111 = vmatprep.mubr.bf16.mxu0 %v2866
    %4112 = vmatmul.mubr.bf16.gmra.mxu0 %v2865
    %v4113 = vpop.f32.mrf.mxu0
    %v4114 = vadd.f32 %v4021, %v4113
    %v4115 = vpop.f32.mrf.mxu0
    %v4116 = vadd.f32 %v4023, %v4115
    %v4117 = vpop.f32.mrf.mxu0
    %v4118 = vadd.f32 %v4025, %v4117
    %v4119 = vpop.f32.mrf.mxu0
    %v4120 = vadd.f32 %v4027, %v4119
    %4121 = vmatprep.mubr.bf16.mxu0 %v2870
    %4122 = vmatmul.mubr.bf16.gmra.mxu0 %v2869
    %v4123 = vpop.f32.mrf.mxu0
    %v4124 = vadd.f32 %v4031, %v4123
    %v4125 = vpop.f32.mrf.mxu0
    %v4126 = vadd.f32 %v4033, %v4125
    %v4127 = vpop.f32.mrf.mxu0
    %v4128 = vadd.f32 %v4035, %v4127
    %v4129 = vpop.f32.mrf.mxu0
    %v4130 = vadd.f32 %v4037, %v4129
    %4131 = vmatprep.mubr.bf16.mxu0 %v2874
    %4132 = vmatmul.mubr.bf16.gmra.mxu0 %v2873
    %v4133 = vpop.f32.mrf.mxu0
    %v4134 = vadd.f32 %v4041, %v4133
    %v4135 = vpop.f32.mrf.mxu0
    %v4136 = vadd.f32 %v4043, %v4135
    %v4137 = vpop.f32.mrf.mxu0
    %v4138 = vadd.f32 %v4045, %v4137
    %v4139 = vpop.f32.mrf.mxu0
    %v4140 = vadd.f32 %v4047, %v4139
    %4141 = vmatprep.mubr.bf16.mxu0 %v2878
    %4142 = vmatmul.mubr.bf16.gmra.mxu0 %v2877
    %v4143 = vpop.f32.mrf.mxu0
    %v4144 = vadd.f32 %v4051, %v4143
    %v4145 = vpop.f32.mrf.mxu0
    %v4146 = vadd.f32 %v4053, %v4145
    %v4147 = vpop.f32.mrf.mxu0
    %v4148 = vadd.f32 %v4055, %v4147
    %v4149 = vpop.f32.mrf.mxu0
    %v4150 = vadd.f32 %v4057, %v4149
    %4151 = vdwg.mxu0
    %v4280 = vunpack.c.l.b16 %v2883
    %v4281 = vunpack.c.h.b16 %v2883
    %v4282 = vunpack.c.l.b16 %v2884
    %v4283 = vunpack.c.h.b16 %v2884
    %v4284 = vunpack.c.l.b16 %v2885
    %v4285 = vunpack.c.h.b16 %v2885
    %v4286 = vunpack.c.l.b16 %v2886
    %v4287 = vunpack.c.h.b16 %v2886
    %v4288 = vunpack.c.l.b16 %v2887
    %v4289 = vunpack.c.h.b16 %v2887
    %v4290 = vunpack.c.l.b16 %v2888
    %v4291 = vunpack.c.h.b16 %v2888
    %v4292 = vunpack.c.l.b16 %v2889
    %v4293 = vunpack.c.h.b16 %v2889
    %v4294 = vunpack.c.l.b16 %v2890
    %v4295 = vunpack.c.h.b16 %v2890
    %v4296 = vunpack.c.l.b16 %v2891
    %v4297 = vunpack.c.h.b16 %v2891
    %v4298 = vunpack.c.l.b16 %v2892
    %v4299 = vunpack.c.h.b16 %v2892
    %v4300 = vunpack.c.l.b16 %v2893
    %v4301 = vunpack.c.h.b16 %v2893
    %v4302 = vunpack.c.l.b16 %v2894
    %v4303 = vunpack.c.h.b16 %v2894
    %v4304 = vunpack.c.l.b16 %v2895
    %v4305 = vunpack.c.h.b16 %v2895
    %v4306 = vunpack.c.l.b16 %v2896
    %v4307 = vunpack.c.h.b16 %v2896
    %v4308 = vunpack.c.l.b16 %v2897
    %v4309 = vunpack.c.h.b16 %v2897
    %v4310 = vunpack.c.l.b16 %v2898
    %v4311 = vunpack.c.h.b16 %v2898
    %v4312 = vunpack.c.l.b16 %v2899
    %v4313 = vunpack.c.h.b16 %v2899
    %v4314 = vunpack.c.l.b16 %v2900
    %v4315 = vunpack.c.h.b16 %v2900
    %v4316 = vunpack.c.l.b16 %v2901
    %v4317 = vunpack.c.h.b16 %v2901
    %v4318 = vunpack.c.l.b16 %v2902
    %v4319 = vunpack.c.h.b16 %v2902
    %v4320 = vunpack.c.l.b16 %v2903
    %v4321 = vunpack.c.h.b16 %v2903
    %v4322 = vunpack.c.l.b16 %v2904
    %v4323 = vunpack.c.h.b16 %v2904
    %v4324 = vunpack.c.l.b16 %v2905
    %v4325 = vunpack.c.h.b16 %v2905
    %v4326 = vunpack.c.l.b16 %v2906
    %v4327 = vunpack.c.h.b16 %v2906
    %v4328 = vunpack.c.l.b16 %v2907
    %v4329 = vunpack.c.h.b16 %v2907
    %v4330 = vunpack.c.l.b16 %v2908
    %v4331 = vunpack.c.h.b16 %v2908
    %v4332 = vunpack.c.l.b16 %v2909
    %v4333 = vunpack.c.h.b16 %v2909
    %v4334 = vunpack.c.l.b16 %v2910
    %v4335 = vunpack.c.h.b16 %v2910
    %v4336 = vunpack.c.l.b16 %v2911
    %v4337 = vunpack.c.h.b16 %v2911
    %v4338 = vunpack.c.l.b16 %v2912
    %v4339 = vunpack.c.h.b16 %v2912
    %v4340 = vunpack.c.l.b16 %v2913
    %v4341 = vunpack.c.h.b16 %v2913
    %v4342 = vunpack.c.l.b16 %v2914
    %v4343 = vunpack.c.h.b16 %v2914
    %v4344 = vunpack.c.l.b16 %v2915
    %v4345 = vunpack.c.h.b16 %v2915
    %v4346 = vunpack.c.l.b16 %v2916
    %v4347 = vunpack.c.h.b16 %v2916
    %v4348 = vunpack.c.l.b16 %v2917
    %v4349 = vunpack.c.h.b16 %v2917
    %v4350 = vunpack.c.l.b16 %v2918
    %v4351 = vunpack.c.h.b16 %v2918
    %v4352 = vunpack.c.l.b16 %v2919
    %v4353 = vunpack.c.h.b16 %v2919
    %v4354 = vunpack.c.l.b16 %v2920
    %v4355 = vunpack.c.h.b16 %v2920
    %v4356 = vunpack.c.l.b16 %v2921
    %v4357 = vunpack.c.h.b16 %v2921
    %v4358 = vunpack.c.l.b16 %v2922
    %v4359 = vunpack.c.h.b16 %v2922
    %v4360 = vunpack.c.l.b16 %v2923
    %v4361 = vunpack.c.h.b16 %v2923
    %v4362 = vunpack.c.l.b16 %v2924
    %v4363 = vunpack.c.h.b16 %v2924
    %v4364 = vunpack.c.l.b16 %v2925
    %v4365 = vunpack.c.h.b16 %v2925
    %v4366 = vunpack.c.l.b16 %v2926
    %v4367 = vunpack.c.h.b16 %v2926
    %v4368 = vunpack.c.l.b16 %v2927
    %v4369 = vunpack.c.h.b16 %v2927
    %v4370 = vunpack.c.l.b16 %v2928
    %v4371 = vunpack.c.h.b16 %v2928
    %v4372 = vunpack.c.l.b16 %v2929
    %v4373 = vunpack.c.h.b16 %v2929
    %v4374 = vunpack.c.l.b16 %v2930
    %v4375 = vunpack.c.h.b16 %v2930
    %v4376 = vunpack.c.l.b16 %v2931
    %v4377 = vunpack.c.h.b16 %v2931
    %v4378 = vunpack.c.l.b16 %v2932
    %v4379 = vunpack.c.h.b16 %v2932
    %v4380 = vunpack.c.l.b16 %v2933
    %v4381 = vunpack.c.h.b16 %v2933
    %v4382 = vunpack.c.l.b16 %v2934
    %v4383 = vunpack.c.h.b16 %v2934
    %v4384 = vunpack.c.l.b16 %v2935
    %v4385 = vunpack.c.h.b16 %v2935
    %v4386 = vunpack.c.l.b16 %v2936
    %v4387 = vunpack.c.h.b16 %v2936
    %v4388 = vunpack.c.l.b16 %v2937
    %v4389 = vunpack.c.h.b16 %v2937
    %v4390 = vunpack.c.l.b16 %v2938
    %v4391 = vunpack.c.h.b16 %v2938
    %v4392 = vunpack.c.l.b16 %v2939
    %v4393 = vunpack.c.h.b16 %v2939
    %v4394 = vunpack.c.l.b16 %v2940
    %v4395 = vunpack.c.h.b16 %v2940
    %v4396 = vunpack.c.l.b16 %v2941
    %v4397 = vunpack.c.h.b16 %v2941
    %v4398 = vunpack.c.l.b16 %v2942
    %v4399 = vunpack.c.h.b16 %v2942
    %v4400 = vunpack.c.l.b16 %v2943
    %v4401 = vunpack.c.h.b16 %v2943
    %v4402 = vunpack.c.l.b16 %v2944
    %v4403 = vunpack.c.h.b16 %v2944
    %v4404 = vunpack.c.l.b16 %v2945
    %v4405 = vunpack.c.h.b16 %v2945
    %v4406 = vunpack.c.l.b16 %v2946
    %v4407 = vunpack.c.h.b16 %v2946
    %v4408 = vunpack.c.l.b16 %v2947
    %v4409 = vunpack.c.h.b16 %v2947
    %v4410 = vunpack.c.l.b16 %v2948
    %v4411 = vunpack.c.h.b16 %v2948
    %v4412 = vunpack.c.l.b16 %v2949
    %v4413 = vunpack.c.h.b16 %v2949
    %v4414 = vunpack.c.l.b16 %v2950
    %v4415 = vunpack.c.h.b16 %v2950
    %v4416 = vunpack.c.l.b16 %v2951
    %v4417 = vunpack.c.h.b16 %v2951
    %v4418 = vunpack.c.l.b16 %v2952
    %v4419 = vunpack.c.h.b16 %v2952
    %v4420 = vunpack.c.l.b16 %v2953
    %v4421 = vunpack.c.h.b16 %v2953
    %v4422 = vunpack.c.l.b16 %v2954
    %v4423 = vunpack.c.h.b16 %v2954
    %v4424 = vunpack.c.l.b16 %v2955
    %v4425 = vunpack.c.h.b16 %v2955
    %v4426 = vunpack.c.l.b16 %v2956
    %v4427 = vunpack.c.h.b16 %v2956
    %v4428 = vunpack.c.l.b16 %v2957
    %v4429 = vunpack.c.h.b16 %v2957
    %v4430 = vunpack.c.l.b16 %v2958
    %v4431 = vunpack.c.h.b16 %v2958
    %v4432 = vunpack.c.l.b16 %v2959
    %v4433 = vunpack.c.h.b16 %v2959
    %v4434 = vunpack.c.l.b16 %v2960
    %v4435 = vunpack.c.h.b16 %v2960
    %v4436 = vunpack.c.l.b16 %v2961
    %v4437 = vunpack.c.h.b16 %v2961
    %v4438 = vunpack.c.l.b16 %v2962
    %v4439 = vunpack.c.h.b16 %v2962
    %v4440 = vunpack.c.l.b16 %v2963
    %v4441 = vunpack.c.h.b16 %v2963
    %v4442 = vunpack.c.l.b16 %v2964
    %v4443 = vunpack.c.h.b16 %v2964
    %v4444 = vunpack.c.l.b16 %v2965
    %v4445 = vunpack.c.h.b16 %v2965
    %v4446 = vunpack.c.l.b16 %v2966
    %v4447 = vunpack.c.h.b16 %v2966
    %v4448 = vunpack.c.l.b16 %v2967
    %v4449 = vunpack.c.h.b16 %v2967
    %v4450 = vunpack.c.l.b16 %v2968
    %v4451 = vunpack.c.h.b16 %v2968
    %v4452 = vunpack.c.l.b16 %v2969
    %v4453 = vunpack.c.h.b16 %v2969
    %v4454 = vunpack.c.l.b16 %v2970
    %v4455 = vunpack.c.h.b16 %v2970
    %v4456 = vunpack.c.l.b16 %v2971
    %v4457 = vunpack.c.h.b16 %v2971
    %v4458 = vunpack.c.l.b16 %v2972
    %v4459 = vunpack.c.h.b16 %v2972
    %v4460 = vunpack.c.l.b16 %v2973
    %v4461 = vunpack.c.h.b16 %v2973
    %v4462 = vunpack.c.l.b16 %v2974
    %v4463 = vunpack.c.h.b16 %v2974
    %v4464 = vunpack.c.l.b16 %v2975
    %v4465 = vunpack.c.h.b16 %v2975
    %v4466 = vunpack.c.l.b16 %v2976
    %v4467 = vunpack.c.h.b16 %v2976
    %v4468 = vunpack.c.l.b16 %v2977
    %v4469 = vunpack.c.h.b16 %v2977
    %v4470 = vunpack.c.l.b16 %v2978
    %v4471 = vunpack.c.h.b16 %v2978
    %v4472 = vunpack.c.l.b16 %v2979
    %v4473 = vunpack.c.h.b16 %v2979
    %v4474 = vunpack.c.l.b16 %v2980
    %v4475 = vunpack.c.h.b16 %v2980
    %v4476 = vunpack.c.l.b16 %v2981
    %v4477 = vunpack.c.h.b16 %v2981
    %v4478 = vunpack.c.l.b16 %v2982
    %v4479 = vunpack.c.h.b16 %v2982
    %v4480 = vunpack.c.l.b16 %v2983
    %v4481 = vunpack.c.h.b16 %v2983
    %v4482 = vunpack.c.l.b16 %v2984
    %v4483 = vunpack.c.h.b16 %v2984
    %v4484 = vunpack.c.l.b16 %v2985
    %v4485 = vunpack.c.h.b16 %v2985
    %v4486 = vunpack.c.l.b16 %v2986
    %v4487 = vunpack.c.h.b16 %v2986
    %v4488 = vunpack.c.l.b16 %v2987
    %v4489 = vunpack.c.h.b16 %v2987
    %v4490 = vunpack.c.l.b16 %v2988
    %v4491 = vunpack.c.h.b16 %v2988
    %v4492 = vunpack.c.l.b16 %v2989
    %v4493 = vunpack.c.h.b16 %v2989
    %v4494 = vunpack.c.l.b16 %v2990
    %v4495 = vunpack.c.h.b16 %v2990
    %v4496 = vunpack.c.l.b16 %v2991
    %v4497 = vunpack.c.h.b16 %v2991
    %v4498 = vunpack.c.l.b16 %v2992
    %v4499 = vunpack.c.h.b16 %v2992
    %v4500 = vunpack.c.l.b16 %v2993
    %v4501 = vunpack.c.h.b16 %v2993
    %v4502 = vunpack.c.l.b16 %v2994
    %v4503 = vunpack.c.h.b16 %v2994
    %v4504 = vunpack.c.l.b16 %v2995
    %v4505 = vunpack.c.h.b16 %v2995
    %v4506 = vunpack.c.l.b16 %v2996
    %v4507 = vunpack.c.h.b16 %v2996
    %v4508 = vunpack.c.l.b16 %v2997
    %v4509 = vunpack.c.h.b16 %v2997
    %v4510 = vunpack.c.l.b16 %v2998
    %v4511 = vunpack.c.h.b16 %v2998
    %v4512 = vunpack.c.l.b16 %v2999
    %v4513 = vunpack.c.h.b16 %v2999
    %v4514 = vunpack.c.l.b16 %v3000
    %v4515 = vunpack.c.h.b16 %v3000
    %v4516 = vunpack.c.l.b16 %v3001
    %v4517 = vunpack.c.h.b16 %v3001
    %v4518 = vunpack.c.l.b16 %v3002
    %v4519 = vunpack.c.h.b16 %v3002
    %v4520 = vunpack.c.l.b16 %v3003
    %v4521 = vunpack.c.h.b16 %v3003
    %v4522 = vunpack.c.l.b16 %v3004
    %v4523 = vunpack.c.h.b16 %v3004
    %v4524 = vunpack.c.l.b16 %v3005
    %v4525 = vunpack.c.h.b16 %v3005
    %v4526 = vunpack.c.l.b16 %v3006
    %v4527 = vunpack.c.h.b16 %v3006
    %v4528 = vunpack.c.l.b16 %v3007
    %v4529 = vunpack.c.h.b16 %v3007
    %v4530 = vunpack.c.l.b16 %v3008
    %v4531 = vunpack.c.h.b16 %v3008
    %v4532 = vunpack.c.l.b16 %v3009
    %v4533 = vunpack.c.h.b16 %v3009
    %v4534 = vunpack.c.l.b16 %v3010
    %v4535 = vunpack.c.h.b16 %v3010
    %v4536 = vpack.c.b16 %v4284, %v4280
    %v4537 = vpack.c.b16 %v4285, %v4281
    %v4538 = vpack.c.b16 %v4286, %v4282
    %v4539 = vpack.c.b16 %v4287, %v4283
    %v4540 = vpack.c.b16 %v4292, %v4288
    %v4541 = vpack.c.b16 %v4293, %v4289
    %v4542 = vpack.c.b16 %v4294, %v4290
    %v4543 = vpack.c.b16 %v4295, %v4291
    %v4544 = vpack.c.b16 %v4300, %v4296
    %v4545 = vpack.c.b16 %v4301, %v4297
    %v4546 = vpack.c.b16 %v4302, %v4298
    %v4547 = vpack.c.b16 %v4303, %v4299
    %v4548 = vpack.c.b16 %v4308, %v4304
    %v4549 = vpack.c.b16 %v4309, %v4305
    %v4550 = vpack.c.b16 %v4310, %v4306
    %v4551 = vpack.c.b16 %v4311, %v4307
    %v4552 = vpack.c.b16 %v4316, %v4312
    %v4553 = vpack.c.b16 %v4317, %v4313
    %v4554 = vpack.c.b16 %v4318, %v4314
    %v4555 = vpack.c.b16 %v4319, %v4315
    %v4556 = vpack.c.b16 %v4324, %v4320
    %v4557 = vpack.c.b16 %v4325, %v4321
    %v4558 = vpack.c.b16 %v4326, %v4322
    %v4559 = vpack.c.b16 %v4327, %v4323
    %v4560 = vpack.c.b16 %v4332, %v4328
    %v4561 = vpack.c.b16 %v4333, %v4329
    %v4562 = vpack.c.b16 %v4334, %v4330
    %v4563 = vpack.c.b16 %v4335, %v4331
    %v4564 = vpack.c.b16 %v4340, %v4336
    %v4565 = vpack.c.b16 %v4341, %v4337
    %v4566 = vpack.c.b16 %v4342, %v4338
    %v4567 = vpack.c.b16 %v4343, %v4339
    %v4568 = vpack.c.b16 %v4348, %v4344
    %v4569 = vpack.c.b16 %v4349, %v4345
    %v4570 = vpack.c.b16 %v4350, %v4346
    %v4571 = vpack.c.b16 %v4351, %v4347
    %v4572 = vpack.c.b16 %v4356, %v4352
    %v4573 = vpack.c.b16 %v4357, %v4353
    %v4574 = vpack.c.b16 %v4358, %v4354
    %v4575 = vpack.c.b16 %v4359, %v4355
    %v4576 = vpack.c.b16 %v4364, %v4360
    %v4577 = vpack.c.b16 %v4365, %v4361
    %v4578 = vpack.c.b16 %v4366, %v4362
    %v4579 = vpack.c.b16 %v4367, %v4363
    %v4580 = vpack.c.b16 %v4372, %v4368
    %v4581 = vpack.c.b16 %v4373, %v4369
    %v4582 = vpack.c.b16 %v4374, %v4370
    %v4583 = vpack.c.b16 %v4375, %v4371
    %v4584 = vpack.c.b16 %v4380, %v4376
    %v4585 = vpack.c.b16 %v4381, %v4377
    %v4586 = vpack.c.b16 %v4382, %v4378
    %v4587 = vpack.c.b16 %v4383, %v4379
    %v4588 = vpack.c.b16 %v4388, %v4384
    %v4589 = vpack.c.b16 %v4389, %v4385
    %v4590 = vpack.c.b16 %v4390, %v4386
    %v4591 = vpack.c.b16 %v4391, %v4387
    %v4592 = vpack.c.b16 %v4396, %v4392
    %v4593 = vpack.c.b16 %v4397, %v4393
    %v4594 = vpack.c.b16 %v4398, %v4394
    %v4595 = vpack.c.b16 %v4399, %v4395
    %v4596 = vpack.c.b16 %v4404, %v4400
    %v4597 = vpack.c.b16 %v4405, %v4401
    %v4598 = vpack.c.b16 %v4406, %v4402
    %v4599 = vpack.c.b16 %v4407, %v4403
    %v4600 = vpack.c.b16 %v4412, %v4408
    %v4601 = vpack.c.b16 %v4413, %v4409
    %v4602 = vpack.c.b16 %v4414, %v4410
    %v4603 = vpack.c.b16 %v4415, %v4411
    %v4604 = vpack.c.b16 %v4420, %v4416
    %v4605 = vpack.c.b16 %v4421, %v4417
    %v4606 = vpack.c.b16 %v4422, %v4418
    %v4607 = vpack.c.b16 %v4423, %v4419
    %v4608 = vpack.c.b16 %v4428, %v4424
    %v4609 = vpack.c.b16 %v4429, %v4425
    %v4610 = vpack.c.b16 %v4430, %v4426
    %v4611 = vpack.c.b16 %v4431, %v4427
    %v4612 = vpack.c.b16 %v4436, %v4432
    %v4613 = vpack.c.b16 %v4437, %v4433
    %v4614 = vpack.c.b16 %v4438, %v4434
    %v4615 = vpack.c.b16 %v4439, %v4435
    %v4616 = vpack.c.b16 %v4444, %v4440
    %v4617 = vpack.c.b16 %v4445, %v4441
    %v4618 = vpack.c.b16 %v4446, %v4442
    %v4619 = vpack.c.b16 %v4447, %v4443
    %v4620 = vpack.c.b16 %v4452, %v4448
    %v4621 = vpack.c.b16 %v4453, %v4449
    %v4622 = vpack.c.b16 %v4454, %v4450
    %v4623 = vpack.c.b16 %v4455, %v4451
    %v4624 = vpack.c.b16 %v4460, %v4456
    %v4625 = vpack.c.b16 %v4461, %v4457
    %v4626 = vpack.c.b16 %v4462, %v4458
    %v4627 = vpack.c.b16 %v4463, %v4459
    %v4628 = vpack.c.b16 %v4468, %v4464
    %v4629 = vpack.c.b16 %v4469, %v4465
    %v4630 = vpack.c.b16 %v4470, %v4466
    %v4631 = vpack.c.b16 %v4471, %v4467
    %v4632 = vpack.c.b16 %v4476, %v4472
    %v4633 = vpack.c.b16 %v4477, %v4473
    %v4634 = vpack.c.b16 %v4478, %v4474
    %v4635 = vpack.c.b16 %v4479, %v4475
    %v4636 = vpack.c.b16 %v4484, %v4480
    %v4637 = vpack.c.b16 %v4485, %v4481
    %v4638 = vpack.c.b16 %v4486, %v4482
    %v4639 = vpack.c.b16 %v4487, %v4483
    %v4640 = vpack.c.b16 %v4492, %v4488
    %v4641 = vpack.c.b16 %v4493, %v4489
    %v4642 = vpack.c.b16 %v4494, %v4490
    %v4643 = vpack.c.b16 %v4495, %v4491
    %v4644 = vpack.c.b16 %v4500, %v4496
    %v4645 = vpack.c.b16 %v4501, %v4497
    %v4646 = vpack.c.b16 %v4502, %v4498
    %v4647 = vpack.c.b16 %v4503, %v4499
    %v4648 = vpack.c.b16 %v4508, %v4504
    %v4649 = vpack.c.b16 %v4509, %v4505
    %v4650 = vpack.c.b16 %v4510, %v4506
    %v4651 = vpack.c.b16 %v4511, %v4507
    %v4652 = vpack.c.b16 %v4516, %v4512
    %v4653 = vpack.c.b16 %v4517, %v4513
    %v4654 = vpack.c.b16 %v4518, %v4514
    %v4655 = vpack.c.b16 %v4519, %v4515
    %v4656 = vpack.c.b16 %v4524, %v4520
    %v4657 = vpack.c.b16 %v4525, %v4521
    %v4658 = vpack.c.b16 %v4526, %v4522
    %v4659 = vpack.c.b16 %v4527, %v4523
    %v4660 = vpack.c.b16 %v4532, %v4528
    %v4661 = vpack.c.b16 %v4533, %v4529
    %v4662 = vpack.c.b16 %v4534, %v4530
    %v4663 = vpack.c.b16 %v4535, %v4531
    %4792 = vmatprep.subr.bf16.mxu0 %v4565
    %4793 = vmatpush1.bf16.msra.mxu0 %v4564
    %4794 = vmatprep.subr.bf16.mxu0 %v4561
    %4795 = vmatpush1.bf16.msra.mxu0 %v4560
    %4796 = vmatprep.subr.bf16.mxu0 %v4557
    %4797 = vmatpush1.bf16.msra.mxu0 %v4556
    %4798 = vmatprep.subr.bf16.mxu0 %v4553
    %4799 = vmatpush1.bf16.msra.mxu0 %v4552
    %4800 = vmatprep.subr.bf16.mxu0 %v4549
    %4801 = vmatpush1.bf16.msra.mxu0 %v4548
    %4802 = vmatprep.subr.bf16.mxu0 %v4545
    %4803 = vmatpush1.bf16.msra.mxu0 %v4544
    %4804 = vmatprep.subr.bf16.mxu0 %v4541
    %4805 = vmatpush1.bf16.msra.mxu0 %v4540
    %4806 = vmatprep.subr.bf16.mxu0 %v4537
    %4807 = vmatpush1.bf16.msra.mxu0 %v4536
    %4808 = vmatprep.subr.bf16.mxu0 %v4597
    %4809 = vmatpush2.bf16.msra.mxu0 %v4596
    %4810 = vmatprep.subr.bf16.mxu0 %v4593
    %4811 = vmatpush2.bf16.msra.mxu0 %v4592
    %4812 = vmatprep.subr.bf16.mxu0 %v4589
    %4813 = vmatpush2.bf16.msra.mxu0 %v4588
    %4814 = vmatprep.subr.bf16.mxu0 %v4585
    %4815 = vmatpush2.bf16.msra.mxu0 %v4584
    %4816 = vmatprep.subr.bf16.mxu0 %v4581
    %4817 = vmatpush2.bf16.msra.mxu0 %v4580
    %4818 = vmatprep.subr.bf16.mxu0 %v4577
    %4819 = vmatpush2.bf16.msra.mxu0 %v4576
    %4820 = vmatprep.subr.bf16.mxu0 %v4573
    %4821 = vmatpush2.bf16.msra.mxu0 %v4572
    %4822 = vmatprep.subr.bf16.mxu0 %v4569
    %4823 = vmatpush2.bf16.msra.mxu0 %v4568
    %4824 = vmatprep.mubr.bf16.mxu0 %v2828
    %4825 = vmatmul.mubr.bf16.gmra.mxu0 %v2827
    %v4826 = vpop.f32.mrf.mxu0
    %v4827 = vadd.f32 %v3908, %v4826
    %v4828 = vpop.f32.mrf.mxu0
    %v4829 = vadd.f32 %v3910, %v4828
    %v4830 = vpop.f32.mrf.mxu0
    %v4831 = vadd.f32 %v3912, %v4830
    %v4832 = vpop.f32.mrf.mxu0
    %v4833 = vadd.f32 %v3914, %v4832
    %4834 = vmatprep.mubr.bf16.mxu0 %v2832
    %4835 = vmatmul.mubr.bf16.gmra.mxu0 %v2831
    %v4836 = vpop.f32.mrf.mxu0
    %v4837 = vadd.f32 %v3918, %v4836
    %v4838 = vpop.f32.mrf.mxu0
    %v4839 = vadd.f32 %v3920, %v4838
    %v4840 = vpop.f32.mrf.mxu0
    %v4841 = vadd.f32 %v3922, %v4840
    %v4842 = vpop.f32.mrf.mxu0
    %v4843 = vadd.f32 %v3924, %v4842
    %4844 = vmatprep.mubr.bf16.mxu0 %v2836
    %4845 = vmatmul.mubr.bf16.gmra.mxu0 %v2835
    %v4846 = vpop.f32.mrf.mxu0
    %v4847 = vadd.f32 %v3928, %v4846
    %v4848 = vpop.f32.mrf.mxu0
    %v4849 = vadd.f32 %v3930, %v4848
    %v4850 = vpop.f32.mrf.mxu0
    %v4851 = vadd.f32 %v3932, %v4850
    %v4852 = vpop.f32.mrf.mxu0
    %v4853 = vadd.f32 %v3934, %v4852
    %4854 = vmatprep.mubr.bf16.mxu0 %v2840
    %4855 = vmatmul.mubr.bf16.gmra.mxu0 %v2839
    %v4856 = vpop.f32.mrf.mxu0
    %v4857 = vadd.f32 %v3938, %v4856
    %v4858 = vpop.f32.mrf.mxu0
    %v4859 = vadd.f32 %v3940, %v4858
    %v4860 = vpop.f32.mrf.mxu0
    %v4861 = vadd.f32 %v3942, %v4860
    %v4862 = vpop.f32.mrf.mxu0
    %v4863 = vadd.f32 %v3944, %v4862
    %4864 = vmatprep.mubr.bf16.mxu0 %v2844
    %4865 = vmatmul.mubr.bf16.gmra.mxu0 %v2843
    %v4866 = vpop.f32.mrf.mxu0
    %v4867 = vadd.f32 %v3948, %v4866
    %v4868 = vpop.f32.mrf.mxu0
    %v4869 = vadd.f32 %v3950, %v4868
    %v4870 = vpop.f32.mrf.mxu0
    %v4871 = vadd.f32 %v3952, %v4870
    %v4872 = vpop.f32.mrf.mxu0
    %v4873 = vadd.f32 %v3954, %v4872
    %4874 = vmatprep.mubr.bf16.mxu0 %v2848
    %4875 = vmatmul.mubr.bf16.gmra.mxu0 %v2847
    %v4876 = vpop.f32.mrf.mxu0
    %v4877 = vadd.f32 %v3958, %v4876
    %v4878 = vpop.f32.mrf.mxu0
    %v4879 = vadd.f32 %v3960, %v4878
    %v4880 = vpop.f32.mrf.mxu0
    %v4881 = vadd.f32 %v3962, %v4880
    %v4882 = vpop.f32.mrf.mxu0
    %v4883 = vadd.f32 %v3964, %v4882
    %4884 = vdwg.mxu0
    %4885 = vmatprep.subr.bf16.mxu0 %v4629
    %4886 = vmatpush1.bf16.msra.mxu0 %v4628
    %4887 = vmatprep.subr.bf16.mxu0 %v4625
    %4888 = vmatpush1.bf16.msra.mxu0 %v4624
    %4889 = vmatprep.subr.bf16.mxu0 %v4621
    %4890 = vmatpush1.bf16.msra.mxu0 %v4620
    %4891 = vmatprep.subr.bf16.mxu0 %v4617
    %4892 = vmatpush1.bf16.msra.mxu0 %v4616
    %4893 = vmatprep.subr.bf16.mxu0 %v4613
    %4894 = vmatpush1.bf16.msra.mxu0 %v4612
    %4895 = vmatprep.subr.bf16.mxu0 %v4609
    %4896 = vmatpush1.bf16.msra.mxu0 %v4608
    %4897 = vmatprep.subr.bf16.mxu0 %v4605
    %4898 = vmatpush1.bf16.msra.mxu0 %v4604
    %4899 = vmatprep.subr.bf16.mxu0 %v4601
    %4900 = vmatpush1.bf16.msra.mxu0 %v4600
    %4901 = vmatprep.subr.bf16.mxu0 %v4661
    %4902 = vmatpush2.bf16.msra.mxu0 %v4660
    %4903 = vmatprep.subr.bf16.mxu0 %v4657
    %4904 = vmatpush2.bf16.msra.mxu0 %v4656
    %4905 = vmatprep.subr.bf16.mxu0 %v4653
    %4906 = vmatpush2.bf16.msra.mxu0 %v4652
    %4907 = vmatprep.subr.bf16.mxu0 %v4649
    %4908 = vmatpush2.bf16.msra.mxu0 %v4648
    %4909 = vmatprep.subr.bf16.mxu0 %v4645
    %4910 = vmatpush2.bf16.msra.mxu0 %v4644
    %4911 = vmatprep.subr.bf16.mxu0 %v4641
    %4912 = vmatpush2.bf16.msra.mxu0 %v4640
    %4913 = vmatprep.subr.bf16.mxu0 %v4637
    %4914 = vmatpush2.bf16.msra.mxu0 %v4636
    %4915 = vmatprep.subr.bf16.mxu0 %v4633
    %4916 = vmatpush2.bf16.msra.mxu0 %v4632
    %4917 = vmatprep.mubr.bf16.mxu0 %v2830
    %4918 = vmatmul.mubr.bf16.gmra.mxu0 %v2829
    %v4919 = vpop.f32.mrf.mxu0
    %v4920 = vadd.f32 %v4827, %v4919
    %v4921 = vpop.f32.mrf.mxu0
    %v4922 = vadd.f32 %v4829, %v4921
    %v4923 = vpop.f32.mrf.mxu0
    %v4924 = vadd.f32 %v4831, %v4923
    %v4925 = vpop.f32.mrf.mxu0
    %v4926 = vadd.f32 %v4833, %v4925
    %4927 = vmatprep.mubr.bf16.mxu0 %v2834
    %4928 = vmatmul.mubr.bf16.gmra.mxu0 %v2833
    %v4929 = vpop.f32.mrf.mxu0
    %v4930 = vadd.f32 %v4837, %v4929
    %v4931 = vpop.f32.mrf.mxu0
    %v4932 = vadd.f32 %v4839, %v4931
    %v4933 = vpop.f32.mrf.mxu0
    %v4934 = vadd.f32 %v4841, %v4933
    %v4935 = vpop.f32.mrf.mxu0
    %v4936 = vadd.f32 %v4843, %v4935
    %4937 = vmatprep.mubr.bf16.mxu0 %v2838
    %4938 = vmatmul.mubr.bf16.gmra.mxu0 %v2837
    %v4939 = vpop.f32.mrf.mxu0
    %v4940 = vadd.f32 %v4847, %v4939
    %v4941 = vpop.f32.mrf.mxu0
    %v4942 = vadd.f32 %v4849, %v4941
    %v4943 = vpop.f32.mrf.mxu0
    %v4944 = vadd.f32 %v4851, %v4943
    %v4945 = vpop.f32.mrf.mxu0
    %v4946 = vadd.f32 %v4853, %v4945
    %4947 = vmatprep.mubr.bf16.mxu0 %v2842
    %4948 = vmatmul.mubr.bf16.gmra.mxu0 %v2841
    %v4949 = vpop.f32.mrf.mxu0
    %v4950 = vadd.f32 %v4857, %v4949
    %v4951 = vpop.f32.mrf.mxu0
    %v4952 = vadd.f32 %v4859, %v4951
    %v4953 = vpop.f32.mrf.mxu0
    %v4954 = vadd.f32 %v4861, %v4953
    %v4955 = vpop.f32.mrf.mxu0
    %v4956 = vadd.f32 %v4863, %v4955
    %4957 = vmatprep.mubr.bf16.mxu0 %v2846
    %4958 = vmatmul.mubr.bf16.gmra.mxu0 %v2845
    %v4959 = vpop.f32.mrf.mxu0
    %v4960 = vadd.f32 %v4867, %v4959
    %v4961 = vpop.f32.mrf.mxu0
    %v4962 = vadd.f32 %v4869, %v4961
    %v4963 = vpop.f32.mrf.mxu0
    %v4964 = vadd.f32 %v4871, %v4963
    %v4965 = vpop.f32.mrf.mxu0
    %v4966 = vadd.f32 %v4873, %v4965
    %4967 = vmatprep.mubr.bf16.mxu0 %v2850
    %4968 = vmatmul.mubr.bf16.gmra.mxu0 %v2849
    %v4969 = vpop.f32.mrf.mxu0
    %v4970 = vadd.f32 %v4877, %v4969
    %v4971 = vpop.f32.mrf.mxu0
    %v4972 = vadd.f32 %v4879, %v4971
    %v4973 = vpop.f32.mrf.mxu0
    %v4974 = vadd.f32 %v4881, %v4973
    %v4975 = vpop.f32.mrf.mxu0
    %v4976 = vadd.f32 %v4883, %v4975
    %4977 = vdwg.mxu0
    %4978 = vmatprep.subr.bf16.mxu0 %v4567
    %4979 = vmatpush1.bf16.msra.mxu0 %v4566
    %4980 = vmatprep.subr.bf16.mxu0 %v4563
    %4981 = vmatpush1.bf16.msra.mxu0 %v4562
    %4982 = vmatprep.subr.bf16.mxu0 %v4559
    %4983 = vmatpush1.bf16.msra.mxu0 %v4558
    %4984 = vmatprep.subr.bf16.mxu0 %v4555
    %4985 = vmatpush1.bf16.msra.mxu0 %v4554
    %4986 = vmatprep.subr.bf16.mxu0 %v4551
    %4987 = vmatpush1.bf16.msra.mxu0 %v4550
    %4988 = vmatprep.subr.bf16.mxu0 %v4547
    %4989 = vmatpush1.bf16.msra.mxu0 %v4546
    %4990 = vmatprep.subr.bf16.mxu0 %v4543
    %4991 = vmatpush1.bf16.msra.mxu0 %v4542
    %4992 = vmatprep.subr.bf16.mxu0 %v4539
    %4993 = vmatpush1.bf16.msra.mxu0 %v4538
    %4994 = vmatprep.subr.bf16.mxu0 %v4599
    %4995 = vmatpush2.bf16.msra.mxu0 %v4598
    %4996 = vmatprep.subr.bf16.mxu0 %v4595
    %4997 = vmatpush2.bf16.msra.mxu0 %v4594
    %4998 = vmatprep.subr.bf16.mxu0 %v4591
    %4999 = vmatpush2.bf16.msra.mxu0 %v4590
    %5000 = vmatprep.subr.bf16.mxu0 %v4587
    %5001 = vmatpush2.bf16.msra.mxu0 %v4586
    %5002 = vmatprep.subr.bf16.mxu0 %v4583
    %5003 = vmatpush2.bf16.msra.mxu0 %v4582
    %5004 = vmatprep.subr.bf16.mxu0 %v4579
    %5005 = vmatpush2.bf16.msra.mxu0 %v4578
    %5006 = vmatprep.subr.bf16.mxu0 %v4575
    %5007 = vmatpush2.bf16.msra.mxu0 %v4574
    %5008 = vmatprep.subr.bf16.mxu0 %v4571
    %5009 = vmatpush2.bf16.msra.mxu0 %v4570
    %5010 = vmatprep.mubr.bf16.mxu0 %v2828
    %5011 = vmatmul.mubr.bf16.gmra.mxu0 %v2827
    %v5012 = vpop.f32.mrf.mxu0
    %v5013 = vadd.f32 %v4094, %v5012
    %v5014 = vpop.f32.mrf.mxu0
    %v5015 = vadd.f32 %v4096, %v5014
    %v5016 = vpop.f32.mrf.mxu0
    %v5017 = vadd.f32 %v4098, %v5016
    %v5018 = vpop.f32.mrf.mxu0
    %v5019 = vadd.f32 %v4100, %v5018
    %5020 = vmatprep.mubr.bf16.mxu0 %v2832
    %5021 = vmatmul.mubr.bf16.gmra.mxu0 %v2831
    %v5022 = vpop.f32.mrf.mxu0
    %v5023 = vadd.f32 %v4104, %v5022
    %v5024 = vpop.f32.mrf.mxu0
    %v5025 = vadd.f32 %v4106, %v5024
    %v5026 = vpop.f32.mrf.mxu0
    %v5027 = vadd.f32 %v4108, %v5026
    %v5028 = vpop.f32.mrf.mxu0
    %v5029 = vadd.f32 %v4110, %v5028
    %5030 = vmatprep.mubr.bf16.mxu0 %v2836
    %5031 = vmatmul.mubr.bf16.gmra.mxu0 %v2835
    %v5032 = vpop.f32.mrf.mxu0
    %v5033 = vadd.f32 %v4114, %v5032
    %v5034 = vpop.f32.mrf.mxu0
    %v5035 = vadd.f32 %v4116, %v5034
    %v5036 = vpop.f32.mrf.mxu0
    %v5037 = vadd.f32 %v4118, %v5036
    %v5038 = vpop.f32.mrf.mxu0
    %v5039 = vadd.f32 %v4120, %v5038
    %5040 = vmatprep.mubr.bf16.mxu0 %v2840
    %5041 = vmatmul.mubr.bf16.gmra.mxu0 %v2839
    %v5042 = vpop.f32.mrf.mxu0
    %v5043 = vadd.f32 %v4124, %v5042
    %v5044 = vpop.f32.mrf.mxu0
    %v5045 = vadd.f32 %v4126, %v5044
    %v5046 = vpop.f32.mrf.mxu0
    %v5047 = vadd.f32 %v4128, %v5046
    %v5048 = vpop.f32.mrf.mxu0
    %v5049 = vadd.f32 %v4130, %v5048
    %5050 = vmatprep.mubr.bf16.mxu0 %v2844
    %5051 = vmatmul.mubr.bf16.gmra.mxu0 %v2843
    %v5052 = vpop.f32.mrf.mxu0
    %v5053 = vadd.f32 %v4134, %v5052
    %v5054 = vpop.f32.mrf.mxu0
    %v5055 = vadd.f32 %v4136, %v5054
    %v5056 = vpop.f32.mrf.mxu0
    %v5057 = vadd.f32 %v4138, %v5056
    %v5058 = vpop.f32.mrf.mxu0
    %v5059 = vadd.f32 %v4140, %v5058
    %5060 = vmatprep.mubr.bf16.mxu0 %v2848
    %5061 = vmatmul.mubr.bf16.gmra.mxu0 %v2847
    %v5062 = vpop.f32.mrf.mxu0
    %v5063 = vadd.f32 %v4144, %v5062
    %v5064 = vpop.f32.mrf.mxu0
    %v5065 = vadd.f32 %v4146, %v5064
    %v5066 = vpop.f32.mrf.mxu0
    %v5067 = vadd.f32 %v4148, %v5066
    %v5068 = vpop.f32.mrf.mxu0
    %v5069 = vadd.f32 %v4150, %v5068
    %5070 = vdwg.mxu0
    %5071 = vmatprep.subr.bf16.mxu0 %v4631
    %5072 = vmatpush1.bf16.msra.mxu0 %v4630
    %5073 = vmatprep.subr.bf16.mxu0 %v4627
    %5074 = vmatpush1.bf16.msra.mxu0 %v4626
    %5075 = vmatprep.subr.bf16.mxu0 %v4623
    %5076 = vmatpush1.bf16.msra.mxu0 %v4622
    %5077 = vmatprep.subr.bf16.mxu0 %v4619
    %5078 = vmatpush1.bf16.msra.mxu0 %v4618
    %5079 = vmatprep.subr.bf16.mxu0 %v4615
    %5080 = vmatpush1.bf16.msra.mxu0 %v4614
    %5081 = vmatprep.subr.bf16.mxu0 %v4611
    %5082 = vmatpush1.bf16.msra.mxu0 %v4610
    %5083 = vmatprep.subr.bf16.mxu0 %v4607
    %5084 = vmatpush1.bf16.msra.mxu0 %v4606
    %5085 = vmatprep.subr.bf16.mxu0 %v4603
    %5086 = vmatpush1.bf16.msra.mxu0 %v4602
    %5087 = vmatprep.subr.bf16.mxu0 %v4663
    %5088 = vmatpush2.bf16.msra.mxu0 %v4662
    %5089 = vmatprep.subr.bf16.mxu0 %v4659
    %5090 = vmatpush2.bf16.msra.mxu0 %v4658
    %5091 = vmatprep.subr.bf16.mxu0 %v4655
    %5092 = vmatpush2.bf16.msra.mxu0 %v4654
    %5093 = vmatprep.subr.bf16.mxu0 %v4651
    %5094 = vmatpush2.bf16.msra.mxu0 %v4650
    %5095 = vmatprep.subr.bf16.mxu0 %v4647
    %5096 = vmatpush2.bf16.msra.mxu0 %v4646
    %5097 = vmatprep.subr.bf16.mxu0 %v4643
    %5098 = vmatpush2.bf16.msra.mxu0 %v4642
    %5099 = vmatprep.subr.bf16.mxu0 %v4639
    %5100 = vmatpush2.bf16.msra.mxu0 %v4638
    %5101 = vmatprep.subr.bf16.mxu0 %v4635
    %5102 = vmatpush2.bf16.msra.mxu0 %v4634
    %5103 = vmatprep.mubr.bf16.mxu0 %v2830
    %5104 = vmatmul.mubr.bf16.gmra.mxu0 %v2829
    %v5105 = vpop.f32.mrf.mxu0
    %v5106 = vadd.f32 %v5013, %v5105
    %v5107 = vpop.f32.mrf.mxu0
    %v5108 = vadd.f32 %v5015, %v5107
    %v5109 = vpop.f32.mrf.mxu0
    %v5110 = vadd.f32 %v5017, %v5109
    %v5111 = vpop.f32.mrf.mxu0
    %v5112 = vadd.f32 %v5019, %v5111
    %5113 = vmatprep.mubr.bf16.mxu0 %v2834
    %5114 = vmatmul.mubr.bf16.gmra.mxu0 %v2833
    %v5115 = vpop.f32.mrf.mxu0
    %v5116 = vadd.f32 %v5023, %v5115
    %v5117 = vpop.f32.mrf.mxu0
    %v5118 = vadd.f32 %v5025, %v5117
    %v5119 = vpop.f32.mrf.mxu0
    %v5120 = vadd.f32 %v5027, %v5119
    %v5121 = vpop.f32.mrf.mxu0
    %v5122 = vadd.f32 %v5029, %v5121
    %5123 = vmatprep.mubr.bf16.mxu0 %v2838
    %5124 = vmatmul.mubr.bf16.gmra.mxu0 %v2837
    %v5125 = vpop.f32.mrf.mxu0
    %v5126 = vadd.f32 %v5033, %v5125
    %v5127 = vpop.f32.mrf.mxu0
    %v5128 = vadd.f32 %v5035, %v5127
    %v5129 = vpop.f32.mrf.mxu0
    %v5130 = vadd.f32 %v5037, %v5129
    %v5131 = vpop.f32.mrf.mxu0
    %v5132 = vadd.f32 %v5039, %v5131
    %5133 = vmatprep.mubr.bf16.mxu0 %v2842
    %5134 = vmatmul.mubr.bf16.gmra.mxu0 %v2841
    %v5135 = vpop.f32.mrf.mxu0
    %v5136 = vadd.f32 %v5043, %v5135
    %v5137 = vpop.f32.mrf.mxu0
    %v5138 = vadd.f32 %v5045, %v5137
    %v5139 = vpop.f32.mrf.mxu0
    %v5140 = vadd.f32 %v5047, %v5139
    %v5141 = vpop.f32.mrf.mxu0
    %v5142 = vadd.f32 %v5049, %v5141
    %5143 = vmatprep.mubr.bf16.mxu0 %v2846
    %5144 = vmatmul.mubr.bf16.gmra.mxu0 %v2845
    %v5145 = vpop.f32.mrf.mxu0
    %v5146 = vadd.f32 %v5053, %v5145
    %v5147 = vpop.f32.mrf.mxu0
    %v5148 = vadd.f32 %v5055, %v5147
    %v5149 = vpop.f32.mrf.mxu0
    %v5150 = vadd.f32 %v5057, %v5149
    %v5151 = vpop.f32.mrf.mxu0
    %v5152 = vadd.f32 %v5059, %v5151
    %5153 = vmatprep.mubr.bf16.mxu0 %v2850
    %5154 = vmatmul.mubr.bf16.gmra.mxu0 %v2849
    %v5155 = vpop.f32.mrf.mxu0
    %v5156 = vadd.f32 %v5063, %v5155
    %v5157 = vpop.f32.mrf.mxu0
    %v5158 = vadd.f32 %v5065, %v5157
    %v5159 = vpop.f32.mrf.mxu0
    %v5160 = vadd.f32 %v5067, %v5159
    %v5161 = vpop.f32.mrf.mxu0
    %v5162 = vadd.f32 %v5069, %v5161
    %5163 = vdwg.mxu0
    %s5164 = scalar_lea.vmem [#allocation6], 2048
    %v5165 = vld [vmem:[%s5164] sm:$0xff]
    %v5166 = vld [vmem:[%s5164 + $0x8] sm:$0xff]
    %v5167 = vld [vmem:[%s5164 + $0x10] sm:$0xff]
    %v5168 = vld [vmem:[%s5164 + $0x18] sm:$0xff]
    %v5169 = vld [vmem:[%s5164 + $0x20] sm:$0xff]
    %v5170 = vld [vmem:[%s5164 + $0x28] sm:$0xff]
    %v5171 = vld [vmem:[%s5164 + $0x30] sm:$0xff]
    %v5172 = vld [vmem:[%s5164 + $0x38] sm:$0xff]
    %v5173 = vld [vmem:[%s5164 + $0x40] sm:$0xff]
    %v5174 = vld [vmem:[%s5164 + $0x48] sm:$0xff]
    %v5175 = vld [vmem:[%s5164 + $0x50] sm:$0xff]
    %v5176 = vld [vmem:[%s5164 + $0x58] sm:$0xff]
    %v5177 = vld [vmem:[%s5164 + $0x60] sm:$0xff]
    %v5178 = vld [vmem:[%s5164 + $0x68] sm:$0xff]
    %v5179 = vld [vmem:[%s5164 + $0x70] sm:$0xff]
    %v5180 = vld [vmem:[%s5164 + $0x78] sm:$0xff]
    %v5181 = vld [vmem:[%s5164 + $0x80] sm:$0xff]
    %v5182 = vld [vmem:[%s5164 + $0x88] sm:$0xff]
    %v5183 = vld [vmem:[%s5164 + $0x90] sm:$0xff]
    %v5184 = vld [vmem:[%s5164 + $0x98] sm:$0xff]
    %v5185 = vld [vmem:[%s5164 + $0xa0] sm:$0xff]
    %v5186 = vld [vmem:[%s5164 + $0xa8] sm:$0xff]
    %v5187 = vld [vmem:[%s5164 + $0xb0] sm:$0xff]
    %v5188 = vld [vmem:[%s5164 + $0xb8] sm:$0xff]
    %v5189 = vld [vmem:[%s5164 + $0xc0] sm:$0xff]
    %v5190 = vld [vmem:[%s5164 + $0xc8] sm:$0xff]
    %v5191 = vld [vmem:[%s5164 + $0xd0] sm:$0xff]
    %v5192 = vld [vmem:[%s5164 + $0xd8] sm:$0xff]
    %v5193 = vld [vmem:[%s5164 + $0xe0] sm:$0xff]
    %v5194 = vld [vmem:[%s5164 + $0xe8] sm:$0xff]
    %v5195 = vld [vmem:[%s5164 + $0xf0] sm:$0xff]
    %v5196 = vld [vmem:[%s5164 + $0xf8] sm:$0xff]
    %v5197 = vld [vmem:[%s5164 + $0x100] sm:$0xff]
    %v5198 = vld [vmem:[%s5164 + $0x108] sm:$0xff]
    %v5199 = vld [vmem:[%s5164 + $0x110] sm:$0xff]
    %v5200 = vld [vmem:[%s5164 + $0x118] sm:$0xff]
    %v5201 = vld [vmem:[%s5164 + $0x120] sm:$0xff]
    %v5202 = vld [vmem:[%s5164 + $0x128] sm:$0xff]
    %v5203 = vld [vmem:[%s5164 + $0x130] sm:$0xff]
    %v5204 = vld [vmem:[%s5164 + $0x138] sm:$0xff]
    %v5205 = vld [vmem:[%s5164 + $0x140] sm:$0xff]
    %v5206 = vld [vmem:[%s5164 + $0x148] sm:$0xff]
    %v5207 = vld [vmem:[%s5164 + $0x150] sm:$0xff]
    %v5208 = vld [vmem:[%s5164 + $0x158] sm:$0xff]
    %v5209 = vld [vmem:[%s5164 + $0x160] sm:$0xff]
    %v5210 = vld [vmem:[%s5164 + $0x168] sm:$0xff]
    %v5211 = vld [vmem:[%s5164 + $0x170] sm:$0xff]
    %v5212 = vld [vmem:[%s5164 + $0x178] sm:$0xff]
    %v5213 = vld [vmem:[%s5164 + $0x180] sm:$0xff]
    %v5214 = vld [vmem:[%s5164 + $0x188] sm:$0xff]
    %v5215 = vld [vmem:[%s5164 + $0x190] sm:$0xff]
    %v5216 = vld [vmem:[%s5164 + $0x198] sm:$0xff]
    %v5217 = vld [vmem:[%s5164 + $0x1a0] sm:$0xff]
    %v5218 = vld [vmem:[%s5164 + $0x1a8] sm:$0xff]
    %v5219 = vld [vmem:[%s5164 + $0x1b0] sm:$0xff]
    %v5220 = vld [vmem:[%s5164 + $0x1b8] sm:$0xff]
    %v5221 = vld [vmem:[%s5164 + $0x1c0] sm:$0xff]
    %v5222 = vld [vmem:[%s5164 + $0x1c8] sm:$0xff]
    %v5223 = vld [vmem:[%s5164 + $0x1d0] sm:$0xff]
    %v5224 = vld [vmem:[%s5164 + $0x1d8] sm:$0xff]
    %v5225 = vld [vmem:[%s5164 + $0x1e0] sm:$0xff]
    %v5226 = vld [vmem:[%s5164 + $0x1e8] sm:$0xff]
    %v5227 = vld [vmem:[%s5164 + $0x1f0] sm:$0xff]
    %v5228 = vld [vmem:[%s5164 + $0x1f8] sm:$0xff]
    %v5229 = vld [vmem:[%s5164 + $0x200] sm:$0xff]
    %v5230 = vld [vmem:[%s5164 + $0x208] sm:$0xff]
    %v5231 = vld [vmem:[%s5164 + $0x210] sm:$0xff]
    %v5232 = vld [vmem:[%s5164 + $0x218] sm:$0xff]
    %v5233 = vld [vmem:[%s5164 + $0x220] sm:$0xff]
    %v5234 = vld [vmem:[%s5164 + $0x228] sm:$0xff]
    %v5235 = vld [vmem:[%s5164 + $0x230] sm:$0xff]
    %v5236 = vld [vmem:[%s5164 + $0x238] sm:$0xff]
    %v5237 = vld [vmem:[%s5164 + $0x240] sm:$0xff]
    %v5238 = vld [vmem:[%s5164 + $0x248] sm:$0xff]
    %v5239 = vld [vmem:[%s5164 + $0x250] sm:$0xff]
    %v5240 = vld [vmem:[%s5164 + $0x258] sm:$0xff]
    %v5241 = vld [vmem:[%s5164 + $0x260] sm:$0xff]
    %v5242 = vld [vmem:[%s5164 + $0x268] sm:$0xff]
    %v5243 = vld [vmem:[%s5164 + $0x270] sm:$0xff]
    %v5244 = vld [vmem:[%s5164 + $0x278] sm:$0xff]
    %v5245 = vld [vmem:[%s5164 + $0x280] sm:$0xff]
    %v5246 = vld [vmem:[%s5164 + $0x288] sm:$0xff]
    %v5247 = vld [vmem:[%s5164 + $0x290] sm:$0xff]
    %v5248 = vld [vmem:[%s5164 + $0x298] sm:$0xff]
    %v5249 = vld [vmem:[%s5164 + $0x2a0] sm:$0xff]
    %v5250 = vld [vmem:[%s5164 + $0x2a8] sm:$0xff]
    %v5251 = vld [vmem:[%s5164 + $0x2b0] sm:$0xff]
    %v5252 = vld [vmem:[%s5164 + $0x2b8] sm:$0xff]
    %v5253 = vld [vmem:[%s5164 + $0x2c0] sm:$0xff]
    %v5254 = vld [vmem:[%s5164 + $0x2c8] sm:$0xff]
    %v5255 = vld [vmem:[%s5164 + $0x2d0] sm:$0xff]
    %v5256 = vld [vmem:[%s5164 + $0x2d8] sm:$0xff]
    %v5257 = vld [vmem:[%s5164 + $0x2e0] sm:$0xff]
    %v5258 = vld [vmem:[%s5164 + $0x2e8] sm:$0xff]
    %v5259 = vld [vmem:[%s5164 + $0x2f0] sm:$0xff]
    %v5260 = vld [vmem:[%s5164 + $0x2f8] sm:$0xff]
    %v5261 = vld [vmem:[%s5164 + $0x300] sm:$0xff]
    %v5262 = vld [vmem:[%s5164 + $0x308] sm:$0xff]
    %v5263 = vld [vmem:[%s5164 + $0x310] sm:$0xff]
    %v5264 = vld [vmem:[%s5164 + $0x318] sm:$0xff]
    %v5265 = vld [vmem:[%s5164 + $0x320] sm:$0xff]
    %v5266 = vld [vmem:[%s5164 + $0x328] sm:$0xff]
    %v5267 = vld [vmem:[%s5164 + $0x330] sm:$0xff]
    %v5268 = vld [vmem:[%s5164 + $0x338] sm:$0xff]
    %v5269 = vld [vmem:[%s5164 + $0x340] sm:$0xff]
    %v5270 = vld [vmem:[%s5164 + $0x348] sm:$0xff]
    %v5271 = vld [vmem:[%s5164 + $0x350] sm:$0xff]
    %v5272 = vld [vmem:[%s5164 + $0x358] sm:$0xff]
    %v5273 = vld [vmem:[%s5164 + $0x360] sm:$0xff]
    %v5274 = vld [vmem:[%s5164 + $0x368] sm:$0xff]
    %v5275 = vld [vmem:[%s5164 + $0x370] sm:$0xff]
    %v5276 = vld [vmem:[%s5164 + $0x378] sm:$0xff]
    %v5277 = vld [vmem:[%s5164 + $0x380] sm:$0xff]
    %v5278 = vld [vmem:[%s5164 + $0x388] sm:$0xff]
    %v5279 = vld [vmem:[%s5164 + $0x390] sm:$0xff]
    %v5280 = vld [vmem:[%s5164 + $0x398] sm:$0xff]
    %v5281 = vld [vmem:[%s5164 + $0x3a0] sm:$0xff]
    %v5282 = vld [vmem:[%s5164 + $0x3a8] sm:$0xff]
    %v5283 = vld [vmem:[%s5164 + $0x3b0] sm:$0xff]
    %v5284 = vld [vmem:[%s5164 + $0x3b8] sm:$0xff]
    %v5285 = vld [vmem:[%s5164 + $0x3c0] sm:$0xff]
    %v5286 = vld [vmem:[%s5164 + $0x3c8] sm:$0xff]
    %v5287 = vld [vmem:[%s5164 + $0x3d0] sm:$0xff]
    %v5288 = vld [vmem:[%s5164 + $0x3d8] sm:$0xff]
    %v5289 = vld [vmem:[%s5164 + $0x3e0] sm:$0xff]
    %v5290 = vld [vmem:[%s5164 + $0x3e8] sm:$0xff]
    %v5291 = vld [vmem:[%s5164 + $0x3f0] sm:$0xff]
    %v5292 = vld [vmem:[%s5164 + $0x3f8] sm:$0xff]
    %v5421 = vunpack.c.l.b16 %v5165
    %v5422 = vunpack.c.h.b16 %v5165
    %v5423 = vunpack.c.l.b16 %v5166
    %v5424 = vunpack.c.h.b16 %v5166
    %v5425 = vunpack.c.l.b16 %v5167
    %v5426 = vunpack.c.h.b16 %v5167
    %v5427 = vunpack.c.l.b16 %v5168
    %v5428 = vunpack.c.h.b16 %v5168
    %v5429 = vunpack.c.l.b16 %v5169
    %v5430 = vunpack.c.h.b16 %v5169
    %v5431 = vunpack.c.l.b16 %v5170
    %v5432 = vunpack.c.h.b16 %v5170
    %v5433 = vunpack.c.l.b16 %v5171
    %v5434 = vunpack.c.h.b16 %v5171
    %v5435 = vunpack.c.l.b16 %v5172
    %v5436 = vunpack.c.h.b16 %v5172
    %v5437 = vunpack.c.l.b16 %v5173
    %v5438 = vunpack.c.h.b16 %v5173
    %v5439 = vunpack.c.l.b16 %v5174
    %v5440 = vunpack.c.h.b16 %v5174
    %v5441 = vunpack.c.l.b16 %v5175
    %v5442 = vunpack.c.h.b16 %v5175
    %v5443 = vunpack.c.l.b16 %v5176
    %v5444 = vunpack.c.h.b16 %v5176
    %v5445 = vunpack.c.l.b16 %v5177
    %v5446 = vunpack.c.h.b16 %v5177
    %v5447 = vunpack.c.l.b16 %v5178
    %v5448 = vunpack.c.h.b16 %v5178
    %v5449 = vunpack.c.l.b16 %v5179
    %v5450 = vunpack.c.h.b16 %v5179
    %v5451 = vunpack.c.l.b16 %v5180
    %v5452 = vunpack.c.h.b16 %v5180
    %v5453 = vunpack.c.l.b16 %v5181
    %v5454 = vunpack.c.h.b16 %v5181
    %v5455 = vunpack.c.l.b16 %v5182
    %v5456 = vunpack.c.h.b16 %v5182
    %v5457 = vunpack.c.l.b16 %v5183
    %v5458 = vunpack.c.h.b16 %v5183
    %v5459 = vunpack.c.l.b16 %v5184
    %v5460 = vunpack.c.h.b16 %v5184
    %v5461 = vunpack.c.l.b16 %v5185
    %v5462 = vunpack.c.h.b16 %v5185
    %v5463 = vunpack.c.l.b16 %v5186
    %v5464 = vunpack.c.h.b16 %v5186
    %v5465 = vunpack.c.l.b16 %v5187
    %v5466 = vunpack.c.h.b16 %v5187
    %v5467 = vunpack.c.l.b16 %v5188
    %v5468 = vunpack.c.h.b16 %v5188
    %v5469 = vunpack.c.l.b16 %v5189
    %v5470 = vunpack.c.h.b16 %v5189
    %v5471 = vunpack.c.l.b16 %v5190
    %v5472 = vunpack.c.h.b16 %v5190
    %v5473 = vunpack.c.l.b16 %v5191
    %v5474 = vunpack.c.h.b16 %v5191
    %v5475 = vunpack.c.l.b16 %v5192
    %v5476 = vunpack.c.h.b16 %v5192
    %v5477 = vunpack.c.l.b16 %v5193
    %v5478 = vunpack.c.h.b16 %v5193
    %v5479 = vunpack.c.l.b16 %v5194
    %v5480 = vunpack.c.h.b16 %v5194
    %v5481 = vunpack.c.l.b16 %v5195
    %v5482 = vunpack.c.h.b16 %v5195
    %v5483 = vunpack.c.l.b16 %v5196
    %v5484 = vunpack.c.h.b16 %v5196
    %v5485 = vunpack.c.l.b16 %v5197
    %v5486 = vunpack.c.h.b16 %v5197
    %v5487 = vunpack.c.l.b16 %v5198
    %v5488 = vunpack.c.h.b16 %v5198
    %v5489 = vunpack.c.l.b16 %v5199
    %v5490 = vunpack.c.h.b16 %v5199
    %v5491 = vunpack.c.l.b16 %v5200
    %v5492 = vunpack.c.h.b16 %v5200
    %v5493 = vunpack.c.l.b16 %v5201
    %v5494 = vunpack.c.h.b16 %v5201
    %v5495 = vunpack.c.l.b16 %v5202
    %v5496 = vunpack.c.h.b16 %v5202
    %v5497 = vunpack.c.l.b16 %v5203
    %v5498 = vunpack.c.h.b16 %v5203
    %v5499 = vunpack.c.l.b16 %v5204
    %v5500 = vunpack.c.h.b16 %v5204
    %v5501 = vunpack.c.l.b16 %v5205
    %v5502 = vunpack.c.h.b16 %v5205
    %v5503 = vunpack.c.l.b16 %v5206
    %v5504 = vunpack.c.h.b16 %v5206
    %v5505 = vunpack.c.l.b16 %v5207
    %v5506 = vunpack.c.h.b16 %v5207
    %v5507 = vunpack.c.l.b16 %v5208
    %v5508 = vunpack.c.h.b16 %v5208
    %v5509 = vunpack.c.l.b16 %v5209
    %v5510 = vunpack.c.h.b16 %v5209
    %v5511 = vunpack.c.l.b16 %v5210
    %v5512 = vunpack.c.h.b16 %v5210
    %v5513 = vunpack.c.l.b16 %v5211
    %v5514 = vunpack.c.h.b16 %v5211
    %v5515 = vunpack.c.l.b16 %v5212
    %v5516 = vunpack.c.h.b16 %v5212
    %v5517 = vunpack.c.l.b16 %v5213
    %v5518 = vunpack.c.h.b16 %v5213
    %v5519 = vunpack.c.l.b16 %v5214
    %v5520 = vunpack.c.h.b16 %v5214
    %v5521 = vunpack.c.l.b16 %v5215
    %v5522 = vunpack.c.h.b16 %v5215
    %v5523 = vunpack.c.l.b16 %v5216
    %v5524 = vunpack.c.h.b16 %v5216
    %v5525 = vunpack.c.l.b16 %v5217
    %v5526 = vunpack.c.h.b16 %v5217
    %v5527 = vunpack.c.l.b16 %v5218
    %v5528 = vunpack.c.h.b16 %v5218
    %v5529 = vunpack.c.l.b16 %v5219
    %v5530 = vunpack.c.h.b16 %v5219
    %v5531 = vunpack.c.l.b16 %v5220
    %v5532 = vunpack.c.h.b16 %v5220
    %v5533 = vunpack.c.l.b16 %v5221
    %v5534 = vunpack.c.h.b16 %v5221
    %v5535 = vunpack.c.l.b16 %v5222
    %v5536 = vunpack.c.h.b16 %v5222
    %v5537 = vunpack.c.l.b16 %v5223
    %v5538 = vunpack.c.h.b16 %v5223
    %v5539 = vunpack.c.l.b16 %v5224
    %v5540 = vunpack.c.h.b16 %v5224
    %v5541 = vunpack.c.l.b16 %v5225
    %v5542 = vunpack.c.h.b16 %v5225
    %v5543 = vunpack.c.l.b16 %v5226
    %v5544 = vunpack.c.h.b16 %v5226
    %v5545 = vunpack.c.l.b16 %v5227
    %v5546 = vunpack.c.h.b16 %v5227
    %v5547 = vunpack.c.l.b16 %v5228
    %v5548 = vunpack.c.h.b16 %v5228
    %v5549 = vunpack.c.l.b16 %v5229
    %v5550 = vunpack.c.h.b16 %v5229
    %v5551 = vunpack.c.l.b16 %v5230
    %v5552 = vunpack.c.h.b16 %v5230
    %v5553 = vunpack.c.l.b16 %v5231
    %v5554 = vunpack.c.h.b16 %v5231
    %v5555 = vunpack.c.l.b16 %v5232
    %v5556 = vunpack.c.h.b16 %v5232
    %v5557 = vunpack.c.l.b16 %v5233
    %v5558 = vunpack.c.h.b16 %v5233
    %v5559 = vunpack.c.l.b16 %v5234
    %v5560 = vunpack.c.h.b16 %v5234
    %v5561 = vunpack.c.l.b16 %v5235
    %v5562 = vunpack.c.h.b16 %v5235
    %v5563 = vunpack.c.l.b16 %v5236
    %v5564 = vunpack.c.h.b16 %v5236
    %v5565 = vunpack.c.l.b16 %v5237
    %v5566 = vunpack.c.h.b16 %v5237
    %v5567 = vunpack.c.l.b16 %v5238
    %v5568 = vunpack.c.h.b16 %v5238
    %v5569 = vunpack.c.l.b16 %v5239
    %v5570 = vunpack.c.h.b16 %v5239
    %v5571 = vunpack.c.l.b16 %v5240
    %v5572 = vunpack.c.h.b16 %v5240
    %v5573 = vunpack.c.l.b16 %v5241
    %v5574 = vunpack.c.h.b16 %v5241
    %v5575 = vunpack.c.l.b16 %v5242
    %v5576 = vunpack.c.h.b16 %v5242
    %v5577 = vunpack.c.l.b16 %v5243
    %v5578 = vunpack.c.h.b16 %v5243
    %v5579 = vunpack.c.l.b16 %v5244
    %v5580 = vunpack.c.h.b16 %v5244
    %v5581 = vunpack.c.l.b16 %v5245
    %v5582 = vunpack.c.h.b16 %v5245
    %v5583 = vunpack.c.l.b16 %v5246
    %v5584 = vunpack.c.h.b16 %v5246
    %v5585 = vunpack.c.l.b16 %v5247
    %v5586 = vunpack.c.h.b16 %v5247
    %v5587 = vunpack.c.l.b16 %v5248
    %v5588 = vunpack.c.h.b16 %v5248
    %v5589 = vunpack.c.l.b16 %v5249
    %v5590 = vunpack.c.h.b16 %v5249
    %v5591 = vunpack.c.l.b16 %v5250
    %v5592 = vunpack.c.h.b16 %v5250
    %v5593 = vunpack.c.l.b16 %v5251
    %v5594 = vunpack.c.h.b16 %v5251
    %v5595 = vunpack.c.l.b16 %v5252
    %v5596 = vunpack.c.h.b16 %v5252
    %v5597 = vunpack.c.l.b16 %v5253
    %v5598 = vunpack.c.h.b16 %v5253
    %v5599 = vunpack.c.l.b16 %v5254
    %v5600 = vunpack.c.h.b16 %v5254
    %v5601 = vunpack.c.l.b16 %v5255
    %v5602 = vunpack.c.h.b16 %v5255
    %v5603 = vunpack.c.l.b16 %v5256
    %v5604 = vunpack.c.h.b16 %v5256
    %v5605 = vunpack.c.l.b16 %v5257
    %v5606 = vunpack.c.h.b16 %v5257
    %v5607 = vunpack.c.l.b16 %v5258
    %v5608 = vunpack.c.h.b16 %v5258
    %v5609 = vunpack.c.l.b16 %v5259
    %v5610 = vunpack.c.h.b16 %v5259
    %v5611 = vunpack.c.l.b16 %v5260
    %v5612 = vunpack.c.h.b16 %v5260
    %v5613 = vunpack.c.l.b16 %v5261
    %v5614 = vunpack.c.h.b16 %v5261
    %v5615 = vunpack.c.l.b16 %v5262
    %v5616 = vunpack.c.h.b16 %v5262
    %v5617 = vunpack.c.l.b16 %v5263
    %v5618 = vunpack.c.h.b16 %v5263
    %v5619 = vunpack.c.l.b16 %v5264
    %v5620 = vunpack.c.h.b16 %v5264
    %v5621 = vunpack.c.l.b16 %v5265
    %v5622 = vunpack.c.h.b16 %v5265
    %v5623 = vunpack.c.l.b16 %v5266
    %v5624 = vunpack.c.h.b16 %v5266
    %v5625 = vunpack.c.l.b16 %v5267
    %v5626 = vunpack.c.h.b16 %v5267
    %v5627 = vunpack.c.l.b16 %v5268
    %v5628 = vunpack.c.h.b16 %v5268
    %v5629 = vunpack.c.l.b16 %v5269
    %v5630 = vunpack.c.h.b16 %v5269
    %v5631 = vunpack.c.l.b16 %v5270
    %v5632 = vunpack.c.h.b16 %v5270
    %v5633 = vunpack.c.l.b16 %v5271
    %v5634 = vunpack.c.h.b16 %v5271
    %v5635 = vunpack.c.l.b16 %v5272
    %v5636 = vunpack.c.h.b16 %v5272
    %v5637 = vunpack.c.l.b16 %v5273
    %v5638 = vunpack.c.h.b16 %v5273
    %v5639 = vunpack.c.l.b16 %v5274
    %v5640 = vunpack.c.h.b16 %v5274
    %v5641 = vunpack.c.l.b16 %v5275
    %v5642 = vunpack.c.h.b16 %v5275
    %v5643 = vunpack.c.l.b16 %v5276
    %v5644 = vunpack.c.h.b16 %v5276
    %v5645 = vunpack.c.l.b16 %v5277
    %v5646 = vunpack.c.h.b16 %v5277
    %v5647 = vunpack.c.l.b16 %v5278
    %v5648 = vunpack.c.h.b16 %v5278
    %v5649 = vunpack.c.l.b16 %v5279
    %v5650 = vunpack.c.h.b16 %v5279
    %v5651 = vunpack.c.l.b16 %v5280
    %v5652 = vunpack.c.h.b16 %v5280
    %v5653 = vunpack.c.l.b16 %v5281
    %v5654 = vunpack.c.h.b16 %v5281
    %v5655 = vunpack.c.l.b16 %v5282
    %v5656 = vunpack.c.h.b16 %v5282
    %v5657 = vunpack.c.l.b16 %v5283
    %v5658 = vunpack.c.h.b16 %v5283
    %v5659 = vunpack.c.l.b16 %v5284
    %v5660 = vunpack.c.h.b16 %v5284
    %v5661 = vunpack.c.l.b16 %v5285
    %v5662 = vunpack.c.h.b16 %v5285
    %v5663 = vunpack.c.l.b16 %v5286
    %v5664 = vunpack.c.h.b16 %v5286
    %v5665 = vunpack.c.l.b16 %v5287
    %v5666 = vunpack.c.h.b16 %v5287
    %v5667 = vunpack.c.l.b16 %v5288
    %v5668 = vunpack.c.h.b16 %v5288
    %v5669 = vunpack.c.l.b16 %v5289
    %v5670 = vunpack.c.h.b16 %v5289
    %v5671 = vunpack.c.l.b16 %v5290
    %v5672 = vunpack.c.h.b16 %v5290
    %v5673 = vunpack.c.l.b16 %v5291
    %v5674 = vunpack.c.h.b16 %v5291
    %v5675 = vunpack.c.l.b16 %v5292
    %v5676 = vunpack.c.h.b16 %v5292
    %v5677 = vpack.c.b16 %v5425, %v5421
    %v5678 = vpack.c.b16 %v5426, %v5422
    %v5679 = vpack.c.b16 %v5427, %v5423
    %v5680 = vpack.c.b16 %v5428, %v5424
    %v5681 = vpack.c.b16 %v5433, %v5429
    %v5682 = vpack.c.b16 %v5434, %v5430
    %v5683 = vpack.c.b16 %v5435, %v5431
    %v5684 = vpack.c.b16 %v5436, %v5432
    %v5685 = vpack.c.b16 %v5441, %v5437
    %v5686 = vpack.c.b16 %v5442, %v5438
    %v5687 = vpack.c.b16 %v5443, %v5439
    %v5688 = vpack.c.b16 %v5444, %v5440
    %v5689 = vpack.c.b16 %v5449, %v5445
    %v5690 = vpack.c.b16 %v5450, %v5446
    %v5691 = vpack.c.b16 %v5451, %v5447
    %v5692 = vpack.c.b16 %v5452, %v5448
    %v5693 = vpack.c.b16 %v5457, %v5453
    %v5694 = vpack.c.b16 %v5458, %v5454
    %v5695 = vpack.c.b16 %v5459, %v5455
    %v5696 = vpack.c.b16 %v5460, %v5456
    %v5697 = vpack.c.b16 %v5465, %v5461
    %v5698 = vpack.c.b16 %v5466, %v5462
    %v5699 = vpack.c.b16 %v5467, %v5463
    %v5700 = vpack.c.b16 %v5468, %v5464
    %v5701 = vpack.c.b16 %v5473, %v5469
    %v5702 = vpack.c.b16 %v5474, %v5470
    %v5703 = vpack.c.b16 %v5475, %v5471
    %v5704 = vpack.c.b16 %v5476, %v5472
    %v5705 = vpack.c.b16 %v5481, %v5477
    %v5706 = vpack.c.b16 %v5482, %v5478
    %v5707 = vpack.c.b16 %v5483, %v5479
    %v5708 = vpack.c.b16 %v5484, %v5480
    %v5709 = vpack.c.b16 %v5489, %v5485
    %v5710 = vpack.c.b16 %v5490, %v5486
    %v5711 = vpack.c.b16 %v5491, %v5487
    %v5712 = vpack.c.b16 %v5492, %v5488
    %v5713 = vpack.c.b16 %v5497, %v5493
    %v5714 = vpack.c.b16 %v5498, %v5494
    %v5715 = vpack.c.b16 %v5499, %v5495
    %v5716 = vpack.c.b16 %v5500, %v5496
    %v5717 = vpack.c.b16 %v5505, %v5501
    %v5718 = vpack.c.b16 %v5506, %v5502
    %v5719 = vpack.c.b16 %v5507, %v5503
    %v5720 = vpack.c.b16 %v5508, %v5504
    %v5721 = vpack.c.b16 %v5513, %v5509
    %v5722 = vpack.c.b16 %v5514, %v5510
    %v5723 = vpack.c.b16 %v5515, %v5511
    %v5724 = vpack.c.b16 %v5516, %v5512
    %v5725 = vpack.c.b16 %v5521, %v5517
    %v5726 = vpack.c.b16 %v5522, %v5518
    %v5727 = vpack.c.b16 %v5523, %v5519
    %v5728 = vpack.c.b16 %v5524, %v5520
    %v5729 = vpack.c.b16 %v5529, %v5525
    %v5730 = vpack.c.b16 %v5530, %v5526
    %v5731 = vpack.c.b16 %v5531, %v5527
    %v5732 = vpack.c.b16 %v5532, %v5528
    %v5733 = vpack.c.b16 %v5537, %v5533
    %v5734 = vpack.c.b16 %v5538, %v5534
    %v5735 = vpack.c.b16 %v5539, %v5535
    %v5736 = vpack.c.b16 %v5540, %v5536
    %v5737 = vpack.c.b16 %v5545, %v5541
    %v5738 = vpack.c.b16 %v5546, %v5542
    %v5739 = vpack.c.b16 %v5547, %v5543
    %v5740 = vpack.c.b16 %v5548, %v5544
    %v5741 = vpack.c.b16 %v5553, %v5549
    %v5742 = vpack.c.b16 %v5554, %v5550
    %v5743 = vpack.c.b16 %v5555, %v5551
    %v5744 = vpack.c.b16 %v5556, %v5552
    %v5745 = vpack.c.b16 %v5561, %v5557
    %v5746 = vpack.c.b16 %v5562, %v5558
    %v5747 = vpack.c.b16 %v5563, %v5559
    %v5748 = vpack.c.b16 %v5564, %v5560
    %v5749 = vpack.c.b16 %v5569, %v5565
    %v5750 = vpack.c.b16 %v5570, %v5566
    %v5751 = vpack.c.b16 %v5571, %v5567
    %v5752 = vpack.c.b16 %v5572, %v5568
    %v5753 = vpack.c.b16 %v5577, %v5573
    %v5754 = vpack.c.b16 %v5578, %v5574
    %v5755 = vpack.c.b16 %v5579, %v5575
    %v5756 = vpack.c.b16 %v5580, %v5576
    %v5757 = vpack.c.b16 %v5585, %v5581
    %v5758 = vpack.c.b16 %v5586, %v5582
    %v5759 = vpack.c.b16 %v5587, %v5583
    %v5760 = vpack.c.b16 %v5588, %v5584
    %v5761 = vpack.c.b16 %v5593, %v5589
    %v5762 = vpack.c.b16 %v5594, %v5590
    %v5763 = vpack.c.b16 %v5595, %v5591
    %v5764 = vpack.c.b16 %v5596, %v5592
    %v5765 = vpack.c.b16 %v5601, %v5597
    %v5766 = vpack.c.b16 %v5602, %v5598
    %v5767 = vpack.c.b16 %v5603, %v5599
    %v5768 = vpack.c.b16 %v5604, %v5600
    %v5769 = vpack.c.b16 %v5609, %v5605
    %v5770 = vpack.c.b16 %v5610, %v5606
    %v5771 = vpack.c.b16 %v5611, %v5607
    %v5772 = vpack.c.b16 %v5612, %v5608
    %v5773 = vpack.c.b16 %v5617, %v5613
    %v5774 = vpack.c.b16 %v5618, %v5614
    %v5775 = vpack.c.b16 %v5619, %v5615
    %v5776 = vpack.c.b16 %v5620, %v5616
    %v5777 = vpack.c.b16 %v5625, %v5621
    %v5778 = vpack.c.b16 %v5626, %v5622
    %v5779 = vpack.c.b16 %v5627, %v5623
    %v5780 = vpack.c.b16 %v5628, %v5624
    %v5781 = vpack.c.b16 %v5633, %v5629
    %v5782 = vpack.c.b16 %v5634, %v5630
    %v5783 = vpack.c.b16 %v5635, %v5631
    %v5784 = vpack.c.b16 %v5636, %v5632
    %v5785 = vpack.c.b16 %v5641, %v5637
    %v5786 = vpack.c.b16 %v5642, %v5638
    %v5787 = vpack.c.b16 %v5643, %v5639
    %v5788 = vpack.c.b16 %v5644, %v5640
    %v5789 = vpack.c.b16 %v5649, %v5645
    %v5790 = vpack.c.b16 %v5650, %v5646
    %v5791 = vpack.c.b16 %v5651, %v5647
    %v5792 = vpack.c.b16 %v5652, %v5648
    %v5793 = vpack.c.b16 %v5657, %v5653
    %v5794 = vpack.c.b16 %v5658, %v5654
    %v5795 = vpack.c.b16 %v5659, %v5655
    %v5796 = vpack.c.b16 %v5660, %v5656
    %v5797 = vpack.c.b16 %v5665, %v5661
    %v5798 = vpack.c.b16 %v5666, %v5662
    %v5799 = vpack.c.b16 %v5667, %v5663
    %v5800 = vpack.c.b16 %v5668, %v5664
    %v5801 = vpack.c.b16 %v5673, %v5669
    %v5802 = vpack.c.b16 %v5674, %v5670
    %v5803 = vpack.c.b16 %v5675, %v5671
    %v5804 = vpack.c.b16 %v5676, %v5672
    %5933 = vmatprep.subr.bf16.mxu0 %v5706
    %5934 = vmatpush1.bf16.msra.mxu0 %v5705
    %5935 = vmatprep.subr.bf16.mxu0 %v5702
    %5936 = vmatpush1.bf16.msra.mxu0 %v5701
    %5937 = vmatprep.subr.bf16.mxu0 %v5698
    %5938 = vmatpush1.bf16.msra.mxu0 %v5697
    %5939 = vmatprep.subr.bf16.mxu0 %v5694
    %5940 = vmatpush1.bf16.msra.mxu0 %v5693
    %5941 = vmatprep.subr.bf16.mxu0 %v5690
    %5942 = vmatpush1.bf16.msra.mxu0 %v5689
    %5943 = vmatprep.subr.bf16.mxu0 %v5686
    %5944 = vmatpush1.bf16.msra.mxu0 %v5685
    %5945 = vmatprep.subr.bf16.mxu0 %v5682
    %5946 = vmatpush1.bf16.msra.mxu0 %v5681
    %5947 = vmatprep.subr.bf16.mxu0 %v5678
    %5948 = vmatpush1.bf16.msra.mxu0 %v5677
    %5949 = vmatprep.subr.bf16.mxu0 %v5738
    %5950 = vmatpush2.bf16.msra.mxu0 %v5737
    %5951 = vmatprep.subr.bf16.mxu0 %v5734
    %5952 = vmatpush2.bf16.msra.mxu0 %v5733
    %5953 = vmatprep.subr.bf16.mxu0 %v5730
    %5954 = vmatpush2.bf16.msra.mxu0 %v5729
    %5955 = vmatprep.subr.bf16.mxu0 %v5726
    %5956 = vmatpush2.bf16.msra.mxu0 %v5725
    %5957 = vmatprep.subr.bf16.mxu0 %v5722
    %5958 = vmatpush2.bf16.msra.mxu0 %v5721
    %5959 = vmatprep.subr.bf16.mxu0 %v5718
    %5960 = vmatpush2.bf16.msra.mxu0 %v5717
    %5961 = vmatprep.subr.bf16.mxu0 %v5714
    %5962 = vmatpush2.bf16.msra.mxu0 %v5713
    %5963 = vmatprep.subr.bf16.mxu0 %v5710
    %5964 = vmatpush2.bf16.msra.mxu0 %v5709
    %5965 = vmatprep.mubr.bf16.mxu0 %v2832
    %5966 = vmatmul.mubr.bf16.gmra.mxu0 %v2831
    %v5967 = vpop.f32.mrf.mxu0
    %v5968 = vadd.f32 0.0, %v5967
    %v5969 = vpop.f32.mrf.mxu0
    %v5970 = vadd.f32 0.0, %v5969
    %v5971 = vpop.f32.mrf.mxu0
    %v5972 = vadd.f32 0.0, %v5971
    %v5973 = vpop.f32.mrf.mxu0
    %v5974 = vadd.f32 0.0, %v5973
    %5975 = vmatprep.mubr.bf16.mxu0 %v2836
    %5976 = vmatmul.mubr.bf16.gmra.mxu0 %v2835
    %v5977 = vpop.f32.mrf.mxu0
    %v5978 = vadd.f32 0.0, %v5977
    %v5979 = vpop.f32.mrf.mxu0
    %v5980 = vadd.f32 0.0, %v5979
    %v5981 = vpop.f32.mrf.mxu0
    %v5982 = vadd.f32 0.0, %v5981
    %v5983 = vpop.f32.mrf.mxu0
    %v5984 = vadd.f32 0.0, %v5983
    %5985 = vmatprep.mubr.bf16.mxu0 %v2840
    %5986 = vmatmul.mubr.bf16.gmra.mxu0 %v2839
    %v5987 = vpop.f32.mrf.mxu0
    %v5988 = vadd.f32 0.0, %v5987
    %v5989 = vpop.f32.mrf.mxu0
    %v5990 = vadd.f32 0.0, %v5989
    %v5991 = vpop.f32.mrf.mxu0
    %v5992 = vadd.f32 0.0, %v5991
    %v5993 = vpop.f32.mrf.mxu0
    %v5994 = vadd.f32 0.0, %v5993
    %5995 = vmatprep.mubr.bf16.mxu0 %v2844
    %5996 = vmatmul.mubr.bf16.gmra.mxu0 %v2843
    %v5997 = vpop.f32.mrf.mxu0
    %v5998 = vadd.f32 0.0, %v5997
    %v5999 = vpop.f32.mrf.mxu0
    %v6000 = vadd.f32 0.0, %v5999
    %v6001 = vpop.f32.mrf.mxu0
    %v6002 = vadd.f32 0.0, %v6001
    %v6003 = vpop.f32.mrf.mxu0
    %v6004 = vadd.f32 0.0, %v6003
    %6005 = vmatprep.mubr.bf16.mxu0 %v2848
    %6006 = vmatmul.mubr.bf16.gmra.mxu0 %v2847
    %v6007 = vpop.f32.mrf.mxu0
    %v6008 = vadd.f32 0.0, %v6007
    %v6009 = vpop.f32.mrf.mxu0
    %v6010 = vadd.f32 0.0, %v6009
    %v6011 = vpop.f32.mrf.mxu0
    %v6012 = vadd.f32 0.0, %v6011
    %v6013 = vpop.f32.mrf.mxu0
    %v6014 = vadd.f32 0.0, %v6013
    %6015 = vmatprep.mubr.bf16.mxu0 %v2852
    %6016 = vmatmul.mubr.bf16.gmra.mxu0 %v2851
    %v6017 = vpop.f32.mrf.mxu0
    %v6018 = vadd.f32 0.0, %v6017
    %v6019 = vpop.f32.mrf.mxu0
    %v6020 = vadd.f32 0.0, %v6019
    %v6021 = vpop.f32.mrf.mxu0
    %v6022 = vadd.f32 0.0, %v6021
    %v6023 = vpop.f32.mrf.mxu0
    %v6024 = vadd.f32 0.0, %v6023
    %6025 = vdwg.mxu0
    %6026 = vmatprep.subr.bf16.mxu0 %v5770
    %6027 = vmatpush1.bf16.msra.mxu0 %v5769
    %6028 = vmatprep.subr.bf16.mxu0 %v5766
    %6029 = vmatpush1.bf16.msra.mxu0 %v5765
    %6030 = vmatprep.subr.bf16.mxu0 %v5762
    %6031 = vmatpush1.bf16.msra.mxu0 %v5761
    %6032 = vmatprep.subr.bf16.mxu0 %v5758
    %6033 = vmatpush1.bf16.msra.mxu0 %v5757
    %6034 = vmatprep.subr.bf16.mxu0 %v5754
    %6035 = vmatpush1.bf16.msra.mxu0 %v5753
    %6036 = vmatprep.subr.bf16.mxu0 %v5750
    %6037 = vmatpush1.bf16.msra.mxu0 %v5749
    %6038 = vmatprep.subr.bf16.mxu0 %v5746
    %6039 = vmatpush1.bf16.msra.mxu0 %v5745
    %6040 = vmatprep.subr.bf16.mxu0 %v5742
    %6041 = vmatpush1.bf16.msra.mxu0 %v5741
    %6042 = vmatprep.subr.bf16.mxu0 %v5802
    %6043 = vmatpush2.bf16.msra.mxu0 %v5801
    %6044 = vmatprep.subr.bf16.mxu0 %v5798
    %6045 = vmatpush2.bf16.msra.mxu0 %v5797
    %6046 = vmatprep.subr.bf16.mxu0 %v5794
    %6047 = vmatpush2.bf16.msra.mxu0 %v5793
    %6048 = vmatprep.subr.bf16.mxu0 %v5790
    %6049 = vmatpush2.bf16.msra.mxu0 %v5789
    %6050 = vmatprep.subr.bf16.mxu0 %v5786
    %6051 = vmatpush2.bf16.msra.mxu0 %v5785
    %6052 = vmatprep.subr.bf16.mxu0 %v5782
    %6053 = vmatpush2.bf16.msra.mxu0 %v5781
    %6054 = vmatprep.subr.bf16.mxu0 %v5778
    %6055 = vmatpush2.bf16.msra.mxu0 %v5777
    %6056 = vmatprep.subr.bf16.mxu0 %v5774
    %6057 = vmatpush2.bf16.msra.mxu0 %v5773
    %6058 = vmatprep.mubr.bf16.mxu0 %v2834
    %6059 = vmatmul.mubr.bf16.gmra.mxu0 %v2833
    %v6060 = vpop.f32.mrf.mxu0
    %v6061 = vadd.f32 %v5968, %v6060
    %v6062 = vpop.f32.mrf.mxu0
    %v6063 = vadd.f32 %v5970, %v6062
    %v6064 = vpop.f32.mrf.mxu0
    %v6065 = vadd.f32 %v5972, %v6064
    %v6066 = vpop.f32.mrf.mxu0
    %v6067 = vadd.f32 %v5974, %v6066
    %6068 = vmatprep.mubr.bf16.mxu0 %v2838
    %6069 = vmatmul.mubr.bf16.gmra.mxu0 %v2837
    %v6070 = vpop.f32.mrf.mxu0
    %v6071 = vadd.f32 %v5978, %v6070
    %v6072 = vpop.f32.mrf.mxu0
    %v6073 = vadd.f32 %v5980, %v6072
    %v6074 = vpop.f32.mrf.mxu0
    %v6075 = vadd.f32 %v5982, %v6074
    %v6076 = vpop.f32.mrf.mxu0
    %v6077 = vadd.f32 %v5984, %v6076
    %6078 = vmatprep.mubr.bf16.mxu0 %v2842
    %6079 = vmatmul.mubr.bf16.gmra.mxu0 %v2841
    %v6080 = vpop.f32.mrf.mxu0
    %v6081 = vadd.f32 %v5988, %v6080
    %v6082 = vpop.f32.mrf.mxu0
    %v6083 = vadd.f32 %v5990, %v6082
    %v6084 = vpop.f32.mrf.mxu0
    %v6085 = vadd.f32 %v5992, %v6084
    %v6086 = vpop.f32.mrf.mxu0
    %v6087 = vadd.f32 %v5994, %v6086
    %6088 = vmatprep.mubr.bf16.mxu0 %v2846
    %6089 = vmatmul.mubr.bf16.gmra.mxu0 %v2845
    %v6090 = vpop.f32.mrf.mxu0
    %v6091 = vadd.f32 %v5998, %v6090
    %v6092 = vpop.f32.mrf.mxu0
    %v6093 = vadd.f32 %v6000, %v6092
    %v6094 = vpop.f32.mrf.mxu0
    %v6095 = vadd.f32 %v6002, %v6094
    %v6096 = vpop.f32.mrf.mxu0
    %v6097 = vadd.f32 %v6004, %v6096
    %6098 = vmatprep.mubr.bf16.mxu0 %v2850
    %6099 = vmatmul.mubr.bf16.gmra.mxu0 %v2849
    %v6100 = vpop.f32.mrf.mxu0
    %v6101 = vadd.f32 %v6008, %v6100
    %v6102 = vpop.f32.mrf.mxu0
    %v6103 = vadd.f32 %v6010, %v6102
    %v6104 = vpop.f32.mrf.mxu0
    %v6105 = vadd.f32 %v6012, %v6104
    %v6106 = vpop.f32.mrf.mxu0
    %v6107 = vadd.f32 %v6014, %v6106
    %6108 = vmatprep.mubr.bf16.mxu0 %v2854
    %6109 = vmatmul.mubr.bf16.gmra.mxu0 %v2853
    %v6110 = vpop.f32.mrf.mxu0
    %v6111 = vadd.f32 %v6018, %v6110
    %v6112 = vpop.f32.mrf.mxu0
    %v6113 = vadd.f32 %v6020, %v6112
    %v6114 = vpop.f32.mrf.mxu0
    %v6115 = vadd.f32 %v6022, %v6114
    %v6116 = vpop.f32.mrf.mxu0
    %v6117 = vadd.f32 %v6024, %v6116
    %6118 = vdwg.mxu0
    %6119 = vmatprep.subr.bf16.mxu0 %v5708
    %6120 = vmatpush1.bf16.msra.mxu0 %v5707
    %6121 = vmatprep.subr.bf16.mxu0 %v5704
    %6122 = vmatpush1.bf16.msra.mxu0 %v5703
    %6123 = vmatprep.subr.bf16.mxu0 %v5700
    %6124 = vmatpush1.bf16.msra.mxu0 %v5699
    %6125 = vmatprep.subr.bf16.mxu0 %v5696
    %6126 = vmatpush1.bf16.msra.mxu0 %v5695
    %6127 = vmatprep.subr.bf16.mxu0 %v5692
    %6128 = vmatpush1.bf16.msra.mxu0 %v5691
    %6129 = vmatprep.subr.bf16.mxu0 %v5688
    %6130 = vmatpush1.bf16.msra.mxu0 %v5687
    %6131 = vmatprep.subr.bf16.mxu0 %v5684
    %6132 = vmatpush1.bf16.msra.mxu0 %v5683
    %6133 = vmatprep.subr.bf16.mxu0 %v5680
    %6134 = vmatpush1.bf16.msra.mxu0 %v5679
    %6135 = vmatprep.subr.bf16.mxu0 %v5740
    %6136 = vmatpush2.bf16.msra.mxu0 %v5739
    %6137 = vmatprep.subr.bf16.mxu0 %v5736
    %6138 = vmatpush2.bf16.msra.mxu0 %v5735
    %6139 = vmatprep.subr.bf16.mxu0 %v5732
    %6140 = vmatpush2.bf16.msra.mxu0 %v5731
    %6141 = vmatprep.subr.bf16.mxu0 %v5728
    %6142 = vmatpush2.bf16.msra.mxu0 %v5727
    %6143 = vmatprep.subr.bf16.mxu0 %v5724
    %6144 = vmatpush2.bf16.msra.mxu0 %v5723
    %6145 = vmatprep.subr.bf16.mxu0 %v5720
    %6146 = vmatpush2.bf16.msra.mxu0 %v5719
    %6147 = vmatprep.subr.bf16.mxu0 %v5716
    %6148 = vmatpush2.bf16.msra.mxu0 %v5715
    %6149 = vmatprep.subr.bf16.mxu0 %v5712
    %6150 = vmatpush2.bf16.msra.mxu0 %v5711
    %6151 = vmatprep.mubr.bf16.mxu0 %v2832
    %6152 = vmatmul.mubr.bf16.gmra.mxu0 %v2831
    %v6153 = vpop.f32.mrf.mxu0
    %v6154 = vadd.f32 0.0, %v6153
    %v6155 = vpop.f32.mrf.mxu0
    %v6156 = vadd.f32 0.0, %v6155
    %v6157 = vpop.f32.mrf.mxu0
    %v6158 = vadd.f32 0.0, %v6157
    %v6159 = vpop.f32.mrf.mxu0
    %v6160 = vadd.f32 0.0, %v6159
    %6161 = vmatprep.mubr.bf16.mxu0 %v2836
    %6162 = vmatmul.mubr.bf16.gmra.mxu0 %v2835
    %v6163 = vpop.f32.mrf.mxu0
    %v6164 = vadd.f32 0.0, %v6163
    %v6165 = vpop.f32.mrf.mxu0
    %v6166 = vadd.f32 0.0, %v6165
    %v6167 = vpop.f32.mrf.mxu0
    %v6168 = vadd.f32 0.0, %v6167
    %v6169 = vpop.f32.mrf.mxu0
    %v6170 = vadd.f32 0.0, %v6169
    %6171 = vmatprep.mubr.bf16.mxu0 %v2840
    %6172 = vmatmul.mubr.bf16.gmra.mxu0 %v2839
    %v6173 = vpop.f32.mrf.mxu0
    %v6174 = vadd.f32 0.0, %v6173
    %v6175 = vpop.f32.mrf.mxu0
    %v6176 = vadd.f32 0.0, %v6175
    %v6177 = vpop.f32.mrf.mxu0
    %v6178 = vadd.f32 0.0, %v6177
    %v6179 = vpop.f32.mrf.mxu0
    %v6180 = vadd.f32 0.0, %v6179
    %6181 = vmatprep.mubr.bf16.mxu0 %v2844
    %6182 = vmatmul.mubr.bf16.gmra.mxu0 %v2843
    %v6183 = vpop.f32.mrf.mxu0
    %v6184 = vadd.f32 0.0, %v6183
    %v6185 = vpop.f32.mrf.mxu0
    %v6186 = vadd.f32 0.0, %v6185
    %v6187 = vpop.f32.mrf.mxu0
    %v6188 = vadd.f32 0.0, %v6187
    %v6189 = vpop.f32.mrf.mxu0
    %v6190 = vadd.f32 0.0, %v6189
    %6191 = vmatprep.mubr.bf16.mxu0 %v2848
    %6192 = vmatmul.mubr.bf16.gmra.mxu0 %v2847
    %v6193 = vpop.f32.mrf.mxu0
    %v6194 = vadd.f32 0.0, %v6193
    %v6195 = vpop.f32.mrf.mxu0
    %v6196 = vadd.f32 0.0, %v6195
    %v6197 = vpop.f32.mrf.mxu0
    %v6198 = vadd.f32 0.0, %v6197
    %v6199 = vpop.f32.mrf.mxu0
    %v6200 = vadd.f32 0.0, %v6199
    %6201 = vmatprep.mubr.bf16.mxu0 %v2852
    %6202 = vmatmul.mubr.bf16.gmra.mxu0 %v2851
    %v6203 = vpop.f32.mrf.mxu0
    %v6204 = vadd.f32 0.0, %v6203
    %v6205 = vpop.f32.mrf.mxu0
    %v6206 = vadd.f32 0.0, %v6205
    %v6207 = vpop.f32.mrf.mxu0
    %v6208 = vadd.f32 0.0, %v6207
    %v6209 = vpop.f32.mrf.mxu0
    %v6210 = vadd.f32 0.0, %v6209
    %6211 = vdwg.mxu0
    %6212 = vmatprep.subr.bf16.mxu0 %v5772
    %6213 = vmatpush1.bf16.msra.mxu0 %v5771
    %6214 = vmatprep.subr.bf16.mxu0 %v5768
    %6215 = vmatpush1.bf16.msra.mxu0 %v5767
    %6216 = vmatprep.subr.bf16.mxu0 %v5764
    %6217 = vmatpush1.bf16.msra.mxu0 %v5763
    %6218 = vmatprep.subr.bf16.mxu0 %v5760
    %6219 = vmatpush1.bf16.msra.mxu0 %v5759
    %6220 = vmatprep.subr.bf16.mxu0 %v5756
    %6221 = vmatpush1.bf16.msra.mxu0 %v5755
    %6222 = vmatprep.subr.bf16.mxu0 %v5752
    %6223 = vmatpush1.bf16.msra.mxu0 %v5751
    %6224 = vmatprep.subr.bf16.mxu0 %v5748
    %6225 = vmatpush1.bf16.msra.mxu0 %v5747
    %6226 = vmatprep.subr.bf16.mxu0 %v5744
    %6227 = vmatpush1.bf16.msra.mxu0 %v5743
    %6228 = vmatprep.subr.bf16.mxu0 %v5804
    %6229 = vmatpush2.bf16.msra.mxu0 %v5803
    %6230 = vmatprep.subr.bf16.mxu0 %v5800
    %6231 = vmatpush2.bf16.msra.mxu0 %v5799
    %6232 = vmatprep.subr.bf16.mxu0 %v5796
    %6233 = vmatpush2.bf16.msra.mxu0 %v5795
    %6234 = vmatprep.subr.bf16.mxu0 %v5792
    %6235 = vmatpush2.bf16.msra.mxu0 %v5791
    %6236 = vmatprep.subr.bf16.mxu0 %v5788
    %6237 = vmatpush2.bf16.msra.mxu0 %v5787
    %6238 = vmatprep.subr.bf16.mxu0 %v5784
    %6239 = vmatpush2.bf16.msra.mxu0 %v5783
    %6240 = vmatprep.subr.bf16.mxu0 %v5780
    %6241 = vmatpush2.bf16.msra.mxu0 %v5779
    %6242 = vmatprep.subr.bf16.mxu0 %v5776
    %6243 = vmatpush2.bf16.msra.mxu0 %v5775
    %6244 = vmatprep.mubr.bf16.mxu0 %v2834
    %6245 = vmatmul.mubr.bf16.gmra.mxu0 %v2833
    %v6246 = vpop.f32.mrf.mxu0
    %v6247 = vadd.f32 %v6154, %v6246
    %v6248 = vpop.f32.mrf.mxu0
    %v6249 = vadd.f32 %v6156, %v6248
    %v6250 = vpop.f32.mrf.mxu0
    %v6251 = vadd.f32 %v6158, %v6250
    %v6252 = vpop.f32.mrf.mxu0
    %v6253 = vadd.f32 %v6160, %v6252
    %6254 = vmatprep.mubr.bf16.mxu0 %v2838
    %6255 = vmatmul.mubr.bf16.gmra.mxu0 %v2837
    %v6256 = vpop.f32.mrf.mxu0
    %v6257 = vadd.f32 %v6164, %v6256
    %v6258 = vpop.f32.mrf.mxu0
    %v6259 = vadd.f32 %v6166, %v6258
    %v6260 = vpop.f32.mrf.mxu0
    %v6261 = vadd.f32 %v6168, %v6260
    %v6262 = vpop.f32.mrf.mxu0
    %v6263 = vadd.f32 %v6170, %v6262
    %6264 = vmatprep.mubr.bf16.mxu0 %v2842
    %6265 = vmatmul.mubr.bf16.gmra.mxu0 %v2841
    %v6266 = vpop.f32.mrf.mxu0
    %v6267 = vadd.f32 %v6174, %v6266
    %v6268 = vpop.f32.mrf.mxu0
    %v6269 = vadd.f32 %v6176, %v6268
    %v6270 = vpop.f32.mrf.mxu0
    %v6271 = vadd.f32 %v6178, %v6270
    %v6272 = vpop.f32.mrf.mxu0
    %v6273 = vadd.f32 %v6180, %v6272
    %6274 = vmatprep.mubr.bf16.mxu0 %v2846
    %6275 = vmatmul.mubr.bf16.gmra.mxu0 %v2845
    %v6276 = vpop.f32.mrf.mxu0
    %v6277 = vadd.f32 %v6184, %v6276
    %v6278 = vpop.f32.mrf.mxu0
    %v6279 = vadd.f32 %v6186, %v6278
    %v6280 = vpop.f32.mrf.mxu0
    %v6281 = vadd.f32 %v6188, %v6280
    %v6282 = vpop.f32.mrf.mxu0
    %v6283 = vadd.f32 %v6190, %v6282
    %6284 = vmatprep.mubr.bf16.mxu0 %v2850
    %6285 = vmatmul.mubr.bf16.gmra.mxu0 %v2849
    %v6286 = vpop.f32.mrf.mxu0
    %v6287 = vadd.f32 %v6194, %v6286
    %v6288 = vpop.f32.mrf.mxu0
    %v6289 = vadd.f32 %v6196, %v6288
    %v6290 = vpop.f32.mrf.mxu0
    %v6291 = vadd.f32 %v6198, %v6290
    %v6292 = vpop.f32.mrf.mxu0
    %v6293 = vadd.f32 %v6200, %v6292
    %6294 = vmatprep.mubr.bf16.mxu0 %v2854
    %6295 = vmatmul.mubr.bf16.gmra.mxu0 %v2853
    %v6296 = vpop.f32.mrf.mxu0
    %v6297 = vadd.f32 %v6204, %v6296
    %v6298 = vpop.f32.mrf.mxu0
    %v6299 = vadd.f32 %v6206, %v6298
    %v6300 = vpop.f32.mrf.mxu0
    %v6301 = vadd.f32 %v6208, %v6300
    %v6302 = vpop.f32.mrf.mxu0
    %v6303 = vadd.f32 %v6210, %v6302
    %6304 = vdwg.mxu0
    %v6305 = vadd.f32 %v4920, %v6061
    %v6306 = vadd.f32 %v4922, %v6063
    %v6307 = vadd.f32 %v5106, %v6247
    %v6308 = vadd.f32 %v5108, %v6249
    %v6309 = vadd.f32 %v4924, %v6065
    %v6310 = vadd.f32 %v4926, %v6067
    %v6311 = vadd.f32 %v5110, %v6251
    %v6312 = vadd.f32 %v5112, %v6253
    %v6313 = vadd.f32 %v4930, %v6071
    %v6314 = vadd.f32 %v4932, %v6073
    %v6315 = vadd.f32 %v5116, %v6257
    %v6316 = vadd.f32 %v5118, %v6259
    %v6317 = vadd.f32 %v4934, %v6075
    %v6318 = vadd.f32 %v4936, %v6077
    %v6319 = vadd.f32 %v5120, %v6261
    %v6320 = vadd.f32 %v5122, %v6263
    %v6321 = vadd.f32 %v4940, %v6081
    %v6322 = vadd.f32 %v4942, %v6083
    %v6323 = vadd.f32 %v5126, %v6267
    %v6324 = vadd.f32 %v5128, %v6269
    %v6325 = vadd.f32 %v4944, %v6085
    %v6326 = vadd.f32 %v4946, %v6087
    %v6327 = vadd.f32 %v5130, %v6271
    %v6328 = vadd.f32 %v5132, %v6273
    %v6329 = vadd.f32 %v4950, %v6091
    %v6330 = vadd.f32 %v4952, %v6093
    %v6331 = vadd.f32 %v5136, %v6277
    %v6332 = vadd.f32 %v5138, %v6279
    %v6333 = vadd.f32 %v4954, %v6095
    %v6334 = vadd.f32 %v4956, %v6097
    %v6335 = vadd.f32 %v5140, %v6281
    %v6336 = vadd.f32 %v5142, %v6283
    %v6337 = vadd.f32 %v4960, %v6101
    %v6338 = vadd.f32 %v4962, %v6103
    %v6339 = vadd.f32 %v5146, %v6287
    %v6340 = vadd.f32 %v5148, %v6289
    %v6341 = vadd.f32 %v4964, %v6105
    %v6342 = vadd.f32 %v4966, %v6107
    %v6343 = vadd.f32 %v5150, %v6291
    %v6344 = vadd.f32 %v5152, %v6293
    %v6345 = vadd.f32 %v4970, %v6111
    %v6346 = vadd.f32 %v4972, %v6113
    %v6347 = vadd.f32 %v5156, %v6297
    %v6348 = vadd.f32 %v5158, %v6299
    %v6349 = vadd.f32 %v4974, %v6115
    %v6350 = vadd.f32 %v4976, %v6117
    %v6351 = vadd.f32 %v5160, %v6301
    %v6352 = vadd.f32 %v5162, %v6303
    %6353 = vmatprep.subr.bf16.mxu0 %v3553
    %6354 = vmatpush1.bf16.msra.mxu0 %v3552
    %6355 = vmatprep.subr.bf16.mxu0 %v3549
    %6356 = vmatpush1.bf16.msra.mxu0 %v3548
    %6357 = vmatprep.subr.bf16.mxu0 %v3545
    %6358 = vmatpush1.bf16.msra.mxu0 %v3544
    %6359 = vmatprep.subr.bf16.mxu0 %v3541
    %6360 = vmatpush1.bf16.msra.mxu0 %v3540
    %6361 = vmatprep.subr.bf16.mxu0 %v3537
    %6362 = vmatpush1.bf16.msra.mxu0 %v3536
    %6363 = vmatprep.subr.bf16.mxu0 %v3533
    %6364 = vmatpush1.bf16.msra.mxu0 %v3532
    %6365 = vmatprep.subr.bf16.mxu0 %v3529
    %6366 = vmatpush1.bf16.msra.mxu0 %v3528
    %6367 = vmatprep.subr.bf16.mxu0 %v3525
    %6368 = vmatpush1.bf16.msra.mxu0 %v3524
    %6369 = vmatprep.subr.bf16.mxu0 %v3585
    %6370 = vmatpush2.bf16.msra.mxu0 %v3584
    %6371 = vmatprep.subr.bf16.mxu0 %v3581
    %6372 = vmatpush2.bf16.msra.mxu0 %v3580
    %6373 = vmatprep.subr.bf16.mxu0 %v3577
    %6374 = vmatpush2.bf16.msra.mxu0 %v3576
    %6375 = vmatprep.subr.bf16.mxu0 %v3573
    %6376 = vmatpush2.bf16.msra.mxu0 %v3572
    %6377 = vmatprep.subr.bf16.mxu0 %v3569
    %6378 = vmatpush2.bf16.msra.mxu0 %v3568
    %6379 = vmatprep.subr.bf16.mxu0 %v3565
    %6380 = vmatpush2.bf16.msra.mxu0 %v3564
    %6381 = vmatprep.subr.bf16.mxu0 %v3561
    %6382 = vmatpush2.bf16.msra.mxu0 %v3560
    %6383 = vmatprep.subr.bf16.mxu0 %v3557
    %6384 = vmatpush2.bf16.msra.mxu0 %v3556
    %6385 = vmatprep.mubr.bf16.mxu0 %v2832
    %6386 = vmatmul.mubr.bf16.gmra.mxu0 %v2831
    %v6387 = vpop.f32.mrf.mxu0
    %v6388 = vadd.f32 0.0, %v6387
    %v6389 = vpop.f32.mrf.mxu0
    %v6390 = vadd.f32 0.0, %v6389
    %v6391 = vpop.f32.mrf.mxu0
    %v6392 = vadd.f32 0.0, %v6391
    %v6393 = vpop.f32.mrf.mxu0
    %v6394 = vadd.f32 0.0, %v6393
    %6395 = vmatprep.mubr.bf16.mxu0 %v2836
    %6396 = vmatmul.mubr.bf16.gmra.mxu0 %v2835
    %v6397 = vpop.f32.mrf.mxu0
    %v6398 = vadd.f32 0.0, %v6397
    %v6399 = vpop.f32.mrf.mxu0
    %v6400 = vadd.f32 0.0, %v6399
    %v6401 = vpop.f32.mrf.mxu0
    %v6402 = vadd.f32 0.0, %v6401
    %v6403 = vpop.f32.mrf.mxu0
    %v6404 = vadd.f32 0.0, %v6403
    %6405 = vmatprep.mubr.bf16.mxu0 %v2840
    %6406 = vmatmul.mubr.bf16.gmra.mxu0 %v2839
    %v6407 = vpop.f32.mrf.mxu0
    %v6408 = vadd.f32 0.0, %v6407
    %v6409 = vpop.f32.mrf.mxu0
    %v6410 = vadd.f32 0.0, %v6409
    %v6411 = vpop.f32.mrf.mxu0
    %v6412 = vadd.f32 0.0, %v6411
    %v6413 = vpop.f32.mrf.mxu0
    %v6414 = vadd.f32 0.0, %v6413
    %6415 = vmatprep.mubr.bf16.mxu0 %v2844
    %6416 = vmatmul.mubr.bf16.gmra.mxu0 %v2843
    %v6417 = vpop.f32.mrf.mxu0
    %v6418 = vadd.f32 0.0, %v6417
    %v6419 = vpop.f32.mrf.mxu0
    %v6420 = vadd.f32 0.0, %v6419
    %v6421 = vpop.f32.mrf.mxu0
    %v6422 = vadd.f32 0.0, %v6421
    %v6423 = vpop.f32.mrf.mxu0
    %v6424 = vadd.f32 0.0, %v6423
    %6425 = vmatprep.mubr.bf16.mxu0 %v2848
    %6426 = vmatmul.mubr.bf16.gmra.mxu0 %v2847
    %v6427 = vpop.f32.mrf.mxu0
    %v6428 = vadd.f32 0.0, %v6427
    %v6429 = vpop.f32.mrf.mxu0
    %v6430 = vadd.f32 0.0, %v6429
    %v6431 = vpop.f32.mrf.mxu0
    %v6432 = vadd.f32 0.0, %v6431
    %v6433 = vpop.f32.mrf.mxu0
    %v6434 = vadd.f32 0.0, %v6433
    %6435 = vmatprep.mubr.bf16.mxu0 %v2852
    %6436 = vmatmul.mubr.bf16.gmra.mxu0 %v2851
    %v6437 = vpop.f32.mrf.mxu0
    %v6438 = vadd.f32 0.0, %v6437
    %v6439 = vpop.f32.mrf.mxu0
    %v6440 = vadd.f32 0.0, %v6439
    %v6441 = vpop.f32.mrf.mxu0
    %v6442 = vadd.f32 0.0, %v6441
    %v6443 = vpop.f32.mrf.mxu0
    %v6444 = vadd.f32 0.0, %v6443
    %6445 = vdwg.mxu0
    %6446 = vmatprep.subr.bf16.mxu0 %v3617
    %6447 = vmatpush1.bf16.msra.mxu0 %v3616
    %6448 = vmatprep.subr.bf16.mxu0 %v3613
    %6449 = vmatpush1.bf16.msra.mxu0 %v3612
    %6450 = vmatprep.subr.bf16.mxu0 %v3609
    %6451 = vmatpush1.bf16.msra.mxu0 %v3608
    %6452 = vmatprep.subr.bf16.mxu0 %v3605
    %6453 = vmatpush1.bf16.msra.mxu0 %v3604
    %6454 = vmatprep.subr.bf16.mxu0 %v3601
    %6455 = vmatpush1.bf16.msra.mxu0 %v3600
    %6456 = vmatprep.subr.bf16.mxu0 %v3597
    %6457 = vmatpush1.bf16.msra.mxu0 %v3596
    %6458 = vmatprep.subr.bf16.mxu0 %v3593
    %6459 = vmatpush1.bf16.msra.mxu0 %v3592
    %6460 = vmatprep.subr.bf16.mxu0 %v3589
    %6461 = vmatpush1.bf16.msra.mxu0 %v3588
    %6462 = vmatprep.subr.bf16.mxu0 %v3649
    %6463 = vmatpush2.bf16.msra.mxu0 %v3648
    %6464 = vmatprep.subr.bf16.mxu0 %v3645
    %6465 = vmatpush2.bf16.msra.mxu0 %v3644
    %6466 = vmatprep.subr.bf16.mxu0 %v3641
    %6467 = vmatpush2.bf16.msra.mxu0 %v3640
    %6468 = vmatprep.subr.bf16.mxu0 %v3637
    %6469 = vmatpush2.bf16.msra.mxu0 %v3636
    %6470 = vmatprep.subr.bf16.mxu0 %v3633
    %6471 = vmatpush2.bf16.msra.mxu0 %v3632
    %6472 = vmatprep.subr.bf16.mxu0 %v3629
    %6473 = vmatpush2.bf16.msra.mxu0 %v3628
    %6474 = vmatprep.subr.bf16.mxu0 %v3625
    %6475 = vmatpush2.bf16.msra.mxu0 %v3624
    %6476 = vmatprep.subr.bf16.mxu0 %v3621
    %6477 = vmatpush2.bf16.msra.mxu0 %v3620
    %6478 = vmatprep.mubr.bf16.mxu0 %v2834
    %6479 = vmatmul.mubr.bf16.gmra.mxu0 %v2833
    %v6480 = vpop.f32.mrf.mxu0
    %v6481 = vadd.f32 %v6388, %v6480
    %v6482 = vpop.f32.mrf.mxu0
    %v6483 = vadd.f32 %v6390, %v6482
    %v6484 = vpop.f32.mrf.mxu0
    %v6485 = vadd.f32 %v6392, %v6484
    %v6486 = vpop.f32.mrf.mxu0
    %v6487 = vadd.f32 %v6394, %v6486
    %6488 = vmatprep.mubr.bf16.mxu0 %v2838
    %6489 = vmatmul.mubr.bf16.gmra.mxu0 %v2837
    %v6490 = vpop.f32.mrf.mxu0
    %v6491 = vadd.f32 %v6398, %v6490
    %v6492 = vpop.f32.mrf.mxu0
    %v6493 = vadd.f32 %v6400, %v6492
    %v6494 = vpop.f32.mrf.mxu0
    %v6495 = vadd.f32 %v6402, %v6494
    %v6496 = vpop.f32.mrf.mxu0
    %v6497 = vadd.f32 %v6404, %v6496
    %6498 = vmatprep.mubr.bf16.mxu0 %v2842
    %6499 = vmatmul.mubr.bf16.gmra.mxu0 %v2841
    %v6500 = vpop.f32.mrf.mxu0
    %v6501 = vadd.f32 %v6408, %v6500
    %v6502 = vpop.f32.mrf.mxu0
    %v6503 = vadd.f32 %v6410, %v6502
    %v6504 = vpop.f32.mrf.mxu0
    %v6505 = vadd.f32 %v6412, %v6504
    %v6506 = vpop.f32.mrf.mxu0
    %v6507 = vadd.f32 %v6414, %v6506
    %6508 = vmatprep.mubr.bf16.mxu0 %v2846
    %6509 = vmatmul.mubr.bf16.gmra.mxu0 %v2845
    %v6510 = vpop.f32.mrf.mxu0
    %v6511 = vadd.f32 %v6418, %v6510
    %v6512 = vpop.f32.mrf.mxu0
    %v6513 = vadd.f32 %v6420, %v6512
    %v6514 = vpop.f32.mrf.mxu0
    %v6515 = vadd.f32 %v6422, %v6514
    %v6516 = vpop.f32.mrf.mxu0
    %v6517 = vadd.f32 %v6424, %v6516
    %6518 = vmatprep.mubr.bf16.mxu0 %v2850
    %6519 = vmatmul.mubr.bf16.gmra.mxu0 %v2849
    %v6520 = vpop.f32.mrf.mxu0
    %v6521 = vadd.f32 %v6428, %v6520
    %v6522 = vpop.f32.mrf.mxu0
    %v6523 = vadd.f32 %v6430, %v6522
    %v6524 = vpop.f32.mrf.mxu0
    %v6525 = vadd.f32 %v6432, %v6524
    %v6526 = vpop.f32.mrf.mxu0
    %v6527 = vadd.f32 %v6434, %v6526
    %6528 = vmatprep.mubr.bf16.mxu0 %v2854
    %6529 = vmatmul.mubr.bf16.gmra.mxu0 %v2853
    %v6530 = vpop.f32.mrf.mxu0
    %v6531 = vadd.f32 %v6438, %v6530
    %v6532 = vpop.f32.mrf.mxu0
    %v6533 = vadd.f32 %v6440, %v6532
    %v6534 = vpop.f32.mrf.mxu0
    %v6535 = vadd.f32 %v6442, %v6534
    %v6536 = vpop.f32.mrf.mxu0
    %v6537 = vadd.f32 %v6444, %v6536
    %6538 = vdwg.mxu0
    %6539 = vmatprep.subr.bf16.mxu0 %v3555
    %6540 = vmatpush1.bf16.msra.mxu0 %v3554
    %6541 = vmatprep.subr.bf16.mxu0 %v3551
    %6542 = vmatpush1.bf16.msra.mxu0 %v3550
    %6543 = vmatprep.subr.bf16.mxu0 %v3547
    %6544 = vmatpush1.bf16.msra.mxu0 %v3546
    %6545 = vmatprep.subr.bf16.mxu0 %v3543
    %6546 = vmatpush1.bf16.msra.mxu0 %v3542
    %6547 = vmatprep.subr.bf16.mxu0 %v3539
    %6548 = vmatpush1.bf16.msra.mxu0 %v3538
    %6549 = vmatprep.subr.bf16.mxu0 %v3535
    %6550 = vmatpush1.bf16.msra.mxu0 %v3534
    %6551 = vmatprep.subr.bf16.mxu0 %v3531
    %6552 = vmatpush1.bf16.msra.mxu0 %v3530
    %6553 = vmatprep.subr.bf16.mxu0 %v3527
    %6554 = vmatpush1.bf16.msra.mxu0 %v3526
    %6555 = vmatprep.subr.bf16.mxu0 %v3587
    %6556 = vmatpush2.bf16.msra.mxu0 %v3586
    %6557 = vmatprep.subr.bf16.mxu0 %v3583
    %6558 = vmatpush2.bf16.msra.mxu0 %v3582
    %6559 = vmatprep.subr.bf16.mxu0 %v3579
    %6560 = vmatpush2.bf16.msra.mxu0 %v3578
    %6561 = vmatprep.subr.bf16.mxu0 %v3575
    %6562 = vmatpush2.bf16.msra.mxu0 %v3574
    %6563 = vmatprep.subr.bf16.mxu0 %v3571
    %6564 = vmatpush2.bf16.msra.mxu0 %v3570
    %6565 = vmatprep.subr.bf16.mxu0 %v3567
    %6566 = vmatpush2.bf16.msra.mxu0 %v3566
    %6567 = vmatprep.subr.bf16.mxu0 %v3563
    %6568 = vmatpush2.bf16.msra.mxu0 %v3562
    %6569 = vmatprep.subr.bf16.mxu0 %v3559
    %6570 = vmatpush2.bf16.msra.mxu0 %v3558
    %6571 = vmatprep.mubr.bf16.mxu0 %v2832
    %6572 = vmatmul.mubr.bf16.gmra.mxu0 %v2831
    %v6573 = vpop.f32.mrf.mxu0
    %v6574 = vadd.f32 0.0, %v6573
    %v6575 = vpop.f32.mrf.mxu0
    %v6576 = vadd.f32 0.0, %v6575
    %v6577 = vpop.f32.mrf.mxu0
    %v6578 = vadd.f32 0.0, %v6577
    %v6579 = vpop.f32.mrf.mxu0
    %v6580 = vadd.f32 0.0, %v6579
    %6581 = vmatprep.mubr.bf16.mxu0 %v2836
    %6582 = vmatmul.mubr.bf16.gmra.mxu0 %v2835
    %v6583 = vpop.f32.mrf.mxu0
    %v6584 = vadd.f32 0.0, %v6583
    %v6585 = vpop.f32.mrf.mxu0
    %v6586 = vadd.f32 0.0, %v6585
    %v6587 = vpop.f32.mrf.mxu0
    %v6588 = vadd.f32 0.0, %v6587
    %v6589 = vpop.f32.mrf.mxu0
    %v6590 = vadd.f32 0.0, %v6589
    %6591 = vmatprep.mubr.bf16.mxu0 %v2840
    %6592 = vmatmul.mubr.bf16.gmra.mxu0 %v2839
    %v6593 = vpop.f32.mrf.mxu0
    %v6594 = vadd.f32 0.0, %v6593
    %v6595 = vpop.f32.mrf.mxu0
    %v6596 = vadd.f32 0.0, %v6595
    %v6597 = vpop.f32.mrf.mxu0
    %v6598 = vadd.f32 0.0, %v6597
    %v6599 = vpop.f32.mrf.mxu0
    %v6600 = vadd.f32 0.0, %v6599
    %6601 = vmatprep.mubr.bf16.mxu0 %v2844
    %6602 = vmatmul.mubr.bf16.gmra.mxu0 %v2843
    %v6603 = vpop.f32.mrf.mxu0
    %v6604 = vadd.f32 0.0, %v6603
    %v6605 = vpop.f32.mrf.mxu0
    %v6606 = vadd.f32 0.0, %v6605
    %v6607 = vpop.f32.mrf.mxu0
    %v6608 = vadd.f32 0.0, %v6607
    %v6609 = vpop.f32.mrf.mxu0
    %v6610 = vadd.f32 0.0, %v6609
    %6611 = vmatprep.mubr.bf16.mxu0 %v2848
    %6612 = vmatmul.mubr.bf16.gmra.mxu0 %v2847
    %v6613 = vpop.f32.mrf.mxu0
    %v6614 = vadd.f32 0.0, %v6613
    %v6615 = vpop.f32.mrf.mxu0
    %v6616 = vadd.f32 0.0, %v6615
    %v6617 = vpop.f32.mrf.mxu0
    %v6618 = vadd.f32 0.0, %v6617
    %v6619 = vpop.f32.mrf.mxu0
    %v6620 = vadd.f32 0.0, %v6619
    %6621 = vmatprep.mubr.bf16.mxu0 %v2852
    %6622 = vmatmul.mubr.bf16.gmra.mxu0 %v2851
    %v6623 = vpop.f32.mrf.mxu0
    %v6624 = vadd.f32 0.0, %v6623
    %v6625 = vpop.f32.mrf.mxu0
    %v6626 = vadd.f32 0.0, %v6625
    %v6627 = vpop.f32.mrf.mxu0
    %v6628 = vadd.f32 0.0, %v6627
    %v6629 = vpop.f32.mrf.mxu0
    %v6630 = vadd.f32 0.0, %v6629
    %6631 = vdwg.mxu0
    %6632 = vmatprep.subr.bf16.mxu0 %v3619
    %6633 = vmatpush1.bf16.msra.mxu0 %v3618
    %6634 = vmatprep.subr.bf16.mxu0 %v3615
    %6635 = vmatpush1.bf16.msra.mxu0 %v3614
    %6636 = vmatprep.subr.bf16.mxu0 %v3611
    %6637 = vmatpush1.bf16.msra.mxu0 %v3610
    %6638 = vmatprep.subr.bf16.mxu0 %v3607
    %6639 = vmatpush1.bf16.msra.mxu0 %v3606
    %6640 = vmatprep.subr.bf16.mxu0 %v3603
    %6641 = vmatpush1.bf16.msra.mxu0 %v3602
    %6642 = vmatprep.subr.bf16.mxu0 %v3599
    %6643 = vmatpush1.bf16.msra.mxu0 %v3598
    %6644 = vmatprep.subr.bf16.mxu0 %v3595
    %6645 = vmatpush1.bf16.msra.mxu0 %v3594
    %6646 = vmatprep.subr.bf16.mxu0 %v3591
    %6647 = vmatpush1.bf16.msra.mxu0 %v3590
    %6648 = vmatprep.subr.bf16.mxu0 %v3651
    %6649 = vmatpush2.bf16.msra.mxu0 %v3650
    %6650 = vmatprep.subr.bf16.mxu0 %v3647
    %6651 = vmatpush2.bf16.msra.mxu0 %v3646
    %6652 = vmatprep.subr.bf16.mxu0 %v3643
    %6653 = vmatpush2.bf16.msra.mxu0 %v3642
    %6654 = vmatprep.subr.bf16.mxu0 %v3639
    %6655 = vmatpush2.bf16.msra.mxu0 %v3638
    %6656 = vmatprep.subr.bf16.mxu0 %v3635
    %6657 = vmatpush2.bf16.msra.mxu0 %v3634
    %6658 = vmatprep.subr.bf16.mxu0 %v3631
    %6659 = vmatpush2.bf16.msra.mxu0 %v3630
    %6660 = vmatprep.subr.bf16.mxu0 %v3627
    %6661 = vmatpush2.bf16.msra.mxu0 %v3626
    %6662 = vmatprep.subr.bf16.mxu0 %v3623
    %6663 = vmatpush2.bf16.msra.mxu0 %v3622
    %6664 = vmatprep.mubr.bf16.mxu0 %v2834
    %6665 = vmatmul.mubr.bf16.gmra.mxu0 %v2833
    %v6666 = vpop.f32.mrf.mxu0
    %v6667 = vadd.f32 %v6574, %v6666
    %v6668 = vpop.f32.mrf.mxu0
    %v6669 = vadd.f32 %v6576, %v6668
    %v6670 = vpop.f32.mrf.mxu0
    %v6671 = vadd.f32 %v6578, %v6670
    %v6672 = vpop.f32.mrf.mxu0
    %v6673 = vadd.f32 %v6580, %v6672
    %6674 = vmatprep.mubr.bf16.mxu0 %v2838
    %6675 = vmatmul.mubr.bf16.gmra.mxu0 %v2837
    %v6676 = vpop.f32.mrf.mxu0
    %v6677 = vadd.f32 %v6584, %v6676
    %v6678 = vpop.f32.mrf.mxu0
    %v6679 = vadd.f32 %v6586, %v6678
    %v6680 = vpop.f32.mrf.mxu0
    %v6681 = vadd.f32 %v6588, %v6680
    %v6682 = vpop.f32.mrf.mxu0
    %v6683 = vadd.f32 %v6590, %v6682
    %6684 = vmatprep.mubr.bf16.mxu0 %v2842
    %6685 = vmatmul.mubr.bf16.gmra.mxu0 %v2841
    %v6686 = vpop.f32.mrf.mxu0
    %v6687 = vadd.f32 %v6594, %v6686
    %v6688 = vpop.f32.mrf.mxu0
    %v6689 = vadd.f32 %v6596, %v6688
    %v6690 = vpop.f32.mrf.mxu0
    %v6691 = vadd.f32 %v6598, %v6690
    %v6692 = vpop.f32.mrf.mxu0
    %v6693 = vadd.f32 %v6600, %v6692
    %6694 = vmatprep.mubr.bf16.mxu0 %v2846
    %6695 = vmatmul.mubr.bf16.gmra.mxu0 %v2845
    %v6696 = vpop.f32.mrf.mxu0
    %v6697 = vadd.f32 %v6604, %v6696
    %v6698 = vpop.f32.mrf.mxu0
    %v6699 = vadd.f32 %v6606, %v6698
    %v6700 = vpop.f32.mrf.mxu0
    %v6701 = vadd.f32 %v6608, %v6700
    %v6702 = vpop.f32.mrf.mxu0
    %v6703 = vadd.f32 %v6610, %v6702
    %6704 = vmatprep.mubr.bf16.mxu0 %v2850
    %6705 = vmatmul.mubr.bf16.gmra.mxu0 %v2849
    %v6706 = vpop.f32.mrf.mxu0
    %v6707 = vadd.f32 %v6614, %v6706
    %v6708 = vpop.f32.mrf.mxu0
    %v6709 = vadd.f32 %v6616, %v6708
    %v6710 = vpop.f32.mrf.mxu0
    %v6711 = vadd.f32 %v6618, %v6710
    %v6712 = vpop.f32.mrf.mxu0
    %v6713 = vadd.f32 %v6620, %v6712
    %6714 = vmatprep.mubr.bf16.mxu0 %v2854
    %6715 = vmatmul.mubr.bf16.gmra.mxu0 %v2853
    %v6716 = vpop.f32.mrf.mxu0
    %v6717 = vadd.f32 %v6624, %v6716
    %v6718 = vpop.f32.mrf.mxu0
    %v6719 = vadd.f32 %v6626, %v6718
    %v6720 = vpop.f32.mrf.mxu0
    %v6721 = vadd.f32 %v6628, %v6720
    %v6722 = vpop.f32.mrf.mxu0
    %v6723 = vadd.f32 %v6630, %v6722
    %6724 = vdwg.mxu0
    %6725 = vmatprep.subr.bf16.mxu0 %v4565
    %6726 = vmatpush1.bf16.msra.mxu0 %v4564
    %6727 = vmatprep.subr.bf16.mxu0 %v4561
    %6728 = vmatpush1.bf16.msra.mxu0 %v4560
    %6729 = vmatprep.subr.bf16.mxu0 %v4557
    %6730 = vmatpush1.bf16.msra.mxu0 %v4556
    %6731 = vmatprep.subr.bf16.mxu0 %v4553
    %6732 = vmatpush1.bf16.msra.mxu0 %v4552
    %6733 = vmatprep.subr.bf16.mxu0 %v4549
    %6734 = vmatpush1.bf16.msra.mxu0 %v4548
    %6735 = vmatprep.subr.bf16.mxu0 %v4545
    %6736 = vmatpush1.bf16.msra.mxu0 %v4544
    %6737 = vmatprep.subr.bf16.mxu0 %v4541
    %6738 = vmatpush1.bf16.msra.mxu0 %v4540
    %6739 = vmatprep.subr.bf16.mxu0 %v4537
    %6740 = vmatpush1.bf16.msra.mxu0 %v4536
    %6741 = vmatprep.subr.bf16.mxu0 %v4597
    %6742 = vmatpush2.bf16.msra.mxu0 %v4596
    %6743 = vmatprep.subr.bf16.mxu0 %v4593
    %6744 = vmatpush2.bf16.msra.mxu0 %v4592
    %6745 = vmatprep.subr.bf16.mxu0 %v4589
    %6746 = vmatpush2.bf16.msra.mxu0 %v4588
    %6747 = vmatprep.subr.bf16.mxu0 %v4585
    %6748 = vmatpush2.bf16.msra.mxu0 %v4584
    %6749 = vmatprep.subr.bf16.mxu0 %v4581
    %6750 = vmatpush2.bf16.msra.mxu0 %v4580
    %6751 = vmatprep.subr.bf16.mxu0 %v4577
    %6752 = vmatpush2.bf16.msra.mxu0 %v4576
    %6753 = vmatprep.subr.bf16.mxu0 %v4573
    %6754 = vmatpush2.bf16.msra.mxu0 %v4572
    %6755 = vmatprep.subr.bf16.mxu0 %v4569
    %6756 = vmatpush2.bf16.msra.mxu0 %v4568
    %6757 = vmatprep.mubr.bf16.mxu0 %v2856
    %6758 = vmatmul.mubr.bf16.gmra.mxu0 %v2855
    %v6759 = vpop.f32.mrf.mxu0
    %v6760 = vadd.f32 %v6481, %v6759
    %v6761 = vpop.f32.mrf.mxu0
    %v6762 = vadd.f32 %v6483, %v6761
    %v6763 = vpop.f32.mrf.mxu0
    %v6764 = vadd.f32 %v6485, %v6763
    %v6765 = vpop.f32.mrf.mxu0
    %v6766 = vadd.f32 %v6487, %v6765
    %6767 = vmatprep.mubr.bf16.mxu0 %v2860
    %6768 = vmatmul.mubr.bf16.gmra.mxu0 %v2859
    %v6769 = vpop.f32.mrf.mxu0
    %v6770 = vadd.f32 %v6491, %v6769
    %v6771 = vpop.f32.mrf.mxu0
    %v6772 = vadd.f32 %v6493, %v6771
    %v6773 = vpop.f32.mrf.mxu0
    %v6774 = vadd.f32 %v6495, %v6773
    %v6775 = vpop.f32.mrf.mxu0
    %v6776 = vadd.f32 %v6497, %v6775
    %6777 = vmatprep.mubr.bf16.mxu0 %v2864
    %6778 = vmatmul.mubr.bf16.gmra.mxu0 %v2863
    %v6779 = vpop.f32.mrf.mxu0
    %v6780 = vadd.f32 %v6501, %v6779
    %v6781 = vpop.f32.mrf.mxu0
    %v6782 = vadd.f32 %v6503, %v6781
    %v6783 = vpop.f32.mrf.mxu0
    %v6784 = vadd.f32 %v6505, %v6783
    %v6785 = vpop.f32.mrf.mxu0
    %v6786 = vadd.f32 %v6507, %v6785
    %6787 = vmatprep.mubr.bf16.mxu0 %v2868
    %6788 = vmatmul.mubr.bf16.gmra.mxu0 %v2867
    %v6789 = vpop.f32.mrf.mxu0
    %v6790 = vadd.f32 %v6511, %v6789
    %v6791 = vpop.f32.mrf.mxu0
    %v6792 = vadd.f32 %v6513, %v6791
    %v6793 = vpop.f32.mrf.mxu0
    %v6794 = vadd.f32 %v6515, %v6793
    %v6795 = vpop.f32.mrf.mxu0
    %v6796 = vadd.f32 %v6517, %v6795
    %6797 = vmatprep.mubr.bf16.mxu0 %v2872
    %6798 = vmatmul.mubr.bf16.gmra.mxu0 %v2871
    %v6799 = vpop.f32.mrf.mxu0
    %v6800 = vadd.f32 %v6521, %v6799
    %v6801 = vpop.f32.mrf.mxu0
    %v6802 = vadd.f32 %v6523, %v6801
    %v6803 = vpop.f32.mrf.mxu0
    %v6804 = vadd.f32 %v6525, %v6803
    %v6805 = vpop.f32.mrf.mxu0
    %v6806 = vadd.f32 %v6527, %v6805
    %6807 = vmatprep.mubr.bf16.mxu0 %v2876
    %6808 = vmatmul.mubr.bf16.gmra.mxu0 %v2875
    %v6809 = vpop.f32.mrf.mxu0
    %v6810 = vadd.f32 %v6531, %v6809
    %v6811 = vpop.f32.mrf.mxu0
    %v6812 = vadd.f32 %v6533, %v6811
    %v6813 = vpop.f32.mrf.mxu0
    %v6814 = vadd.f32 %v6535, %v6813
    %v6815 = vpop.f32.mrf.mxu0
    %v6816 = vadd.f32 %v6537, %v6815
    %6817 = vdwg.mxu0
    %6818 = vmatprep.subr.bf16.mxu0 %v4629
    %6819 = vmatpush1.bf16.msra.mxu0 %v4628
    %6820 = vmatprep.subr.bf16.mxu0 %v4625
    %6821 = vmatpush1.bf16.msra.mxu0 %v4624
    %6822 = vmatprep.subr.bf16.mxu0 %v4621
    %6823 = vmatpush1.bf16.msra.mxu0 %v4620
    %6824 = vmatprep.subr.bf16.mxu0 %v4617
    %6825 = vmatpush1.bf16.msra.mxu0 %v4616
    %6826 = vmatprep.subr.bf16.mxu0 %v4613
    %6827 = vmatpush1.bf16.msra.mxu0 %v4612
    %6828 = vmatprep.subr.bf16.mxu0 %v4609
    %6829 = vmatpush1.bf16.msra.mxu0 %v4608
    %6830 = vmatprep.subr.bf16.mxu0 %v4605
    %6831 = vmatpush1.bf16.msra.mxu0 %v4604
    %6832 = vmatprep.subr.bf16.mxu0 %v4601
    %6833 = vmatpush1.bf16.msra.mxu0 %v4600
    %6834 = vmatprep.subr.bf16.mxu0 %v4661
    %6835 = vmatpush2.bf16.msra.mxu0 %v4660
    %6836 = vmatprep.subr.bf16.mxu0 %v4657
    %6837 = vmatpush2.bf16.msra.mxu0 %v4656
    %6838 = vmatprep.subr.bf16.mxu0 %v4653
    %6839 = vmatpush2.bf16.msra.mxu0 %v4652
    %6840 = vmatprep.subr.bf16.mxu0 %v4649
    %6841 = vmatpush2.bf16.msra.mxu0 %v4648
    %6842 = vmatprep.subr.bf16.mxu0 %v4645
    %6843 = vmatpush2.bf16.msra.mxu0 %v4644
    %6844 = vmatprep.subr.bf16.mxu0 %v4641
    %6845 = vmatpush2.bf16.msra.mxu0 %v4640
    %6846 = vmatprep.subr.bf16.mxu0 %v4637
    %6847 = vmatpush2.bf16.msra.mxu0 %v4636
    %6848 = vmatprep.subr.bf16.mxu0 %v4633
    %6849 = vmatpush2.bf16.msra.mxu0 %v4632
    %6850 = vmatprep.mubr.bf16.mxu0 %v2858
    %6851 = vmatmul.mubr.bf16.gmra.mxu0 %v2857
    %v6852 = vpop.f32.mrf.mxu0
    %v6853 = vadd.f32 %v6760, %v6852
    %v6854 = vpop.f32.mrf.mxu0
    %v6855 = vadd.f32 %v6762, %v6854
    %v6856 = vpop.f32.mrf.mxu0
    %v6857 = vadd.f32 %v6764, %v6856
    %v6858 = vpop.f32.mrf.mxu0
    %v6859 = vadd.f32 %v6766, %v6858
    %6860 = vmatprep.mubr.bf16.mxu0 %v2862
    %6861 = vmatmul.mubr.bf16.gmra.mxu0 %v2861
    %v6862 = vpop.f32.mrf.mxu0
    %v6863 = vadd.f32 %v6770, %v6862
    %v6864 = vpop.f32.mrf.mxu0
    %v6865 = vadd.f32 %v6772, %v6864
    %v6866 = vpop.f32.mrf.mxu0
    %v6867 = vadd.f32 %v6774, %v6866
    %v6868 = vpop.f32.mrf.mxu0
    %v6869 = vadd.f32 %v6776, %v6868
    %6870 = vmatprep.mubr.bf16.mxu0 %v2866
    %6871 = vmatmul.mubr.bf16.gmra.mxu0 %v2865
    %v6872 = vpop.f32.mrf.mxu0
    %v6873 = vadd.f32 %v6780, %v6872
    %v6874 = vpop.f32.mrf.mxu0
    %v6875 = vadd.f32 %v6782, %v6874
    %v6876 = vpop.f32.mrf.mxu0
    %v6877 = vadd.f32 %v6784, %v6876
    %v6878 = vpop.f32.mrf.mxu0
    %v6879 = vadd.f32 %v6786, %v6878
    %6880 = vmatprep.mubr.bf16.mxu0 %v2870
    %6881 = vmatmul.mubr.bf16.gmra.mxu0 %v2869
    %v6882 = vpop.f32.mrf.mxu0
    %v6883 = vadd.f32 %v6790, %v6882
    %v6884 = vpop.f32.mrf.mxu0
    %v6885 = vadd.f32 %v6792, %v6884
    %v6886 = vpop.f32.mrf.mxu0
    %v6887 = vadd.f32 %v6794, %v6886
    %v6888 = vpop.f32.mrf.mxu0
    %v6889 = vadd.f32 %v6796, %v6888
    %6890 = vmatprep.mubr.bf16.mxu0 %v2874
    %6891 = vmatmul.mubr.bf16.gmra.mxu0 %v2873
    %v6892 = vpop.f32.mrf.mxu0
    %v6893 = vadd.f32 %v6800, %v6892
    %v6894 = vpop.f32.mrf.mxu0
    %v6895 = vadd.f32 %v6802, %v6894
    %v6896 = vpop.f32.mrf.mxu0
    %v6897 = vadd.f32 %v6804, %v6896
    %v6898 = vpop.f32.mrf.mxu0
    %v6899 = vadd.f32 %v6806, %v6898
    %6900 = vmatprep.mubr.bf16.mxu0 %v2878
    %6901 = vmatmul.mubr.bf16.gmra.mxu0 %v2877
    %v6902 = vpop.f32.mrf.mxu0
    %v6903 = vadd.f32 %v6810, %v6902
    %v6904 = vpop.f32.mrf.mxu0
    %v6905 = vadd.f32 %v6812, %v6904
    %v6906 = vpop.f32.mrf.mxu0
    %v6907 = vadd.f32 %v6814, %v6906
    %v6908 = vpop.f32.mrf.mxu0
    %v6909 = vadd.f32 %v6816, %v6908
    %6910 = vdwg.mxu0
    %6911 = vmatprep.subr.bf16.mxu0 %v4567
    %6912 = vmatpush1.bf16.msra.mxu0 %v4566
    %6913 = vmatprep.subr.bf16.mxu0 %v4563
    %6914 = vmatpush1.bf16.msra.mxu0 %v4562
    %6915 = vmatprep.subr.bf16.mxu0 %v4559
    %6916 = vmatpush1.bf16.msra.mxu0 %v4558
    %6917 = vmatprep.subr.bf16.mxu0 %v4555
    %6918 = vmatpush1.bf16.msra.mxu0 %v4554
    %6919 = vmatprep.subr.bf16.mxu0 %v4551
    %6920 = vmatpush1.bf16.msra.mxu0 %v4550
    %6921 = vmatprep.subr.bf16.mxu0 %v4547
    %6922 = vmatpush1.bf16.msra.mxu0 %v4546
    %6923 = vmatprep.subr.bf16.mxu0 %v4543
    %6924 = vmatpush1.bf16.msra.mxu0 %v4542
    %6925 = vmatprep.subr.bf16.mxu0 %v4539
    %6926 = vmatpush1.bf16.msra.mxu0 %v4538
    %6927 = vmatprep.subr.bf16.mxu0 %v4599
    %6928 = vmatpush2.bf16.msra.mxu0 %v4598
    %6929 = vmatprep.subr.bf16.mxu0 %v4595
    %6930 = vmatpush2.bf16.msra.mxu0 %v4594
    %6931 = vmatprep.subr.bf16.mxu0 %v4591
    %6932 = vmatpush2.bf16.msra.mxu0 %v4590
    %6933 = vmatprep.subr.bf16.mxu0 %v4587
    %6934 = vmatpush2.bf16.msra.mxu0 %v4586
    %6935 = vmatprep.subr.bf16.mxu0 %v4583
    %6936 = vmatpush2.bf16.msra.mxu0 %v4582
    %6937 = vmatprep.subr.bf16.mxu0 %v4579
    %6938 = vmatpush2.bf16.msra.mxu0 %v4578
    %6939 = vmatprep.subr.bf16.mxu0 %v4575
    %6940 = vmatpush2.bf16.msra.mxu0 %v4574
    %6941 = vmatprep.subr.bf16.mxu0 %v4571
    %6942 = vmatpush2.bf16.msra.mxu0 %v4570
    %6943 = vmatprep.mubr.bf16.mxu0 %v2856
    %6944 = vmatmul.mubr.bf16.gmra.mxu0 %v2855
    %v6945 = vpop.f32.mrf.mxu0
    %v6946 = vadd.f32 %v6667, %v6945
    %v6947 = vpop.f32.mrf.mxu0
    %v6948 = vadd.f32 %v6669, %v6947
    %v6949 = vpop.f32.mrf.mxu0
    %v6950 = vadd.f32 %v6671, %v6949
    %v6951 = vpop.f32.mrf.mxu0
    %v6952 = vadd.f32 %v6673, %v6951
    %6953 = vmatprep.mubr.bf16.mxu0 %v2860
    %6954 = vmatmul.mubr.bf16.gmra.mxu0 %v2859
    %v6955 = vpop.f32.mrf.mxu0
    %v6956 = vadd.f32 %v6677, %v6955
    %v6957 = vpop.f32.mrf.mxu0
    %v6958 = vadd.f32 %v6679, %v6957
    %v6959 = vpop.f32.mrf.mxu0
    %v6960 = vadd.f32 %v6681, %v6959
    %v6961 = vpop.f32.mrf.mxu0
    %v6962 = vadd.f32 %v6683, %v6961
    %6963 = vmatprep.mubr.bf16.mxu0 %v2864
    %6964 = vmatmul.mubr.bf16.gmra.mxu0 %v2863
    %v6965 = vpop.f32.mrf.mxu0
    %v6966 = vadd.f32 %v6687, %v6965
    %v6967 = vpop.f32.mrf.mxu0
    %v6968 = vadd.f32 %v6689, %v6967
    %v6969 = vpop.f32.mrf.mxu0
    %v6970 = vadd.f32 %v6691, %v6969
    %v6971 = vpop.f32.mrf.mxu0
    %v6972 = vadd.f32 %v6693, %v6971
    %6973 = vmatprep.mubr.bf16.mxu0 %v2868
    %6974 = vmatmul.mubr.bf16.gmra.mxu0 %v2867
    %v6975 = vpop.f32.mrf.mxu0
    %v6976 = vadd.f32 %v6697, %v6975
    %v6977 = vpop.f32.mrf.mxu0
    %v6978 = vadd.f32 %v6699, %v6977
    %v6979 = vpop.f32.mrf.mxu0
    %v6980 = vadd.f32 %v6701, %v6979
    %v6981 = vpop.f32.mrf.mxu0
    %v6982 = vadd.f32 %v6703, %v6981
    %6983 = vmatprep.mubr.bf16.mxu0 %v2872
    %6984 = vmatmul.mubr.bf16.gmra.mxu0 %v2871
    %v6985 = vpop.f32.mrf.mxu0
    %v6986 = vadd.f32 %v6707, %v6985
    %v6987 = vpop.f32.mrf.mxu0
    %v6988 = vadd.f32 %v6709, %v6987
    %v6989 = vpop.f32.mrf.mxu0
    %v6990 = vadd.f32 %v6711, %v6989
    %v6991 = vpop.f32.mrf.mxu0
    %v6992 = vadd.f32 %v6713, %v6991
    %6993 = vmatprep.mubr.bf16.mxu0 %v2876
    %6994 = vmatmul.mubr.bf16.gmra.mxu0 %v2875
    %v6995 = vpop.f32.mrf.mxu0
    %v6996 = vadd.f32 %v6717, %v6995
    %v6997 = vpop.f32.mrf.mxu0
    %v6998 = vadd.f32 %v6719, %v6997
    %v6999 = vpop.f32.mrf.mxu0
    %v7000 = vadd.f32 %v6721, %v6999
    %v7001 = vpop.f32.mrf.mxu0
    %v7002 = vadd.f32 %v6723, %v7001
    %7003 = vdwg.mxu0
    %7004 = vmatprep.subr.bf16.mxu0 %v4631
    %7005 = vmatpush1.bf16.msra.mxu0 %v4630
    %7006 = vmatprep.subr.bf16.mxu0 %v4627
    %7007 = vmatpush1.bf16.msra.mxu0 %v4626
    %7008 = vmatprep.subr.bf16.mxu0 %v4623
    %7009 = vmatpush1.bf16.msra.mxu0 %v4622
    %7010 = vmatprep.subr.bf16.mxu0 %v4619
    %7011 = vmatpush1.bf16.msra.mxu0 %v4618
    %7012 = vmatprep.subr.bf16.mxu0 %v4615
    %7013 = vmatpush1.bf16.msra.mxu0 %v4614
    %7014 = vmatprep.subr.bf16.mxu0 %v4611
    %7015 = vmatpush1.bf16.msra.mxu0 %v4610
    %7016 = vmatprep.subr.bf16.mxu0 %v4607
    %7017 = vmatpush1.bf16.msra.mxu0 %v4606
    %7018 = vmatprep.subr.bf16.mxu0 %v4603
    %7019 = vmatpush1.bf16.msra.mxu0 %v4602
    %7020 = vmatprep.subr.bf16.mxu0 %v4663
    %7021 = vmatpush2.bf16.msra.mxu0 %v4662
    %7022 = vmatprep.subr.bf16.mxu0 %v4659
    %7023 = vmatpush2.bf16.msra.mxu0 %v4658
    %7024 = vmatprep.subr.bf16.mxu0 %v4655
    %7025 = vmatpush2.bf16.msra.mxu0 %v4654
    %7026 = vmatprep.subr.bf16.mxu0 %v4651
    %7027 = vmatpush2.bf16.msra.mxu0 %v4650
    %7028 = vmatprep.subr.bf16.mxu0 %v4647
    %7029 = vmatpush2.bf16.msra.mxu0 %v4646
    %7030 = vmatprep.subr.bf16.mxu0 %v4643
    %7031 = vmatpush2.bf16.msra.mxu0 %v4642
    %7032 = vmatprep.subr.bf16.mxu0 %v4639
    %7033 = vmatpush2.bf16.msra.mxu0 %v4638
    %7034 = vmatprep.subr.bf16.mxu0 %v4635
    %7035 = vmatpush2.bf16.msra.mxu0 %v4634
    %7036 = vmatprep.mubr.bf16.mxu0 %v2858
    %7037 = vmatmul.mubr.bf16.gmra.mxu0 %v2857
    %v7038 = vpop.f32.mrf.mxu0
    %v7039 = vadd.f32 %v6946, %v7038
    %v7040 = vpop.f32.mrf.mxu0
    %v7041 = vadd.f32 %v6948, %v7040
    %v7042 = vpop.f32.mrf.mxu0
    %v7043 = vadd.f32 %v6950, %v7042
    %v7044 = vpop.f32.mrf.mxu0
    %v7045 = vadd.f32 %v6952, %v7044
    %7046 = vmatprep.mubr.bf16.mxu0 %v2862
    %7047 = vmatmul.mubr.bf16.gmra.mxu0 %v2861
    %v7048 = vpop.f32.mrf.mxu0
    %v7049 = vadd.f32 %v6956, %v7048
    %v7050 = vpop.f32.mrf.mxu0
    %v7051 = vadd.f32 %v6958, %v7050
    %v7052 = vpop.f32.mrf.mxu0
    %v7053 = vadd.f32 %v6960, %v7052
    %v7054 = vpop.f32.mrf.mxu0
    %v7055 = vadd.f32 %v6962, %v7054
    %7056 = vmatprep.mubr.bf16.mxu0 %v2866
    %7057 = vmatmul.mubr.bf16.gmra.mxu0 %v2865
    %v7058 = vpop.f32.mrf.mxu0
    %v7059 = vadd.f32 %v6966, %v7058
    %v7060 = vpop.f32.mrf.mxu0
    %v7061 = vadd.f32 %v6968, %v7060
    %v7062 = vpop.f32.mrf.mxu0
    %v7063 = vadd.f32 %v6970, %v7062
    %v7064 = vpop.f32.mrf.mxu0
    %v7065 = vadd.f32 %v6972, %v7064
    %7066 = vmatprep.mubr.bf16.mxu0 %v2870
    %7067 = vmatmul.mubr.bf16.gmra.mxu0 %v2869
    %v7068 = vpop.f32.mrf.mxu0
    %v7069 = vadd.f32 %v6976, %v7068
    %v7070 = vpop.f32.mrf.mxu0
    %v7071 = vadd.f32 %v6978, %v7070
    %v7072 = vpop.f32.mrf.mxu0
    %v7073 = vadd.f32 %v6980, %v7072
    %v7074 = vpop.f32.mrf.mxu0
    %v7075 = vadd.f32 %v6982, %v7074
    %7076 = vmatprep.mubr.bf16.mxu0 %v2874
    %7077 = vmatmul.mubr.bf16.gmra.mxu0 %v2873
    %v7078 = vpop.f32.mrf.mxu0
    %v7079 = vadd.f32 %v6986, %v7078
    %v7080 = vpop.f32.mrf.mxu0
    %v7081 = vadd.f32 %v6988, %v7080
    %v7082 = vpop.f32.mrf.mxu0
    %v7083 = vadd.f32 %v6990, %v7082
    %v7084 = vpop.f32.mrf.mxu0
    %v7085 = vadd.f32 %v6992, %v7084
    %7086 = vmatprep.mubr.bf16.mxu0 %v2878
    %7087 = vmatmul.mubr.bf16.gmra.mxu0 %v2877
    %v7088 = vpop.f32.mrf.mxu0
    %v7089 = vadd.f32 %v6996, %v7088
    %v7090 = vpop.f32.mrf.mxu0
    %v7091 = vadd.f32 %v6998, %v7090
    %v7092 = vpop.f32.mrf.mxu0
    %v7093 = vadd.f32 %v7000, %v7092
    %v7094 = vpop.f32.mrf.mxu0
    %v7095 = vadd.f32 %v7002, %v7094
    %7096 = vdwg.mxu0
    %7097 = vmatprep.subr.bf16.mxu0 %v5706
    %7098 = vmatpush1.bf16.msra.mxu0 %v5705
    %7099 = vmatprep.subr.bf16.mxu0 %v5702
    %7100 = vmatpush1.bf16.msra.mxu0 %v5701
    %7101 = vmatprep.subr.bf16.mxu0 %v5698
    %7102 = vmatpush1.bf16.msra.mxu0 %v5697
    %7103 = vmatprep.subr.bf16.mxu0 %v5694
    %7104 = vmatpush1.bf16.msra.mxu0 %v5693
    %7105 = vmatprep.subr.bf16.mxu0 %v5690
    %7106 = vmatpush1.bf16.msra.mxu0 %v5689
    %7107 = vmatprep.subr.bf16.mxu0 %v5686
    %7108 = vmatpush1.bf16.msra.mxu0 %v5685
    %7109 = vmatprep.subr.bf16.mxu0 %v5682
    %7110 = vmatpush1.bf16.msra.mxu0 %v5681
    %7111 = vmatprep.subr.bf16.mxu0 %v5678
    %7112 = vmatpush1.bf16.msra.mxu0 %v5677
    %7113 = vmatprep.subr.bf16.mxu0 %v5738
    %7114 = vmatpush2.bf16.msra.mxu0 %v5737
    %7115 = vmatprep.subr.bf16.mxu0 %v5734
    %7116 = vmatpush2.bf16.msra.mxu0 %v5733
    %7117 = vmatprep.subr.bf16.mxu0 %v5730
    %7118 = vmatpush2.bf16.msra.mxu0 %v5729
    %7119 = vmatprep.subr.bf16.mxu0 %v5726
    %7120 = vmatpush2.bf16.msra.mxu0 %v5725
    %7121 = vmatprep.subr.bf16.mxu0 %v5722
    %7122 = vmatpush2.bf16.msra.mxu0 %v5721
    %7123 = vmatprep.subr.bf16.mxu0 %v5718
    %7124 = vmatpush2.bf16.msra.mxu0 %v5717
    %7125 = vmatprep.subr.bf16.mxu0 %v5714
    %7126 = vmatpush2.bf16.msra.mxu0 %v5713
    %7127 = vmatprep.subr.bf16.mxu0 %v5710
    %7128 = vmatpush2.bf16.msra.mxu0 %v5709
    %7129 = vmatprep.mubr.bf16.mxu0 %v2860
    %7130 = vmatmul.mubr.bf16.gmra.mxu0 %v2859
    %v7131 = vpop.f32.mrf.mxu0
    %v7132 = vadd.f32 0.0, %v7131
    %v7133 = vpop.f32.mrf.mxu0
    %v7134 = vadd.f32 0.0, %v7133
    %v7135 = vpop.f32.mrf.mxu0
    %v7136 = vadd.f32 0.0, %v7135
    %v7137 = vpop.f32.mrf.mxu0
    %v7138 = vadd.f32 0.0, %v7137
    %7139 = vmatprep.mubr.bf16.mxu0 %v2864
    %7140 = vmatmul.mubr.bf16.gmra.mxu0 %v2863
    %v7141 = vpop.f32.mrf.mxu0
    %v7142 = vadd.f32 0.0, %v7141
    %v7143 = vpop.f32.mrf.mxu0
    %v7144 = vadd.f32 0.0, %v7143
    %v7145 = vpop.f32.mrf.mxu0
    %v7146 = vadd.f32 0.0, %v7145
    %v7147 = vpop.f32.mrf.mxu0
    %v7148 = vadd.f32 0.0, %v7147
    %7149 = vmatprep.mubr.bf16.mxu0 %v2868
    %7150 = vmatmul.mubr.bf16.gmra.mxu0 %v2867
    %v7151 = vpop.f32.mrf.mxu0
    %v7152 = vadd.f32 0.0, %v7151
    %v7153 = vpop.f32.mrf.mxu0
    %v7154 = vadd.f32 0.0, %v7153
    %v7155 = vpop.f32.mrf.mxu0
    %v7156 = vadd.f32 0.0, %v7155
    %v7157 = vpop.f32.mrf.mxu0
    %v7158 = vadd.f32 0.0, %v7157
    %7159 = vmatprep.mubr.bf16.mxu0 %v2872
    %7160 = vmatmul.mubr.bf16.gmra.mxu0 %v2871
    %v7161 = vpop.f32.mrf.mxu0
    %v7162 = vadd.f32 0.0, %v7161
    %v7163 = vpop.f32.mrf.mxu0
    %v7164 = vadd.f32 0.0, %v7163
    %v7165 = vpop.f32.mrf.mxu0
    %v7166 = vadd.f32 0.0, %v7165
    %v7167 = vpop.f32.mrf.mxu0
    %v7168 = vadd.f32 0.0, %v7167
    %7169 = vmatprep.mubr.bf16.mxu0 %v2876
    %7170 = vmatmul.mubr.bf16.gmra.mxu0 %v2875
    %v7171 = vpop.f32.mrf.mxu0
    %v7172 = vadd.f32 0.0, %v7171
    %v7173 = vpop.f32.mrf.mxu0
    %v7174 = vadd.f32 0.0, %v7173
    %v7175 = vpop.f32.mrf.mxu0
    %v7176 = vadd.f32 0.0, %v7175
    %v7177 = vpop.f32.mrf.mxu0
    %v7178 = vadd.f32 0.0, %v7177
    %7179 = vmatprep.mubr.bf16.mxu0 %v2880
    %7180 = vmatmul.mubr.bf16.gmra.mxu0 %v2879
    %v7181 = vpop.f32.mrf.mxu0
    %v7182 = vadd.f32 0.0, %v7181
    %v7183 = vpop.f32.mrf.mxu0
    %v7184 = vadd.f32 0.0, %v7183
    %v7185 = vpop.f32.mrf.mxu0
    %v7186 = vadd.f32 0.0, %v7185
    %v7187 = vpop.f32.mrf.mxu0
    %v7188 = vadd.f32 0.0, %v7187
    %7189 = vdwg.mxu0
    %7190 = vmatprep.subr.bf16.mxu0 %v5770
    %7191 = vmatpush1.bf16.msra.mxu0 %v5769
    %7192 = vmatprep.subr.bf16.mxu0 %v5766
    %7193 = vmatpush1.bf16.msra.mxu0 %v5765
    %7194 = vmatprep.subr.bf16.mxu0 %v5762
    %7195 = vmatpush1.bf16.msra.mxu0 %v5761
    %7196 = vmatprep.subr.bf16.mxu0 %v5758
    %7197 = vmatpush1.bf16.msra.mxu0 %v5757
    %7198 = vmatprep.subr.bf16.mxu0 %v5754
    %7199 = vmatpush1.bf16.msra.mxu0 %v5753
    %7200 = vmatprep.subr.bf16.mxu0 %v5750
    %7201 = vmatpush1.bf16.msra.mxu0 %v5749
    %7202 = vmatprep.subr.bf16.mxu0 %v5746
    %7203 = vmatpush1.bf16.msra.mxu0 %v5745
    %7204 = vmatprep.subr.bf16.mxu0 %v5742
    %7205 = vmatpush1.bf16.msra.mxu0 %v5741
    %7206 = vmatprep.subr.bf16.mxu0 %v5802
    %7207 = vmatpush2.bf16.msra.mxu0 %v5801
    %7208 = vmatprep.subr.bf16.mxu0 %v5798
    %7209 = vmatpush2.bf16.msra.mxu0 %v5797
    %7210 = vmatprep.subr.bf16.mxu0 %v5794
    %7211 = vmatpush2.bf16.msra.mxu0 %v5793
    %7212 = vmatprep.subr.bf16.mxu0 %v5790
    %7213 = vmatpush2.bf16.msra.mxu0 %v5789
    %7214 = vmatprep.subr.bf16.mxu0 %v5786
    %7215 = vmatpush2.bf16.msra.mxu0 %v5785
    %7216 = vmatprep.subr.bf16.mxu0 %v5782
    %7217 = vmatpush2.bf16.msra.mxu0 %v5781
    %7218 = vmatprep.subr.bf16.mxu0 %v5778
    %7219 = vmatpush2.bf16.msra.mxu0 %v5777
    %7220 = vmatprep.subr.bf16.mxu0 %v5774
    %7221 = vmatpush2.bf16.msra.mxu0 %v5773
    %7222 = vmatprep.mubr.bf16.mxu0 %v2862
    %7223 = vmatmul.mubr.bf16.gmra.mxu0 %v2861
    %v7224 = vpop.f32.mrf.mxu0
    %v7225 = vadd.f32 %v7132, %v7224
    %v7226 = vpop.f32.mrf.mxu0
    %v7227 = vadd.f32 %v7134, %v7226
    %v7228 = vpop.f32.mrf.mxu0
    %v7229 = vadd.f32 %v7136, %v7228
    %v7230 = vpop.f32.mrf.mxu0
    %v7231 = vadd.f32 %v7138, %v7230
    %7232 = vmatprep.mubr.bf16.mxu0 %v2866
    %7233 = vmatmul.mubr.bf16.gmra.mxu0 %v2865
    %v7234 = vpop.f32.mrf.mxu0
    %v7235 = vadd.f32 %v7142, %v7234
    %v7236 = vpop.f32.mrf.mxu0
    %v7237 = vadd.f32 %v7144, %v7236
    %v7238 = vpop.f32.mrf.mxu0
    %v7239 = vadd.f32 %v7146, %v7238
    %v7240 = vpop.f32.mrf.mxu0
    %v7241 = vadd.f32 %v7148, %v7240
    %7242 = vmatprep.mubr.bf16.mxu0 %v2870
    %7243 = vmatmul.mubr.bf16.gmra.mxu0 %v2869
    %v7244 = vpop.f32.mrf.mxu0
    %v7245 = vadd.f32 %v7152, %v7244
    %v7246 = vpop.f32.mrf.mxu0
    %v7247 = vadd.f32 %v7154, %v7246
    %v7248 = vpop.f32.mrf.mxu0
    %v7249 = vadd.f32 %v7156, %v7248
    %v7250 = vpop.f32.mrf.mxu0
    %v7251 = vadd.f32 %v7158, %v7250
    %7252 = vmatprep.mubr.bf16.mxu0 %v2874
    %7253 = vmatmul.mubr.bf16.gmra.mxu0 %v2873
    %v7254 = vpop.f32.mrf.mxu0
    %v7255 = vadd.f32 %v7162, %v7254
    %v7256 = vpop.f32.mrf.mxu0
    %v7257 = vadd.f32 %v7164, %v7256
    %v7258 = vpop.f32.mrf.mxu0
    %v7259 = vadd.f32 %v7166, %v7258
    %v7260 = vpop.f32.mrf.mxu0
    %v7261 = vadd.f32 %v7168, %v7260
    %7262 = vmatprep.mubr.bf16.mxu0 %v2878
    %7263 = vmatmul.mubr.bf16.gmra.mxu0 %v2877
    %v7264 = vpop.f32.mrf.mxu0
    %v7265 = vadd.f32 %v7172, %v7264
    %v7266 = vpop.f32.mrf.mxu0
    %v7267 = vadd.f32 %v7174, %v7266
    %v7268 = vpop.f32.mrf.mxu0
    %v7269 = vadd.f32 %v7176, %v7268
    %v7270 = vpop.f32.mrf.mxu0
    %v7271 = vadd.f32 %v7178, %v7270
    %7272 = vmatprep.mubr.bf16.mxu0 %v2882
    %7273 = vmatmul.mubr.bf16.gmra.mxu0 %v2881
    %v7274 = vpop.f32.mrf.mxu0
    %v7275 = vadd.f32 %v7182, %v7274
    %v7276 = vpop.f32.mrf.mxu0
    %v7277 = vadd.f32 %v7184, %v7276
    %v7278 = vpop.f32.mrf.mxu0
    %v7279 = vadd.f32 %v7186, %v7278
    %v7280 = vpop.f32.mrf.mxu0
    %v7281 = vadd.f32 %v7188, %v7280
    %7282 = vdwg.mxu0
    %7283 = vmatprep.subr.bf16.mxu0 %v5708
    %7284 = vmatpush1.bf16.msra.mxu0 %v5707
    %7285 = vmatprep.subr.bf16.mxu0 %v5704
    %7286 = vmatpush1.bf16.msra.mxu0 %v5703
    %7287 = vmatprep.subr.bf16.mxu0 %v5700
    %7288 = vmatpush1.bf16.msra.mxu0 %v5699
    %7289 = vmatprep.subr.bf16.mxu0 %v5696
    %7290 = vmatpush1.bf16.msra.mxu0 %v5695
    %7291 = vmatprep.subr.bf16.mxu0 %v5692
    %7292 = vmatpush1.bf16.msra.mxu0 %v5691
    %7293 = vmatprep.subr.bf16.mxu0 %v5688
    %7294 = vmatpush1.bf16.msra.mxu0 %v5687
    %7295 = vmatprep.subr.bf16.mxu0 %v5684
    %7296 = vmatpush1.bf16.msra.mxu0 %v5683
    %7297 = vmatprep.subr.bf16.mxu0 %v5680
    %7298 = vmatpush1.bf16.msra.mxu0 %v5679
    %7299 = vmatprep.subr.bf16.mxu0 %v5740
    %7300 = vmatpush2.bf16.msra.mxu0 %v5739
    %7301 = vmatprep.subr.bf16.mxu0 %v5736
    %7302 = vmatpush2.bf16.msra.mxu0 %v5735
    %7303 = vmatprep.subr.bf16.mxu0 %v5732
    %7304 = vmatpush2.bf16.msra.mxu0 %v5731
    %7305 = vmatprep.subr.bf16.mxu0 %v5728
    %7306 = vmatpush2.bf16.msra.mxu0 %v5727
    %7307 = vmatprep.subr.bf16.mxu0 %v5724
    %7308 = vmatpush2.bf16.msra.mxu0 %v5723
    %7309 = vmatprep.subr.bf16.mxu0 %v5720
    %7310 = vmatpush2.bf16.msra.mxu0 %v5719
    %7311 = vmatprep.subr.bf16.mxu0 %v5716
    %7312 = vmatpush2.bf16.msra.mxu0 %v5715
    %7313 = vmatprep.subr.bf16.mxu0 %v5712
    %7314 = vmatpush2.bf16.msra.mxu0 %v5711
    %7315 = vmatprep.mubr.bf16.mxu0 %v2860
    %7316 = vmatmul.mubr.bf16.gmra.mxu0 %v2859
    %v7317 = vpop.f32.mrf.mxu0
    %v7318 = vadd.f32 0.0, %v7317
    %v7319 = vpop.f32.mrf.mxu0
    %v7320 = vadd.f32 0.0, %v7319
    %v7321 = vpop.f32.mrf.mxu0
    %v7322 = vadd.f32 0.0, %v7321
    %v7323 = vpop.f32.mrf.mxu0
    %v7324 = vadd.f32 0.0, %v7323
    %7325 = vmatprep.mubr.bf16.mxu0 %v2864
    %7326 = vmatmul.mubr.bf16.gmra.mxu0 %v2863
    %v7327 = vpop.f32.mrf.mxu0
    %v7328 = vadd.f32 0.0, %v7327
    %v7329 = vpop.f32.mrf.mxu0
    %v7330 = vadd.f32 0.0, %v7329
    %v7331 = vpop.f32.mrf.mxu0
    %v7332 = vadd.f32 0.0, %v7331
    %v7333 = vpop.f32.mrf.mxu0
    %v7334 = vadd.f32 0.0, %v7333
    %7335 = vmatprep.mubr.bf16.mxu0 %v2868
    %7336 = vmatmul.mubr.bf16.gmra.mxu0 %v2867
    %v7337 = vpop.f32.mrf.mxu0
    %v7338 = vadd.f32 0.0, %v7337
    %v7339 = vpop.f32.mrf.mxu0
    %v7340 = vadd.f32 0.0, %v7339
    %v7341 = vpop.f32.mrf.mxu0
    %v7342 = vadd.f32 0.0, %v7341
    %v7343 = vpop.f32.mrf.mxu0
    %v7344 = vadd.f32 0.0, %v7343
    %7345 = vmatprep.mubr.bf16.mxu0 %v2872
    %7346 = vmatmul.mubr.bf16.gmra.mxu0 %v2871
    %v7347 = vpop.f32.mrf.mxu0
    %v7348 = vadd.f32 0.0, %v7347
    %v7349 = vpop.f32.mrf.mxu0
    %v7350 = vadd.f32 0.0, %v7349
    %v7351 = vpop.f32.mrf.mxu0
    %v7352 = vadd.f32 0.0, %v7351
    %v7353 = vpop.f32.mrf.mxu0
    %v7354 = vadd.f32 0.0, %v7353
    %7355 = vmatprep.mubr.bf16.mxu0 %v2876
    %7356 = vmatmul.mubr.bf16.gmra.mxu0 %v2875
    %v7357 = vpop.f32.mrf.mxu0
    %v7358 = vadd.f32 0.0, %v7357
    %v7359 = vpop.f32.mrf.mxu0
    %v7360 = vadd.f32 0.0, %v7359
    %v7361 = vpop.f32.mrf.mxu0
    %v7362 = vadd.f32 0.0, %v7361
    %v7363 = vpop.f32.mrf.mxu0
    %v7364 = vadd.f32 0.0, %v7363
    %7365 = vmatprep.mubr.bf16.mxu0 %v2880
    %7366 = vmatmul.mubr.bf16.gmra.mxu0 %v2879
    %v7367 = vpop.f32.mrf.mxu0
    %v7368 = vadd.f32 0.0, %v7367
    %v7369 = vpop.f32.mrf.mxu0
    %v7370 = vadd.f32 0.0, %v7369
    %v7371 = vpop.f32.mrf.mxu0
    %v7372 = vadd.f32 0.0, %v7371
    %v7373 = vpop.f32.mrf.mxu0
    %v7374 = vadd.f32 0.0, %v7373
    %7375 = vdwg.mxu0
    %7376 = vmatprep.subr.bf16.mxu0 %v5772
    %7377 = vmatpush1.bf16.msra.mxu0 %v5771
    %7378 = vmatprep.subr.bf16.mxu0 %v5768
    %7379 = vmatpush1.bf16.msra.mxu0 %v5767
    %7380 = vmatprep.subr.bf16.mxu0 %v5764
    %7381 = vmatpush1.bf16.msra.mxu0 %v5763
    %7382 = vmatprep.subr.bf16.mxu0 %v5760
    %7383 = vmatpush1.bf16.msra.mxu0 %v5759
    %7384 = vmatprep.subr.bf16.mxu0 %v5756
    %7385 = vmatpush1.bf16.msra.mxu0 %v5755
    %7386 = vmatprep.subr.bf16.mxu0 %v5752
    %7387 = vmatpush1.bf16.msra.mxu0 %v5751
    %7388 = vmatprep.subr.bf16.mxu0 %v5748
    %7389 = vmatpush1.bf16.msra.mxu0 %v5747
    %7390 = vmatprep.subr.bf16.mxu0 %v5744
    %7391 = vmatpush1.bf16.msra.mxu0 %v5743
    %7392 = vmatprep.subr.bf16.mxu0 %v5804
    %7393 = vmatpush2.bf16.msra.mxu0 %v5803
    %7394 = vmatprep.subr.bf16.mxu0 %v5800
    %7395 = vmatpush2.bf16.msra.mxu0 %v5799
    %7396 = vmatprep.subr.bf16.mxu0 %v5796
    %7397 = vmatpush2.bf16.msra.mxu0 %v5795
    %7398 = vmatprep.subr.bf16.mxu0 %v5792
    %7399 = vmatpush2.bf16.msra.mxu0 %v5791
    %7400 = vmatprep.subr.bf16.mxu0 %v5788
    %7401 = vmatpush2.bf16.msra.mxu0 %v5787
    %7402 = vmatprep.subr.bf16.mxu0 %v5784
    %7403 = vmatpush2.bf16.msra.mxu0 %v5783
    %7404 = vmatprep.subr.bf16.mxu0 %v5780
    %7405 = vmatpush2.bf16.msra.mxu0 %v5779
    %7406 = vmatprep.subr.bf16.mxu0 %v5776
    %7407 = vmatpush2.bf16.msra.mxu0 %v5775
    %7408 = vmatprep.mubr.bf16.mxu0 %v2862
    %7409 = vmatmul.mubr.bf16.gmra.mxu0 %v2861
    %v7410 = vpop.f32.mrf.mxu0
    %v7411 = vadd.f32 %v7318, %v7410
    %v7412 = vpop.f32.mrf.mxu0
    %v7413 = vadd.f32 %v7320, %v7412
    %v7414 = vpop.f32.mrf.mxu0
    %v7415 = vadd.f32 %v7322, %v7414
    %v7416 = vpop.f32.mrf.mxu0
    %v7417 = vadd.f32 %v7324, %v7416
    %7418 = vmatprep.mubr.bf16.mxu0 %v2866
    %7419 = vmatmul.mubr.bf16.gmra.mxu0 %v2865
    %v7420 = vpop.f32.mrf.mxu0
    %v7421 = vadd.f32 %v7328, %v7420
    %v7422 = vpop.f32.mrf.mxu0
    %v7423 = vadd.f32 %v7330, %v7422
    %v7424 = vpop.f32.mrf.mxu0
    %v7425 = vadd.f32 %v7332, %v7424
    %v7426 = vpop.f32.mrf.mxu0
    %v7427 = vadd.f32 %v7334, %v7426
    %7428 = vmatprep.mubr.bf16.mxu0 %v2870
    %7429 = vmatmul.mubr.bf16.gmra.mxu0 %v2869
    %v7430 = vpop.f32.mrf.mxu0
    %v7431 = vadd.f32 %v7338, %v7430
    %v7432 = vpop.f32.mrf.mxu0
    %v7433 = vadd.f32 %v7340, %v7432
    %v7434 = vpop.f32.mrf.mxu0
    %v7435 = vadd.f32 %v7342, %v7434
    %v7436 = vpop.f32.mrf.mxu0
    %v7437 = vadd.f32 %v7344, %v7436
    %7438 = vmatprep.mubr.bf16.mxu0 %v2874
    %7439 = vmatmul.mubr.bf16.gmra.mxu0 %v2873
    %v7440 = vpop.f32.mrf.mxu0
    %v7441 = vadd.f32 %v7348, %v7440
    %v7442 = vpop.f32.mrf.mxu0
    %v7443 = vadd.f32 %v7350, %v7442
    %v7444 = vpop.f32.mrf.mxu0
    %v7445 = vadd.f32 %v7352, %v7444
    %v7446 = vpop.f32.mrf.mxu0
    %v7447 = vadd.f32 %v7354, %v7446
    %7448 = vmatprep.mubr.bf16.mxu0 %v2878
    %7449 = vmatmul.mubr.bf16.gmra.mxu0 %v2877
    %v7450 = vpop.f32.mrf.mxu0
    %v7451 = vadd.f32 %v7358, %v7450
    %v7452 = vpop.f32.mrf.mxu0
    %v7453 = vadd.f32 %v7360, %v7452
    %v7454 = vpop.f32.mrf.mxu0
    %v7455 = vadd.f32 %v7362, %v7454
    %v7456 = vpop.f32.mrf.mxu0
    %v7457 = vadd.f32 %v7364, %v7456
    %7458 = vmatprep.mubr.bf16.mxu0 %v2882
    %7459 = vmatmul.mubr.bf16.gmra.mxu0 %v2881
    %v7460 = vpop.f32.mrf.mxu0
    %v7461 = vadd.f32 %v7368, %v7460
    %v7462 = vpop.f32.mrf.mxu0
    %v7463 = vadd.f32 %v7370, %v7462
    %v7464 = vpop.f32.mrf.mxu0
    %v7465 = vadd.f32 %v7372, %v7464
    %v7466 = vpop.f32.mrf.mxu0
    %v7467 = vadd.f32 %v7374, %v7466
    %7468 = vdwg.mxu0
    %v7469 = vadd.f32 %v6853, %v7225
    %v7470 = vadd.f32 %v6855, %v7227
    %v7471 = vadd.f32 %v7039, %v7411
    %v7472 = vadd.f32 %v7041, %v7413
    %v7473 = vadd.f32 %v6857, %v7229
    %v7474 = vadd.f32 %v6859, %v7231
    %v7475 = vadd.f32 %v7043, %v7415
    %v7476 = vadd.f32 %v7045, %v7417
    %v7477 = vadd.f32 %v6863, %v7235
    %v7478 = vadd.f32 %v6865, %v7237
    %v7479 = vadd.f32 %v7049, %v7421
    %v7480 = vadd.f32 %v7051, %v7423
    %v7481 = vadd.f32 %v6867, %v7239
    %v7482 = vadd.f32 %v6869, %v7241
    %v7483 = vadd.f32 %v7053, %v7425
    %v7484 = vadd.f32 %v7055, %v7427
    %v7485 = vadd.f32 %v6873, %v7245
    %v7486 = vadd.f32 %v6875, %v7247
    %v7487 = vadd.f32 %v7059, %v7431
    %v7488 = vadd.f32 %v7061, %v7433
    %v7489 = vadd.f32 %v6877, %v7249
    %v7490 = vadd.f32 %v6879, %v7251
    %v7491 = vadd.f32 %v7063, %v7435
    %v7492 = vadd.f32 %v7065, %v7437
    %v7493 = vadd.f32 %v6883, %v7255
    %v7494 = vadd.f32 %v6885, %v7257
    %v7495 = vadd.f32 %v7069, %v7441
    %v7496 = vadd.f32 %v7071, %v7443
    %v7497 = vadd.f32 %v6887, %v7259
    %v7498 = vadd.f32 %v6889, %v7261
    %v7499 = vadd.f32 %v7073, %v7445
    %v7500 = vadd.f32 %v7075, %v7447
    %v7501 = vadd.f32 %v6893, %v7265
    %v7502 = vadd.f32 %v6895, %v7267
    %v7503 = vadd.f32 %v7079, %v7451
    %v7504 = vadd.f32 %v7081, %v7453
    %v7505 = vadd.f32 %v6897, %v7269
    %v7506 = vadd.f32 %v6899, %v7271
    %v7507 = vadd.f32 %v7083, %v7455
    %v7508 = vadd.f32 %v7085, %v7457
    %v7509 = vadd.f32 %v6903, %v7275
    %v7510 = vadd.f32 %v6905, %v7277
    %v7511 = vadd.f32 %v7089, %v7461
    %v7512 = vadd.f32 %v7091, %v7463
    %v7513 = vadd.f32 %v6907, %v7279
    %v7514 = vadd.f32 %v6909, %v7281
    %v7515 = vadd.f32 %v7093, %v7465
    %v7516 = vadd.f32 %v7095, %v7467
    %v7517 = vmax.f32 %v6305, %v7469
    %v7518 = vmax.f32 %v6306, %v7470
    %v7519 = vmax.f32 %v6307, %v7471
    %v7520 = vmax.f32 %v6308, %v7472
    %v7521 = vmax.f32 %v6309, %v7473
    %v7522 = vmax.f32 %v6310, %v7474
    %v7523 = vmax.f32 %v6311, %v7475
    %v7524 = vmax.f32 %v6312, %v7476
    %v7525 = vmax.f32 %v6313, %v7477
    %v7526 = vmax.f32 %v6314, %v7478
    %v7527 = vmax.f32 %v6315, %v7479
    %v7528 = vmax.f32 %v6316, %v7480
    %v7529 = vmax.f32 %v6317, %v7481
    %v7530 = vmax.f32 %v6318, %v7482
    %v7531 = vmax.f32 %v6319, %v7483
    %v7532 = vmax.f32 %v6320, %v7484
    %v7533 = vmax.f32 %v6321, %v7485
    %v7534 = vmax.f32 %v6322, %v7486
    %v7535 = vmax.f32 %v6323, %v7487
    %v7536 = vmax.f32 %v6324, %v7488
    %v7537 = vmax.f32 %v6325, %v7489
    %v7538 = vmax.f32 %v6326, %v7490
    %v7539 = vmax.f32 %v6327, %v7491
    %v7540 = vmax.f32 %v6328, %v7492
    %v7541 = vmax.f32 %v6329, %v7493
    %v7542 = vmax.f32 %v6330, %v7494
    %v7543 = vmax.f32 %v6331, %v7495
    %v7544 = vmax.f32 %v6332, %v7496
    %v7545 = vmax.f32 %v6333, %v7497
    %v7546 = vmax.f32 %v6334, %v7498
    %v7547 = vmax.f32 %v6335, %v7499
    %v7548 = vmax.f32 %v6336, %v7500
    %v7549 = vmax.f32 %v6337, %v7501
    %v7550 = vmax.f32 %v6338, %v7502
    %v7551 = vmax.f32 %v6339, %v7503
    %v7552 = vmax.f32 %v6340, %v7504
    %v7553 = vmax.f32 %v6341, %v7505
    %v7554 = vmax.f32 %v6342, %v7506
    %v7555 = vmax.f32 %v6343, %v7507
    %v7556 = vmax.f32 %v6344, %v7508
    %v7557 = vmax.f32 %v6345, %v7509
    %v7558 = vmax.f32 %v6346, %v7510
    %v7559 = vmax.f32 %v6347, %v7511
    %v7560 = vmax.f32 %v6348, %v7512
    %v7561 = vmax.f32 %v6349, %v7513
    %v7562 = vmax.f32 %v6350, %v7514
    %v7563 = vmax.f32 %v6351, %v7515
    %v7564 = vmax.f32 %v6352, %v7516
    %v7565 = vmax.f32 %v7517, %v7519
    %v7566 = vmax.f32 %v7518, %v7520
    %v7567 = vmax.f32 %v7521, %v7523
    %v7568 = vmax.f32 %v7522, %v7524
    %v7569 = vmax.f32 %v7525, %v7527
    %v7570 = vmax.f32 %v7526, %v7528
    %v7571 = vmax.f32 %v7529, %v7531
    %v7572 = vmax.f32 %v7530, %v7532
    %v7573 = vmax.f32 %v7533, %v7535
    %v7574 = vmax.f32 %v7534, %v7536
    %v7575 = vmax.f32 %v7537, %v7539
    %v7576 = vmax.f32 %v7538, %v7540
    %v7577 = vmax.f32 %v7541, %v7543
    %v7578 = vmax.f32 %v7542, %v7544
    %v7579 = vmax.f32 %v7545, %v7547
    %v7580 = vmax.f32 %v7546, %v7548
    %v7581 = vmax.f32 %v7549, %v7551
    %v7582 = vmax.f32 %v7550, %v7552
    %v7583 = vmax.f32 %v7553, %v7555
    %v7584 = vmax.f32 %v7554, %v7556
    %v7585 = vmax.f32 %v7557, %v7559
    %v7586 = vmax.f32 %v7558, %v7560
    %v7587 = vmax.f32 %v7561, %v7563
    %v7588 = vmax.f32 %v7562, %v7564
    %v7589 = vld [vmem:[#allocation7] sm:$0x3]
    %v7591 = vlaneseq
    %v7592 = vshrl.u32 %v7591, 7
    %v7593 = vsub.s32 0, %v7592
    %v7594 = vrot.slane %v7589, %v7593
    %v7595 = vlaneseq
    %v7596 = vshrl.u32 %v7595, 7
    %v7597 = vsub.s32 1, %v7596
    %v7598 = vrot.slane %v7589, %v7597
    %v7601 = vadd.f32 %v7565, %v7594
    %v7602 = vadd.f32 %v7566, %v7598
    %v7603 = vadd.f32 %v7567, %v7594
    %v7604 = vadd.f32 %v7568, %v7598
    %v7605 = vadd.f32 %v7569, %v7594
    %v7606 = vadd.f32 %v7570, %v7598
    %v7607 = vadd.f32 %v7571, %v7594
    %v7608 = vadd.f32 %v7572, %v7598
    %v7609 = vadd.f32 %v7573, %v7594
    %v7610 = vadd.f32 %v7574, %v7598
    %v7611 = vadd.f32 %v7575, %v7594
    %v7612 = vadd.f32 %v7576, %v7598
    %v7613 = vadd.f32 %v7577, %v7594
    %v7614 = vadd.f32 %v7578, %v7598
    %v7615 = vadd.f32 %v7579, %v7594
    %v7616 = vadd.f32 %v7580, %v7598
    %v7617 = vadd.f32 %v7581, %v7594
    %v7618 = vadd.f32 %v7582, %v7598
    %v7619 = vadd.f32 %v7583, %v7594
    %v7620 = vadd.f32 %v7584, %v7598
    %v7621 = vadd.f32 %v7585, %v7594
    %v7622 = vadd.f32 %v7586, %v7598
    %v7623 = vadd.f32 %v7587, %v7594
    %v7624 = vadd.f32 %v7588, %v7598
    %v7625 = vmax.f32 %v7601, 0.0
    %v7626 = vmax.f32 %v7602, 0.0
    %v7627 = vmax.f32 %v7603, 0.0
    %v7628 = vmax.f32 %v7604, 0.0
    %v7629 = vmax.f32 %v7605, 0.0
    %v7630 = vmax.f32 %v7606, 0.0
    %v7631 = vmax.f32 %v7607, 0.0
    %v7632 = vmax.f32 %v7608, 0.0
    %v7633 = vmax.f32 %v7609, 0.0
    %v7634 = vmax.f32 %v7610, 0.0
    %v7635 = vmax.f32 %v7611, 0.0
    %v7636 = vmax.f32 %v7612, 0.0
    %v7637 = vmax.f32 %v7613, 0.0
    %v7638 = vmax.f32 %v7614, 0.0
    %v7639 = vmax.f32 %v7615, 0.0
    %v7640 = vmax.f32 %v7616, 0.0
    %v7641 = vmax.f32 %v7617, 0.0
    %v7642 = vmax.f32 %v7618, 0.0
    %v7643 = vmax.f32 %v7619, 0.0
    %v7644 = vmax.f32 %v7620, 0.0
    %v7645 = vmax.f32 %v7621, 0.0
    %v7646 = vmax.f32 %v7622, 0.0
    %v7647 = vmax.f32 %v7623, 0.0
    %v7648 = vmax.f32 %v7624, 0.0
    %v7649 = vpack.c.bf16 %v7627, %v7625
    %v7650 = vpack.c.bf16 %v7628, %v7626
    %v7651 = vpack.c.bf16 %v7631, %v7629
    %v7652 = vpack.c.bf16 %v7632, %v7630
    %v7653 = vpack.c.bf16 %v7635, %v7633
    %v7654 = vpack.c.bf16 %v7636, %v7634
    %v7655 = vpack.c.bf16 %v7639, %v7637
    %v7656 = vpack.c.bf16 %v7640, %v7638
    %v7657 = vpack.c.bf16 %v7643, %v7641
    %v7658 = vpack.c.bf16 %v7644, %v7642
    %v7659 = vpack.c.bf16 %v7647, %v7645
    %v7660 = vpack.c.bf16 %v7648, %v7646
    %v7661 = vld [vmem:[%s5] sm:$0xff]
    %v7662 = vld [vmem:[%s5 + $0x8] sm:$0xff]
    %v7663 = vld [vmem:[%s5 + $0x10] sm:$0xff]
    %v7664 = vld [vmem:[%s5 + $0x18] sm:$0xff]
    %v7665 = vld [vmem:[%s5 + $0x20] sm:$0xff]
    %v7666 = vld [vmem:[%s5 + $0x28] sm:$0xff]
    %v7667 = vld [vmem:[%s5 + $0x30] sm:$0xff]
    %v7668 = vld [vmem:[%s5 + $0x38] sm:$0xff]
    %v7669 = vld [vmem:[%s5 + $0x40] sm:$0xff]
    %v7670 = vld [vmem:[%s5 + $0x48] sm:$0xff]
    %v7671 = vld [vmem:[%s5 + $0x50] sm:$0xff]
    %v7672 = vld [vmem:[%s5 + $0x58] sm:$0xff]
    %v7673 = vld [vmem:[%s5 + $0x60] sm:$0xff]
    %v7674 = vld [vmem:[%s5 + $0x68] sm:$0xff]
    %v7675 = vld [vmem:[%s5 + $0x70] sm:$0xff]
    %v7676 = vld [vmem:[%s5 + $0x78] sm:$0xff]
    %v7677 = vld [vmem:[%s5 + $0x80] sm:$0xff]
    %v7678 = vld [vmem:[%s5 + $0x88] sm:$0xff]
    %v7679 = vld [vmem:[%s5 + $0x90] sm:$0xff]
    %v7680 = vld [vmem:[%s5 + $0x98] sm:$0xff]
    %v7681 = vld [vmem:[%s5 + $0xa0] sm:$0xff]
    %v7682 = vld [vmem:[%s5 + $0xa8] sm:$0xff]
    %v7683 = vld [vmem:[%s5 + $0xb0] sm:$0xff]
    %v7684 = vld [vmem:[%s5 + $0xb8] sm:$0xff]
    %v7685 = vld [vmem:[%s5 + $0xc0] sm:$0xff]
    %v7686 = vld [vmem:[%s5 + $0xc8] sm:$0xff]
    %v7687 = vld [vmem:[%s5 + $0xd0] sm:$0xff]
    %v7688 = vld [vmem:[%s5 + $0xd8] sm:$0xff]
    %v7689 = vld [vmem:[%s5 + $0xe0] sm:$0xff]
    %v7690 = vld [vmem:[%s5 + $0xe8] sm:$0xff]
    %v7691 = vld [vmem:[%s5 + $0xf0] sm:$0xff]
    %v7692 = vld [vmem:[%s5 + $0xf8] sm:$0xff]
    %v7693 = vld [vmem:[%s5 + $0x100] sm:$0xff]
    %v7694 = vld [vmem:[%s5 + $0x108] sm:$0xff]
    %v7695 = vld [vmem:[%s5 + $0x110] sm:$0xff]
    %v7696 = vld [vmem:[%s5 + $0x118] sm:$0xff]
    %v7697 = vld [vmem:[%s5 + $0x120] sm:$0xff]
    %v7698 = vld [vmem:[%s5 + $0x128] sm:$0xff]
    %v7699 = vld [vmem:[%s5 + $0x130] sm:$0xff]
    %v7700 = vld [vmem:[%s5 + $0x138] sm:$0xff]
    %v7701 = vld [vmem:[%s5 + $0x140] sm:$0xff]
    %v7702 = vld [vmem:[%s5 + $0x148] sm:$0xff]
    %v7703 = vld [vmem:[%s5 + $0x150] sm:$0xff]
    %v7704 = vld [vmem:[%s5 + $0x158] sm:$0xff]
    %v7705 = vld [vmem:[%s5 + $0x160] sm:$0xff]
    %v7706 = vld [vmem:[%s5 + $0x168] sm:$0xff]
    %v7707 = vld [vmem:[%s5 + $0x170] sm:$0xff]
    %v7708 = vld [vmem:[%s5 + $0x178] sm:$0xff]
    %v7709 = vld [vmem:[%s5 + $0x180] sm:$0xff]
    %v7710 = vld [vmem:[%s5 + $0x188] sm:$0xff]
    %v7711 = vld [vmem:[%s5 + $0x190] sm:$0xff]
    %v7712 = vld [vmem:[%s5 + $0x198] sm:$0xff]
    %v7713 = vld [vmem:[%s5 + $0x1a0] sm:$0xff]
    %v7714 = vld [vmem:[%s5 + $0x1a8] sm:$0xff]
    %v7715 = vld [vmem:[%s5 + $0x1b0] sm:$0xff]
    %v7716 = vld [vmem:[%s5 + $0x1b8] sm:$0xff]
    %v7717 = vld [vmem:[%s5 + $0x1c0] sm:$0xff]
    %v7718 = vld [vmem:[%s5 + $0x1c8] sm:$0xff]
    %v7719 = vld [vmem:[%s5 + $0x1d0] sm:$0xff]
    %v7720 = vld [vmem:[%s5 + $0x1d8] sm:$0xff]
    %v7721 = vld [vmem:[%s5 + $0x1e0] sm:$0xff]
    %v7722 = vld [vmem:[%s5 + $0x1e8] sm:$0xff]
    %v7723 = vld [vmem:[%s5 + $0x1f0] sm:$0xff]
    %v7724 = vld [vmem:[%s5 + $0x1f8] sm:$0xff]
    %v7757 = vunpack.c.l.b16 %v7693
    %v7758 = vunpack.c.h.b16 %v7693
    %v7759 = vunpack.c.l.b16 %v7694
    %v7760 = vunpack.c.h.b16 %v7694
    %v7761 = vunpack.c.l.b16 %v7695
    %v7762 = vunpack.c.h.b16 %v7695
    %v7763 = vunpack.c.l.b16 %v7696
    %v7764 = vunpack.c.h.b16 %v7696
    %v7765 = vunpack.c.l.b16 %v7697
    %v7766 = vunpack.c.h.b16 %v7697
    %v7767 = vunpack.c.l.b16 %v7698
    %v7768 = vunpack.c.h.b16 %v7698
    %v7769 = vunpack.c.l.b16 %v7699
    %v7770 = vunpack.c.h.b16 %v7699
    %v7771 = vunpack.c.l.b16 %v7700
    %v7772 = vunpack.c.h.b16 %v7700
    %v7773 = vunpack.c.l.b16 %v7701
    %v7774 = vunpack.c.h.b16 %v7701
    %v7775 = vunpack.c.l.b16 %v7702
    %v7776 = vunpack.c.h.b16 %v7702
    %v7777 = vunpack.c.l.b16 %v7703
    %v7778 = vunpack.c.h.b16 %v7703
    %v7779 = vunpack.c.l.b16 %v7704
    %v7780 = vunpack.c.h.b16 %v7704
    %v7781 = vunpack.c.l.b16 %v7705
    %v7782 = vunpack.c.h.b16 %v7705
    %v7783 = vunpack.c.l.b16 %v7706
    %v7784 = vunpack.c.h.b16 %v7706
    %v7785 = vunpack.c.l.b16 %v7707
    %v7786 = vunpack.c.h.b16 %v7707
    %v7787 = vunpack.c.l.b16 %v7708
    %v7788 = vunpack.c.h.b16 %v7708
    %v7789 = vunpack.c.l.b16 %v7709
    %v7790 = vunpack.c.h.b16 %v7709
    %v7791 = vunpack.c.l.b16 %v7710
    %v7792 = vunpack.c.h.b16 %v7710
    %v7793 = vunpack.c.l.b16 %v7711
    %v7794 = vunpack.c.h.b16 %v7711
    %v7795 = vunpack.c.l.b16 %v7712
    %v7796 = vunpack.c.h.b16 %v7712
    %v7797 = vunpack.c.l.b16 %v7713
    %v7798 = vunpack.c.h.b16 %v7713
    %v7799 = vunpack.c.l.b16 %v7714
    %v7800 = vunpack.c.h.b16 %v7714
    %v7801 = vunpack.c.l.b16 %v7715
    %v7802 = vunpack.c.h.b16 %v7715
    %v7803 = vunpack.c.l.b16 %v7716
    %v7804 = vunpack.c.h.b16 %v7716
    %v7805 = vunpack.c.l.b16 %v7717
    %v7806 = vunpack.c.h.b16 %v7717
    %v7807 = vunpack.c.l.b16 %v7718
    %v7808 = vunpack.c.h.b16 %v7718
    %v7809 = vunpack.c.l.b16 %v7719
    %v7810 = vunpack.c.h.b16 %v7719
    %v7811 = vunpack.c.l.b16 %v7720
    %v7812 = vunpack.c.h.b16 %v7720
    %v7813 = vunpack.c.l.b16 %v7721
    %v7814 = vunpack.c.h.b16 %v7721
    %v7815 = vunpack.c.l.b16 %v7722
    %v7816 = vunpack.c.h.b16 %v7722
    %v7817 = vunpack.c.l.b16 %v7723
    %v7818 = vunpack.c.h.b16 %v7723
    %v7819 = vunpack.c.l.b16 %v7724
    %v7820 = vunpack.c.h.b16 %v7724
    %v7821 = vpack.c.b16 %v7759, %v7757
    %v7822 = vpack.c.b16 %v7760, %v7758
    %v7823 = vpack.c.b16 %v7763, %v7761
    %v7824 = vpack.c.b16 %v7764, %v7762
    %v7825 = vpack.c.b16 %v7767, %v7765
    %v7826 = vpack.c.b16 %v7768, %v7766
    %v7827 = vpack.c.b16 %v7771, %v7769
    %v7828 = vpack.c.b16 %v7772, %v7770
    %v7829 = vpack.c.b16 %v7775, %v7773
    %v7830 = vpack.c.b16 %v7776, %v7774
    %v7831 = vpack.c.b16 %v7779, %v7777
    %v7832 = vpack.c.b16 %v7780, %v7778
    %v7833 = vpack.c.b16 %v7783, %v7781
    %v7834 = vpack.c.b16 %v7784, %v7782
    %v7835 = vpack.c.b16 %v7787, %v7785
    %v7836 = vpack.c.b16 %v7788, %v7786
    %v7837 = vpack.c.b16 %v7791, %v7789
    %v7838 = vpack.c.b16 %v7792, %v7790
    %v7839 = vpack.c.b16 %v7795, %v7793
    %v7840 = vpack.c.b16 %v7796, %v7794
    %v7841 = vpack.c.b16 %v7799, %v7797
    %v7842 = vpack.c.b16 %v7800, %v7798
    %v7843 = vpack.c.b16 %v7803, %v7801
    %v7844 = vpack.c.b16 %v7804, %v7802
    %v7845 = vpack.c.b16 %v7807, %v7805
    %v7846 = vpack.c.b16 %v7808, %v7806
    %v7847 = vpack.c.b16 %v7811, %v7809
    %v7848 = vpack.c.b16 %v7812, %v7810
    %v7849 = vpack.c.b16 %v7815, %v7813
    %v7850 = vpack.c.b16 %v7816, %v7814
    %v7851 = vpack.c.b16 %v7819, %v7817
    %v7852 = vpack.c.b16 %v7820, %v7818
    %7885 = vmatprep.subr.bf16.mxu0 %v7836
    %7886 = vmatpush1.bf16.msra.mxu0 %v7835
    %7887 = vmatprep.subr.bf16.mxu0 %v7834
    %7888 = vmatpush1.bf16.msra.mxu0 %v7833
    %7889 = vmatprep.subr.bf16.mxu0 %v7832
    %7890 = vmatpush1.bf16.msra.mxu0 %v7831
    %7891 = vmatprep.subr.bf16.mxu0 %v7830
    %7892 = vmatpush1.bf16.msra.mxu0 %v7829
    %7893 = vmatprep.subr.bf16.mxu0 %v7828
    %7894 = vmatpush1.bf16.msra.mxu0 %v7827
    %7895 = vmatprep.subr.bf16.mxu0 %v7826
    %7896 = vmatpush1.bf16.msra.mxu0 %v7825
    %7897 = vmatprep.subr.bf16.mxu0 %v7824
    %7898 = vmatpush1.bf16.msra.mxu0 %v7823
    %7899 = vmatprep.subr.bf16.mxu0 %v7822
    %7900 = vmatpush1.bf16.msra.mxu0 %v7821
    %7901 = vmatprep.subr.bf16.mxu0 %v7852
    %7902 = vmatpush2.bf16.msra.mxu0 %v7851
    %7903 = vmatprep.subr.bf16.mxu0 %v7850
    %7904 = vmatpush2.bf16.msra.mxu0 %v7849
    %7905 = vmatprep.subr.bf16.mxu0 %v7848
    %7906 = vmatpush2.bf16.msra.mxu0 %v7847
    %7907 = vmatprep.subr.bf16.mxu0 %v7846
    %7908 = vmatpush2.bf16.msra.mxu0 %v7845
    %7909 = vmatprep.subr.bf16.mxu0 %v7844
    %7910 = vmatpush2.bf16.msra.mxu0 %v7843
    %7911 = vmatprep.subr.bf16.mxu0 %v7842
    %7912 = vmatpush2.bf16.msra.mxu0 %v7841
    %7913 = vmatprep.subr.bf16.mxu0 %v7840
    %7914 = vmatpush2.bf16.msra.mxu0 %v7839
    %7915 = vmatprep.subr.bf16.mxu0 %v7838
    %7916 = vmatpush2.bf16.msra.mxu0 %v7837
    %7917 = vmatprep.mubr.bf16.mxu0 %v7652
    %7918 = vmatmul.mubr.bf16.gmra.mxu0 %v7651
    %v7919 = vpop.f32.mrf.mxu0
    %v7920 = vadd.f32 0.0, %v7919
    %v7921 = vpop.f32.mrf.mxu0
    %v7922 = vadd.f32 0.0, %v7921
    %v7923 = vpop.f32.mrf.mxu0
    %v7924 = vadd.f32 0.0, %v7923
    %v7925 = vpop.f32.mrf.mxu0
    %v7926 = vadd.f32 0.0, %v7925
    %7927 = vdwg.mxu0
    %v7960 = vunpack.c.l.b16 %v7661
    %v7961 = vunpack.c.h.b16 %v7661
    %v7962 = vunpack.c.l.b16 %v7662
    %v7963 = vunpack.c.h.b16 %v7662
    %v7964 = vunpack.c.l.b16 %v7663
    %v7965 = vunpack.c.h.b16 %v7663
    %v7966 = vunpack.c.l.b16 %v7664
    %v7967 = vunpack.c.h.b16 %v7664
    %v7968 = vunpack.c.l.b16 %v7665
    %v7969 = vunpack.c.h.b16 %v7665
    %v7970 = vunpack.c.l.b16 %v7666
    %v7971 = vunpack.c.h.b16 %v7666
    %v7972 = vunpack.c.l.b16 %v7667
    %v7973 = vunpack.c.h.b16 %v7667
    %v7974 = vunpack.c.l.b16 %v7668
    %v7975 = vunpack.c.h.b16 %v7668
    %v7976 = vunpack.c.l.b16 %v7669
    %v7977 = vunpack.c.h.b16 %v7669
    %v7978 = vunpack.c.l.b16 %v7670
    %v7979 = vunpack.c.h.b16 %v7670
    %v7980 = vunpack.c.l.b16 %v7671
    %v7981 = vunpack.c.h.b16 %v7671
    %v7982 = vunpack.c.l.b16 %v7672
    %v7983 = vunpack.c.h.b16 %v7672
    %v7984 = vunpack.c.l.b16 %v7673
    %v7985 = vunpack.c.h.b16 %v7673
    %v7986 = vunpack.c.l.b16 %v7674
    %v7987 = vunpack.c.h.b16 %v7674
    %v7988 = vunpack.c.l.b16 %v7675
    %v7989 = vunpack.c.h.b16 %v7675
    %v7990 = vunpack.c.l.b16 %v7676
    %v7991 = vunpack.c.h.b16 %v7676
    %v7992 = vunpack.c.l.b16 %v7677
    %v7993 = vunpack.c.h.b16 %v7677
    %v7994 = vunpack.c.l.b16 %v7678
    %v7995 = vunpack.c.h.b16 %v7678
    %v7996 = vunpack.c.l.b16 %v7679
    %v7997 = vunpack.c.h.b16 %v7679
    %v7998 = vunpack.c.l.b16 %v7680
    %v7999 = vunpack.c.h.b16 %v7680
    %v8000 = vunpack.c.l.b16 %v7681
    %v8001 = vunpack.c.h.b16 %v7681
    %v8002 = vunpack.c.l.b16 %v7682
    %v8003 = vunpack.c.h.b16 %v7682
    %v8004 = vunpack.c.l.b16 %v7683
    %v8005 = vunpack.c.h.b16 %v7683
    %v8006 = vunpack.c.l.b16 %v7684
    %v8007 = vunpack.c.h.b16 %v7684
    %v8008 = vunpack.c.l.b16 %v7685
    %v8009 = vunpack.c.h.b16 %v7685
    %v8010 = vunpack.c.l.b16 %v7686
    %v8011 = vunpack.c.h.b16 %v7686
    %v8012 = vunpack.c.l.b16 %v7687
    %v8013 = vunpack.c.h.b16 %v7687
    %v8014 = vunpack.c.l.b16 %v7688
    %v8015 = vunpack.c.h.b16 %v7688
    %v8016 = vunpack.c.l.b16 %v7689
    %v8017 = vunpack.c.h.b16 %v7689
    %v8018 = vunpack.c.l.b16 %v7690
    %v8019 = vunpack.c.h.b16 %v7690
    %v8020 = vunpack.c.l.b16 %v7691
    %v8021 = vunpack.c.h.b16 %v7691
    %v8022 = vunpack.c.l.b16 %v7692
    %v8023 = vunpack.c.h.b16 %v7692
    %v8024 = vpack.c.b16 %v7962, %v7960
    %v8025 = vpack.c.b16 %v7963, %v7961
    %v8026 = vpack.c.b16 %v7966, %v7964
    %v8027 = vpack.c.b16 %v7967, %v7965
    %v8028 = vpack.c.b16 %v7970, %v7968
    %v8029 = vpack.c.b16 %v7971, %v7969
    %v8030 = vpack.c.b16 %v7974, %v7972
    %v8031 = vpack.c.b16 %v7975, %v7973
    %v8032 = vpack.c.b16 %v7978, %v7976
    %v8033 = vpack.c.b16 %v7979, %v7977
    %v8034 = vpack.c.b16 %v7982, %v7980
    %v8035 = vpack.c.b16 %v7983, %v7981
    %v8036 = vpack.c.b16 %v7986, %v7984
    %v8037 = vpack.c.b16 %v7987, %v7985
    %v8038 = vpack.c.b16 %v7990, %v7988
    %v8039 = vpack.c.b16 %v7991, %v7989
    %v8040 = vpack.c.b16 %v7994, %v7992
    %v8041 = vpack.c.b16 %v7995, %v7993
    %v8042 = vpack.c.b16 %v7998, %v7996
    %v8043 = vpack.c.b16 %v7999, %v7997
    %v8044 = vpack.c.b16 %v8002, %v8000
    %v8045 = vpack.c.b16 %v8003, %v8001
    %v8046 = vpack.c.b16 %v8006, %v8004
    %v8047 = vpack.c.b16 %v8007, %v8005
    %v8048 = vpack.c.b16 %v8010, %v8008
    %v8049 = vpack.c.b16 %v8011, %v8009
    %v8050 = vpack.c.b16 %v8014, %v8012
    %v8051 = vpack.c.b16 %v8015, %v8013
    %v8052 = vpack.c.b16 %v8018, %v8016
    %v8053 = vpack.c.b16 %v8019, %v8017
    %v8054 = vpack.c.b16 %v8022, %v8020
    %v8055 = vpack.c.b16 %v8023, %v8021
    %8088 = vmatprep.subr.bf16.mxu0 %v8039
    %8089 = vmatpush1.bf16.msra.mxu0 %v8038
    %8090 = vmatprep.subr.bf16.mxu0 %v8037
    %8091 = vmatpush1.bf16.msra.mxu0 %v8036
    %8092 = vmatprep.subr.bf16.mxu0 %v8035
    %8093 = vmatpush1.bf16.msra.mxu0 %v8034
    %8094 = vmatprep.subr.bf16.mxu0 %v8033
    %8095 = vmatpush1.bf16.msra.mxu0 %v8032
    %8096 = vmatprep.subr.bf16.mxu0 %v8031
    %8097 = vmatpush1.bf16.msra.mxu0 %v8030
    %8098 = vmatprep.subr.bf16.mxu0 %v8029
    %8099 = vmatpush1.bf16.msra.mxu0 %v8028
    %8100 = vmatprep.subr.bf16.mxu0 %v8027
    %8101 = vmatpush1.bf16.msra.mxu0 %v8026
    %8102 = vmatprep.subr.bf16.mxu0 %v8025
    %8103 = vmatpush1.bf16.msra.mxu0 %v8024
    %8104 = vmatprep.subr.bf16.mxu0 %v8055
    %8105 = vmatpush2.bf16.msra.mxu0 %v8054
    %8106 = vmatprep.subr.bf16.mxu0 %v8053
    %8107 = vmatpush2.bf16.msra.mxu0 %v8052
    %8108 = vmatprep.subr.bf16.mxu0 %v8051
    %8109 = vmatpush2.bf16.msra.mxu0 %v8050
    %8110 = vmatprep.subr.bf16.mxu0 %v8049
    %8111 = vmatpush2.bf16.msra.mxu0 %v8048
    %8112 = vmatprep.subr.bf16.mxu0 %v8047
    %8113 = vmatpush2.bf16.msra.mxu0 %v8046
    %8114 = vmatprep.subr.bf16.mxu0 %v8045
    %8115 = vmatpush2.bf16.msra.mxu0 %v8044
    %8116 = vmatprep.subr.bf16.mxu0 %v8043
    %8117 = vmatpush2.bf16.msra.mxu0 %v8042
    %8118 = vmatprep.subr.bf16.mxu0 %v8041
    %8119 = vmatpush2.bf16.msra.mxu0 %v8040
    %8120 = vmatprep.mubr.bf16.mxu0 %v7650
    %8121 = vmatmul.mubr.bf16.gmra.mxu0 %v7649
    %v8122 = vpop.f32.mrf.mxu0
    %v8123 = vadd.f32 %v7920, %v8122
    %v8124 = vpop.f32.mrf.mxu0
    %v8125 = vadd.f32 %v7922, %v8124
    %v8126 = vpop.f32.mrf.mxu0
    %v8127 = vadd.f32 %v7924, %v8126
    %v8128 = vpop.f32.mrf.mxu0
    %v8129 = vadd.f32 %v7926, %v8128
    %8130 = vdwg.mxu0
    %v8131 = vld [vmem:[%s5 + $0x200] sm:$0xff]
    %v8132 = vld [vmem:[%s5 + $0x208] sm:$0xff]
    %v8133 = vld [vmem:[%s5 + $0x210] sm:$0xff]
    %v8134 = vld [vmem:[%s5 + $0x218] sm:$0xff]
    %v8135 = vld [vmem:[%s5 + $0x220] sm:$0xff]
    %v8136 = vld [vmem:[%s5 + $0x228] sm:$0xff]
    %v8137 = vld [vmem:[%s5 + $0x230] sm:$0xff]
    %v8138 = vld [vmem:[%s5 + $0x238] sm:$0xff]
    %v8139 = vld [vmem:[%s5 + $0x240] sm:$0xff]
    %v8140 = vld [vmem:[%s5 + $0x248] sm:$0xff]
    %v8141 = vld [vmem:[%s5 + $0x250] sm:$0xff]
    %v8142 = vld [vmem:[%s5 + $0x258] sm:$0xff]
    %v8143 = vld [vmem:[%s5 + $0x260] sm:$0xff]
    %v8144 = vld [vmem:[%s5 + $0x268] sm:$0xff]
    %v8145 = vld [vmem:[%s5 + $0x270] sm:$0xff]
    %v8146 = vld [vmem:[%s5 + $0x278] sm:$0xff]
    %v8147 = vld [vmem:[%s5 + $0x280] sm:$0xff]
    %v8148 = vld [vmem:[%s5 + $0x288] sm:$0xff]
    %v8149 = vld [vmem:[%s5 + $0x290] sm:$0xff]
    %v8150 = vld [vmem:[%s5 + $0x298] sm:$0xff]
    %v8151 = vld [vmem:[%s5 + $0x2a0] sm:$0xff]
    %v8152 = vld [vmem:[%s5 + $0x2a8] sm:$0xff]
    %v8153 = vld [vmem:[%s5 + $0x2b0] sm:$0xff]
    %v8154 = vld [vmem:[%s5 + $0x2b8] sm:$0xff]
    %v8155 = vld [vmem:[%s5 + $0x2c0] sm:$0xff]
    %v8156 = vld [vmem:[%s5 + $0x2c8] sm:$0xff]
    %v8157 = vld [vmem:[%s5 + $0x2d0] sm:$0xff]
    %v8158 = vld [vmem:[%s5 + $0x2d8] sm:$0xff]
    %v8159 = vld [vmem:[%s5 + $0x2e0] sm:$0xff]
    %v8160 = vld [vmem:[%s5 + $0x2e8] sm:$0xff]
    %v8161 = vld [vmem:[%s5 + $0x2f0] sm:$0xff]
    %v8162 = vld [vmem:[%s5 + $0x2f8] sm:$0xff]
    %v8195 = vunpack.c.l.b16 %v8131
    %v8196 = vunpack.c.h.b16 %v8131
    %v8197 = vunpack.c.l.b16 %v8132
    %v8198 = vunpack.c.h.b16 %v8132
    %v8199 = vunpack.c.l.b16 %v8133
    %v8200 = vunpack.c.h.b16 %v8133
    %v8201 = vunpack.c.l.b16 %v8134
    %v8202 = vunpack.c.h.b16 %v8134
    %v8203 = vunpack.c.l.b16 %v8135
    %v8204 = vunpack.c.h.b16 %v8135
    %v8205 = vunpack.c.l.b16 %v8136
    %v8206 = vunpack.c.h.b16 %v8136
    %v8207 = vunpack.c.l.b16 %v8137
    %v8208 = vunpack.c.h.b16 %v8137
    %v8209 = vunpack.c.l.b16 %v8138
    %v8210 = vunpack.c.h.b16 %v8138
    %v8211 = vunpack.c.l.b16 %v8139
    %v8212 = vunpack.c.h.b16 %v8139
    %v8213 = vunpack.c.l.b16 %v8140
    %v8214 = vunpack.c.h.b16 %v8140
    %v8215 = vunpack.c.l.b16 %v8141
    %v8216 = vunpack.c.h.b16 %v8141
    %v8217 = vunpack.c.l.b16 %v8142
    %v8218 = vunpack.c.h.b16 %v8142
    %v8219 = vunpack.c.l.b16 %v8143
    %v8220 = vunpack.c.h.b16 %v8143
    %v8221 = vunpack.c.l.b16 %v8144
    %v8222 = vunpack.c.h.b16 %v8144
    %v8223 = vunpack.c.l.b16 %v8145
    %v8224 = vunpack.c.h.b16 %v8145
    %v8225 = vunpack.c.l.b16 %v8146
    %v8226 = vunpack.c.h.b16 %v8146
    %v8227 = vunpack.c.l.b16 %v8147
    %v8228 = vunpack.c.h.b16 %v8147
    %v8229 = vunpack.c.l.b16 %v8148
    %v8230 = vunpack.c.h.b16 %v8148
    %v8231 = vunpack.c.l.b16 %v8149
    %v8232 = vunpack.c.h.b16 %v8149
    %v8233 = vunpack.c.l.b16 %v8150
    %v8234 = vunpack.c.h.b16 %v8150
    %v8235 = vunpack.c.l.b16 %v8151
    %v8236 = vunpack.c.h.b16 %v8151
    %v8237 = vunpack.c.l.b16 %v8152
    %v8238 = vunpack.c.h.b16 %v8152
    %v8239 = vunpack.c.l.b16 %v8153
    %v8240 = vunpack.c.h.b16 %v8153
    %v8241 = vunpack.c.l.b16 %v8154
    %v8242 = vunpack.c.h.b16 %v8154
    %v8243 = vunpack.c.l.b16 %v8155
    %v8244 = vunpack.c.h.b16 %v8155
    %v8245 = vunpack.c.l.b16 %v8156
    %v8246 = vunpack.c.h.b16 %v8156
    %v8247 = vunpack.c.l.b16 %v8157
    %v8248 = vunpack.c.h.b16 %v8157
    %v8249 = vunpack.c.l.b16 %v8158
    %v8250 = vunpack.c.h.b16 %v8158
    %v8251 = vunpack.c.l.b16 %v8159
    %v8252 = vunpack.c.h.b16 %v8159
    %v8253 = vunpack.c.l.b16 %v8160
    %v8254 = vunpack.c.h.b16 %v8160
    %v8255 = vunpack.c.l.b16 %v8161
    %v8256 = vunpack.c.h.b16 %v8161
    %v8257 = vunpack.c.l.b16 %v8162
    %v8258 = vunpack.c.h.b16 %v8162
    %v8259 = vpack.c.b16 %v8197, %v8195
    %v8260 = vpack.c.b16 %v8198, %v8196
    %v8261 = vpack.c.b16 %v8201, %v8199
    %v8262 = vpack.c.b16 %v8202, %v8200
    %v8263 = vpack.c.b16 %v8205, %v8203
    %v8264 = vpack.c.b16 %v8206, %v8204
    %v8265 = vpack.c.b16 %v8209, %v8207
    %v8266 = vpack.c.b16 %v8210, %v8208
    %v8267 = vpack.c.b16 %v8213, %v8211
    %v8268 = vpack.c.b16 %v8214, %v8212
    %v8269 = vpack.c.b16 %v8217, %v8215
    %v8270 = vpack.c.b16 %v8218, %v8216
    %v8271 = vpack.c.b16 %v8221, %v8219
    %v8272 = vpack.c.b16 %v8222, %v8220
    %v8273 = vpack.c.b16 %v8225, %v8223
    %v8274 = vpack.c.b16 %v8226, %v8224
    %v8275 = vpack.c.b16 %v8229, %v8227
    %v8276 = vpack.c.b16 %v8230, %v8228
    %v8277 = vpack.c.b16 %v8233, %v8231
    %v8278 = vpack.c.b16 %v8234, %v8232
    %v8279 = vpack.c.b16 %v8237, %v8235
    %v8280 = vpack.c.b16 %v8238, %v8236
    %v8281 = vpack.c.b16 %v8241, %v8239
    %v8282 = vpack.c.b16 %v8242, %v8240
    %v8283 = vpack.c.b16 %v8245, %v8243
    %v8284 = vpack.c.b16 %v8246, %v8244
    %v8285 = vpack.c.b16 %v8249, %v8247
    %v8286 = vpack.c.b16 %v8250, %v8248
    %v8287 = vpack.c.b16 %v8253, %v8251
    %v8288 = vpack.c.b16 %v8254, %v8252
    %v8289 = vpack.c.b16 %v8257, %v8255
    %v8290 = vpack.c.b16 %v8258, %v8256
    %8323 = vmatprep.subr.bf16.mxu0 %v8274
    %8324 = vmatpush1.bf16.msra.mxu0 %v8273
    %8325 = vmatprep.subr.bf16.mxu0 %v8272
    %8326 = vmatpush1.bf16.msra.mxu0 %v8271
    %8327 = vmatprep.subr.bf16.mxu0 %v8270
    %8328 = vmatpush1.bf16.msra.mxu0 %v8269
    %8329 = vmatprep.subr.bf16.mxu0 %v8268
    %8330 = vmatpush1.bf16.msra.mxu0 %v8267
    %8331 = vmatprep.subr.bf16.mxu0 %v8266
    %8332 = vmatpush1.bf16.msra.mxu0 %v8265
    %8333 = vmatprep.subr.bf16.mxu0 %v8264
    %8334 = vmatpush1.bf16.msra.mxu0 %v8263
    %8335 = vmatprep.subr.bf16.mxu0 %v8262
    %8336 = vmatpush1.bf16.msra.mxu0 %v8261
    %8337 = vmatprep.subr.bf16.mxu0 %v8260
    %8338 = vmatpush1.bf16.msra.mxu0 %v8259
    %8339 = vmatprep.subr.bf16.mxu0 %v8290
    %8340 = vmatpush2.bf16.msra.mxu0 %v8289
    %8341 = vmatprep.subr.bf16.mxu0 %v8288
    %8342 = vmatpush2.bf16.msra.mxu0 %v8287
    %8343 = vmatprep.subr.bf16.mxu0 %v8286
    %8344 = vmatpush2.bf16.msra.mxu0 %v8285
    %8345 = vmatprep.subr.bf16.mxu0 %v8284
    %8346 = vmatpush2.bf16.msra.mxu0 %v8283
    %8347 = vmatprep.subr.bf16.mxu0 %v8282
    %8348 = vmatpush2.bf16.msra.mxu0 %v8281
    %8349 = vmatprep.subr.bf16.mxu0 %v8280
    %8350 = vmatpush2.bf16.msra.mxu0 %v8279
    %8351 = vmatprep.subr.bf16.mxu0 %v8278
    %8352 = vmatpush2.bf16.msra.mxu0 %v8277
    %8353 = vmatprep.subr.bf16.mxu0 %v8276
    %8354 = vmatpush2.bf16.msra.mxu0 %v8275
    %8355 = vmatprep.mubr.bf16.mxu0 %v7654
    %8356 = vmatmul.mubr.bf16.gmra.mxu0 %v7653
    %v8357 = vpop.f32.mrf.mxu0
    %v8358 = vadd.f32 0.0, %v8357
    %v8359 = vpop.f32.mrf.mxu0
    %v8360 = vadd.f32 0.0, %v8359
    %v8361 = vpop.f32.mrf.mxu0
    %v8362 = vadd.f32 0.0, %v8361
    %v8363 = vpop.f32.mrf.mxu0
    %v8364 = vadd.f32 0.0, %v8363
    %8365 = vdwg.mxu0
    %v8366 = vadd.f32 %v8123, %v8358
    %v8367 = vadd.f32 %v8125, %v8360
    %v8368 = vadd.f32 %v8127, %v8362
    %v8369 = vadd.f32 %v8129, %v8364
    %v8370 = vld [vmem:[%s5 + $0x300] sm:$0xff]
    %v8371 = vld [vmem:[%s5 + $0x308] sm:$0xff]
    %v8372 = vld [vmem:[%s5 + $0x310] sm:$0xff]
    %v8373 = vld [vmem:[%s5 + $0x318] sm:$0xff]
    %v8374 = vld [vmem:[%s5 + $0x320] sm:$0xff]
    %v8375 = vld [vmem:[%s5 + $0x328] sm:$0xff]
    %v8376 = vld [vmem:[%s5 + $0x330] sm:$0xff]
    %v8377 = vld [vmem:[%s5 + $0x338] sm:$0xff]
    %v8378 = vld [vmem:[%s5 + $0x340] sm:$0xff]
    %v8379 = vld [vmem:[%s5 + $0x348] sm:$0xff]
    %v8380 = vld [vmem:[%s5 + $0x350] sm:$0xff]
    %v8381 = vld [vmem:[%s5 + $0x358] sm:$0xff]
    %v8382 = vld [vmem:[%s5 + $0x360] sm:$0xff]
    %v8383 = vld [vmem:[%s5 + $0x368] sm:$0xff]
    %v8384 = vld [vmem:[%s5 + $0x370] sm:$0xff]
    %v8385 = vld [vmem:[%s5 + $0x378] sm:$0xff]
    %v8386 = vld [vmem:[%s5 + $0x380] sm:$0xff]
    %v8387 = vld [vmem:[%s5 + $0x388] sm:$0xff]
    %v8388 = vld [vmem:[%s5 + $0x390] sm:$0xff]
    %v8389 = vld [vmem:[%s5 + $0x398] sm:$0xff]
    %v8390 = vld [vmem:[%s5 + $0x3a0] sm:$0xff]
    %v8391 = vld [vmem:[%s5 + $0x3a8] sm:$0xff]
    %v8392 = vld [vmem:[%s5 + $0x3b0] sm:$0xff]
    %v8393 = vld [vmem:[%s5 + $0x3b8] sm:$0xff]
    %v8394 = vld [vmem:[%s5 + $0x3c0] sm:$0xff]
    %v8395 = vld [vmem:[%s5 + $0x3c8] sm:$0xff]
    %v8396 = vld [vmem:[%s5 + $0x3d0] sm:$0xff]
    %v8397 = vld [vmem:[%s5 + $0x3d8] sm:$0xff]
    %v8398 = vld [vmem:[%s5 + $0x3e0] sm:$0xff]
    %v8399 = vld [vmem:[%s5 + $0x3e8] sm:$0xff]
    %v8400 = vld [vmem:[%s5 + $0x3f0] sm:$0xff]
    %v8401 = vld [vmem:[%s5 + $0x3f8] sm:$0xff]
    %v8434 = vunpack.c.l.b16 %v8370
    %v8435 = vunpack.c.h.b16 %v8370
    %v8436 = vunpack.c.l.b16 %v8371
    %v8437 = vunpack.c.h.b16 %v8371
    %v8438 = vunpack.c.l.b16 %v8372
    %v8439 = vunpack.c.h.b16 %v8372
    %v8440 = vunpack.c.l.b16 %v8373
    %v8441 = vunpack.c.h.b16 %v8373
    %v8442 = vunpack.c.l.b16 %v8374
    %v8443 = vunpack.c.h.b16 %v8374
    %v8444 = vunpack.c.l.b16 %v8375
    %v8445 = vunpack.c.h.b16 %v8375
    %v8446 = vunpack.c.l.b16 %v8376
    %v8447 = vunpack.c.h.b16 %v8376
    %v8448 = vunpack.c.l.b16 %v8377
    %v8449 = vunpack.c.h.b16 %v8377
    %v8450 = vunpack.c.l.b16 %v8378
    %v8451 = vunpack.c.h.b16 %v8378
    %v8452 = vunpack.c.l.b16 %v8379
    %v8453 = vunpack.c.h.b16 %v8379
    %v8454 = vunpack.c.l.b16 %v8380
    %v8455 = vunpack.c.h.b16 %v8380
    %v8456 = vunpack.c.l.b16 %v8381
    %v8457 = vunpack.c.h.b16 %v8381
    %v8458 = vunpack.c.l.b16 %v8382
    %v8459 = vunpack.c.h.b16 %v8382
    %v8460 = vunpack.c.l.b16 %v8383
    %v8461 = vunpack.c.h.b16 %v8383
    %v8462 = vunpack.c.l.b16 %v8384
    %v8463 = vunpack.c.h.b16 %v8384
    %v8464 = vunpack.c.l.b16 %v8385
    %v8465 = vunpack.c.h.b16 %v8385
    %v8466 = vunpack.c.l.b16 %v8386
    %v8467 = vunpack.c.h.b16 %v8386
    %v8468 = vunpack.c.l.b16 %v8387
    %v8469 = vunpack.c.h.b16 %v8387
    %v8470 = vunpack.c.l.b16 %v8388
    %v8471 = vunpack.c.h.b16 %v8388
    %v8472 = vunpack.c.l.b16 %v8389
    %v8473 = vunpack.c.h.b16 %v8389
    %v8474 = vunpack.c.l.b16 %v8390
    %v8475 = vunpack.c.h.b16 %v8390
    %v8476 = vunpack.c.l.b16 %v8391
    %v8477 = vunpack.c.h.b16 %v8391
    %v8478 = vunpack.c.l.b16 %v8392
    %v8479 = vunpack.c.h.b16 %v8392
    %v8480 = vunpack.c.l.b16 %v8393
    %v8481 = vunpack.c.h.b16 %v8393
    %v8482 = vunpack.c.l.b16 %v8394
    %v8483 = vunpack.c.h.b16 %v8394
    %v8484 = vunpack.c.l.b16 %v8395
    %v8485 = vunpack.c.h.b16 %v8395
    %v8486 = vunpack.c.l.b16 %v8396
    %v8487 = vunpack.c.h.b16 %v8396
    %v8488 = vunpack.c.l.b16 %v8397
    %v8489 = vunpack.c.h.b16 %v8397
    %v8490 = vunpack.c.l.b16 %v8398
    %v8491 = vunpack.c.h.b16 %v8398
    %v8492 = vunpack.c.l.b16 %v8399
    %v8493 = vunpack.c.h.b16 %v8399
    %v8494 = vunpack.c.l.b16 %v8400
    %v8495 = vunpack.c.h.b16 %v8400
    %v8496 = vunpack.c.l.b16 %v8401
    %v8497 = vunpack.c.h.b16 %v8401
    %v8498 = vpack.c.b16 %v8436, %v8434
    %v8499 = vpack.c.b16 %v8437, %v8435
    %v8500 = vpack.c.b16 %v8440, %v8438
    %v8501 = vpack.c.b16 %v8441, %v8439
    %v8502 = vpack.c.b16 %v8444, %v8442
    %v8503 = vpack.c.b16 %v8445, %v8443
    %v8504 = vpack.c.b16 %v8448, %v8446
    %v8505 = vpack.c.b16 %v8449, %v8447
    %v8506 = vpack.c.b16 %v8452, %v8450
    %v8507 = vpack.c.b16 %v8453, %v8451
    %v8508 = vpack.c.b16 %v8456, %v8454
    %v8509 = vpack.c.b16 %v8457, %v8455
    %v8510 = vpack.c.b16 %v8460, %v8458
    %v8511 = vpack.c.b16 %v8461, %v8459
    %v8512 = vpack.c.b16 %v8464, %v8462
    %v8513 = vpack.c.b16 %v8465, %v8463
    %v8514 = vpack.c.b16 %v8468, %v8466
    %v8515 = vpack.c.b16 %v8469, %v8467
    %v8516 = vpack.c.b16 %v8472, %v8470
    %v8517 = vpack.c.b16 %v8473, %v8471
    %v8518 = vpack.c.b16 %v8476, %v8474
    %v8519 = vpack.c.b16 %v8477, %v8475
    %v8520 = vpack.c.b16 %v8480, %v8478
    %v8521 = vpack.c.b16 %v8481, %v8479
    %v8522 = vpack.c.b16 %v8484, %v8482
    %v8523 = vpack.c.b16 %v8485, %v8483
    %v8524 = vpack.c.b16 %v8488, %v8486
    %v8525 = vpack.c.b16 %v8489, %v8487
    %v8526 = vpack.c.b16 %v8492, %v8490
    %v8527 = vpack.c.b16 %v8493, %v8491
    %v8528 = vpack.c.b16 %v8496, %v8494
    %v8529 = vpack.c.b16 %v8497, %v8495
    %8562 = vmatprep.subr.bf16.mxu0 %v8513
    %8563 = vmatpush1.bf16.msra.mxu0 %v8512
    %8564 = vmatprep.subr.bf16.mxu0 %v8511
    %8565 = vmatpush1.bf16.msra.mxu0 %v8510
    %8566 = vmatprep.subr.bf16.mxu0 %v8509
    %8567 = vmatpush1.bf16.msra.mxu0 %v8508
    %8568 = vmatprep.subr.bf16.mxu0 %v8507
    %8569 = vmatpush1.bf16.msra.mxu0 %v8506
    %8570 = vmatprep.subr.bf16.mxu0 %v8505
    %8571 = vmatpush1.bf16.msra.mxu0 %v8504
    %8572 = vmatprep.subr.bf16.mxu0 %v8503
    %8573 = vmatpush1.bf16.msra.mxu0 %v8502
    %8574 = vmatprep.subr.bf16.mxu0 %v8501
    %8575 = vmatpush1.bf16.msra.mxu0 %v8500
    %8576 = vmatprep.subr.bf16.mxu0 %v8499
    %8577 = vmatpush1.bf16.msra.mxu0 %v8498
    %8578 = vmatprep.subr.bf16.mxu0 %v8529
    %8579 = vmatpush2.bf16.msra.mxu0 %v8528
    %8580 = vmatprep.subr.bf16.mxu0 %v8527
    %8581 = vmatpush2.bf16.msra.mxu0 %v8526
    %8582 = vmatprep.subr.bf16.mxu0 %v8525
    %8583 = vmatpush2.bf16.msra.mxu0 %v8524
    %8584 = vmatprep.subr.bf16.mxu0 %v8523
    %8585 = vmatpush2.bf16.msra.mxu0 %v8522
    %8586 = vmatprep.subr.bf16.mxu0 %v8521
    %8587 = vmatpush2.bf16.msra.mxu0 %v8520
    %8588 = vmatprep.subr.bf16.mxu0 %v8519
    %8589 = vmatpush2.bf16.msra.mxu0 %v8518
    %8590 = vmatprep.subr.bf16.mxu0 %v8517
    %8591 = vmatpush2.bf16.msra.mxu0 %v8516
    %8592 = vmatprep.subr.bf16.mxu0 %v8515
    %8593 = vmatpush2.bf16.msra.mxu0 %v8514
    %8594 = vmatprep.mubr.bf16.mxu0 %v7656
    %8595 = vmatmul.mubr.bf16.gmra.mxu0 %v7655
    %v8596 = vpop.f32.mrf.mxu0
    %v8597 = vadd.f32 0.0, %v8596
    %v8598 = vpop.f32.mrf.mxu0
    %v8599 = vadd.f32 0.0, %v8598
    %v8600 = vpop.f32.mrf.mxu0
    %v8601 = vadd.f32 0.0, %v8600
    %v8602 = vpop.f32.mrf.mxu0
    %v8603 = vadd.f32 0.0, %v8602
    %8604 = vdwg.mxu0
    %v8605 = vadd.f32 %v8366, %v8597
    %v8606 = vadd.f32 %v8367, %v8599
    %v8607 = vadd.f32 %v8368, %v8601
    %v8608 = vadd.f32 %v8369, %v8603
    %v8609 = vld [vmem:[%s5 + $0x400] sm:$0xff]
    %v8610 = vld [vmem:[%s5 + $0x408] sm:$0xff]
    %v8611 = vld [vmem:[%s5 + $0x410] sm:$0xff]
    %v8612 = vld [vmem:[%s5 + $0x418] sm:$0xff]
    %v8613 = vld [vmem:[%s5 + $0x420] sm:$0xff]
    %v8614 = vld [vmem:[%s5 + $0x428] sm:$0xff]
    %v8615 = vld [vmem:[%s5 + $0x430] sm:$0xff]
    %v8616 = vld [vmem:[%s5 + $0x438] sm:$0xff]
    %v8617 = vld [vmem:[%s5 + $0x440] sm:$0xff]
    %v8618 = vld [vmem:[%s5 + $0x448] sm:$0xff]
    %v8619 = vld [vmem:[%s5 + $0x450] sm:$0xff]
    %v8620 = vld [vmem:[%s5 + $0x458] sm:$0xff]
    %v8621 = vld [vmem:[%s5 + $0x460] sm:$0xff]
    %v8622 = vld [vmem:[%s5 + $0x468] sm:$0xff]
    %v8623 = vld [vmem:[%s5 + $0x470] sm:$0xff]
    %v8624 = vld [vmem:[%s5 + $0x478] sm:$0xff]
    %v8625 = vld [vmem:[%s5 + $0x480] sm:$0xff]
    %v8626 = vld [vmem:[%s5 + $0x488] sm:$0xff]
    %v8627 = vld [vmem:[%s5 + $0x490] sm:$0xff]
    %v8628 = vld [vmem:[%s5 + $0x498] sm:$0xff]
    %v8629 = vld [vmem:[%s5 + $0x4a0] sm:$0xff]
    %v8630 = vld [vmem:[%s5 + $0x4a8] sm:$0xff]
    %v8631 = vld [vmem:[%s5 + $0x4b0] sm:$0xff]
    %v8632 = vld [vmem:[%s5 + $0x4b8] sm:$0xff]
    %v8633 = vld [vmem:[%s5 + $0x4c0] sm:$0xff]
    %v8634 = vld [vmem:[%s5 + $0x4c8] sm:$0xff]
    %v8635 = vld [vmem:[%s5 + $0x4d0] sm:$0xff]
    %v8636 = vld [vmem:[%s5 + $0x4d8] sm:$0xff]
    %v8637 = vld [vmem:[%s5 + $0x4e0] sm:$0xff]
    %v8638 = vld [vmem:[%s5 + $0x4e8] sm:$0xff]
    %v8639 = vld [vmem:[%s5 + $0x4f0] sm:$0xff]
    %v8640 = vld [vmem:[%s5 + $0x4f8] sm:$0xff]
    %v8673 = vunpack.c.l.b16 %v8609
    %v8674 = vunpack.c.h.b16 %v8609
    %v8675 = vunpack.c.l.b16 %v8610
    %v8676 = vunpack.c.h.b16 %v8610
    %v8677 = vunpack.c.l.b16 %v8611
    %v8678 = vunpack.c.h.b16 %v8611
    %v8679 = vunpack.c.l.b16 %v8612
    %v8680 = vunpack.c.h.b16 %v8612
    %v8681 = vunpack.c.l.b16 %v8613
    %v8682 = vunpack.c.h.b16 %v8613
    %v8683 = vunpack.c.l.b16 %v8614
    %v8684 = vunpack.c.h.b16 %v8614
    %v8685 = vunpack.c.l.b16 %v8615
    %v8686 = vunpack.c.h.b16 %v8615
    %v8687 = vunpack.c.l.b16 %v8616
    %v8688 = vunpack.c.h.b16 %v8616
    %v8689 = vunpack.c.l.b16 %v8617
    %v8690 = vunpack.c.h.b16 %v8617
    %v8691 = vunpack.c.l.b16 %v8618
    %v8692 = vunpack.c.h.b16 %v8618
    %v8693 = vunpack.c.l.b16 %v8619
    %v8694 = vunpack.c.h.b16 %v8619
    %v8695 = vunpack.c.l.b16 %v8620
    %v8696 = vunpack.c.h.b16 %v8620
    %v8697 = vunpack.c.l.b16 %v8621
    %v8698 = vunpack.c.h.b16 %v8621
    %v8699 = vunpack.c.l.b16 %v8622
    %v8700 = vunpack.c.h.b16 %v8622
    %v8701 = vunpack.c.l.b16 %v8623
    %v8702 = vunpack.c.h.b16 %v8623
    %v8703 = vunpack.c.l.b16 %v8624
    %v8704 = vunpack.c.h.b16 %v8624
    %v8705 = vunpack.c.l.b16 %v8625
    %v8706 = vunpack.c.h.b16 %v8625
    %v8707 = vunpack.c.l.b16 %v8626
    %v8708 = vunpack.c.h.b16 %v8626
    %v8709 = vunpack.c.l.b16 %v8627
    %v8710 = vunpack.c.h.b16 %v8627
    %v8711 = vunpack.c.l.b16 %v8628
    %v8712 = vunpack.c.h.b16 %v8628
    %v8713 = vunpack.c.l.b16 %v8629
    %v8714 = vunpack.c.h.b16 %v8629
    %v8715 = vunpack.c.l.b16 %v8630
    %v8716 = vunpack.c.h.b16 %v8630
    %v8717 = vunpack.c.l.b16 %v8631
    %v8718 = vunpack.c.h.b16 %v8631
    %v8719 = vunpack.c.l.b16 %v8632
    %v8720 = vunpack.c.h.b16 %v8632
    %v8721 = vunpack.c.l.b16 %v8633
    %v8722 = vunpack.c.h.b16 %v8633
    %v8723 = vunpack.c.l.b16 %v8634
    %v8724 = vunpack.c.h.b16 %v8634
    %v8725 = vunpack.c.l.b16 %v8635
    %v8726 = vunpack.c.h.b16 %v8635
    %v8727 = vunpack.c.l.b16 %v8636
    %v8728 = vunpack.c.h.b16 %v8636
    %v8729 = vunpack.c.l.b16 %v8637
    %v8730 = vunpack.c.h.b16 %v8637
    %v8731 = vunpack.c.l.b16 %v8638
    %v8732 = vunpack.c.h.b16 %v8638
    %v8733 = vunpack.c.l.b16 %v8639
    %v8734 = vunpack.c.h.b16 %v8639
    %v8735 = vunpack.c.l.b16 %v8640
    %v8736 = vunpack.c.h.b16 %v8640
    %v8737 = vpack.c.b16 %v8675, %v8673
    %v8738 = vpack.c.b16 %v8676, %v8674
    %v8739 = vpack.c.b16 %v8679, %v8677
    %v8740 = vpack.c.b16 %v8680, %v8678
    %v8741 = vpack.c.b16 %v8683, %v8681
    %v8742 = vpack.c.b16 %v8684, %v8682
    %v8743 = vpack.c.b16 %v8687, %v8685
    %v8744 = vpack.c.b16 %v8688, %v8686
    %v8745 = vpack.c.b16 %v8691, %v8689
    %v8746 = vpack.c.b16 %v8692, %v8690
    %v8747 = vpack.c.b16 %v8695, %v8693
    %v8748 = vpack.c.b16 %v8696, %v8694
    %v8749 = vpack.c.b16 %v8699, %v8697
    %v8750 = vpack.c.b16 %v8700, %v8698
    %v8751 = vpack.c.b16 %v8703, %v8701
    %v8752 = vpack.c.b16 %v8704, %v8702
    %v8753 = vpack.c.b16 %v8707, %v8705
    %v8754 = vpack.c.b16 %v8708, %v8706
    %v8755 = vpack.c.b16 %v8711, %v8709
    %v8756 = vpack.c.b16 %v8712, %v8710
    %v8757 = vpack.c.b16 %v8715, %v8713
    %v8758 = vpack.c.b16 %v8716, %v8714
    %v8759 = vpack.c.b16 %v8719, %v8717
    %v8760 = vpack.c.b16 %v8720, %v8718
    %v8761 = vpack.c.b16 %v8723, %v8721
    %v8762 = vpack.c.b16 %v8724, %v8722
    %v8763 = vpack.c.b16 %v8727, %v8725
    %v8764 = vpack.c.b16 %v8728, %v8726
    %v8765 = vpack.c.b16 %v8731, %v8729
    %v8766 = vpack.c.b16 %v8732, %v8730
    %v8767 = vpack.c.b16 %v8735, %v8733
    %v8768 = vpack.c.b16 %v8736, %v8734
    %8801 = vmatprep.subr.bf16.mxu0 %v8752
    %8802 = vmatpush1.bf16.msra.mxu0 %v8751
    %8803 = vmatprep.subr.bf16.mxu0 %v8750
    %8804 = vmatpush1.bf16.msra.mxu0 %v8749
    %8805 = vmatprep.subr.bf16.mxu0 %v8748
    %8806 = vmatpush1.bf16.msra.mxu0 %v8747
    %8807 = vmatprep.subr.bf16.mxu0 %v8746
    %8808 = vmatpush1.bf16.msra.mxu0 %v8745
    %8809 = vmatprep.subr.bf16.mxu0 %v8744
    %8810 = vmatpush1.bf16.msra.mxu0 %v8743
    %8811 = vmatprep.subr.bf16.mxu0 %v8742
    %8812 = vmatpush1.bf16.msra.mxu0 %v8741
    %8813 = vmatprep.subr.bf16.mxu0 %v8740
    %8814 = vmatpush1.bf16.msra.mxu0 %v8739
    %8815 = vmatprep.subr.bf16.mxu0 %v8738
    %8816 = vmatpush1.bf16.msra.mxu0 %v8737
    %8817 = vmatprep.subr.bf16.mxu0 %v8768
    %8818 = vmatpush2.bf16.msra.mxu0 %v8767
    %8819 = vmatprep.subr.bf16.mxu0 %v8766
    %8820 = vmatpush2.bf16.msra.mxu0 %v8765
    %8821 = vmatprep.subr.bf16.mxu0 %v8764
    %8822 = vmatpush2.bf16.msra.mxu0 %v8763
    %8823 = vmatprep.subr.bf16.mxu0 %v8762
    %8824 = vmatpush2.bf16.msra.mxu0 %v8761
    %8825 = vmatprep.subr.bf16.mxu0 %v8760
    %8826 = vmatpush2.bf16.msra.mxu0 %v8759
    %8827 = vmatprep.subr.bf16.mxu0 %v8758
    %8828 = vmatpush2.bf16.msra.mxu0 %v8757
    %8829 = vmatprep.subr.bf16.mxu0 %v8756
    %8830 = vmatpush2.bf16.msra.mxu0 %v8755
    %8831 = vmatprep.subr.bf16.mxu0 %v8754
    %8832 = vmatpush2.bf16.msra.mxu0 %v8753
    %8833 = vmatprep.mubr.bf16.mxu0 %v7658
    %8834 = vmatmul.mubr.bf16.gmra.mxu0 %v7657
    %v8835 = vpop.f32.mrf.mxu0
    %v8836 = vadd.f32 0.0, %v8835
    %v8837 = vpop.f32.mrf.mxu0
    %v8838 = vadd.f32 0.0, %v8837
    %v8839 = vpop.f32.mrf.mxu0
    %v8840 = vadd.f32 0.0, %v8839
    %v8841 = vpop.f32.mrf.mxu0
    %v8842 = vadd.f32 0.0, %v8841
    %8843 = vdwg.mxu0
    %v8844 = vadd.f32 %v8605, %v8836
    %v8845 = vadd.f32 %v8606, %v8838
    %v8846 = vadd.f32 %v8607, %v8840
    %v8847 = vadd.f32 %v8608, %v8842
    %v8848 = vld [vmem:[%s5 + $0x500] sm:$0xff]
    %v8849 = vld [vmem:[%s5 + $0x508] sm:$0xff]
    %v8850 = vld [vmem:[%s5 + $0x510] sm:$0xff]
    %v8851 = vld [vmem:[%s5 + $0x518] sm:$0xff]
    %v8852 = vld [vmem:[%s5 + $0x520] sm:$0xff]
    %v8853 = vld [vmem:[%s5 + $0x528] sm:$0xff]
    %v8854 = vld [vmem:[%s5 + $0x530] sm:$0xff]
    %v8855 = vld [vmem:[%s5 + $0x538] sm:$0xff]
    %v8856 = vld [vmem:[%s5 + $0x540] sm:$0xff]
    %v8857 = vld [vmem:[%s5 + $0x548] sm:$0xff]
    %v8858 = vld [vmem:[%s5 + $0x550] sm:$0xff]
    %v8859 = vld [vmem:[%s5 + $0x558] sm:$0xff]
    %v8860 = vld [vmem:[%s5 + $0x560] sm:$0xff]
    %v8861 = vld [vmem:[%s5 + $0x568] sm:$0xff]
    %v8862 = vld [vmem:[%s5 + $0x570] sm:$0xff]
    %v8863 = vld [vmem:[%s5 + $0x578] sm:$0xff]
    %v8864 = vld [vmem:[%s5 + $0x580] sm:$0xff]
    %v8865 = vld [vmem:[%s5 + $0x588] sm:$0xff]
    %v8866 = vld [vmem:[%s5 + $0x590] sm:$0xff]
    %v8867 = vld [vmem:[%s5 + $0x598] sm:$0xff]
    %v8868 = vld [vmem:[%s5 + $0x5a0] sm:$0xff]
    %v8869 = vld [vmem:[%s5 + $0x5a8] sm:$0xff]
    %v8870 = vld [vmem:[%s5 + $0x5b0] sm:$0xff]
    %v8871 = vld [vmem:[%s5 + $0x5b8] sm:$0xff]
    %v8872 = vld [vmem:[%s5 + $0x5c0] sm:$0xff]
    %v8873 = vld [vmem:[%s5 + $0x5c8] sm:$0xff]
    %v8874 = vld [vmem:[%s5 + $0x5d0] sm:$0xff]
    %v8875 = vld [vmem:[%s5 + $0x5d8] sm:$0xff]
    %v8876 = vld [vmem:[%s5 + $0x5e0] sm:$0xff]
    %v8877 = vld [vmem:[%s5 + $0x5e8] sm:$0xff]
    %v8878 = vld [vmem:[%s5 + $0x5f0] sm:$0xff]
    %v8879 = vld [vmem:[%s5 + $0x5f8] sm:$0xff]
    %v8912 = vunpack.c.l.b16 %v8848
    %v8913 = vunpack.c.h.b16 %v8848
    %v8914 = vunpack.c.l.b16 %v8849
    %v8915 = vunpack.c.h.b16 %v8849
    %v8916 = vunpack.c.l.b16 %v8850
    %v8917 = vunpack.c.h.b16 %v8850
    %v8918 = vunpack.c.l.b16 %v8851
    %v8919 = vunpack.c.h.b16 %v8851
    %v8920 = vunpack.c.l.b16 %v8852
    %v8921 = vunpack.c.h.b16 %v8852
    %v8922 = vunpack.c.l.b16 %v8853
    %v8923 = vunpack.c.h.b16 %v8853
    %v8924 = vunpack.c.l.b16 %v8854
    %v8925 = vunpack.c.h.b16 %v8854
    %v8926 = vunpack.c.l.b16 %v8855
    %v8927 = vunpack.c.h.b16 %v8855
    %v8928 = vunpack.c.l.b16 %v8856
    %v8929 = vunpack.c.h.b16 %v8856
    %v8930 = vunpack.c.l.b16 %v8857
    %v8931 = vunpack.c.h.b16 %v8857
    %v8932 = vunpack.c.l.b16 %v8858
    %v8933 = vunpack.c.h.b16 %v8858
    %v8934 = vunpack.c.l.b16 %v8859
    %v8935 = vunpack.c.h.b16 %v8859
    %v8936 = vunpack.c.l.b16 %v8860
    %v8937 = vunpack.c.h.b16 %v8860
    %v8938 = vunpack.c.l.b16 %v8861
    %v8939 = vunpack.c.h.b16 %v8861
    %v8940 = vunpack.c.l.b16 %v8862
    %v8941 = vunpack.c.h.b16 %v8862
    %v8942 = vunpack.c.l.b16 %v8863
    %v8943 = vunpack.c.h.b16 %v8863
    %v8944 = vunpack.c.l.b16 %v8864
    %v8945 = vunpack.c.h.b16 %v8864
    %v8946 = vunpack.c.l.b16 %v8865
    %v8947 = vunpack.c.h.b16 %v8865
    %v8948 = vunpack.c.l.b16 %v8866
    %v8949 = vunpack.c.h.b16 %v8866
    %v8950 = vunpack.c.l.b16 %v8867
    %v8951 = vunpack.c.h.b16 %v8867
    %v8952 = vunpack.c.l.b16 %v8868
    %v8953 = vunpack.c.h.b16 %v8868
    %v8954 = vunpack.c.l.b16 %v8869
    %v8955 = vunpack.c.h.b16 %v8869
    %v8956 = vunpack.c.l.b16 %v8870
    %v8957 = vunpack.c.h.b16 %v8870
    %v8958 = vunpack.c.l.b16 %v8871
    %v8959 = vunpack.c.h.b16 %v8871
    %v8960 = vunpack.c.l.b16 %v8872
    %v8961 = vunpack.c.h.b16 %v8872
    %v8962 = vunpack.c.l.b16 %v8873
    %v8963 = vunpack.c.h.b16 %v8873
    %v8964 = vunpack.c.l.b16 %v8874
    %v8965 = vunpack.c.h.b16 %v8874
    %v8966 = vunpack.c.l.b16 %v8875
    %v8967 = vunpack.c.h.b16 %v8875
    %v8968 = vunpack.c.l.b16 %v8876
    %v8969 = vunpack.c.h.b16 %v8876
    %v8970 = vunpack.c.l.b16 %v8877
    %v8971 = vunpack.c.h.b16 %v8877
    %v8972 = vunpack.c.l.b16 %v8878
    %v8973 = vunpack.c.h.b16 %v8878
    %v8974 = vunpack.c.l.b16 %v8879
    %v8975 = vunpack.c.h.b16 %v8879
    %v8976 = vpack.c.b16 %v8914, %v8912
    %v8977 = vpack.c.b16 %v8915, %v8913
    %v8978 = vpack.c.b16 %v8918, %v8916
    %v8979 = vpack.c.b16 %v8919, %v8917
    %v8980 = vpack.c.b16 %v8922, %v8920
    %v8981 = vpack.c.b16 %v8923, %v8921
    %v8982 = vpack.c.b16 %v8926, %v8924
    %v8983 = vpack.c.b16 %v8927, %v8925
    %v8984 = vpack.c.b16 %v8930, %v8928
    %v8985 = vpack.c.b16 %v8931, %v8929
    %v8986 = vpack.c.b16 %v8934, %v8932
    %v8987 = vpack.c.b16 %v8935, %v8933
    %v8988 = vpack.c.b16 %v8938, %v8936
    %v8989 = vpack.c.b16 %v8939, %v8937
    %v8990 = vpack.c.b16 %v8942, %v8940
    %v8991 = vpack.c.b16 %v8943, %v8941
    %v8992 = vpack.c.b16 %v8946, %v8944
    %v8993 = vpack.c.b16 %v8947, %v8945
    %v8994 = vpack.c.b16 %v8950, %v8948
    %v8995 = vpack.c.b16 %v8951, %v8949
    %v8996 = vpack.c.b16 %v8954, %v8952
    %v8997 = vpack.c.b16 %v8955, %v8953
    %v8998 = vpack.c.b16 %v8958, %v8956
    %v8999 = vpack.c.b16 %v8959, %v8957
    %v9000 = vpack.c.b16 %v8962, %v8960
    %v9001 = vpack.c.b16 %v8963, %v8961
    %v9002 = vpack.c.b16 %v8966, %v8964
    %v9003 = vpack.c.b16 %v8967, %v8965
    %v9004 = vpack.c.b16 %v8970, %v8968
    %v9005 = vpack.c.b16 %v8971, %v8969
    %v9006 = vpack.c.b16 %v8974, %v8972
    %v9007 = vpack.c.b16 %v8975, %v8973
    %9040 = vmatprep.subr.bf16.mxu0 %v8991
    %9041 = vmatpush1.bf16.msra.mxu0 %v8990
    %9042 = vmatprep.subr.bf16.mxu0 %v8989
    %9043 = vmatpush1.bf16.msra.mxu0 %v8988
    %9044 = vmatprep.subr.bf16.mxu0 %v8987
    %9045 = vmatpush1.bf16.msra.mxu0 %v8986
    %9046 = vmatprep.subr.bf16.mxu0 %v8985
    %9047 = vmatpush1.bf16.msra.mxu0 %v8984
    %9048 = vmatprep.subr.bf16.mxu0 %v8983
    %9049 = vmatpush1.bf16.msra.mxu0 %v8982
    %9050 = vmatprep.subr.bf16.mxu0 %v8981
    %9051 = vmatpush1.bf16.msra.mxu0 %v8980
    %9052 = vmatprep.subr.bf16.mxu0 %v8979
    %9053 = vmatpush1.bf16.msra.mxu0 %v8978
    %9054 = vmatprep.subr.bf16.mxu0 %v8977
    %9055 = vmatpush1.bf16.msra.mxu0 %v8976
    %9056 = vmatprep.subr.bf16.mxu0 %v9007
    %9057 = vmatpush2.bf16.msra.mxu0 %v9006
    %9058 = vmatprep.subr.bf16.mxu0 %v9005
    %9059 = vmatpush2.bf16.msra.mxu0 %v9004
    %9060 = vmatprep.subr.bf16.mxu0 %v9003
    %9061 = vmatpush2.bf16.msra.mxu0 %v9002
    %9062 = vmatprep.subr.bf16.mxu0 %v9001
    %9063 = vmatpush2.bf16.msra.mxu0 %v9000
    %9064 = vmatprep.subr.bf16.mxu0 %v8999
    %9065 = vmatpush2.bf16.msra.mxu0 %v8998
    %9066 = vmatprep.subr.bf16.mxu0 %v8997
    %9067 = vmatpush2.bf16.msra.mxu0 %v8996
    %9068 = vmatprep.subr.bf16.mxu0 %v8995
    %9069 = vmatpush2.bf16.msra.mxu0 %v8994
    %9070 = vmatprep.subr.bf16.mxu0 %v8993
    %9071 = vmatpush2.bf16.msra.mxu0 %v8992
    %9072 = vmatprep.mubr.bf16.mxu0 %v7660
    %9073 = vmatmul.mubr.bf16.gmra.mxu0 %v7659
    %v9074 = vpop.f32.mrf.mxu0
    %v9075 = vadd.f32 0.0, %v9074
    %v9076 = vpop.f32.mrf.mxu0
    %v9077 = vadd.f32 0.0, %v9076
    %v9078 = vpop.f32.mrf.mxu0
    %v9079 = vadd.f32 0.0, %v9078
    %v9080 = vpop.f32.mrf.mxu0
    %v9081 = vadd.f32 0.0, %v9080
    %9082 = vdwg.mxu0
    %v9083 = vadd.f32 %v8844, %v9075
    %v9084 = vadd.f32 %v8845, %v9077
    %v9085 = vadd.f32 %v8846, %v9079
    %v9086 = vadd.f32 %v8847, %v9081
    %v9087 = vld [vmem:[#allocation9] sm:$0x3]
    %v9089 = vlaneseq
    %v9090 = vshrl.u32 %v9089, 7
    %v9091 = vsub.s32 0, %v9090
    %v9092 = vrot.slane %v9087, %v9091
    %v9093 = vlaneseq
    %v9094 = vshrl.u32 %v9093, 7
    %v9095 = vsub.s32 1, %v9094
    %v9096 = vrot.slane %v9087, %v9095
    %v9099 = vadd.f32 %v9083, %v9092
    %v9100 = vadd.f32 %v9084, %v9096
    %v9101 = vadd.f32 %v9085, %v9092
    %v9102 = vadd.f32 %v9086, %v9096
    %v9103 = vmax.f32 %v9099, 0.0
    %v9104 = vmax.f32 %v9100, 0.0
    %v9105 = vmax.f32 %v9101, 0.0
    %v9106 = vmax.f32 %v9102, 0.0
    %v9107 = vpack.c.bf16 %v9105, %v9103
    %v9108 = vpack.c.bf16 %v9106, %v9104
    %v9109 = vld [vmem:[#allocation10] sm:$0xf]
    %v9110 = vld [vmem:[#allocation10 + $0x4] sm:$0xf]
    %v9111 = vld [vmem:[#allocation10 + $0x8] sm:$0xf]
    %v9112 = vld [vmem:[#allocation10 + $0xc] sm:$0xf]
    %v9113 = vld [vmem:[#allocation10 + $0x10] sm:$0xf]
    %v9114 = vld [vmem:[#allocation10 + $0x14] sm:$0xf]
    %v9115 = vld [vmem:[#allocation10 + $0x18] sm:$0xf]
    %v9116 = vld [vmem:[#allocation10 + $0x1c] sm:$0xf]
    %v9117 = vld [vmem:[#allocation10 + $0x20] sm:$0xf]
    %v9118 = vld [vmem:[#allocation10 + $0x24] sm:$0xf]
    %v9119 = vld [vmem:[#allocation10 + $0x28] sm:$0xf]
    %v9120 = vld [vmem:[#allocation10 + $0x2c] sm:$0xf]
    %v9121 = vld [vmem:[#allocation10 + $0x30] sm:$0xf]
    %v9122 = vld [vmem:[#allocation10 + $0x34] sm:$0xf]
    %v9123 = vld [vmem:[#allocation10 + $0x38] sm:$0xf]
    %v9124 = vld [vmem:[#allocation10 + $0x3c] sm:$0xf]
    %v9125 = vld [vmem:[#allocation10 + $0x40] sm:$0xf]
    %v9126 = vld [vmem:[#allocation10 + $0x44] sm:$0xf]
    %v9127 = vld [vmem:[#allocation10 + $0x48] sm:$0xf]
    %v9128 = vld [vmem:[#allocation10 + $0x4c] sm:$0xf]
    %v9129 = vld [vmem:[#allocation10 + $0x50] sm:$0xf]
    %v9130 = vld [vmem:[#allocation10 + $0x54] sm:$0xf]
    %v9131 = vld [vmem:[#allocation10 + $0x58] sm:$0xf]
    %v9132 = vld [vmem:[#allocation10 + $0x5c] sm:$0xf]
    %v9133 = vld [vmem:[#allocation10 + $0x60] sm:$0xf]
    %v9134 = vld [vmem:[#allocation10 + $0x64] sm:$0xf]
    %v9135 = vld [vmem:[#allocation10 + $0x68] sm:$0xf]
    %v9136 = vld [vmem:[#allocation10 + $0x6c] sm:$0xf]
    %v9137 = vld [vmem:[#allocation10 + $0x70] sm:$0xf]
    %v9138 = vld [vmem:[#allocation10 + $0x74] sm:$0xf]
    %v9139 = vld [vmem:[#allocation10 + $0x78] sm:$0xf]
    %v9140 = vld [vmem:[#allocation10 + $0x7c] sm:$0xf]
    %v9141 = vld [vmem:[#allocation12] sm:$0x1]
    %v9143 = vlaneseq
    %v9144 = vshrl.u32 %v9143, 7
    %v9145 = vsub.s32 0, %v9144
    %v9146 = vrot.slane %v9141, %v9145
    %v9180 = vunpack.c.l.b16 %v9109
    %v9181 = vunpack.c.l.b16 %v9110
    %v9182 = vunpack.c.l.b16 %v9111
    %v9183 = vunpack.c.l.b16 %v9112
    %v9184 = vunpack.c.l.b16 %v9113
    %v9185 = vunpack.c.l.b16 %v9114
    %v9186 = vunpack.c.l.b16 %v9115
    %v9187 = vunpack.c.l.b16 %v9116
    %v9188 = vunpack.c.l.b16 %v9117
    %v9189 = vunpack.c.l.b16 %v9118
    %v9190 = vunpack.c.l.b16 %v9119
    %v9191 = vunpack.c.l.b16 %v9120
    %v9192 = vunpack.c.l.b16 %v9121
    %v9193 = vunpack.c.l.b16 %v9122
    %v9194 = vunpack.c.l.b16 %v9123
    %v9195 = vunpack.c.l.b16 %v9124
    %v9196 = vunpack.c.l.b16 %v9125
    %v9197 = vunpack.c.l.b16 %v9126
    %v9198 = vunpack.c.l.b16 %v9127
    %v9199 = vunpack.c.l.b16 %v9128
    %v9200 = vunpack.c.l.b16 %v9129
    %v9201 = vunpack.c.l.b16 %v9130
    %v9202 = vunpack.c.l.b16 %v9131
    %v9203 = vunpack.c.l.b16 %v9132
    %v9204 = vunpack.c.l.b16 %v9133
    %v9205 = vunpack.c.l.b16 %v9134
    %v9206 = vunpack.c.l.b16 %v9135
    %v9207 = vunpack.c.l.b16 %v9136
    %v9208 = vunpack.c.l.b16 %v9137
    %v9209 = vunpack.c.l.b16 %v9138
    %v9210 = vunpack.c.l.b16 %v9139
    %v9211 = vunpack.c.l.b16 %v9140
    %v9212 = vpack.c.b16 %v9181, %v9180
    %v9213 = vpack.c.b16 %v9183, %v9182
    %v9214 = vpack.c.b16 %v9185, %v9184
    %v9215 = vpack.c.b16 %v9187, %v9186
    %v9216 = vpack.c.b16 %v9189, %v9188
    %v9217 = vpack.c.b16 %v9191, %v9190
    %v9218 = vpack.c.b16 %v9193, %v9192
    %v9219 = vpack.c.b16 %v9195, %v9194
    %v9220 = vpack.c.b16 %v9197, %v9196
    %v9221 = vpack.c.b16 %v9199, %v9198
    %v9222 = vpack.c.b16 %v9201, %v9200
    %v9223 = vpack.c.b16 %v9203, %v9202
    %v9224 = vpack.c.b16 %v9205, %v9204
    %v9225 = vpack.c.b16 %v9207, %v9206
    %v9226 = vpack.c.b16 %v9209, %v9208
    %v9227 = vpack.c.b16 %v9211, %v9210
    %9244 = vmatprep.subr.bf16.mxu0 0
    %9245 = vmatpush1.bf16.msra.mxu0 %v9219
    %9246 = vmatprep.subr.bf16.mxu0 0
    %9247 = vmatpush1.bf16.msra.mxu0 %v9218
    %9248 = vmatprep.subr.bf16.mxu0 0
    %9249 = vmatpush1.bf16.msra.mxu0 %v9217
    %9250 = vmatprep.subr.bf16.mxu0 0
    %9251 = vmatpush1.bf16.msra.mxu0 %v9216
    %9252 = vmatprep.subr.bf16.mxu0 0
    %9253 = vmatpush1.bf16.msra.mxu0 %v9215
    %9254 = vmatprep.subr.bf16.mxu0 0
    %9255 = vmatpush1.bf16.msra.mxu0 %v9214
    %9256 = vmatprep.subr.bf16.mxu0 0
    %9257 = vmatpush1.bf16.msra.mxu0 %v9213
    %9258 = vmatprep.subr.bf16.mxu0 0
    %9259 = vmatpush1.bf16.msra.mxu0 %v9212
    %9260 = vmatprep.subr.bf16.mxu0 0
    %9261 = vmatpush2.bf16.msra.mxu0 %v9227
    %9262 = vmatprep.subr.bf16.mxu0 0
    %9263 = vmatpush2.bf16.msra.mxu0 %v9226
    %9264 = vmatprep.subr.bf16.mxu0 0
    %9265 = vmatpush2.bf16.msra.mxu0 %v9225
    %9266 = vmatprep.subr.bf16.mxu0 0
    %9267 = vmatpush2.bf16.msra.mxu0 %v9224
    %9268 = vmatprep.subr.bf16.mxu0 0
    %9269 = vmatpush2.bf16.msra.mxu0 %v9223
    %9270 = vmatprep.subr.bf16.mxu0 0
    %9271 = vmatpush2.bf16.msra.mxu0 %v9222
    %9272 = vmatprep.subr.bf16.mxu0 0
    %9273 = vmatpush2.bf16.msra.mxu0 %v9221
    %9274 = vmatprep.subr.bf16.mxu0 0
    %9275 = vmatpush2.bf16.msra.mxu0 %v9220
    %9276 = vmatprep.mubr.bf16.mxu0 %v9108
    %9277 = vmatmul.mubr.bf16.gmra.mxu0 %v9107
    %v9278 = vpop.f32.mrf.mxu0
    %v9279 = vadd.f32 %v9146, %v9278
    %v9280 = vpop.f32.mrf.mxu0
    %v9281 = vpop.f32.mrf.mxu0
    %v9282 = vadd.f32 %v9146, %v9281
    %v9283 = vpop.f32.mrf.mxu0
    %9284 = vdwg.mxu0
    %9285 = vst [vmem:[%s9] sm:$0xff] %v9279
    %9286 = vst [vmem:[%s9 + $0x8] sm:$0xff] %v9282
    // Predicated region
    $region66: #{cnn_forward.1} parent=1 // pred_check
      _
    $region67: #{cnn_forward.1} parent=1 // pred_check_branch
      %9288 = sbr.rel (0) target = $region69
    $region68: #{cnn_forward.1} parent=1 // pred_region
      _
    $region69: #{cnn_forward.1} parent=1 // pred_fallthru
      _
    // Predicated region
    $region70: #{cnn_forward.1} parent=1 // pred_check
      _
    $region71: #{cnn_forward.1} parent=1 // pred_check_branch
      %9290 = sbr.rel (0) target = $region73
    $region72: #{cnn_forward.1} parent=1 // pred_region
      _
    $region73: #{cnn_forward.1} parent=1 // pred_fallthru
      _
    %9291 = vsyncpa [#allocation3], 1
    %9292 = vsyncpa [#allocation5], 1
    %9293 = vsyncpa [#allocation8], 1
    %9294 = vsyncpa [#allocation11], 1

</llo_original>
